<compile_context>
chip_gen: v5e
topology: v5e:2x2
jax: 0.10.0
libtpu: 0.0.40
codegen_flags: <defaults>
</compile_context>

<pallas_src>
import math
import functools
import numpy as np

import jax
import jax.numpy as jnp
from jax import lax
from jax.experimental import pallas as pl
from jax.experimental.pallas import tpu as pltpu


# ---------------------------------------------------------------------------
# Config (small, consistent with the module's shape relations)
# ---------------------------------------------------------------------------
class CFG:
    num_points = 8            # n_offsets
    sample_points = 4
    num_priors = 32
    prior_feat_channels = 8
    fc_hidden_dim = 8         # == prior_feat_channels (required by ROIGather residual)
    num_fc = 2
    refine_layers = 3
    img_w = 64
    img_h = 32


# ---------------------------------------------------------------------------
# Slab packer: many tiny f32 constants -> one (rows, 128) array, one DMA
# ---------------------------------------------------------------------------
class _Slab:
    WIDTH = 128

    def __init__(self):
        self._chunks = []
        self._offs = {}
        self._row = 0

    def add(self, name, arr):
        arr = np.asarray(arr, dtype=np.float32)
        if arr.ndim == 1:
            arr = arr[None, :]
        nr, nc = arr.shape
        assert nc <= self.WIDTH, (name, arr.shape)
        pad = np.zeros((nr, self.WIDTH), np.float32)
        pad[:, :nc] = arr
        self._offs[name] = (self._row, nr, nc)
        self._chunks.append(pad)
        self._row += nr
        rem = (-self._row) % 8          # keep every entry 8-row aligned
        if rem:
            self._chunks.append(np.zeros((rem, self.WIDTH), np.float32))
            self._row += rem

    def build(self):
        return np.concatenate(self._chunks, axis=0), dict(self._offs)


# ---------------------------------------------------------------------------
# Fused kernel: pool (separable bilinear + fc) -> ROIGather core -> heads, x3 stages
# ---------------------------------------------------------------------------
def _clr_fused_kernel(f0c_ref, f1c_ref, f2c_ref, f0r_ref, f1r_ref, f2r_ref,
                      slab_ref, apool_ref, pred_ref,
                      *, offs, a_offs, spatial, idx_rev, dims, img_w, img_h):
    # f{k}c_ref : (1, C, H_k*W_k) bf16   (attention layout)
    # f{k}r_ref : (1, C*H_k, W_k) bf16   (pooling layout)
    # slab_ref  : (R, 128) f32           apool_ref : (sum S*C*H_k, h) bf16
    C, S, P, n, h = dims
    inv_w1 = 1.0 / (img_w - 1.0)
    feats_cf = (f0c_ref, f1c_ref, f2c_ref)
    feats_rw = (f0r_ref, f1r_ref, f2r_ref)

    def ld(name):
        r, nr, nc = offs[name]
        return slab_ref[pl.ds(r, nr), pl.ds(0, nc)]

    # Shared constants (one slab load each; static slices are cheap VMEM reads).
    priors0 = ld('priors')                       # (P, 6+n)
    ys_row = ld('prior_ys')                      # (1, n)
    w_iota = ld('w_iota')                        # (1, 128)
    bfc, ln_g, ln_b = ld('bfc'), ld('ln_g'), ld('ln_b')
    wkv = ld('wkv').astype(jnp.bfloat16)         # (2C, C)  fused [f_key | f_value]
    bk, bv = ld('bk'), ld('bv')                  # (C, 1)
    wq, bq, wo, bo = ld('wq'), ld('bq'), ld('wo'), ld('bo')   # (P, 1)
    w1, b1 = ld('w1'), ld('b1')
    w2, b2 = ld('w2'), ld('b2')
    w3, b3 = ld('w3'), ld('b3')

    p_c2 = priors0[:, 2:3]
    p_c3 = priors0[:, 3:4]
    p_c4 = priors0[:, 4:5]
    p_geo = priors0[:, 6:]                       # (P, n)

    n_stages = len(spatial)
    for stage in range(n_stages):                # static unroll (shapes differ per stage)
        H, W = spatial[stage]
        feat_rw = feats_rw[stage][0]             # (C*H, W)  bf16
        feat_cf = feats_cf[stage][0]             # (C, H*W)  bf16

        # ---- pool_prior_features (separable bilinear) fused with ROIGather.fc ----
        # x-weights only over W; y-weights + fc weight are folded into apool constants.
        xs = jnp.concatenate([p_geo[:, c:c + 1] for c in idx_rev], axis=0)     # (S*P, 1)
        wx = jnp.maximum(0.0, 1.0 - jnp.abs(xs * (W - 1.0) - w_iota[:, :W]))   # (S*P, W)
        tmp = lax.dot_general(wx.astype(jnp.bfloat16), feat_rw,
                              (((1,), (1,)), ((), ())),
                              preferred_element_type=jnp.float32)              # (S*P, C*H)
        roi = bfc
        for s in range(S):
            a_s = apool_ref[pl.ds(a_offs[stage][s], C * H), :]                 # (C*H, h) bf16
            t_s = tmp[s * P:(s + 1) * P, :].astype(jnp.bfloat16)               # (P, C*H)
            roi = roi + jnp.dot(t_s, a_s, preferred_element_type=jnp.float32)  # (P, h)

        # fc_norm (single-pass LayerNorm) + ReLU
        mu = jnp.mean(roi, axis=-1, keepdims=True)
        msq = jnp.mean(roi * roi, axis=-1, keepdims=True)
        roi = (roi - mu) * lax.rsqrt(msq - mu * mu + 1e-5) * ln_g + ln_b
        roi = jnp.maximum(roi, 0.0)                                            # (P, h)

        # ---- ROIGather attention core ----
        kv = jnp.dot(wkv, feat_cf, preferred_element_type=jnp.float32)         # (2C, HW)
        key = jnp.maximum(kv[:C, :] + bk, 0.0)                                 # f_key (+BN+ReLU folded)
        value = kv[C:, :] + bv                                                 # f_value
        query = jnp.maximum(roi * wq + bq, 0.0)                                # f_query (per-prior grouped conv)
        sim = lax.dot_general(query.astype(jnp.bfloat16), key.astype(jnp.bfloat16),
                              (((1,), (0,)), ((), ())),
                              preferred_element_type=jnp.float32)              # (P, HW)
        sim = sim * (float(C) ** -0.5)
        sim = sim - jnp.max(sim, axis=-1, keepdims=True)
        e = jnp.exp(sim)
        att = e * pl.reciprocal(jnp.sum(e, axis=-1, keepdims=True), approx=True)
        ctx = lax.dot_general(att.astype(jnp.bfloat16), value.astype(jnp.bfloat16),
                              (((1,), (1,)), ((), ())),
                              preferred_element_type=jnp.float32)              # (P, C)
        ctx = ctx * wo + bo                                                    # ROIGather.W (zero-init)
        fcf = roi + jnp.maximum(ctx, 0.0)                                      # (P, h)

        # ---- fused cls|reg FC stacks + heads (block-diagonal weights, f32) ----
        x1 = jnp.maximum(jnp.dot(fcf, w1, preferred_element_type=jnp.float32) + b1, 0.0)
        x2 = jnp.maximum(jnp.dot(x1, w2, preferred_element_type=jnp.float32) + b2, 0.0)
        out = jnp.dot(x2, w3, preferred_element_type=jnp.float32) + b3          # (P, 2+n+4)

        cls = out[:, 0:2]
        reg = out[:, 2:]
        c2 = p_c2 + reg[:, 0:1]      # start_y
        c3 = p_c3 + reg[:, 1:2]      # start_x
        c4 = p_c4 + reg[:, 2:3]      # theta
        c5 = reg[:, 3:4]             # length
        ang = c4 * math.pi + 1e-5
        cot = jnp.cos(ang) / jnp.sin(ang)     # exact divide: feeds next-stage priors
        geo = (c3 * (img_w - 1.0) + (1.0 - ys_row - c2) * img_h * cot) * inv_w1  # (P, n)

        if stage == n_stages - 1:
            pred_ref[0] = jnp.concatenate([cls, c2, c3, c4, c5, geo + reg[:, 4:]], axis=-1)
        else:
            # prediction_lines become next-stage priors (cols 0:2 and 5 never read downstream)
            p_c2, p_c3, p_c4, p_geo = c2, c3, c4, geo


# ---------------------------------------------------------------------------
# Buffers (deterministic, matching __init__ logic)
# ---------------------------------------------------------------------------
def init_buffers(cfg):
    n_offsets = cfg.num_points
    n_strips = n_offsets - 1
    S, P = cfg.sample_points, cfg.num_priors

    sample_x_indexs = (np.linspace(0, 1, S, dtype=np.float32) * n_strips).astype(np.int64)
    prior_feat_ys = np.flip(1.0 - sample_x_indexs.astype(np.float32) / n_strips, axis=-1).copy()
    prior_ys = np.linspace(1, 0, n_offsets, dtype=np.float32)

    # _init_prior_embeddings
    emb = np.zeros((P, 3), np.float32)
    bottom = P * 3 // 4
    left = P // 8
    strip_size = 0.5 / (left // 2 - 1)
    bottom_strip_size = 1.0 / (bottom // 4 + 1)
    for i in range(left):
        emb[i] = [(i // 2) * strip_size, 0.0, 0.16 if i % 2 == 0 else 0.32]
    for i in range(left, left + bottom):
        emb[i] = [0.0, ((i - left) // 4 + 1) * bottom_strip_size, 0.2 * (i % 4 + 1)]
    for i in range(left + bottom, P):
        emb[i] = [((i - left - bottom) // 2) * strip_size, 1.0, 0.68 if i % 2 == 0 else 0.84]

    # generate_priors_from_embeddings
    priors = np.zeros((P, 6 + n_offsets), np.float32)
    priors[:, 2:5] = emb
    priors[:, 6:] = (priors[:, 3:4] * (cfg.img_w - 1) +
                     (1.0 - prior_ys[None, :] - priors[:, 2:3]) * cfg.img_h /
                     np.tan(priors[:, 4:5] * math.pi + 1e-5)) / (cfg.img_w - 1)

    return dict(sample_x_indexs=sample_x_indexs,
                prior_feat_ys=prior_feat_ys,
                prior_ys=prior_ys,
                priors=priors)


def init_params(cfg, key):
    C, h = cfg.prior_feat_channels, cfg.fc_hidden_dim
    assert h == C, "ROIGather residual requires fc_hidden_dim == prior_feat_channels"
    S, P, n = cfg.sample_points, cfg.num_priors, cfg.num_points
    keys = jax.random.split(key, 24)
    it = iter(keys)

    def nrm(shape, std=0.05):
        return jax.random.normal(next(it), shape, jnp.float32) * std

    roi = dict(
        wfc=nrm((C * S, h)),                    # ROIGather.fc, PyTorch row order = c*S + s
        bfc=nrm((1, h)),
        ln_g=jnp.ones((1, h), jnp.float32), ln_b=jnp.zeros((1, h), jnp.float32),
        wkv=nrm((2 * C, C)),                    # fused [f_key conv(+BN) | f_value conv]
        bk=nrm((C, 1)), bv=nrm((C, 1)),
        wq=nrm((P, 1)), bq=nrm((P, 1)),         # f_query: grouped per-prior 1x1 conv
        wo=jnp.zeros((P, 1), jnp.float32), bo=jnp.zeros((P, 1), jnp.float32),  # ROIGather.W zero-init
    )

    # Independent cls / reg FC stacks (LinearModule x2 + heads), fused block-diagonally.
    wc1, bc1 = nrm((h, h)), nrm((1, h))
    wc2, bc2 = nrm((h, h)), nrm((1, h))
    wcls, bcls = nrm((h, 2), 0.001), nrm((1, 2), 0.001)        # init_weights: std=0.001
    wr1, br1 = nrm((h, h)), nrm((1, h))
    wr2, br2 = nrm((h, h)), nrm((1, h))
    wreg, breg = nrm((h, n + 4), 0.001), nrm((1, n + 4), 0.001)

    zh = jnp.zeros((h, h), jnp.float32)
    head = dict(
        w1=jnp.concatenate([wc1, wr1], axis=1),                                  # (h, 2h)
        b1=jnp.concatenate([bc1, br1], axis=1),
        w2=jnp.concatenate([jnp.concatenate([wc2, zh], 1),
                            jnp.concatenate([zh, wr2], 1)], 0),                  # (2h, 2h)
        b2=jnp.concatenate([bc2, br2], axis=1),
        w3=jnp.concatenate([jnp.concatenate([wcls, jnp.zeros((h, n + 4), jnp.float32)], 1),
                            jnp.concatenate([jnp.zeros((h, 2), jnp.float32), wreg], 1)], 0),
        b3=jnp.concatenate([bcls, breg], axis=1),                                # (1, 2+n+4)
    )
    return dict(roi=roi, head=head)


# ---------------------------------------------------------------------------
# CLRHead.forward (inference path) — single fused pallas_call
# ---------------------------------------------------------------------------
def clr_head_forward(feats, params, bufs, cfg):
    batch_features = list(feats[len(feats) - cfg.refine_layers:])
    batch_features.reverse()
    B = batch_features[-1].shape[0]
    C, P, n, S = cfg.prior_feat_channels, cfg.num_priors, cfg.num_points, cfg.sample_points
    h = cfg.fc_hidden_dim
    D = 6 + n

    spatial = tuple((int(f.shape[2]), int(f.shape[3])) for f in batch_features)
    # Two layouts of the (tiny) feature maps: (C, H*W) for attention, (C*H, W) for pooling.
    feat_cf = [f.reshape(B, C, H * W).astype(jnp.bfloat16)
               for f, (H, W) in zip(batch_features, spatial)]
    feat_rw = [f.reshape(B, C * H, W).astype(jnp.bfloat16)
               for f, (H, W) in zip(batch_features, spatial)]

    rp, hp = params['roi'], params['head']

    # ---- one f32 slab holding every small parameter / buffer (single DMA) ----
    sb = _Slab()
    sb.add('priors', np.asarray(bufs['priors']))
    sb.add('prior_ys', np.asarray(bufs['prior_ys']).reshape(1, n))
    sb.add('w_iota', np.arange(128, dtype=np.float32).reshape(1, 128))
    for name in ('bfc', 'ln_g', 'ln_b', 'wkv', 'bk', 'bv', 'wq', 'bq', 'wo', 'bo'):
        sb.add(name, np.asarray(rp[name]))
    for name in ('w1', 'b1', 'w2', 'b2', 'w3', 'b3'):
        sb.add(name, np.asarray(hp[name]))
    slab_np, offs = sb.build()
    slab = jnp.asarray(slab_np)

    # ---- pooling constants: bilinear y-weights folded with ROIGather.fc ----
    # A[stage, s][c*H + hy, k] = wy[s, hy] * wfc[c*S + s, k]   (pooled only feeds fc)
    wfc_np = np.asarray(rp['wfc'], np.float32)             # (C*S, h)
    pys = np.asarray(bufs['prior_feat_ys'], np.float32)    # (S,)  already flipped
    a_blocks, a_offs, row = [], [], 0
    for (H, W) in spatial:
        hy = np.arange(H, dtype=np.float32)
        stage_offs = []
        for s in range(S):
            ky = np.maximum(0.0, 1.0 - np.abs(pys[s] * (H - 1.0) - hy))         # (H,)
            wsc = wfc_np[np.arange(C) * S + s]                                   # (C, h)
            blk = (ky[None, :, None] * wsc[:, None, :]).reshape(C * H, h)
            a_blocks.append(blk)
            stage_offs.append(row)
            row += C * H
        a_offs.append(tuple(stage_offs))
    a_offs = tuple(a_offs)
    apool = jnp.asarray(np.concatenate(a_blocks, axis=0)).astype(jnp.bfloat16)   # (sum S*C*H, h)

    idx_rev = tuple(int(i) for i in reversed(np.asarray(bufs['sample_x_indexs'])))

    kern = functools.partial(_clr_fused_kernel, offs=offs, a_offs=a_offs,
                             spatial=spatial, idx_rev=idx_rev,
                             dims=(C, S, P, n, h),
                             img_w=float(cfg.img_w), img_h=float(cfg.img_h))

    in_specs = ([pl.BlockSpec((1, C, H * W), lambda b: (b, 0, 0)) for (H, W) in spatial] +
                [pl.BlockSpec((1, C * H, W), lambda b: (b, 0, 0)) for (H, W) in spatial] +
                [pl.BlockSpec(tuple(slab.shape), lambda b: (0, 0)),
                 pl.BlockSpec(tuple(apool.shape), lambda b: (0, 0))])

    pred = pl.pallas_call(
        kern,
        out_shape=jax.ShapeDtypeStruct((B, P, D), jnp.float32),
        grid=(B,),
        in_specs=in_specs,
        out_specs=pl.BlockSpec((1, P, D), lambda b: (b, 0, 0)),
        compiler_params=pltpu.CompilerParams(dimension_semantics=("parallel",)),
    )(*feat_cf, *feat_rw, slab, apool)
    return pred


if __name__ == "__main__":
    cfg = CFG()
    key = jax.random.PRNGKey(0)
    kf, kp = jax.random.split(key)
    kf1, kf2, kf3 = jax.random.split(kf, 3)

    B, C = 2, cfg.prior_feat_channels
    # pyramid features (NCHW), shallowest -> deepest
    x = [jax.random.normal(kf1, (B, C, 16, 16), jnp.float32),
         jax.random.normal(kf2, (B, C, 8, 8), jnp.float32),
         jax.random.normal(kf3, (B, C, 4, 4), jnp.float32)]

    params = init_params(cfg, kp)
    bufs = init_buffers(cfg)

    out = clr_head_forward(x, params, bufs, cfg)
    out = jax.block_until_ready(out)

    assert out.shape == (B, cfg.num_priors, 6 + cfg.num_points), out.shape
    assert np.all(np.isfinite(np.asarray(out)))
    print("KERNEL_OK")
</pallas_src>

<mosaic_0001>
module attributes {stable_mosaic.version = 11 : i64} {
  func.func @_clr_fused_kernel(%arg0: i32, %arg1: memref<1x8x16xbf16, #tpu.memory_space<vmem>>, %arg2: memref<1x8x64xbf16, #tpu.memory_space<vmem>>, %arg3: memref<1x8x256xbf16, #tpu.memory_space<vmem>>, %arg4: memref<1x32x4xbf16, #tpu.memory_space<vmem>>, %arg5: memref<1x64x8xbf16, #tpu.memory_space<vmem>>, %arg6: memref<1x128x16xbf16, #tpu.memory_space<vmem>>, %arg7: memref<296x128xf32, #tpu.memory_space<vmem>>, %arg8: memref<896x8xbf16, #tpu.memory_space<vmem>>, %arg9: memref<1x32x14xf32, #tpu.memory_space<vmem>>) attributes {dimension_semantics = [#tpu.dimension_semantics<parallel>], iteration_bounds = array<i64: 2>, scalar_prefetch = 0 : i64, scratch_operands = 0 : i64, tpu.core_type = #tpu.core_type<tc>, window_params = [{transform_indices = @transform_0, window_bounds = array<i64: 1, 8, 16>}, {transform_indices = @transform_1, window_bounds = array<i64: 1, 8, 64>}, {transform_indices = @transform_2, window_bounds = array<i64: 1, 8, 256>}, {transform_indices = @transform_3, window_bounds = array<i64: 1, 32, 4>}, {transform_indices = @transform_4, window_bounds = array<i64: 1, 64, 8>}, {transform_indices = @transform_5, window_bounds = array<i64: 1, 128, 16>}, {pipeline_mode = #tpu.pipeline_mode<synchronous>, transform_indices = @transform_6, window_bounds = array<i64: 296, 128>}, {pipeline_mode = #tpu.pipeline_mode<synchronous>, transform_indices = @transform_7, window_bounds = array<i64: 896, 8>}, {transform_indices = @transform_8, window_bounds = array<i64: 1, 32, 14>}]} {
    %c0 = arith.constant 0 : index
    %c0_0 = arith.constant 0 : index
    %0 = vector.load %arg7[%c0, %c0_0] : memref<296x128xf32, #tpu.memory_space<vmem>>, vector<32x14xf32>
    %c32 = arith.constant 32 : index
    %c0_1 = arith.constant 0 : index
    %1 = vector.load %arg7[%c32, %c0_1] : memref<296x128xf32, #tpu.memory_space<vmem>>, vector<1x8xf32>
    %c40 = arith.constant 40 : index
    %c0_2 = arith.constant 0 : index
    %2 = vector.load %arg7[%c40, %c0_2] : memref<296x128xf32, #tpu.memory_space<vmem>>, vector<1x128xf32>
    %c48 = arith.constant 48 : index
    %c0_3 = arith.constant 0 : index
    %3 = vector.load %arg7[%c48, %c0_3] : memref<296x128xf32, #tpu.memory_space<vmem>>, vector<1x8xf32>
    %c56 = arith.constant 56 : index
    %c0_4 = arith.constant 0 : index
    %4 = vector.load %arg7[%c56, %c0_4] : memref<296x128xf32, #tpu.memory_space<vmem>>, vector<1x8xf32>
    %c64 = arith.constant 64 : index
    %c0_5 = arith.constant 0 : index
    %5 = vector.load %arg7[%c64, %c0_5] : memref<296x128xf32, #tpu.memory_space<vmem>>, vector<1x8xf32>
    %c72 = arith.constant 72 : index
    %c0_6 = arith.constant 0 : index
    %6 = vector.load %arg7[%c72, %c0_6] : memref<296x128xf32, #tpu.memory_space<vmem>>, vector<16x8xf32>
    %7 = arith.truncf %6 : vector<16x8xf32> to vector<16x8xbf16>
    %c88 = arith.constant 88 : index
    %c0_7 = arith.constant 0 : index
    %8 = vector.load %arg7[%c88, %c0_7] : memref<296x128xf32, #tpu.memory_space<vmem>>, vector<8x1xf32>
    %c96 = arith.constant 96 : index
    %c0_8 = arith.constant 0 : index
    %9 = vector.load %arg7[%c96, %c0_8] : memref<296x128xf32, #tpu.memory_space<vmem>>, vector<8x1xf32>
    %c104 = arith.constant 104 : index
    %c0_9 = arith.constant 0 : index
    %10 = vector.load %arg7[%c104, %c0_9] : memref<296x128xf32, #tpu.memory_space<vmem>>, vector<32x1xf32>
    %c136 = arith.constant 136 : index
    %c0_10 = arith.constant 0 : index
    %11 = vector.load %arg7[%c136, %c0_10] : memref<296x128xf32, #tpu.memory_space<vmem>>, vector<32x1xf32>
    %c168 = arith.constant 168 : index
    %c0_11 = arith.constant 0 : index
    %12 = vector.load %arg7[%c168, %c0_11] : memref<296x128xf32, #tpu.memory_space<vmem>>, vector<32x1xf32>
    %c200 = arith.constant 200 : index
    %c0_12 = arith.constant 0 : index
    %13 = vector.load %arg7[%c200, %c0_12] : memref<296x128xf32, #tpu.memory_space<vmem>>, vector<32x1xf32>
    %c232 = arith.constant 232 : index
    %c0_13 = arith.constant 0 : index
    %14 = vector.load %arg7[%c232, %c0_13] : memref<296x128xf32, #tpu.memory_space<vmem>>, vector<8x16xf32>
    %c240 = arith.constant 240 : index
    %c0_14 = arith.constant 0 : index
    %15 = vector.load %arg7[%c240, %c0_14] : memref<296x128xf32, #tpu.memory_space<vmem>>, vector<1x16xf32>
    %c248 = arith.constant 248 : index
    %c0_15 = arith.constant 0 : index
    %16 = vector.load %arg7[%c248, %c0_15] : memref<296x128xf32, #tpu.memory_space<vmem>>, vector<16x16xf32>
    %c264 = arith.constant 264 : index
    %c0_16 = arith.constant 0 : index
    %17 = vector.load %arg7[%c264, %c0_16] : memref<296x128xf32, #tpu.memory_space<vmem>>, vector<1x16xf32>
    %c272 = arith.constant 272 : index
    %c0_17 = arith.constant 0 : index
    %18 = vector.load %arg7[%c272, %c0_17] : memref<296x128xf32, #tpu.memory_space<vmem>>, vector<16x14xf32>
    %c288 = arith.constant 288 : index
    %c0_18 = arith.constant 0 : index
    %19 = vector.load %arg7[%c288, %c0_18] : memref<296x128xf32, #tpu.memory_space<vmem>>, vector<1x14xf32>
    %20 = vector.extract_strided_slice %0 {offsets = [0, 2], sizes = [32, 1], strides = [1, 1]} : vector<32x14xf32> to vector<32x1xf32>
    %21 = vector.extract_strided_slice %0 {offsets = [0, 3], sizes = [32, 1], strides = [1, 1]} : vector<32x14xf32> to vector<32x1xf32>
    %22 = vector.extract_strided_slice %0 {offsets = [0, 4], sizes = [32, 1], strides = [1, 1]} : vector<32x14xf32> to vector<32x1xf32>
    %23 = vector.extract_strided_slice %0 {offsets = [0, 6], sizes = [32, 8], strides = [1, 1]} : vector<32x14xf32> to vector<32x8xf32>
    %c0_19 = arith.constant 0 : index
    %c0_20 = arith.constant 0 : index
    %c0_21 = arith.constant 0 : index
    %24 = vector.load %arg4[%c0_19, %c0_20, %c0_21] : memref<1x32x4xbf16, #tpu.memory_space<vmem>>, vector<1x32x4xbf16>
    %25 = vector.shape_cast %24 : vector<1x32x4xbf16> to vector<32x4xbf16>
    %c0_22 = arith.constant 0 : index
    %c0_23 = arith.constant 0 : index
    %c0_24 = arith.constant 0 : index
    %26 = vector.load %arg1[%c0_22, %c0_23, %c0_24] : memref<1x8x16xbf16, #tpu.memory_space<vmem>>, vector<1x8x16xbf16>
    %27 = vector.shape_cast %26 : vector<1x8x16xbf16> to vector<8x16xbf16>
    %28 = vector.extract_strided_slice %23 {offsets = [0, 7], sizes = [32, 1], strides = [1, 1]} : vector<32x8xf32> to vector<32x1xf32>
    %29 = vector.extract_strided_slice %23 {offsets = [0, 4], sizes = [32, 1], strides = [1, 1]} : vector<32x8xf32> to vector<32x1xf32>
    %30 = vector.extract_strided_slice %23 {offsets = [0, 2], sizes = [32, 1], strides = [1, 1]} : vector<32x8xf32> to vector<32x1xf32>
    %31 = vector.extract_strided_slice %23 {offsets = [0, 0], sizes = [32, 1], strides = [1, 1]} : vector<32x8xf32> to vector<32x1xf32>
    %32 = tpu.concatenate %28, %29, %30, %31 in 0 : vector<32x1xf32>, vector<32x1xf32>, vector<32x1xf32>, vector<32x1xf32> -> vector<128x1xf32>
    %cst = arith.constant 3.000000e+00 : f32
    %33 = vector.broadcast %cst : f32 to vector<128x1xf32>
    %34 = arith.mulf %32, %33 : vector<128x1xf32>
    %35 = vector.extract_strided_slice %2 {offsets = [0, 0], sizes = [1, 4], strides = [1, 1]} : vector<1x128xf32> to vector<1x4xf32>
    %36 = vector.broadcast %34 : vector<128x1xf32> to vector<128x4xf32>
    %37 = vector.broadcast %35 : vector<1x4xf32> to vector<128x4xf32>
    %38 = arith.subf %36, %37 : vector<128x4xf32>
    %39 = math.absf %38 : vector<128x4xf32>
    %cst_25 = arith.constant 1.000000e+00 : f32
    %40 = vector.broadcast %cst_25 : f32 to vector<128x4xf32>
    %41 = arith.subf %40, %39 : vector<128x4xf32>
    %cst_26 = arith.constant 0.000000e+00 : f32
    %42 = vector.broadcast %cst_26 : f32 to vector<128x4xf32>
    %43 = arith.maximumf %42, %41 : vector<128x4xf32>
    %44 = arith.truncf %43 : vector<128x4xf32> to vector<128x4xbf16>
    %cst_27 = arith.constant dense<0.000000e+00> : vector<128x32xf32>
    %45 = tpu.matmul %44, %25, %cst_27 {dimension_numbers = #tpu.dot_dimension_numbers<[1], [1], [0], [0], [0, 0, 1, 0], [], []>} : vector<128x4xbf16>, vector<32x4xbf16>, vector<128x32xf32> -> vector<128x32xf32>
    %c0_28 = arith.constant 0 : index
    %c0_29 = arith.constant 0 : index
    %46 = vector.load %arg8[%c0_28, %c0_29] : memref<896x8xbf16, #tpu.memory_space<vmem>>, vector<32x8xbf16>
    %47 = vector.extract_strided_slice %45 {offsets = [0, 0], sizes = [32, 32], strides = [1, 1]} : vector<128x32xf32> to vector<32x32xf32>
    %48 = arith.truncf %47 : vector<32x32xf32> to vector<32x32xbf16>
    %cst_30 = arith.constant dense<0.000000e+00> : vector<32x8xf32>
    %49 = tpu.matmul %48, %46, %cst_30 {dimension_numbers = #tpu.dot_dimension_numbers<[1], [0], [0], [1], [0, 0, 1, 1], [], []>} : vector<32x32xbf16>, vector<32x8xbf16>, vector<32x8xf32> -> vector<32x8xf32>
    %50 = vector.broadcast %3 : vector<1x8xf32> to vector<32x8xf32>
    %51 = arith.addf %50, %49 : vector<32x8xf32>
    %c32_31 = arith.constant 32 : index
    %c0_32 = arith.constant 0 : index
    %52 = vector.load %arg8[%c32_31, %c0_32] : memref<896x8xbf16, #tpu.memory_space<vmem>>, vector<32x8xbf16>
    %53 = vector.extract_strided_slice %45 {offsets = [32, 0], sizes = [32, 32], strides = [1, 1]} : vector<128x32xf32> to vector<32x32xf32>
    %54 = arith.truncf %53 : vector<32x32xf32> to vector<32x32xbf16>
    %cst_33 = arith.constant dense<0.000000e+00> : vector<32x8xf32>
    %55 = tpu.matmul %54, %52, %cst_33 {dimension_numbers = #tpu.dot_dimension_numbers<[1], [0], [0], [1], [0, 0, 1, 1], [], []>} : vector<32x32xbf16>, vector<32x8xbf16>, vector<32x8xf32> -> vector<32x8xf32>
    %56 = arith.addf %51, %55 : vector<32x8xf32>
    %c64_34 = arith.constant 64 : index
    %c0_35 = arith.constant 0 : index
    %57 = vector.load %arg8[%c64_34, %c0_35] : memref<896x8xbf16, #tpu.memory_space<vmem>>, vector<32x8xbf16>
    %58 = vector.extract_strided_slice %45 {offsets = [64, 0], sizes = [32, 32], strides = [1, 1]} : vector<128x32xf32> to vector<32x32xf32>
    %59 = arith.truncf %58 : vector<32x32xf32> to vector<32x32xbf16>
    %cst_36 = arith.constant dense<0.000000e+00> : vector<32x8xf32>
    %60 = tpu.matmul %59, %57, %cst_36 {dimension_numbers = #tpu.dot_dimension_numbers<[1], [0], [0], [1], [0, 0, 1, 1], [], []>} : vector<32x32xbf16>, vector<32x8xbf16>, vector<32x8xf32> -> vector<32x8xf32>
    %61 = arith.addf %56, %60 : vector<32x8xf32>
    %c96_37 = arith.constant 96 : index
    %c0_38 = arith.constant 0 : index
    %62 = vector.load %arg8[%c96_37, %c0_38] : memref<896x8xbf16, #tpu.memory_space<vmem>>, vector<32x8xbf16>
    %63 = vector.extract_strided_slice %45 {offsets = [96, 0], sizes = [32, 32], strides = [1, 1]} : vector<128x32xf32> to vector<32x32xf32>
    %64 = arith.truncf %63 : vector<32x32xf32> to vector<32x32xbf16>
    %cst_39 = arith.constant dense<0.000000e+00> : vector<32x8xf32>
    %65 = tpu.matmul %64, %62, %cst_39 {dimension_numbers = #tpu.dot_dimension_numbers<[1], [0], [0], [1], [0, 0, 1, 1], [], []>} : vector<32x32xbf16>, vector<32x8xbf16>, vector<32x8xf32> -> vector<32x8xf32>
    %66 = arith.addf %61, %65 : vector<32x8xf32>
    %cst_40 = arith.constant dense<0.000000e+00> : vector<32xf32>
    %67 = vector.multi_reduction <add>, %66, %cst_40 [1] : vector<32x8xf32> to vector<32xf32>
    %68 = vector.shape_cast %67 : vector<32xf32> to vector<32x1xf32>
    %cst_41 = arith.constant 8.000000e+00 : f32
    %69 = vector.broadcast %cst_41 : f32 to vector<32x1xf32>
    %70 = arith.divf %68, %69 : vector<32x1xf32>
    %71 = arith.mulf %66, %66 : vector<32x8xf32>
    %cst_42 = arith.constant dense<0.000000e+00> : vector<32xf32>
    %72 = vector.multi_reduction <add>, %71, %cst_42 [1] : vector<32x8xf32> to vector<32xf32>
    %73 = vector.shape_cast %72 : vector<32xf32> to vector<32x1xf32>
    %cst_43 = arith.constant 8.000000e+00 : f32
    %74 = vector.broadcast %cst_43 : f32 to vector<32x1xf32>
    %75 = arith.divf %73, %74 : vector<32x1xf32>
    %76 = vector.broadcast %70 : vector<32x1xf32> to vector<32x8xf32>
    %77 = arith.subf %66, %76 : vector<32x8xf32>
    %78 = arith.mulf %70, %70 : vector<32x1xf32>
    %79 = arith.subf %75, %78 : vector<32x1xf32>
    %cst_44 = arith.constant 9.99999974E-6 : f32
    %80 = vector.broadcast %cst_44 : f32 to vector<32x1xf32>
    %81 = arith.addf %79, %80 : vector<32x1xf32>
    %82 = math.rsqrt %81 : vector<32x1xf32>
    %83 = vector.broadcast %82 : vector<32x1xf32> to vector<32x8xf32>
    %84 = arith.mulf %77, %83 : vector<32x8xf32>
    %85 = vector.broadcast %4 : vector<1x8xf32> to vector<32x8xf32>
    %86 = arith.mulf %84, %85 : vector<32x8xf32>
    %87 = vector.broadcast %5 : vector<1x8xf32> to vector<32x8xf32>
    %88 = arith.addf %86, %87 : vector<32x8xf32>
    %cst_45 = arith.constant 0.000000e+00 : f32
    %89 = vector.broadcast %cst_45 : f32 to vector<32x8xf32>
    %90 = arith.maximumf %88, %89 : vector<32x8xf32>
    %cst_46 = arith.constant dense<0.000000e+00> : vector<16x16xf32>
    %91 = tpu.matmul %7, %27, %cst_46 {dimension_numbers = #tpu.dot_dimension_numbers<[1], [0], [0], [1], [0, 0, 1, 1], [], []>} : vector<16x8xbf16>, vector<8x16xbf16>, vector<16x16xf32> -> vector<16x16xf32>
    %92 = vector.extract_strided_slice %91 {offsets = [0, 0], sizes = [8, 16], strides = [1, 1]} : vector<16x16xf32> to vector<8x16xf32>
    %93 = vector.broadcast %8 : vector<8x1xf32> to vector<8x16xf32>
    %94 = arith.addf %92, %93 : vector<8x16xf32>
    %cst_47 = arith.constant 0.000000e+00 : f32
    %95 = vector.broadcast %cst_47 : f32 to vector<8x16xf32>
    %96 = arith.maximumf %94, %95 : vector<8x16xf32>
    %97 = vector.extract_strided_slice %91 {offsets = [8, 0], sizes = [8, 16], strides = [1, 1]} : vector<16x16xf32> to vector<8x16xf32>
    %98 = vector.broadcast %9 : vector<8x1xf32> to vector<8x16xf32>
    %99 = arith.addf %97, %98 : vector<8x16xf32>
    %100 = vector.broadcast %10 : vector<32x1xf32> to vector<32x8xf32>
    %101 = arith.mulf %90, %100 : vector<32x8xf32>
    %102 = vector.broadcast %11 : vector<32x1xf32> to vector<32x8xf32>
    %103 = arith.addf %101, %102 : vector<32x8xf32>
    %cst_48 = arith.constant 0.000000e+00 : f32
    %104 = vector.broadcast %cst_48 : f32 to vector<32x8xf32>
    %105 = arith.maximumf %103, %104 : vector<32x8xf32>
    %106 = arith.truncf %105 : vector<32x8xf32> to vector<32x8xbf16>
    %107 = arith.truncf %96 : vector<8x16xf32> to vector<8x16xbf16>
    %cst_49 = arith.constant dense<0.000000e+00> : vector<32x16xf32>
    %108 = tpu.matmul %106, %107, %cst_49 {dimension_numbers = #tpu.dot_dimension_numbers<[1], [0], [0], [1], [0, 0, 1, 1], [], []>} : vector<32x8xbf16>, vector<8x16xbf16>, vector<32x16xf32> -> vector<32x16xf32>
    %cst_50 = arith.constant 0.353553385 : f32
    %109 = vector.broadcast %cst_50 : f32 to vector<32x16xf32>
    %110 = arith.mulf %108, %109 : vector<32x16xf32>
    %cst_51 = arith.constant dense<0xFF800000> : vector<32xf32>
    %111 = vector.multi_reduction <maximumf>, %110, %cst_51 [1] : vector<32x16xf32> to vector<32xf32>
    %112 = vector.shape_cast %111 : vector<32xf32> to vector<32x1xf32>
    %113 = vector.broadcast %112 : vector<32x1xf32> to vector<32x16xf32>
    %114 = arith.subf %110, %113 : vector<32x16xf32>
    %115 = math.exp %114 : vector<32x16xf32>
    %cst_52 = arith.constant dense<0.000000e+00> : vector<32xf32>
    %116 = vector.multi_reduction <add>, %115, %cst_52 [1] : vector<32x16xf32> to vector<32xf32>
    %117 = vector.shape_cast %116 : vector<32xf32> to vector<32x1xf32>
    %118 = tpu.reciprocal %117 {approx = true} : vector<32x1xf32> -> vector<32x1xf32>
    %119 = vector.broadcast %118 : vector<32x1xf32> to vector<32x16xf32>
    %120 = arith.mulf %115, %119 : vector<32x16xf32>
    %121 = arith.truncf %120 : vector<32x16xf32> to vector<32x16xbf16>
    %122 = arith.truncf %99 : vector<8x16xf32> to vector<8x16xbf16>
    %cst_53 = arith.constant dense<0.000000e+00> : vector<32x8xf32>
    %123 = tpu.matmul %121, %122, %cst_53 {dimension_numbers = #tpu.dot_dimension_numbers<[1], [1], [0], [0], [0, 0, 1, 0], [], []>} : vector<32x16xbf16>, vector<8x16xbf16>, vector<32x8xf32> -> vector<32x8xf32>
    %124 = vector.broadcast %12 : vector<32x1xf32> to vector<32x8xf32>
    %125 = arith.mulf %123, %124 : vector<32x8xf32>
    %126 = vector.broadcast %13 : vector<32x1xf32> to vector<32x8xf32>
    %127 = arith.addf %125, %126 : vector<32x8xf32>
    %cst_54 = arith.constant 0.000000e+00 : f32
    %128 = vector.broadcast %cst_54 : f32 to vector<32x8xf32>
    %129 = arith.maximumf %127, %128 : vector<32x8xf32>
    %130 = arith.addf %90, %129 : vector<32x8xf32>
    %cst_55 = arith.constant dense<0.000000e+00> : vector<32x16xf32>
    %131 = tpu.matmul %130, %14, %cst_55 {dimension_numbers = #tpu.dot_dimension_numbers<[1], [0], [0], [1], [0, 0, 1, 1], [], []>} : vector<32x8xf32>, vector<8x16xf32>, vector<32x16xf32> -> vector<32x16xf32>
    %132 = vector.broadcast %15 : vector<1x16xf32> to vector<32x16xf32>
    %133 = arith.addf %131, %132 : vector<32x16xf32>
    %cst_56 = arith.constant 0.000000e+00 : f32
    %134 = vector.broadcast %cst_56 : f32 to vector<32x16xf32>
    %135 = arith.maximumf %133, %134 : vector<32x16xf32>
    %cst_57 = arith.constant dense<0.000000e+00> : vector<32x16xf32>
    %136 = tpu.matmul %135, %16, %cst_57 {dimension_numbers = #tpu.dot_dimension_numbers<[1], [0], [0], [1], [0, 0, 1, 1], [], []>} : vector<32x16xf32>, vector<16x16xf32>, vector<32x16xf32> -> vector<32x16xf32>
    %137 = vector.broadcast %17 : vector<1x16xf32> to vector<32x16xf32>
    %138 = arith.addf %136, %137 : vector<32x16xf32>
    %cst_58 = arith.constant 0.000000e+00 : f32
    %139 = vector.broadcast %cst_58 : f32 to vector<32x16xf32>
    %140 = arith.maximumf %138, %139 : vector<32x16xf32>
    %cst_59 = arith.constant dense<0.000000e+00> : vector<32x14xf32>
    %141 = tpu.matmul %140, %18, %cst_59 {dimension_numbers = #tpu.dot_dimension_numbers<[1], [0], [0], [1], [0, 0, 1, 1], [], []>} : vector<32x16xf32>, vector<16x14xf32>, vector<32x14xf32> -> vector<32x14xf32>
    %142 = vector.broadcast %19 : vector<1x14xf32> to vector<32x14xf32>
    %143 = arith.addf %141, %142 : vector<32x14xf32>
    %144 = vector.extract_strided_slice %143 {offsets = [0, 2], sizes = [32, 12], strides = [1, 1]} : vector<32x14xf32> to vector<32x12xf32>
    %145 = vector.extract_strided_slice %144 {offsets = [0, 0], sizes = [32, 1], strides = [1, 1]} : vector<32x12xf32> to vector<32x1xf32>
    %146 = arith.addf %20, %145 : vector<32x1xf32>
    %147 = vector.extract_strided_slice %144 {offsets = [0, 1], sizes = [32, 1], strides = [1, 1]} : vector<32x12xf32> to vector<32x1xf32>
    %148 = arith.addf %21, %147 : vector<32x1xf32>
    %149 = vector.extract_strided_slice %144 {offsets = [0, 2], sizes = [32, 1], strides = [1, 1]} : vector<32x12xf32> to vector<32x1xf32>
    %150 = arith.addf %22, %149 : vector<32x1xf32>
    %cst_60 = arith.constant 3.14159274 : f32
    %151 = vector.broadcast %cst_60 : f32 to vector<32x1xf32>
    %152 = arith.mulf %150, %151 : vector<32x1xf32>
    %cst_61 = arith.constant 9.99999974E-6 : f32
    %153 = vector.broadcast %cst_61 : f32 to vector<32x1xf32>
    %154 = arith.addf %152, %153 : vector<32x1xf32>
    %155 = math.cos %154 : vector<32x1xf32>
    %156 = math.sin %154 : vector<32x1xf32>
    %157 = arith.divf %155, %156 : vector<32x1xf32>
    %cst_62 = arith.constant 6.300000e+01 : f32
    %158 = vector.broadcast %cst_62 : f32 to vector<32x1xf32>
    %159 = arith.mulf %148, %158 : vector<32x1xf32>
    %cst_63 = arith.constant 1.000000e+00 : f32
    %160 = vector.broadcast %cst_63 : f32 to vector<1x8xf32>
    %161 = arith.subf %160, %1 : vector<1x8xf32>
    %162 = vector.broadcast %161 : vector<1x8xf32> to vector<32x8xf32>
    %163 = vector.broadcast %146 : vector<32x1xf32> to vector<32x8xf32>
    %164 = arith.subf %162, %163 : vector<32x8xf32>
    %cst_64 = arith.constant 3.200000e+01 : f32
    %165 = vector.broadcast %cst_64 : f32 to vector<32x8xf32>
    %166 = arith.mulf %164, %165 : vector<32x8xf32>
    %167 = vector.broadcast %157 : vector<32x1xf32> to vector<32x8xf32>
    %168 = arith.mulf %166, %167 : vector<32x8xf32>
    %169 = vector.broadcast %159 : vector<32x1xf32> to vector<32x8xf32>
    %170 = arith.addf %169, %168 : vector<32x8xf32>
    %cst_65 = arith.constant 0.0158730168 : f32
    %171 = vector.broadcast %cst_65 : f32 to vector<32x8xf32>
    %172 = arith.mulf %170, %171 : vector<32x8xf32>
    %c0_66 = arith.constant 0 : index
    %c0_67 = arith.constant 0 : index
    %c0_68 = arith.constant 0 : index
    %173 = vector.load %arg5[%c0_66, %c0_67, %c0_68] : memref<1x64x8xbf16, #tpu.memory_space<vmem>>, vector<1x64x8xbf16>
    %174 = vector.shape_cast %173 : vector<1x64x8xbf16> to vector<64x8xbf16>
    %c0_69 = arith.constant 0 : index
    %c0_70 = arith.constant 0 : index
    %c0_71 = arith.constant 0 : index
    %175 = vector.load %arg2[%c0_69, %c0_70, %c0_71] : memref<1x8x64xbf16, #tpu.memory_space<vmem>>, vector<1x8x64xbf16>
    %176 = vector.shape_cast %175 : vector<1x8x64xbf16> to vector<8x64xbf16>
    %177 = vector.extract_strided_slice %172 {offsets = [0, 7], sizes = [32, 1], strides = [1, 1]} : vector<32x8xf32> to vector<32x1xf32>
    %178 = vector.extract_strided_slice %172 {offsets = [0, 4], sizes = [32, 1], strides = [1, 1]} : vector<32x8xf32> to vector<32x1xf32>
    %179 = vector.extract_strided_slice %172 {offsets = [0, 2], sizes = [32, 1], strides = [1, 1]} : vector<32x8xf32> to vector<32x1xf32>
    %180 = vector.extract_strided_slice %172 {offsets = [0, 0], sizes = [32, 1], strides = [1, 1]} : vector<32x8xf32> to vector<32x1xf32>
    %181 = tpu.concatenate %177, %178, %179, %180 in 0 : vector<32x1xf32>, vector<32x1xf32>, vector<32x1xf32>, vector<32x1xf32> -> vector<128x1xf32>
    %cst_72 = arith.constant 7.000000e+00 : f32
    %182 = vector.broadcast %cst_72 : f32 to vector<128x1xf32>
    %183 = arith.mulf %181, %182 : vector<128x1xf32>
    %184 = vector.extract_strided_slice %2 {offsets = [0, 0], sizes = [1, 8], strides = [1, 1]} : vector<1x128xf32> to vector<1x8xf32>
    %185 = vector.broadcast %183 : vector<128x1xf32> to vector<128x8xf32>
    %186 = vector.broadcast %184 : vector<1x8xf32> to vector<128x8xf32>
    %187 = arith.subf %185, %186 : vector<128x8xf32>
    %188 = math.absf %187 : vector<128x8xf32>
    %cst_73 = arith.constant 1.000000e+00 : f32
    %189 = vector.broadcast %cst_73 : f32 to vector<128x8xf32>
    %190 = arith.subf %189, %188 : vector<128x8xf32>
    %cst_74 = arith.constant 0.000000e+00 : f32
    %191 = vector.broadcast %cst_74 : f32 to vector<128x8xf32>
    %192 = arith.maximumf %191, %190 : vector<128x8xf32>
    %193 = arith.truncf %192 : vector<128x8xf32> to vector<128x8xbf16>
    %cst_75 = arith.constant dense<0.000000e+00> : vector<128x64xf32>
    %194 = tpu.matmul %193, %174, %cst_75 {dimension_numbers = #tpu.dot_dimension_numbers<[1], [1], [0], [0], [0, 0, 1, 0], [], []>} : vector<128x8xbf16>, vector<64x8xbf16>, vector<128x64xf32> -> vector<128x64xf32>
    %c128 = arith.constant 128 : index
    %c0_76 = arith.constant 0 : index
    %195 = vector.load %arg8[%c128, %c0_76] : memref<896x8xbf16, #tpu.memory_space<vmem>>, vector<64x8xbf16>
    %196 = vector.extract_strided_slice %194 {offsets = [0, 0], sizes = [32, 64], strides = [1, 1]} : vector<128x64xf32> to vector<32x64xf32>
    %197 = arith.truncf %196 : vector<32x64xf32> to vector<32x64xbf16>
    %cst_77 = arith.constant dense<0.000000e+00> : vector<32x8xf32>
    %198 = tpu.matmul %197, %195, %cst_77 {dimension_numbers = #tpu.dot_dimension_numbers<[1], [0], [0], [1], [0, 0, 1, 1], [], []>} : vector<32x64xbf16>, vector<64x8xbf16>, vector<32x8xf32> -> vector<32x8xf32>
    %199 = vector.broadcast %3 : vector<1x8xf32> to vector<32x8xf32>
    %200 = arith.addf %199, %198 : vector<32x8xf32>
    %c192 = arith.constant 192 : index
    %c0_78 = arith.constant 0 : index
    %201 = vector.load %arg8[%c192, %c0_78] : memref<896x8xbf16, #tpu.memory_space<vmem>>, vector<64x8xbf16>
    %202 = vector.extract_strided_slice %194 {offsets = [32, 0], sizes = [32, 64], strides = [1, 1]} : vector<128x64xf32> to vector<32x64xf32>
    %203 = arith.truncf %202 : vector<32x64xf32> to vector<32x64xbf16>
    %cst_79 = arith.constant dense<0.000000e+00> : vector<32x8xf32>
    %204 = tpu.matmul %203, %201, %cst_79 {dimension_numbers = #tpu.dot_dimension_numbers<[1], [0], [0], [1], [0, 0, 1, 1], [], []>} : vector<32x64xbf16>, vector<64x8xbf16>, vector<32x8xf32> -> vector<32x8xf32>
    %205 = arith.addf %200, %204 : vector<32x8xf32>
    %c256 = arith.constant 256 : index
    %c0_80 = arith.constant 0 : index
    %206 = vector.load %arg8[%c256, %c0_80] : memref<896x8xbf16, #tpu.memory_space<vmem>>, vector<64x8xbf16>
    %207 = vector.extract_strided_slice %194 {offsets = [64, 0], sizes = [32, 64], strides = [1, 1]} : vector<128x64xf32> to vector<32x64xf32>
    %208 = arith.truncf %207 : vector<32x64xf32> to vector<32x64xbf16>
    %cst_81 = arith.constant dense<0.000000e+00> : vector<32x8xf32>
    %209 = tpu.matmul %208, %206, %cst_81 {dimension_numbers = #tpu.dot_dimension_numbers<[1], [0], [0], [1], [0, 0, 1, 1], [], []>} : vector<32x64xbf16>, vector<64x8xbf16>, vector<32x8xf32> -> vector<32x8xf32>
    %210 = arith.addf %205, %209 : vector<32x8xf32>
    %c320 = arith.constant 320 : index
    %c0_82 = arith.constant 0 : index
    %211 = vector.load %arg8[%c320, %c0_82] : memref<896x8xbf16, #tpu.memory_space<vmem>>, vector<64x8xbf16>
    %212 = vector.extract_strided_slice %194 {offsets = [96, 0], sizes = [32, 64], strides = [1, 1]} : vector<128x64xf32> to vector<32x64xf32>
    %213 = arith.truncf %212 : vector<32x64xf32> to vector<32x64xbf16>
    %cst_83 = arith.constant dense<0.000000e+00> : vector<32x8xf32>
    %214 = tpu.matmul %213, %211, %cst_83 {dimension_numbers = #tpu.dot_dimension_numbers<[1], [0], [0], [1], [0, 0, 1, 1], [], []>} : vector<32x64xbf16>, vector<64x8xbf16>, vector<32x8xf32> -> vector<32x8xf32>
    %215 = arith.addf %210, %214 : vector<32x8xf32>
    %cst_84 = arith.constant dense<0.000000e+00> : vector<32xf32>
    %216 = vector.multi_reduction <add>, %215, %cst_84 [1] : vector<32x8xf32> to vector<32xf32>
    %217 = vector.shape_cast %216 : vector<32xf32> to vector<32x1xf32>
    %cst_85 = arith.constant 8.000000e+00 : f32
    %218 = vector.broadcast %cst_85 : f32 to vector<32x1xf32>
    %219 = arith.divf %217, %218 : vector<32x1xf32>
    %220 = arith.mulf %215, %215 : vector<32x8xf32>
    %cst_86 = arith.constant dense<0.000000e+00> : vector<32xf32>
    %221 = vector.multi_reduction <add>, %220, %cst_86 [1] : vector<32x8xf32> to vector<32xf32>
    %222 = vector.shape_cast %221 : vector<32xf32> to vector<32x1xf32>
    %cst_87 = arith.constant 8.000000e+00 : f32
    %223 = vector.broadcast %cst_87 : f32 to vector<32x1xf32>
    %224 = arith.divf %222, %223 : vector<32x1xf32>
    %225 = vector.broadcast %219 : vector<32x1xf32> to vector<32x8xf32>
    %226 = arith.subf %215, %225 : vector<32x8xf32>
    %227 = arith.mulf %219, %219 : vector<32x1xf32>
    %228 = arith.subf %224, %227 : vector<32x1xf32>
    %cst_88 = arith.constant 9.99999974E-6 : f32
    %229 = vector.broadcast %cst_88 : f32 to vector<32x1xf32>
    %230 = arith.addf %228, %229 : vector<32x1xf32>
    %231 = math.rsqrt %230 : vector<32x1xf32>
    %232 = vector.broadcast %231 : vector<32x1xf32> to vector<32x8xf32>
    %233 = arith.mulf %226, %232 : vector<32x8xf32>
    %234 = vector.broadcast %4 : vector<1x8xf32> to vector<32x8xf32>
    %235 = arith.mulf %233, %234 : vector<32x8xf32>
    %236 = vector.broadcast %5 : vector<1x8xf32> to vector<32x8xf32>
    %237 = arith.addf %235, %236 : vector<32x8xf32>
    %cst_89 = arith.constant 0.000000e+00 : f32
    %238 = vector.broadcast %cst_89 : f32 to vector<32x8xf32>
    %239 = arith.maximumf %237, %238 : vector<32x8xf32>
    %cst_90 = arith.constant dense<0.000000e+00> : vector<16x64xf32>
    %240 = tpu.matmul %7, %176, %cst_90 {dimension_numbers = #tpu.dot_dimension_numbers<[1], [0], [0], [1], [0, 0, 1, 1], [], []>} : vector<16x8xbf16>, vector<8x64xbf16>, vector<16x64xf32> -> vector<16x64xf32>
    %241 = vector.extract_strided_slice %240 {offsets = [0, 0], sizes = [8, 64], strides = [1, 1]} : vector<16x64xf32> to vector<8x64xf32>
    %242 = vector.broadcast %8 : vector<8x1xf32> to vector<8x64xf32>
    %243 = arith.addf %241, %242 : vector<8x64xf32>
    %cst_91 = arith.constant 0.000000e+00 : f32
    %244 = vector.broadcast %cst_91 : f32 to vector<8x64xf32>
    %245 = arith.maximumf %243, %244 : vector<8x64xf32>
    %246 = vector.extract_strided_slice %240 {offsets = [8, 0], sizes = [8, 64], strides = [1, 1]} : vector<16x64xf32> to vector<8x64xf32>
    %247 = vector.broadcast %9 : vector<8x1xf32> to vector<8x64xf32>
    %248 = arith.addf %246, %247 : vector<8x64xf32>
    %249 = vector.broadcast %10 : vector<32x1xf32> to vector<32x8xf32>
    %250 = arith.mulf %239, %249 : vector<32x8xf32>
    %251 = vector.broadcast %11 : vector<32x1xf32> to vector<32x8xf32>
    %252 = arith.addf %250, %251 : vector<32x8xf32>
    %cst_92 = arith.constant 0.000000e+00 : f32
    %253 = vector.broadcast %cst_92 : f32 to vector<32x8xf32>
    %254 = arith.maximumf %252, %253 : vector<32x8xf32>
    %255 = arith.truncf %254 : vector<32x8xf32> to vector<32x8xbf16>
    %256 = arith.truncf %245 : vector<8x64xf32> to vector<8x64xbf16>
    %cst_93 = arith.constant dense<0.000000e+00> : vector<32x64xf32>
    %257 = tpu.matmul %255, %256, %cst_93 {dimension_numbers = #tpu.dot_dimension_numbers<[1], [0], [0], [1], [0, 0, 1, 1], [], []>} : vector<32x8xbf16>, vector<8x64xbf16>, vector<32x64xf32> -> vector<32x64xf32>
    %cst_94 = arith.constant 0.353553385 : f32
    %258 = vector.broadcast %cst_94 : f32 to vector<32x64xf32>
    %259 = arith.mulf %257, %258 : vector<32x64xf32>
    %cst_95 = arith.constant dense<0xFF800000> : vector<32xf32>
    %260 = vector.multi_reduction <maximumf>, %259, %cst_95 [1] : vector<32x64xf32> to vector<32xf32>
    %261 = vector.shape_cast %260 : vector<32xf32> to vector<32x1xf32>
    %262 = vector.broadcast %261 : vector<32x1xf32> to vector<32x64xf32>
    %263 = arith.subf %259, %262 : vector<32x64xf32>
    %264 = math.exp %263 : vector<32x64xf32>
    %cst_96 = arith.constant dense<0.000000e+00> : vector<32xf32>
    %265 = vector.multi_reduction <add>, %264, %cst_96 [1] : vector<32x64xf32> to vector<32xf32>
    %266 = vector.shape_cast %265 : vector<32xf32> to vector<32x1xf32>
    %267 = tpu.reciprocal %266 {approx = true} : vector<32x1xf32> -> vector<32x1xf32>
    %268 = vector.broadcast %267 : vector<32x1xf32> to vector<32x64xf32>
    %269 = arith.mulf %264, %268 : vector<32x64xf32>
    %270 = arith.truncf %269 : vector<32x64xf32> to vector<32x64xbf16>
    %271 = arith.truncf %248 : vector<8x64xf32> to vector<8x64xbf16>
    %cst_97 = arith.constant dense<0.000000e+00> : vector<32x8xf32>
    %272 = tpu.matmul %270, %271, %cst_97 {dimension_numbers = #tpu.dot_dimension_numbers<[1], [1], [0], [0], [0, 0, 1, 0], [], []>} : vector<32x64xbf16>, vector<8x64xbf16>, vector<32x8xf32> -> vector<32x8xf32>
    %273 = vector.broadcast %12 : vector<32x1xf32> to vector<32x8xf32>
    %274 = arith.mulf %272, %273 : vector<32x8xf32>
    %275 = vector.broadcast %13 : vector<32x1xf32> to vector<32x8xf32>
    %276 = arith.addf %274, %275 : vector<32x8xf32>
    %cst_98 = arith.constant 0.000000e+00 : f32
    %277 = vector.broadcast %cst_98 : f32 to vector<32x8xf32>
    %278 = arith.maximumf %276, %277 : vector<32x8xf32>
    %279 = arith.addf %239, %278 : vector<32x8xf32>
    %cst_99 = arith.constant dense<0.000000e+00> : vector<32x16xf32>
    %280 = tpu.matmul %279, %14, %cst_99 {dimension_numbers = #tpu.dot_dimension_numbers<[1], [0], [0], [1], [0, 0, 1, 1], [], []>} : vector<32x8xf32>, vector<8x16xf32>, vector<32x16xf32> -> vector<32x16xf32>
    %281 = vector.broadcast %15 : vector<1x16xf32> to vector<32x16xf32>
    %282 = arith.addf %280, %281 : vector<32x16xf32>
    %cst_100 = arith.constant 0.000000e+00 : f32
    %283 = vector.broadcast %cst_100 : f32 to vector<32x16xf32>
    %284 = arith.maximumf %282, %283 : vector<32x16xf32>
    %cst_101 = arith.constant dense<0.000000e+00> : vector<32x16xf32>
    %285 = tpu.matmul %284, %16, %cst_101 {dimension_numbers = #tpu.dot_dimension_numbers<[1], [0], [0], [1], [0, 0, 1, 1], [], []>} : vector<32x16xf32>, vector<16x16xf32>, vector<32x16xf32> -> vector<32x16xf32>
    %286 = vector.broadcast %17 : vector<1x16xf32> to vector<32x16xf32>
    %287 = arith.addf %285, %286 : vector<32x16xf32>
    %cst_102 = arith.constant 0.000000e+00 : f32
    %288 = vector.broadcast %cst_102 : f32 to vector<32x16xf32>
    %289 = arith.maximumf %287, %288 : vector<32x16xf32>
    %cst_103 = arith.constant dense<0.000000e+00> : vector<32x14xf32>
    %290 = tpu.matmul %289, %18, %cst_103 {dimension_numbers = #tpu.dot_dimension_numbers<[1], [0], [0], [1], [0, 0, 1, 1], [], []>} : vector<32x16xf32>, vector<16x14xf32>, vector<32x14xf32> -> vector<32x14xf32>
    %291 = vector.broadcast %19 : vector<1x14xf32> to vector<32x14xf32>
    %292 = arith.addf %290, %291 : vector<32x14xf32>
    %293 = vector.extract_strided_slice %292 {offsets = [0, 2], sizes = [32, 12], strides = [1, 1]} : vector<32x14xf32> to vector<32x12xf32>
    %294 = vector.extract_strided_slice %293 {offsets = [0, 0], sizes = [32, 1], strides = [1, 1]} : vector<32x12xf32> to vector<32x1xf32>
    %295 = arith.addf %146, %294 : vector<32x1xf32>
    %296 = vector.extract_strided_slice %293 {offsets = [0, 1], sizes = [32, 1], strides = [1, 1]} : vector<32x12xf32> to vector<32x1xf32>
    %297 = arith.addf %148, %296 : vector<32x1xf32>
    %298 = vector.extract_strided_slice %293 {offsets = [0, 2], sizes = [32, 1], strides = [1, 1]} : vector<32x12xf32> to vector<32x1xf32>
    %299 = arith.addf %150, %298 : vector<32x1xf32>
    %cst_104 = arith.constant 3.14159274 : f32
    %300 = vector.broadcast %cst_104 : f32 to vector<32x1xf32>
    %301 = arith.mulf %299, %300 : vector<32x1xf32>
    %cst_105 = arith.constant 9.99999974E-6 : f32
    %302 = vector.broadcast %cst_105 : f32 to vector<32x1xf32>
    %303 = arith.addf %301, %302 : vector<32x1xf32>
    %304 = math.cos %303 : vector<32x1xf32>
    %305 = math.sin %303 : vector<32x1xf32>
    %306 = arith.divf %304, %305 : vector<32x1xf32>
    %cst_106 = arith.constant 6.300000e+01 : f32
    %307 = vector.broadcast %cst_106 : f32 to vector<32x1xf32>
    %308 = arith.mulf %297, %307 : vector<32x1xf32>
    %cst_107 = arith.constant 1.000000e+00 : f32
    %309 = vector.broadcast %cst_107 : f32 to vector<1x8xf32>
    %310 = arith.subf %309, %1 : vector<1x8xf32>
    %311 = vector.broadcast %310 : vector<1x8xf32> to vector<32x8xf32>
    %312 = vector.broadcast %295 : vector<32x1xf32> to vector<32x8xf32>
    %313 = arith.subf %311, %312 : vector<32x8xf32>
    %cst_108 = arith.constant 3.200000e+01 : f32
    %314 = vector.broadcast %cst_108 : f32 to vector<32x8xf32>
    %315 = arith.mulf %313, %314 : vector<32x8xf32>
    %316 = vector.broadcast %306 : vector<32x1xf32> to vector<32x8xf32>
    %317 = arith.mulf %315, %316 : vector<32x8xf32>
    %318 = vector.broadcast %308 : vector<32x1xf32> to vector<32x8xf32>
    %319 = arith.addf %318, %317 : vector<32x8xf32>
    %cst_109 = arith.constant 0.0158730168 : f32
    %320 = vector.broadcast %cst_109 : f32 to vector<32x8xf32>
    %321 = arith.mulf %319, %320 : vector<32x8xf32>
    %c0_110 = arith.constant 0 : index
    %c0_111 = arith.constant 0 : index
    %c0_112 = arith.constant 0 : index
    %322 = vector.load %arg6[%c0_110, %c0_111, %c0_112] : memref<1x128x16xbf16, #tpu.memory_space<vmem>>, vector<1x128x16xbf16>
    %323 = vector.shape_cast %322 : vector<1x128x16xbf16> to vector<128x16xbf16>
    %c0_113 = arith.constant 0 : index
    %c0_114 = arith.constant 0 : index
    %c0_115 = arith.constant 0 : index
    %324 = vector.load %arg3[%c0_113, %c0_114, %c0_115] : memref<1x8x256xbf16, #tpu.memory_space<vmem>>, vector<1x8x256xbf16>
    %325 = vector.shape_cast %324 : vector<1x8x256xbf16> to vector<8x256xbf16>
    %326 = vector.extract_strided_slice %321 {offsets = [0, 7], sizes = [32, 1], strides = [1, 1]} : vector<32x8xf32> to vector<32x1xf32>
    %327 = vector.extract_strided_slice %321 {offsets = [0, 4], sizes = [32, 1], strides = [1, 1]} : vector<32x8xf32> to vector<32x1xf32>
    %328 = vector.extract_strided_slice %321 {offsets = [0, 2], sizes = [32, 1], strides = [1, 1]} : vector<32x8xf32> to vector<32x1xf32>
    %329 = vector.extract_strided_slice %321 {offsets = [0, 0], sizes = [32, 1], strides = [1, 1]} : vector<32x8xf32> to vector<32x1xf32>
    %330 = tpu.concatenate %326, %327, %328, %329 in 0 : vector<32x1xf32>, vector<32x1xf32>, vector<32x1xf32>, vector<32x1xf32> -> vector<128x1xf32>
    %cst_116 = arith.constant 1.500000e+01 : f32
    %331 = vector.broadcast %cst_116 : f32 to vector<128x1xf32>
    %332 = arith.mulf %330, %331 : vector<128x1xf32>
    %333 = vector.extract_strided_slice %2 {offsets = [0, 0], sizes = [1, 16], strides = [1, 1]} : vector<1x128xf32> to vector<1x16xf32>
    %334 = vector.broadcast %332 : vector<128x1xf32> to vector<128x16xf32>
    %335 = vector.broadcast %333 : vector<1x16xf32> to vector<128x16xf32>
    %336 = arith.subf %334, %335 : vector<128x16xf32>
    %337 = math.absf %336 : vector<128x16xf32>
    %cst_117 = arith.constant 1.000000e+00 : f32
    %338 = vector.broadcast %cst_117 : f32 to vector<128x16xf32>
    %339 = arith.subf %338, %337 : vector<128x16xf32>
    %cst_118 = arith.constant 0.000000e+00 : f32
    %340 = vector.broadcast %cst_118 : f32 to vector<128x16xf32>
    %341 = arith.maximumf %340, %339 : vector<128x16xf32>
    %342 = arith.truncf %341 : vector<128x16xf32> to vector<128x16xbf16>
    %cst_119 = arith.constant dense<0.000000e+00> : vector<128x128xf32>
    %343 = tpu.matmul %342, %323, %cst_119 {dimension_numbers = #tpu.dot_dimension_numbers<[1], [1], [0], [0], [0, 0, 1, 0], [], []>} : vector<128x16xbf16>, vector<128x16xbf16>, vector<128x128xf32> -> vector<128x128xf32>
    %c384 = arith.constant 384 : index
    %c0_120 = arith.constant 0 : index
    %344 = vector.load %arg8[%c384, %c0_120] : memref<896x8xbf16, #tpu.memory_space<vmem>>, vector<128x8xbf16>
    %345 = vector.extract_strided_slice %343 {offsets = [0, 0], sizes = [32, 128], strides = [1, 1]} : vector<128x128xf32> to vector<32x128xf32>
    %346 = arith.truncf %345 : vector<32x128xf32> to vector<32x128xbf16>
    %cst_121 = arith.constant dense<0.000000e+00> : vector<32x8xf32>
    %347 = tpu.matmul %346, %344, %cst_121 {dimension_numbers = #tpu.dot_dimension_numbers<[1], [0], [0], [1], [0, 0, 1, 1], [], []>} : vector<32x128xbf16>, vector<128x8xbf16>, vector<32x8xf32> -> vector<32x8xf32>
    %348 = vector.broadcast %3 : vector<1x8xf32> to vector<32x8xf32>
    %349 = arith.addf %348, %347 : vector<32x8xf32>
    %c512 = arith.constant 512 : index
    %c0_122 = arith.constant 0 : index
    %350 = vector.load %arg8[%c512, %c0_122] : memref<896x8xbf16, #tpu.memory_space<vmem>>, vector<128x8xbf16>
    %351 = vector.extract_strided_slice %343 {offsets = [32, 0], sizes = [32, 128], strides = [1, 1]} : vector<128x128xf32> to vector<32x128xf32>
    %352 = arith.truncf %351 : vector<32x128xf32> to vector<32x128xbf16>
    %cst_123 = arith.constant dense<0.000000e+00> : vector<32x8xf32>
    %353 = tpu.matmul %352, %350, %cst_123 {dimension_numbers = #tpu.dot_dimension_numbers<[1], [0], [0], [1], [0, 0, 1, 1], [], []>} : vector<32x128xbf16>, vector<128x8xbf16>, vector<32x8xf32> -> vector<32x8xf32>
    %354 = arith.addf %349, %353 : vector<32x8xf32>
    %c640 = arith.constant 640 : index
    %c0_124 = arith.constant 0 : index
    %355 = vector.load %arg8[%c640, %c0_124] : memref<896x8xbf16, #tpu.memory_space<vmem>>, vector<128x8xbf16>
    %356 = vector.extract_strided_slice %343 {offsets = [64, 0], sizes = [32, 128], strides = [1, 1]} : vector<128x128xf32> to vector<32x128xf32>
    %357 = arith.truncf %356 : vector<32x128xf32> to vector<32x128xbf16>
    %cst_125 = arith.constant dense<0.000000e+00> : vector<32x8xf32>
    %358 = tpu.matmul %357, %355, %cst_125 {dimension_numbers = #tpu.dot_dimension_numbers<[1], [0], [0], [1], [0, 0, 1, 1], [], []>} : vector<32x128xbf16>, vector<128x8xbf16>, vector<32x8xf32> -> vector<32x8xf32>
    %359 = arith.addf %354, %358 : vector<32x8xf32>
    %c768 = arith.constant 768 : index
    %c0_126 = arith.constant 0 : index
    %360 = vector.load %arg8[%c768, %c0_126] : memref<896x8xbf16, #tpu.memory_space<vmem>>, vector<128x8xbf16>
    %361 = vector.extract_strided_slice %343 {offsets = [96, 0], sizes = [32, 128], strides = [1, 1]} : vector<128x128xf32> to vector<32x128xf32>
    %362 = arith.truncf %361 : vector<32x128xf32> to vector<32x128xbf16>
    %cst_127 = arith.constant dense<0.000000e+00> : vector<32x8xf32>
    %363 = tpu.matmul %362, %360, %cst_127 {dimension_numbers = #tpu.dot_dimension_numbers<[1], [0], [0], [1], [0, 0, 1, 1], [], []>} : vector<32x128xbf16>, vector<128x8xbf16>, vector<32x8xf32> -> vector<32x8xf32>
    %364 = arith.addf %359, %363 : vector<32x8xf32>
    %cst_128 = arith.constant dense<0.000000e+00> : vector<32xf32>
    %365 = vector.multi_reduction <add>, %364, %cst_128 [1] : vector<32x8xf32> to vector<32xf32>
    %366 = vector.shape_cast %365 : vector<32xf32> to vector<32x1xf32>
    %cst_129 = arith.constant 8.000000e+00 : f32
    %367 = vector.broadcast %cst_129 : f32 to vector<32x1xf32>
    %368 = arith.divf %366, %367 : vector<32x1xf32>
    %369 = arith.mulf %364, %364 : vector<32x8xf32>
    %cst_130 = arith.constant dense<0.000000e+00> : vector<32xf32>
    %370 = vector.multi_reduction <add>, %369, %cst_130 [1] : vector<32x8xf32> to vector<32xf32>
    %371 = vector.shape_cast %370 : vector<32xf32> to vector<32x1xf32>
    %cst_131 = arith.constant 8.000000e+00 : f32
    %372 = vector.broadcast %cst_131 : f32 to vector<32x1xf32>
    %373 = arith.divf %371, %372 : vector<32x1xf32>
    %374 = vector.broadcast %368 : vector<32x1xf32> to vector<32x8xf32>
    %375 = arith.subf %364, %374 : vector<32x8xf32>
    %376 = arith.mulf %368, %368 : vector<32x1xf32>
    %377 = arith.subf %373, %376 : vector<32x1xf32>
    %cst_132 = arith.constant 9.99999974E-6 : f32
    %378 = vector.broadcast %cst_132 : f32 to vector<32x1xf32>
    %379 = arith.addf %377, %378 : vector<32x1xf32>
    %380 = math.rsqrt %379 : vector<32x1xf32>
    %381 = vector.broadcast %380 : vector<32x1xf32> to vector<32x8xf32>
    %382 = arith.mulf %375, %381 : vector<32x8xf32>
    %383 = vector.broadcast %4 : vector<1x8xf32> to vector<32x8xf32>
    %384 = arith.mulf %382, %383 : vector<32x8xf32>
    %385 = vector.broadcast %5 : vector<1x8xf32> to vector<32x8xf32>
    %386 = arith.addf %384, %385 : vector<32x8xf32>
    %cst_133 = arith.constant 0.000000e+00 : f32
    %387 = vector.broadcast %cst_133 : f32 to vector<32x8xf32>
    %388 = arith.maximumf %386, %387 : vector<32x8xf32>
    %cst_134 = arith.constant dense<0.000000e+00> : vector<16x256xf32>
    %389 = tpu.matmul %7, %325, %cst_134 {dimension_numbers = #tpu.dot_dimension_numbers<[1], [0], [0], [1], [0, 0, 1, 1], [], []>} : vector<16x8xbf16>, vector<8x256xbf16>, vector<16x256xf32> -> vector<16x256xf32>
    %390 = vector.extract_strided_slice %389 {offsets = [0, 0], sizes = [8, 256], strides = [1, 1]} : vector<16x256xf32> to vector<8x256xf32>
    %391 = vector.broadcast %8 : vector<8x1xf32> to vector<8x256xf32>
    %392 = arith.addf %390, %391 : vector<8x256xf32>
    %cst_135 = arith.constant 0.000000e+00 : f32
    %393 = vector.broadcast %cst_135 : f32 to vector<8x256xf32>
    %394 = arith.maximumf %392, %393 : vector<8x256xf32>
    %395 = vector.extract_strided_slice %389 {offsets = [8, 0], sizes = [8, 256], strides = [1, 1]} : vector<16x256xf32> to vector<8x256xf32>
    %396 = vector.broadcast %9 : vector<8x1xf32> to vector<8x256xf32>
    %397 = arith.addf %395, %396 : vector<8x256xf32>
    %398 = vector.broadcast %10 : vector<32x1xf32> to vector<32x8xf32>
    %399 = arith.mulf %388, %398 : vector<32x8xf32>
    %400 = vector.broadcast %11 : vector<32x1xf32> to vector<32x8xf32>
    %401 = arith.addf %399, %400 : vector<32x8xf32>
    %cst_136 = arith.constant 0.000000e+00 : f32
    %402 = vector.broadcast %cst_136 : f32 to vector<32x8xf32>
    %403 = arith.maximumf %401, %402 : vector<32x8xf32>
    %404 = arith.truncf %403 : vector<32x8xf32> to vector<32x8xbf16>
    %405 = arith.truncf %394 : vector<8x256xf32> to vector<8x256xbf16>
    %cst_137 = arith.constant dense<0.000000e+00> : vector<32x256xf32>
    %406 = tpu.matmul %404, %405, %cst_137 {dimension_numbers = #tpu.dot_dimension_numbers<[1], [0], [0], [1], [0, 0, 1, 1], [], []>} : vector<32x8xbf16>, vector<8x256xbf16>, vector<32x256xf32> -> vector<32x256xf32>
    %cst_138 = arith.constant 0.353553385 : f32
    %407 = vector.broadcast %cst_138 : f32 to vector<32x256xf32>
    %408 = arith.mulf %406, %407 : vector<32x256xf32>
    %cst_139 = arith.constant dense<0xFF800000> : vector<32xf32>
    %409 = vector.multi_reduction <maximumf>, %408, %cst_139 [1] : vector<32x256xf32> to vector<32xf32>
    %410 = vector.shape_cast %409 : vector<32xf32> to vector<32x1xf32>
    %411 = vector.broadcast %410 : vector<32x1xf32> to vector<32x256xf32>
    %412 = arith.subf %408, %411 : vector<32x256xf32>
    %413 = math.exp %412 : vector<32x256xf32>
    %cst_140 = arith.constant dense<0.000000e+00> : vector<32xf32>
    %414 = vector.multi_reduction <add>, %413, %cst_140 [1] : vector<32x256xf32> to vector<32xf32>
    %415 = vector.shape_cast %414 : vector<32xf32> to vector<32x1xf32>
    %416 = tpu.reciprocal %415 {approx = true} : vector<32x1xf32> -> vector<32x1xf32>
    %417 = vector.broadcast %416 : vector<32x1xf32> to vector<32x256xf32>
    %418 = arith.mulf %413, %417 : vector<32x256xf32>
    %419 = arith.truncf %418 : vector<32x256xf32> to vector<32x256xbf16>
    %420 = arith.truncf %397 : vector<8x256xf32> to vector<8x256xbf16>
    %cst_141 = arith.constant dense<0.000000e+00> : vector<32x8xf32>
    %421 = tpu.matmul %419, %420, %cst_141 {dimension_numbers = #tpu.dot_dimension_numbers<[1], [1], [0], [0], [0, 0, 1, 0], [], []>} : vector<32x256xbf16>, vector<8x256xbf16>, vector<32x8xf32> -> vector<32x8xf32>
    %422 = vector.broadcast %12 : vector<32x1xf32> to vector<32x8xf32>
    %423 = arith.mulf %421, %422 : vector<32x8xf32>
    %424 = vector.broadcast %13 : vector<32x1xf32> to vector<32x8xf32>
    %425 = arith.addf %423, %424 : vector<32x8xf32>
    %cst_142 = arith.constant 0.000000e+00 : f32
    %426 = vector.broadcast %cst_142 : f32 to vector<32x8xf32>
    %427 = arith.maximumf %425, %426 : vector<32x8xf32>
    %428 = arith.addf %388, %427 : vector<32x8xf32>
    %cst_143 = arith.constant dense<0.000000e+00> : vector<32x16xf32>
    %429 = tpu.matmul %428, %14, %cst_143 {dimension_numbers = #tpu.dot_dimension_numbers<[1], [0], [0], [1], [0, 0, 1, 1], [], []>} : vector<32x8xf32>, vector<8x16xf32>, vector<32x16xf32> -> vector<32x16xf32>
    %430 = vector.broadcast %15 : vector<1x16xf32> to vector<32x16xf32>
    %431 = arith.addf %429, %430 : vector<32x16xf32>
    %cst_144 = arith.constant 0.000000e+00 : f32
    %432 = vector.broadcast %cst_144 : f32 to vector<32x16xf32>
    %433 = arith.maximumf %431, %432 : vector<32x16xf32>
    %cst_145 = arith.constant dense<0.000000e+00> : vector<32x16xf32>
    %434 = tpu.matmul %433, %16, %cst_145 {dimension_numbers = #tpu.dot_dimension_numbers<[1], [0], [0], [1], [0, 0, 1, 1], [], []>} : vector<32x16xf32>, vector<16x16xf32>, vector<32x16xf32> -> vector<32x16xf32>
    %435 = vector.broadcast %17 : vector<1x16xf32> to vector<32x16xf32>
    %436 = arith.addf %434, %435 : vector<32x16xf32>
    %cst_146 = arith.constant 0.000000e+00 : f32
    %437 = vector.broadcast %cst_146 : f32 to vector<32x16xf32>
    %438 = arith.maximumf %436, %437 : vector<32x16xf32>
    %cst_147 = arith.constant dense<0.000000e+00> : vector<32x14xf32>
    %439 = tpu.matmul %438, %18, %cst_147 {dimension_numbers = #tpu.dot_dimension_numbers<[1], [0], [0], [1], [0, 0, 1, 1], [], []>} : vector<32x16xf32>, vector<16x14xf32>, vector<32x14xf32> -> vector<32x14xf32>
    %440 = vector.broadcast %19 : vector<1x14xf32> to vector<32x14xf32>
    %441 = arith.addf %439, %440 : vector<32x14xf32>
    %442 = vector.extract_strided_slice %441 {offsets = [0, 0], sizes = [32, 2], strides = [1, 1]} : vector<32x14xf32> to vector<32x2xf32>
    %443 = vector.extract_strided_slice %441 {offsets = [0, 2], sizes = [32, 12], strides = [1, 1]} : vector<32x14xf32> to vector<32x12xf32>
    %444 = vector.extract_strided_slice %443 {offsets = [0, 0], sizes = [32, 1], strides = [1, 1]} : vector<32x12xf32> to vector<32x1xf32>
    %445 = arith.addf %295, %444 : vector<32x1xf32>
    %446 = vector.extract_strided_slice %443 {offsets = [0, 1], sizes = [32, 1], strides = [1, 1]} : vector<32x12xf32> to vector<32x1xf32>
    %447 = arith.addf %297, %446 : vector<32x1xf32>
    %448 = vector.extract_strided_slice %443 {offsets = [0, 2], sizes = [32, 1], strides = [1, 1]} : vector<32x12xf32> to vector<32x1xf32>
    %449 = arith.addf %299, %448 : vector<32x1xf32>
    %450 = vector.extract_strided_slice %443 {offsets = [0, 3], sizes = [32, 1], strides = [1, 1]} : vector<32x12xf32> to vector<32x1xf32>
    %cst_148 = arith.constant 3.14159274 : f32
    %451 = vector.broadcast %cst_148 : f32 to vector<32x1xf32>
    %452 = arith.mulf %449, %451 : vector<32x1xf32>
    %cst_149 = arith.constant 9.99999974E-6 : f32
    %453 = vector.broadcast %cst_149 : f32 to vector<32x1xf32>
    %454 = arith.addf %452, %453 : vector<32x1xf32>
    %455 = math.cos %454 : vector<32x1xf32>
    %456 = math.sin %454 : vector<32x1xf32>
    %457 = arith.divf %455, %456 : vector<32x1xf32>
    %cst_150 = arith.constant 6.300000e+01 : f32
    %458 = vector.broadcast %cst_150 : f32 to vector<32x1xf32>
    %459 = arith.mulf %447, %458 : vector<32x1xf32>
    %cst_151 = arith.constant 1.000000e+00 : f32
    %460 = vector.broadcast %cst_151 : f32 to vector<1x8xf32>
    %461 = arith.subf %460, %1 : vector<1x8xf32>
    %462 = vector.broadcast %461 : vector<1x8xf32> to vector<32x8xf32>
    %463 = vector.broadcast %445 : vector<32x1xf32> to vector<32x8xf32>
    %464 = arith.subf %462, %463 : vector<32x8xf32>
    %cst_152 = arith.constant 3.200000e+01 : f32
    %465 = vector.broadcast %cst_152 : f32 to vector<32x8xf32>
    %466 = arith.mulf %464, %465 : vector<32x8xf32>
    %467 = vector.broadcast %457 : vector<32x1xf32> to vector<32x8xf32>
    %468 = arith.mulf %466, %467 : vector<32x8xf32>
    %469 = vector.broadcast %459 : vector<32x1xf32> to vector<32x8xf32>
    %470 = arith.addf %469, %468 : vector<32x8xf32>
    %cst_153 = arith.constant 0.0158730168 : f32
    %471 = vector.broadcast %cst_153 : f32 to vector<32x8xf32>
    %472 = arith.mulf %470, %471 : vector<32x8xf32>
    %473 = vector.extract_strided_slice %443 {offsets = [0, 4], sizes = [32, 8], strides = [1, 1]} : vector<32x12xf32> to vector<32x8xf32>
    %474 = arith.addf %472, %473 : vector<32x8xf32>
    %475 = tpu.concatenate %442, %445, %447, %449, %450, %474 in 1 : vector<32x2xf32>, vector<32x1xf32>, vector<32x1xf32>, vector<32x1xf32>, vector<32x1xf32>, vector<32x8xf32> -> vector<32x14xf32>
    %c0_154 = arith.constant 0 : index
    %c0_155 = arith.constant 0 : index
    %c0_156 = arith.constant 0 : index
    %476 = vector.load %arg9[%c0_154, %c0_155, %c0_156] : memref<1x32x14xf32, #tpu.memory_space<vmem>>, vector<1x32x14xf32>
    %477 = vector.shape_cast %476 : vector<1x32x14xf32> to vector<32x14xf32>
    %478 = vector.shape_cast %475 : vector<32x14xf32> to vector<1x32x14xf32>
    tpu.vector_store %arg9[%c0_154, %c0_155, %c0_156], %478 {strides = array<i32>} : memref<1x32x14xf32, #tpu.memory_space<vmem>>, vector<1x32x14xf32>,
    return
  }
  func.func @transform_0(%arg0: i32) -> (i32, i32, i32) {
    %c0_i32 = arith.constant 0 : i32
    %c0_i32_0 = arith.constant 0 : i32
    %c0_i32_1 = arith.constant 0 : i32
    return %arg0, %c0_i32, %c0_i32_0 : i32, i32, i32
  }
  func.func @transform_1(%arg0: i32) -> (i32, i32, i32) {
    %c0_i32 = arith.constant 0 : i32
    %c0_i32_0 = arith.constant 0 : i32
    %c0_i32_1 = arith.constant 0 : i32
    return %arg0, %c0_i32, %c0_i32_0 : i32, i32, i32
  }
  func.func @transform_2(%arg0: i32) -> (i32, i32, i32) {
    %c0_i32 = arith.constant 0 : i32
    %c0_i32_0 = arith.constant 0 : i32
    %c0_i32_1 = arith.constant 0 : i32
    return %arg0, %c0_i32, %c0_i32_0 : i32, i32, i32
  }
  func.func @transform_3(%arg0: i32) -> (i32, i32, i32) {
    %c0_i32 = arith.constant 0 : i32
    %c0_i32_0 = arith.constant 0 : i32
    %c0_i32_1 = arith.constant 0 : i32
    return %arg0, %c0_i32, %c0_i32_0 : i32, i32, i32
  }
  func.func @transform_4(%arg0: i32) -> (i32, i32, i32) {
    %c0_i32 = arith.constant 0 : i32
    %c0_i32_0 = arith.constant 0 : i32
    %c0_i32_1 = arith.constant 0 : i32
    return %arg0, %c0_i32, %c0_i32_0 : i32, i32, i32
  }
  func.func @transform_5(%arg0: i32) -> (i32, i32, i32) {
    %c0_i32 = arith.constant 0 : i32
    %c0_i32_0 = arith.constant 0 : i32
    %c0_i32_1 = arith.constant 0 : i32
    return %arg0, %c0_i32, %c0_i32_0 : i32, i32, i32
  }
  func.func @transform_6(%arg0: i32) -> (i32, i32) {
    %c0_i32 = arith.constant 0 : i32
    %c0_i32_0 = arith.constant 0 : i32
    %c0_i32_1 = arith.constant 0 : i32
    return %c0_i32, %c0_i32_0 : i32, i32
  }
  func.func @transform_7(%arg0: i32) -> (i32, i32) {
    %c0_i32 = arith.constant 0 : i32
    %c0_i32_0 = arith.constant 0 : i32
    %c0_i32_1 = arith.constant 0 : i32
    return %c0_i32, %c0_i32_0 : i32, i32
  }
  func.func @transform_8(%arg0: i32) -> (i32, i32, i32) {
    %c0_i32 = arith.constant 0 : i32
    %c0_i32_0 = arith.constant 0 : i32
    %c0_i32_1 = arith.constant 0 : i32
    return %arg0, %c0_i32, %c0_i32_0 : i32, i32, i32
  }
}

</mosaic_0001>

<llo_original>
// kernel: tpu_custom_call.1
$region0: #{tpu_custom_call.1}
  #allocation0 [shape = 'u32[]', space=smem, size = 0x4, offset = 0x4, fixed_abs, tag = 'smem constant byte address 0x4 - core index']
  #allocation1 [shape = 'u32[72,128]{1,0:T(1,128)}', space=vmem, size = 0x9000, scoped, tag = 'internal scratch']
  %s0 = inlined_call_operand.vmem [shape: bf16[2,8,16], index: 0, kind: input, shape index: {}]
  %s1 = inlined_call_operand.vmem [shape: bf16[2,8,64], index: 1, kind: input, shape index: {}]
  %s2 = inlined_call_operand.vmem [shape: bf16[2,8,256], index: 2, kind: input, shape index: {}]
  %s3 = inlined_call_operand.vmem [shape: bf16[2,32,4], index: 3, kind: input, shape index: {}]
  %s4 = inlined_call_operand.vmem [shape: bf16[2,64,8], index: 4, kind: input, shape index: {}]
  %s5 = inlined_call_operand.vmem [shape: bf16[2,128,16], index: 5, kind: input, shape index: {}]
  %s6 = inlined_call_operand.vmem [shape: f32[296,128], index: 6, kind: input, shape index: {}]
  %s7 = inlined_call_operand.vmem [shape: bf16[896,8], index: 7, kind: input, shape index: {}]
  %s8 = inlined_call_operand.vmem [shape: f32[2,32,14], index: 8, kind: output, shape index: {}]
  %s9 = sld [smem:[#allocation0]]
  $region65: #{tpu_custom_call.1} parent=0
    _
  %s11 = ssub.s32 1, %s9
  %s12 = scalar_select 0, %s11, %s9
  loop: start=0, step=1, limit=4
  $region2: #{tpu_custom_call.1} parent=0 // loop_pre_header
    _
  $region3: #{tpu_custom_call.1} parent=0 // loop_header
    %s14 = sphi 0, %s18
    %p15 = scmp.ge.s32.totalorder %s14, 4
    %s24 = sphi 0, %s26
    %s27 = sphi 0, %s24
    %s28 = sphi 0, %s27
    %s44 = sphi 0, %s28
    %s50 = sphi 0, %s52
    %s53 = sphi 0, %s50
    %s54 = sphi 0, %s53
    %s70 = sphi 0, %s54
    %s76 = sphi 0, %s78
    %s79 = sphi 0, %s76
    %s80 = sphi 0, %s79
    %s96 = sphi 0, %s80
    %s102 = sphi 0, %s104
    %s105 = sphi 0, %s102
    %s106 = sphi 0, %s105
    %s122 = sphi 0, %s106
    %s128 = sphi 0, %s130
    %s131 = sphi 0, %s128
    %s132 = sphi 0, %s131
    %s148 = sphi 0, %s132
    %s154 = sphi 0, %s156
    %s157 = sphi 0, %s154
    %s158 = sphi 0, %s157
    %s174 = sphi 0, %s158
    %s178 = sphi 0, %s178
    %s180 = sphi 0, %s178
    %s181 = sphi 0, %s180
    %s195 = sphi 0, %s181
    %s199 = sphi 0, %s199
    %s201 = sphi 0, %s199
    %s202 = sphi 0, %s201
    %s216 = sphi 0, %s202
    %s222 = sphi 0, %s224
    %s225 = sphi 0, %s222
    %s226 = sphi 0, %s225
    %s242 = sphi 0, %s226
  $region4: #{tpu_custom_call.1} parent=0 // loop_header_branch
    %17 = sbr.rel (%p15) target = $region8
  $region5: #{tpu_custom_call.1} parent=0 // loop_body
    %s19 = ssub.s32 %s14, 1
    %s20 = ssub.s32 %s14, 2
    %s21 = sadd.s32 %s14, 1
    %s22 = ssub.s32 %s14, %s21
    %p23 = scmp.eq.s32.totalorder %s22, 0
    %s25 = sadd.s32 %s24, 1
    %s26 = scalar_select %p23, %s24, %s25
    %p29 = pneg %p23
    %p30 = scmp.eq.s32.totalorder %s14, 1
    %p31 = por %p29, %p30
    %p32 = scmp.ne.s32.totalorder %s24, %s27
    %p33 = scmp.eq.s32.totalorder %s14, 0
    %p34 = por %p32, %p33
    %p35 = scmp.ne.s32.totalorder %s24, %s27
    %p36 = scmp.eq.s32.totalorder %s19, 1
    %p37 = por %p35, %p36
    %p38 = scmp.ne.s32.totalorder %s27, %s28
    %p39 = scmp.eq.s32.totalorder %s19, 0
    %p40 = por %p38, %p39
    %p41 = scmp.ne.s32.totalorder %s27, %s28
    %p42 = scmp.eq.s32.totalorder %s20, 1
    %p43 = por %p41, %p42
    %p45 = scmp.ne.s32.totalorder %s28, %s44
    %p46 = scmp.eq.s32.totalorder %s20, 0
    %p47 = por %p45, %p46
    %s48 = ssub.s32 %s14, %s21
    %p49 = scmp.eq.s32.totalorder %s48, 0
    %s51 = sadd.s32 %s50, 1
    %s52 = scalar_select %p49, %s50, %s51
    %p55 = pneg %p49
    %p56 = scmp.eq.s32.totalorder %s14, 1
    %p57 = por %p55, %p56
    %p58 = scmp.ne.s32.totalorder %s50, %s53
    %p59 = scmp.eq.s32.totalorder %s14, 0
    %p60 = por %p58, %p59
    %p61 = scmp.ne.s32.totalorder %s50, %s53
    %p62 = scmp.eq.s32.totalorder %s19, 1
    %p63 = por %p61, %p62
    %p64 = scmp.ne.s32.totalorder %s53, %s54
    %p65 = scmp.eq.s32.totalorder %s19, 0
    %p66 = por %p64, %p65
    %p67 = scmp.ne.s32.totalorder %s53, %s54
    %p68 = scmp.eq.s32.totalorder %s20, 1
    %p69 = por %p67, %p68
    %p71 = scmp.ne.s32.totalorder %s54, %s70
    %p72 = scmp.eq.s32.totalorder %s20, 0
    %p73 = por %p71, %p72
    %s74 = ssub.s32 %s14, %s21
    %p75 = scmp.eq.s32.totalorder %s74, 0
    %s77 = sadd.s32 %s76, 1
    %s78 = scalar_select %p75, %s76, %s77
    %p81 = pneg %p75
    %p82 = scmp.eq.s32.totalorder %s14, 1
    %p83 = por %p81, %p82
    %p84 = scmp.ne.s32.totalorder %s76, %s79
    %p85 = scmp.eq.s32.totalorder %s14, 0
    %p86 = por %p84, %p85
    %p87 = scmp.ne.s32.totalorder %s76, %s79
    %p88 = scmp.eq.s32.totalorder %s19, 1
    %p89 = por %p87, %p88
    %p90 = scmp.ne.s32.totalorder %s79, %s80
    %p91 = scmp.eq.s32.totalorder %s19, 0
    %p92 = por %p90, %p91
    %p93 = scmp.ne.s32.totalorder %s79, %s80
    %p94 = scmp.eq.s32.totalorder %s20, 1
    %p95 = por %p93, %p94
    %p97 = scmp.ne.s32.totalorder %s80, %s96
    %p98 = scmp.eq.s32.totalorder %s20, 0
    %p99 = por %p97, %p98
    %s100 = ssub.s32 %s14, %s21
    %p101 = scmp.eq.s32.totalorder %s100, 0
    %s103 = sadd.s32 %s102, 1
    %s104 = scalar_select %p101, %s102, %s103
    %p107 = pneg %p101
    %p108 = scmp.eq.s32.totalorder %s14, 1
    %p109 = por %p107, %p108
    %p110 = scmp.ne.s32.totalorder %s102, %s105
    %p111 = scmp.eq.s32.totalorder %s14, 0
    %p112 = por %p110, %p111
    %p113 = scmp.ne.s32.totalorder %s102, %s105
    %p114 = scmp.eq.s32.totalorder %s19, 1
    %p115 = por %p113, %p114
    %p116 = scmp.ne.s32.totalorder %s105, %s106
    %p117 = scmp.eq.s32.totalorder %s19, 0
    %p118 = por %p116, %p117
    %p119 = scmp.ne.s32.totalorder %s105, %s106
    %p120 = scmp.eq.s32.totalorder %s20, 1
    %p121 = por %p119, %p120
    %p123 = scmp.ne.s32.totalorder %s106, %s122
    %p124 = scmp.eq.s32.totalorder %s20, 0
    %p125 = por %p123, %p124
    %s126 = ssub.s32 %s14, %s21
    %p127 = scmp.eq.s32.totalorder %s126, 0
    %s129 = sadd.s32 %s128, 1
    %s130 = scalar_select %p127, %s128, %s129
    %p133 = pneg %p127
    %p134 = scmp.eq.s32.totalorder %s14, 1
    %p135 = por %p133, %p134
    %p136 = scmp.ne.s32.totalorder %s128, %s131
    %p137 = scmp.eq.s32.totalorder %s14, 0
    %p138 = por %p136, %p137
    %p139 = scmp.ne.s32.totalorder %s128, %s131
    %p140 = scmp.eq.s32.totalorder %s19, 1
    %p141 = por %p139, %p140
    %p142 = scmp.ne.s32.totalorder %s131, %s132
    %p143 = scmp.eq.s32.totalorder %s19, 0
    %p144 = por %p142, %p143
    %p145 = scmp.ne.s32.totalorder %s131, %s132
    %p146 = scmp.eq.s32.totalorder %s20, 1
    %p147 = por %p145, %p146
    %p149 = scmp.ne.s32.totalorder %s132, %s148
    %p150 = scmp.eq.s32.totalorder %s20, 0
    %p151 = por %p149, %p150
    %s152 = ssub.s32 %s14, %s21
    %p153 = scmp.eq.s32.totalorder %s152, 0
    %s155 = sadd.s32 %s154, 1
    %s156 = scalar_select %p153, %s154, %s155
    %p159 = pneg %p153
    %p160 = scmp.eq.s32.totalorder %s14, 1
    %p161 = por %p159, %p160
    %p162 = scmp.ne.s32.totalorder %s154, %s157
    %p163 = scmp.eq.s32.totalorder %s14, 0
    %p164 = por %p162, %p163
    %p165 = scmp.ne.s32.totalorder %s154, %s157
    %p166 = scmp.eq.s32.totalorder %s19, 1
    %p167 = por %p165, %p166
    %p168 = scmp.ne.s32.totalorder %s157, %s158
    %p169 = scmp.eq.s32.totalorder %s19, 0
    %p170 = por %p168, %p169
    %p171 = scmp.ne.s32.totalorder %s157, %s158
    %p172 = scmp.eq.s32.totalorder %s20, 1
    %p173 = por %p171, %p172
    %p175 = scmp.ne.s32.totalorder %s158, %s174
    %p176 = scmp.eq.s32.totalorder %s20, 0
    %p177 = por %p175, %p176
    %s179 = sadd.s32 %s178, 1
    %p182 = scmp.eq.s32.totalorder %s14, 1
    %p183 = scmp.ne.s32.totalorder %s178, %s180
    %p184 = scmp.eq.s32.totalorder %s14, 0
    %p185 = por %p183, %p184
    %p186 = scmp.ne.s32.totalorder %s178, %s180
    %p187 = scmp.eq.s32.totalorder %s19, 1
    %p188 = por %p186, %p187
    %p189 = scmp.ne.s32.totalorder %s180, %s181
    %p190 = scmp.eq.s32.totalorder %s19, 0
    %p191 = por %p189, %p190
    %p192 = scmp.ne.s32.totalorder %s180, %s181
    %p193 = scmp.eq.s32.totalorder %s20, 1
    %p194 = por %p192, %p193
    %p196 = scmp.ne.s32.totalorder %s181, %s195
    %p197 = scmp.eq.s32.totalorder %s20, 0
    %p198 = por %p196, %p197
    %s200 = sadd.s32 %s199, 1
    %p203 = scmp.eq.s32.totalorder %s14, 1
    %p204 = scmp.ne.s32.totalorder %s199, %s201
    %p205 = scmp.eq.s32.totalorder %s14, 0
    %p206 = por %p204, %p205
    %p207 = scmp.ne.s32.totalorder %s199, %s201
    %p208 = scmp.eq.s32.totalorder %s19, 1
    %p209 = por %p207, %p208
    %p210 = scmp.ne.s32.totalorder %s201, %s202
    %p211 = scmp.eq.s32.totalorder %s19, 0
    %p212 = por %p210, %p211
    %p213 = scmp.ne.s32.totalorder %s201, %s202
    %p214 = scmp.eq.s32.totalorder %s20, 1
    %p215 = por %p213, %p214
    %p217 = scmp.ne.s32.totalorder %s202, %s216
    %p218 = scmp.eq.s32.totalorder %s20, 0
    %p219 = por %p217, %p218
    %s220 = ssub.s32 %s14, %s21
    %p221 = scmp.eq.s32.totalorder %s220, 0
    %s223 = sadd.s32 %s222, 1
    %s224 = scalar_select %p221, %s222, %s223
    %p227 = pneg %p221
    %p228 = scmp.eq.s32.totalorder %s14, 1
    %p229 = por %p227, %p228
    %p230 = scmp.ne.s32.totalorder %s222, %s225
    %p231 = scmp.eq.s32.totalorder %s14, 0
    %p232 = por %p230, %p231
    %p233 = scmp.ne.s32.totalorder %s222, %s225
    %p234 = scmp.eq.s32.totalorder %s19, 1
    %p235 = por %p233, %p234
    %p236 = scmp.ne.s32.totalorder %s225, %s226
    %p237 = scmp.eq.s32.totalorder %s19, 0
    %p238 = por %p236, %p237
    %p239 = scmp.ne.s32.totalorder %s225, %s226
    %p240 = scmp.eq.s32.totalorder %s20, 1
    %p241 = por %p239, %p240
    %p243 = scmp.ne.s32.totalorder %s226, %s242
    %p244 = scmp.eq.s32.totalorder %s20, 0
    %p245 = por %p243, %p244
    %p246 = scmp.le.s32.totalorder 1, %s14
    %p247 = scmp.lt.s32.totalorder %s14, 3
    %p248 = pnand %p246, %p247
    %p249 = pneg %p248
    // Predicated region
    $region9: #{tpu_custom_call.1} parent=5 // pred_check
      _
    $region10: #{tpu_custom_call.1} parent=5 // pred_check_branch
      %251 = sbr.rel (%p248) target = $region12
    $region11: #{tpu_custom_call.1} parent=5 // pred_region
      %s252 = ssub.s32 %s14, 1
      // Predicated region
      $region13: #{tpu_custom_call.1} parent=11 // pred_check
        %p253 = pneg %p191
      $region14: #{tpu_custom_call.1} parent=11 // pred_check_branch
        %255 = sbr.rel (%p253) target = $region16
      $region15: #{tpu_custom_call.1} parent=11 // pred_region
        _
      $region16: #{tpu_custom_call.1} parent=11 // pred_fallthru
        _
      // Predicated region
      $region17: #{tpu_custom_call.1} parent=11 // pred_check
        %p256 = pneg %p212
      $region18: #{tpu_custom_call.1} parent=11 // pred_check_branch
        %258 = sbr.rel (%p256) target = $region20
      $region19: #{tpu_custom_call.1} parent=11 // pred_region
        _
      $region20: #{tpu_custom_call.1} parent=11 // pred_fallthru
        _
    $region12: #{tpu_custom_call.1} parent=5 // pred_fallthru
      _
    %p259 = scmp.lt.s32.totalorder %s14, 2
    // Predicated region
    $region21: #{tpu_custom_call.1} parent=5 // pred_check
      %p260 = pneg %p259
    $region22: #{tpu_custom_call.1} parent=5 // pred_check_branch
      %262 = sbr.rel (%p260) target = $region24
    $region23: #{tpu_custom_call.1} parent=5 // pred_region
      // Predicated region
      $region25: #{tpu_custom_call.1} parent=23 // pred_check
        %p263 = pneg %p34
      $region26: #{tpu_custom_call.1} parent=23 // pred_check_branch
        %265 = sbr.rel (%p263) target = $region28
      $region27: #{tpu_custom_call.1} parent=23 // pred_region
        %p266 = scmp.lt.s32.totalorder %s14, 1
        %s267 = scalar_select %p266, %s14, 1
        %s268 = smul.addr %s267, 4
        %s269 = scalar_lea.vmem %s0, %s268
      $region28: #{tpu_custom_call.1} parent=23 // pred_fallthru
        _
      // Predicated region
      $region29: #{tpu_custom_call.1} parent=23 // pred_check
        %p270 = pneg %p60
      $region30: #{tpu_custom_call.1} parent=23 // pred_check_branch
        %272 = sbr.rel (%p270) target = $region32
      $region31: #{tpu_custom_call.1} parent=23 // pred_region
        %p273 = scmp.lt.s32.totalorder %s14, 1
        %s274 = scalar_select %p273, %s14, 1
        %s275 = smul.addr %s274, 4
        %s276 = scalar_lea.vmem %s1, %s275
      $region32: #{tpu_custom_call.1} parent=23 // pred_fallthru
        _
      // Predicated region
      $region33: #{tpu_custom_call.1} parent=23 // pred_check
        %p277 = pneg %p86
      $region34: #{tpu_custom_call.1} parent=23 // pred_check_branch
        %279 = sbr.rel (%p277) target = $region36
      $region35: #{tpu_custom_call.1} parent=23 // pred_region
        %p280 = scmp.lt.s32.totalorder %s14, 1
        %s281 = scalar_select %p280, %s14, 1
        %s282 = smul.addr %s281, 2
        %s283 = smul.addr %s282, 4
        %s284 = scalar_lea.vmem %s2, %s283
      $region36: #{tpu_custom_call.1} parent=23 // pred_fallthru
        _
      // Predicated region
      $region37: #{tpu_custom_call.1} parent=23 // pred_check
        %p285 = pneg %p112
      $region38: #{tpu_custom_call.1} parent=23 // pred_check_branch
        %287 = sbr.rel (%p285) target = $region40
      $region39: #{tpu_custom_call.1} parent=23 // pred_region
        %p288 = scmp.lt.s32.totalorder %s14, 1
        %s289 = scalar_select %p288, %s14, 1
        %s290 = smul.addr %s289, 4
        %s291 = smul.addr %s290, 4
        %s292 = scalar_lea.vmem %s3, %s291
      $region40: #{tpu_custom_call.1} parent=23 // pred_fallthru
        _
      // Predicated region
      $region41: #{tpu_custom_call.1} parent=23 // pred_check
        %p293 = pneg %p138
      $region42: #{tpu_custom_call.1} parent=23 // pred_check_branch
        %295 = sbr.rel (%p293) target = $region44
      $region43: #{tpu_custom_call.1} parent=23 // pred_region
        %p296 = scmp.lt.s32.totalorder %s14, 1
        %s297 = scalar_select %p296, %s14, 1
        %s298 = smul.addr %s297, 8
        %s299 = smul.addr %s298, 4
        %s300 = scalar_lea.vmem %s4, %s299
      $region44: #{tpu_custom_call.1} parent=23 // pred_fallthru
        _
      // Predicated region
      $region45: #{tpu_custom_call.1} parent=23 // pred_check
        %p301 = pneg %p164
      $region46: #{tpu_custom_call.1} parent=23 // pred_check_branch
        %303 = sbr.rel (%p301) target = $region48
      $region47: #{tpu_custom_call.1} parent=23 // pred_region
        %p304 = scmp.lt.s32.totalorder %s14, 1
        %s305 = scalar_select %p304, %s14, 1
        %s306 = smul.addr %s305, 16
        %s307 = smul.addr %s306, 4
        %s308 = scalar_lea.vmem %s5, %s307
      $region48: #{tpu_custom_call.1} parent=23 // pred_fallthru
        _
    $region24: #{tpu_custom_call.1} parent=5 // pred_fallthru
      _
    %p309 = scmp.le.s32.totalorder 1, %s14
    %p310 = scmp.lt.s32.totalorder %s14, 3
    %p311 = pnand %p309, %p310
    %p312 = pneg %p311
    // Predicated region
    $region49: #{tpu_custom_call.1} parent=5 // pred_check
      _
    $region50: #{tpu_custom_call.1} parent=5 // pred_check_branch
      %314 = sbr.rel (%p311) target = $region52
    $region51: #{tpu_custom_call.1} parent=5 // pred_region
      %s315 = ssub.s32 %s14, 1
      %p316 = scmp.lt.s32.totalorder %s19, 1
      %s317 = scalar_select %p316, %s19, 1
      %s318 = smul.addr %s317, 4
      %s319 = scalar_lea.vmem %s0, %s318
      %p320 = pneg %p40
      %p321 = pneg %p37
      %p322 = scmp.lt.s32.totalorder %s19, 1
      %s323 = scalar_select %p322, %s19, 1
      %s324 = smul.addr %s323, 4
      %s325 = scalar_lea.vmem %s1, %s324
      %p326 = pneg %p66
      %p327 = pneg %p63
      %p328 = scmp.lt.s32.totalorder %s19, 1
      %s329 = scalar_select %p328, %s19, 1
      %s330 = smul.addr %s329, 2
      %s331 = smul.addr %s330, 4
      %s332 = scalar_lea.vmem %s2, %s331
      %p333 = pneg %p92
      %p334 = pneg %p89
      %p335 = scmp.lt.s32.totalorder %s19, 1
      %s336 = scalar_select %p335, %s19, 1
      %s337 = smul.addr %s336, 4
      %s338 = smul.addr %s337, 4
      %s339 = scalar_lea.vmem %s3, %s338
      %p340 = pneg %p118
      %p341 = pneg %p115
      %p342 = scmp.lt.s32.totalorder %s19, 1
      %s343 = scalar_select %p342, %s19, 1
      %s344 = smul.addr %s343, 8
      %s345 = smul.addr %s344, 4
      %s346 = scalar_lea.vmem %s4, %s345
      %p347 = pneg %p144
      %p348 = pneg %p141
      %p349 = scmp.lt.s32.totalorder %s19, 1
      %s350 = scalar_select %p349, %s19, 1
      %s351 = smul.addr %s350, 16
      %s352 = smul.addr %s351, 4
      %s353 = scalar_lea.vmem %s5, %s352
      %p354 = pneg %p170
      %p355 = pneg %p167
      %p356 = pneg %p191
      %p357 = pneg %p188
      %p358 = pneg %p212
      %p359 = pneg %p209
      %p360 = pneg %p238
      %p361 = pneg %p235
      %p362 = scmp.lt.s32.totalorder %s19, 1
      %s363 = scalar_select %p362, %s19, 1
      %s364 = smul.addr %s363, 4
      %s365 = smul.addr %s364, 8
      %s366 = scalar_lea.vmem %s8, %s365
      %p367 = scmp.lt.s32.totalorder %s19, 1
      %s368 = scalar_select %p367, %s19, 1
      %s369 = smul.addr %s368, 4
      %s370 = scalar_lea.vmem %s0, %s369
      %p371 = scmp.lt.s32.totalorder %s19, 1
      %s372 = scalar_select %p371, %s19, 1
      %s373 = smul.addr %s372, 4
      %s374 = scalar_lea.vmem %s1, %s373
      %p375 = scmp.lt.s32.totalorder %s19, 1
      %s376 = scalar_select %p375, %s19, 1
      %s377 = smul.addr %s376, 2
      %s378 = smul.addr %s377, 4
      %s379 = scalar_lea.vmem %s2, %s378
      %p380 = scmp.lt.s32.totalorder %s19, 1
      %s381 = scalar_select %p380, %s19, 1
      %s382 = smul.addr %s381, 4
      %s383 = smul.addr %s382, 4
      %s384 = scalar_lea.vmem %s3, %s383
      %p385 = scmp.lt.s32.totalorder %s19, 1
      %s386 = scalar_select %p385, %s19, 1
      %s387 = smul.addr %s386, 8
      %s388 = smul.addr %s387, 4
      %s389 = scalar_lea.vmem %s4, %s388
      %p390 = scmp.lt.s32.totalorder %s19, 1
      %s391 = scalar_select %p390, %s19, 1
      %s392 = smul.addr %s391, 16
      %s393 = smul.addr %s392, 4
      %s394 = scalar_lea.vmem %s5, %s393
      %p395 = scmp.lt.s32.totalorder %s19, 1
      %s396 = scalar_select %p395, %s19, 1
      %s397 = smul.addr %s396, 4
      %s398 = smul.addr %s397, 8
      %s399 = scalar_lea.vmem %s8, %s398
      %v401 = vld [vmem:[%s6] sm:$0xff]
      %v402 = vld [vmem:[%s6 + $0x8] sm:$0xff]
      %v403 = vld [vmem:[%s6 + $0x10] sm:$0xff]
      %v404 = vld [vmem:[%s6 + $0x18] sm:$0xff]
      %v405 = vld [vmem:[%s6 + $0x20] sm:$0x1]
      %v406 = vld [vmem:[%s6 + $0x28] sm:$0x1]
      %v407 = vld [vmem:[%s6 + $0x30] sm:$0x1]
      %v408 = vld [vmem:[%s6 + $0x38] sm:$0x1]
      %v409 = vld [vmem:[%s6 + $0x40] sm:$0x1]
      %v410 = vld [vmem:[%s6 + $0x48] sm:$0xff]
      %v411 = vld [vmem:[%s6 + $0x50] sm:$0xff]
      %v412 = vpack.c.bf16 %v411, %v410
      %v413 = vld [vmem:[%s6 + $0x58] sm:$0xff]
      %v414 = vld [vmem:[%s6 + $0x60] sm:$0xff]
      %v415 = vld [vmem:[%s6 + $0x68] sm:$0xff]
      %v416 = vld [vmem:[%s6 + $0x70] sm:$0xff]
      %v417 = vld [vmem:[%s6 + $0x78] sm:$0xff]
      %v418 = vld [vmem:[%s6 + $0x80] sm:$0xff]
      %v419 = vld [vmem:[%s6 + $0x88] sm:$0xff]
      %v420 = vld [vmem:[%s6 + $0x90] sm:$0xff]
      %v421 = vld [vmem:[%s6 + $0x98] sm:$0xff]
      %v422 = vld [vmem:[%s6 + $0xa0] sm:$0xff]
      %v423 = vld [vmem:[%s6 + $0xa8] sm:$0xff]
      %v424 = vld [vmem:[%s6 + $0xb0] sm:$0xff]
      %v425 = vld [vmem:[%s6 + $0xb8] sm:$0xff]
      %v426 = vld [vmem:[%s6 + $0xc0] sm:$0xff]
      %v427 = vld [vmem:[%s6 + $0xc8] sm:$0xff]
      %v428 = vld [vmem:[%s6 + $0xd0] sm:$0xff]
      %v429 = vld [vmem:[%s6 + $0xd8] sm:$0xff]
      %v430 = vld [vmem:[%s6 + $0xe0] sm:$0xff]
      %v431 = vld [vmem:[%s6 + $0xe8] sm:$0xff]
      %v432 = vld [vmem:[%s6 + $0xf0] sm:$0x1]
      %v433 = vld [vmem:[%s6 + $0xf8] sm:$0xff]
      %v434 = vld [vmem:[%s6 + $0x100] sm:$0xff]
      %v435 = vld [vmem:[%s6 + $0x108] sm:$0x1]
      %v436 = vld [vmem:[%s6 + $0x110] sm:$0xff]
      %v437 = vld [vmem:[%s6 + $0x118] sm:$0xff]
      %v438 = vld [vmem:[%s6 + $0x120] sm:$0x1]
      %v439 = vld [vmem:[%s384] sm:$0xf]
      %v440 = vld [vmem:[%s384 + $0x4] sm:$0xf]
      %v441 = vld [vmem:[%s384 + $0x8] sm:$0xf]
      %v442 = vld [vmem:[%s384 + $0xc] sm:$0xf]
      %v443 = vld [vmem:[%s370] sm:$0xf]
      %448 = vrot.lane.b32.xlu0 %v401, 3
      %v449 = vpop.permute.xlu0 %448
      %450 = vrot.lane.b32.xlu0 %v402, 3
      %v451 = vpop.permute.xlu0 %450
      %452 = vrot.lane.b32.xlu0 %v403, 3
      %v453 = vpop.permute.xlu0 %452
      %454 = vrot.lane.b32.xlu0 %v404, 3
      %v455 = vpop.permute.xlu0 %454
      %460 = vrot.lane.b32.xlu0 %v401, 5
      %v461 = vpop.permute.xlu0 %460
      %462 = vrot.lane.b32.xlu0 %v402, 5
      %v463 = vpop.permute.xlu0 %462
      %464 = vrot.lane.b32.xlu0 %v403, 5
      %v465 = vpop.permute.xlu0 %464
      %466 = vrot.lane.b32.xlu0 %v404, 5
      %v467 = vpop.permute.xlu0 %466
      %472 = vrot.lane.b32.xlu0 %v401, 7
      %v473 = vpop.permute.xlu0 %472
      %474 = vrot.lane.b32.xlu0 %v402, 7
      %v475 = vpop.permute.xlu0 %474
      %476 = vrot.lane.b32.xlu0 %v403, 7
      %v477 = vpop.permute.xlu0 %476
      %478 = vrot.lane.b32.xlu0 %v404, 7
      %v479 = vpop.permute.xlu0 %478
      %v484 = vmul.f32 %v401, 3.0
      %v485 = vmul.f32 %v402, 3.0
      %v486 = vmul.f32 %v403, 3.0
      %v487 = vmul.f32 %v404, 3.0
      %v488 = vmul.f32 %v449, 3.0
      %v489 = vmul.f32 %v451, 3.0
      %v490 = vmul.f32 %v453, 3.0
      %v491 = vmul.f32 %v455, 3.0
      %v492 = vmul.f32 %v461, 3.0
      %v493 = vmul.f32 %v463, 3.0
      %v494 = vmul.f32 %v465, 3.0
      %v495 = vmul.f32 %v467, 3.0
      %v496 = vmul.f32 %v473, 3.0
      %v497 = vmul.f32 %v475, 3.0
      %v498 = vmul.f32 %v477, 3.0
      %v499 = vmul.f32 %v479, 3.0
      %501 = vset.pattern.permute.xlu0 13
      %502 = vperm.xlu0 %501, %v484
      %v503 = vpop.permute.xlu0 %502
      %506 = vset.pattern.permute.xlu0 13
      %507 = vperm.xlu0 %506, %v485
      %v508 = vpop.permute.xlu0 %507
      %511 = vset.pattern.permute.xlu0 13
      %512 = vperm.xlu0 %511, %v486
      %v513 = vpop.permute.xlu0 %512
      %516 = vset.pattern.permute.xlu0 13
      %517 = vperm.xlu0 %516, %v487
      %v518 = vpop.permute.xlu0 %517
      %521 = vset.pattern.permute.xlu0 13
      %522 = vperm.xlu0 %521, %v488
      %v523 = vpop.permute.xlu0 %522
      %526 = vset.pattern.permute.xlu0 13
      %527 = vperm.xlu0 %526, %v489
      %v528 = vpop.permute.xlu0 %527
      %531 = vset.pattern.permute.xlu0 13
      %532 = vperm.xlu0 %531, %v490
      %v533 = vpop.permute.xlu0 %532
      %536 = vset.pattern.permute.xlu0 13
      %537 = vperm.xlu0 %536, %v491
      %v538 = vpop.permute.xlu0 %537
      %541 = vset.pattern.permute.xlu0 13
      %542 = vperm.xlu0 %541, %v492
      %v543 = vpop.permute.xlu0 %542
      %546 = vset.pattern.permute.xlu0 13
      %547 = vperm.xlu0 %546, %v493
      %v548 = vpop.permute.xlu0 %547
      %551 = vset.pattern.permute.xlu0 13
      %552 = vperm.xlu0 %551, %v494
      %v553 = vpop.permute.xlu0 %552
      %556 = vset.pattern.permute.xlu0 13
      %557 = vperm.xlu0 %556, %v495
      %v558 = vpop.permute.xlu0 %557
      %561 = vset.pattern.permute.xlu0 13
      %562 = vperm.xlu0 %561, %v496
      %v563 = vpop.permute.xlu0 %562
      %566 = vset.pattern.permute.xlu0 13
      %567 = vperm.xlu0 %566, %v497
      %v568 = vpop.permute.xlu0 %567
      %571 = vset.pattern.permute.xlu0 13
      %572 = vperm.xlu0 %571, %v498
      %v573 = vpop.permute.xlu0 %572
      %576 = vset.pattern.permute.xlu0 13
      %577 = vperm.xlu0 %576, %v499
      %v578 = vpop.permute.xlu0 %577
      %v580 = vperm.slane %v406, 0
      %v581 = vsub.f32 %v503, %v580
      %v582 = vsub.f32 %v508, %v580
      %v583 = vsub.f32 %v513, %v580
      %v584 = vsub.f32 %v518, %v580
      %v585 = vsub.f32 %v523, %v580
      %v586 = vsub.f32 %v528, %v580
      %v587 = vsub.f32 %v533, %v580
      %v588 = vsub.f32 %v538, %v580
      %v589 = vsub.f32 %v543, %v580
      %v590 = vsub.f32 %v548, %v580
      %v591 = vsub.f32 %v553, %v580
      %v592 = vsub.f32 %v558, %v580
      %v593 = vsub.f32 %v563, %v580
      %v594 = vsub.f32 %v568, %v580
      %v595 = vsub.f32 %v573, %v580
      %v596 = vsub.f32 %v578, %v580
      %v597 = vand.u32 2147483647, %v581
      %v598 = vand.u32 2147483647, %v582
      %v599 = vand.u32 2147483647, %v583
      %v600 = vand.u32 2147483647, %v584
      %v601 = vand.u32 2147483647, %v585
      %v602 = vand.u32 2147483647, %v586
      %v603 = vand.u32 2147483647, %v587
      %v604 = vand.u32 2147483647, %v588
      %v605 = vand.u32 2147483647, %v589
      %v606 = vand.u32 2147483647, %v590
      %v607 = vand.u32 2147483647, %v591
      %v608 = vand.u32 2147483647, %v592
      %v609 = vand.u32 2147483647, %v593
      %v610 = vand.u32 2147483647, %v594
      %v611 = vand.u32 2147483647, %v595
      %v612 = vand.u32 2147483647, %v596
      %v613 = vsub.f32 1.0, %v597
      %v614 = vsub.f32 1.0, %v598
      %v615 = vsub.f32 1.0, %v599
      %v616 = vsub.f32 1.0, %v600
      %v617 = vsub.f32 1.0, %v601
      %v618 = vsub.f32 1.0, %v602
      %v619 = vsub.f32 1.0, %v603
      %v620 = vsub.f32 1.0, %v604
      %v621 = vsub.f32 1.0, %v605
      %v622 = vsub.f32 1.0, %v606
      %v623 = vsub.f32 1.0, %v607
      %v624 = vsub.f32 1.0, %v608
      %v625 = vsub.f32 1.0, %v609
      %v626 = vsub.f32 1.0, %v610
      %v627 = vsub.f32 1.0, %v611
      %v628 = vsub.f32 1.0, %v612
      %v629 = vmax.f32 %v613, 0.0
      %v630 = vmax.f32 %v614, 0.0
      %v631 = vmax.f32 %v615, 0.0
      %v632 = vmax.f32 %v616, 0.0
      %v633 = vmax.f32 %v617, 0.0
      %v634 = vmax.f32 %v618, 0.0
      %v635 = vmax.f32 %v619, 0.0
      %v636 = vmax.f32 %v620, 0.0
      %v637 = vmax.f32 %v621, 0.0
      %v638 = vmax.f32 %v622, 0.0
      %v639 = vmax.f32 %v623, 0.0
      %v640 = vmax.f32 %v624, 0.0
      %v641 = vmax.f32 %v625, 0.0
      %v642 = vmax.f32 %v626, 0.0
      %v643 = vmax.f32 %v627, 0.0
      %v644 = vmax.f32 %v628, 0.0
      %v645 = vpack.c.bf16 %v630, %v629
      %v646 = vpack.c.bf16 %v632, %v631
      %v647 = vpack.c.bf16 %v634, %v633
      %v648 = vpack.c.bf16 %v636, %v635
      %v649 = vpack.c.bf16 %v638, %v637
      %v650 = vpack.c.bf16 %v640, %v639
      %v651 = vpack.c.bf16 %v642, %v641
      %v652 = vpack.c.bf16 %v644, %v643
      %v657 = vunpack.c.l.b16 %v439
      %v658 = vunpack.c.l.b16 %v440
      %v659 = vunpack.c.l.b16 %v441
      %v660 = vunpack.c.l.b16 %v442
      %v661 = vpack.c.b16 %v658, %v657
      %v662 = vpack.c.b16 %v660, %v659
      %vm663 = vcmask 31744
      %v665 = vsel %vm663, %v645, 0
      %v668 = vsel %vm663, %v646, 0
      %v671 = vsel %vm663, %v647, 0
      %v674 = vsel %vm663, %v648, 0
      %v677 = vsel %vm663, %v649, 0
      %v680 = vsel %vm663, %v650, 0
      %v683 = vsel %vm663, %v651, 0
      %v686 = vsel %vm663, %v652, 0
      %v689 = vsel %vm663, %v661, 0
      %v692 = vsel %vm663, %v662, 0
      %694 = vmatpush.bf16.xpose.msra.mxu0 0
      %695 = vmatpush.bf16.xpose.msra.mxu0 0
      %696 = vmatpush.bf16.xpose.msra.mxu0 0
      %697 = vmatpush.bf16.xpose.msra.mxu0 0
      %698 = vmatpush.bf16.xpose.msra.mxu0 0
      %699 = vmatpush.bf16.xpose.msra.mxu0 0
      %700 = vmatpush.bf16.xpose.msra.mxu0 %v692
      %701 = vmatpush.bf16.xpose.msra.mxu0 %v689
      %702 = vmatmul.bf16.gmra.mxu0 %v665
      %v703 = vpop.f32.mrf.mxu0
      %v704 = vadd.f32 0.0, %v703
      %v705 = vpop.f32.mrf.mxu0
      %v706 = vadd.f32 0.0, %v705
      %707 = vmatmul.bf16.gmra.mxu0 %v668
      %v708 = vpop.f32.mrf.mxu0
      %v709 = vadd.f32 0.0, %v708
      %v710 = vpop.f32.mrf.mxu0
      %v711 = vadd.f32 0.0, %v710
      %712 = vmatmul.bf16.gmra.mxu0 %v671
      %v713 = vpop.f32.mrf.mxu0
      %v714 = vadd.f32 0.0, %v713
      %v715 = vpop.f32.mrf.mxu0
      %v716 = vadd.f32 0.0, %v715
      %717 = vmatmul.bf16.gmra.mxu0 %v674
      %v718 = vpop.f32.mrf.mxu0
      %v719 = vadd.f32 0.0, %v718
      %v720 = vpop.f32.mrf.mxu0
      %v721 = vadd.f32 0.0, %v720
      %722 = vmatmul.bf16.gmra.mxu0 %v677
      %v723 = vpop.f32.mrf.mxu0
      %v724 = vadd.f32 0.0, %v723
      %v725 = vpop.f32.mrf.mxu0
      %v726 = vadd.f32 0.0, %v725
      %727 = vmatmul.bf16.gmra.mxu0 %v680
      %v728 = vpop.f32.mrf.mxu0
      %v729 = vadd.f32 0.0, %v728
      %v730 = vpop.f32.mrf.mxu0
      %v731 = vadd.f32 0.0, %v730
      %732 = vmatmul.bf16.gmra.mxu0 %v683
      %v733 = vpop.f32.mrf.mxu0
      %v734 = vadd.f32 0.0, %v733
      %v735 = vpop.f32.mrf.mxu0
      %v736 = vadd.f32 0.0, %v735
      %737 = vmatmul.bf16.gmra.mxu0 %v686
      %v738 = vpop.f32.mrf.mxu0
      %v739 = vadd.f32 0.0, %v738
      %v740 = vpop.f32.mrf.mxu0
      %v741 = vadd.f32 0.0, %v740
      %742 = vdwg.mxu0
      %v743 = vld [vmem:[%s7] sm:$0xf]
      %v744 = vld [vmem:[%s7 + $0x4] sm:$0xf]
      %v745 = vld [vmem:[%s7 + $0x8] sm:$0xf]
      %v746 = vld [vmem:[%s7 + $0xc] sm:$0xf]
      %v747 = vpack.c.bf16 %v706, %v704
      %v748 = vpack.c.bf16 %v711, %v709
      %v753 = vunpack.c.l.b16 %v743
      %v754 = vunpack.c.l.b16 %v744
      %v755 = vunpack.c.l.b16 %v745
      %v756 = vunpack.c.l.b16 %v746
      %v757 = vpack.c.b16 %v754, %v753
      %v758 = vpack.c.b16 %v756, %v755
      %vm761 = vcmask 261120
      %v763 = vsel %vm761, %v747, 0
      %v766 = vsel %vm761, %v748, 0
      %768 = vmatpush.bf16.msra.mxu0 0
      %769 = vmatpush.bf16.msra.mxu0 0
      %770 = vmatpush.bf16.msra.mxu0 0
      %771 = vmatpush.bf16.msra.mxu0 0
      %772 = vmatpush.bf16.msra.mxu0 0
      %773 = vmatpush.bf16.msra.mxu0 0
      %774 = vmatpush.bf16.msra.mxu0 %v758
      %775 = vmatpush.bf16.msra.mxu0 %v757
      %776 = vmatmul.bf16.gmra.mxu0 %v763
      %v777 = vpop.f32.mrf.mxu0
      %v778 = vadd.f32 0.0, %v777
      %v779 = vpop.f32.mrf.mxu0
      %v780 = vadd.f32 0.0, %v779
      %781 = vmatmul.bf16.gmra.mxu0 %v766
      %v782 = vpop.f32.mrf.mxu0
      %v783 = vadd.f32 0.0, %v782
      %v784 = vpop.f32.mrf.mxu0
      %v785 = vadd.f32 0.0, %v784
      %786 = vdwg.mxu0
      %v787 = vperm.slane %v407, 0
      %v788 = vadd.f32 %v787, %v778
      %v789 = vadd.f32 %v787, %v780
      %v790 = vadd.f32 %v787, %v783
      %v791 = vadd.f32 %v787, %v785
      %v792 = vld [vmem:[%s7 + $0x10] sm:$0xf]
      %v793 = vld [vmem:[%s7 + $0x14] sm:$0xf]
      %v794 = vld [vmem:[%s7 + $0x18] sm:$0xf]
      %v795 = vld [vmem:[%s7 + $0x1c] sm:$0xf]
      %v796 = vpack.c.bf16 %v716, %v714
      %v797 = vpack.c.bf16 %v721, %v719
      %v802 = vunpack.c.l.b16 %v792
      %v803 = vunpack.c.l.b16 %v793
      %v804 = vunpack.c.l.b16 %v794
      %v805 = vunpack.c.l.b16 %v795
      %v806 = vpack.c.b16 %v803, %v802
      %v807 = vpack.c.b16 %v805, %v804
      %v811 = vsel %vm761, %v796, 0
      %v814 = vsel %vm761, %v797, 0
      %816 = vmatpush.bf16.msra.mxu0 0
      %817 = vmatpush.bf16.msra.mxu0 0
      %818 = vmatpush.bf16.msra.mxu0 0
      %819 = vmatpush.bf16.msra.mxu0 0
      %820 = vmatpush.bf16.msra.mxu0 0
      %821 = vmatpush.bf16.msra.mxu0 0
      %822 = vmatpush.bf16.msra.mxu0 %v807
      %823 = vmatpush.bf16.msra.mxu0 %v806
      %824 = vmatmul.bf16.gmra.mxu0 %v811
      %v825 = vpop.f32.mrf.mxu0
      %v826 = vadd.f32 0.0, %v825
      %v827 = vpop.f32.mrf.mxu0
      %v828 = vadd.f32 0.0, %v827
      %829 = vmatmul.bf16.gmra.mxu0 %v814
      %v830 = vpop.f32.mrf.mxu0
      %v831 = vadd.f32 0.0, %v830
      %v832 = vpop.f32.mrf.mxu0
      %v833 = vadd.f32 0.0, %v832
      %834 = vdwg.mxu0
      %v835 = vadd.f32 %v788, %v826
      %v836 = vadd.f32 %v789, %v828
      %v837 = vadd.f32 %v790, %v831
      %v838 = vadd.f32 %v791, %v833
      %v839 = vld [vmem:[%s7 + $0x20] sm:$0xf]
      %v840 = vld [vmem:[%s7 + $0x24] sm:$0xf]
      %v841 = vld [vmem:[%s7 + $0x28] sm:$0xf]
      %v842 = vld [vmem:[%s7 + $0x2c] sm:$0xf]
      %v843 = vpack.c.bf16 %v726, %v724
      %v844 = vpack.c.bf16 %v731, %v729
      %v849 = vunpack.c.l.b16 %v839
      %v850 = vunpack.c.l.b16 %v840
      %v851 = vunpack.c.l.b16 %v841
      %v852 = vunpack.c.l.b16 %v842
      %v853 = vpack.c.b16 %v850, %v849
      %v854 = vpack.c.b16 %v852, %v851
      %v858 = vsel %vm761, %v843, 0
      %v861 = vsel %vm761, %v844, 0
      %863 = vmatpush.bf16.msra.mxu0 0
      %864 = vmatpush.bf16.msra.mxu0 0
      %865 = vmatpush.bf16.msra.mxu0 0
      %866 = vmatpush.bf16.msra.mxu0 0
      %867 = vmatpush.bf16.msra.mxu0 0
      %868 = vmatpush.bf16.msra.mxu0 0
      %869 = vmatpush.bf16.msra.mxu0 %v854
      %870 = vmatpush.bf16.msra.mxu0 %v853
      %871 = vmatmul.bf16.gmra.mxu0 %v858
      %v872 = vpop.f32.mrf.mxu0
      %v873 = vadd.f32 0.0, %v872
      %v874 = vpop.f32.mrf.mxu0
      %v875 = vadd.f32 0.0, %v874
      %876 = vmatmul.bf16.gmra.mxu0 %v861
      %v877 = vpop.f32.mrf.mxu0
      %v878 = vadd.f32 0.0, %v877
      %v879 = vpop.f32.mrf.mxu0
      %v880 = vadd.f32 0.0, %v879
      %881 = vdwg.mxu0
      %v882 = vadd.f32 %v835, %v873
      %v883 = vadd.f32 %v836, %v875
      %v884 = vadd.f32 %v837, %v878
      %v885 = vadd.f32 %v838, %v880
      %v886 = vld [vmem:[%s7 + $0x30] sm:$0xf]
      %v887 = vld [vmem:[%s7 + $0x34] sm:$0xf]
      %v888 = vld [vmem:[%s7 + $0x38] sm:$0xf]
      %v889 = vld [vmem:[%s7 + $0x3c] sm:$0xf]
      %v890 = vpack.c.bf16 %v736, %v734
      %v891 = vpack.c.bf16 %v741, %v739
      %v896 = vunpack.c.l.b16 %v886
      %v897 = vunpack.c.l.b16 %v887
      %v898 = vunpack.c.l.b16 %v888
      %v899 = vunpack.c.l.b16 %v889
      %v900 = vpack.c.b16 %v897, %v896
      %v901 = vpack.c.b16 %v899, %v898
      %v905 = vsel %vm761, %v890, 0
      %v908 = vsel %vm761, %v891, 0
      %910 = vmatpush.bf16.msra.mxu0 0
      %911 = vmatpush.bf16.msra.mxu0 0
      %912 = vmatpush.bf16.msra.mxu0 0
      %913 = vmatpush.bf16.msra.mxu0 0
      %914 = vmatpush.bf16.msra.mxu0 0
      %915 = vmatpush.bf16.msra.mxu0 0
      %916 = vmatpush.bf16.msra.mxu0 %v901
      %917 = vmatpush.bf16.msra.mxu0 %v900
      %918 = vmatmul.bf16.gmra.mxu0 %v905
      %v919 = vpop.f32.mrf.mxu0
      %v920 = vadd.f32 0.0, %v919
      %v921 = vpop.f32.mrf.mxu0
      %v922 = vadd.f32 0.0, %v921
      %923 = vmatmul.bf16.gmra.mxu0 %v908
      %v924 = vpop.f32.mrf.mxu0
      %v925 = vadd.f32 0.0, %v924
      %v926 = vpop.f32.mrf.mxu0
      %v927 = vadd.f32 0.0, %v926
      %928 = vdwg.mxu0
      %v929 = vadd.f32 %v882, %v920
      %v930 = vadd.f32 %v883, %v922
      %v931 = vadd.f32 %v884, %v925
      %v932 = vadd.f32 %v885, %v927
      %vm933 = vcmask 64512
      %v934 = vsel %vm933, %v929, 0.0
      %935 = vadd.xlane.f32.xlu0 %v934
      %v936 = vpop.xlane.xlu0 %935
      %v937 = vsel %vm933, %v930, 0.0
      %938 = vadd.xlane.f32.xlu0 %v937
      %v939 = vpop.xlane.xlu0 %938
      %v940 = vsel %vm933, %v931, 0.0
      %941 = vadd.xlane.f32.xlu0 %v940
      %v942 = vpop.xlane.xlu0 %941
      %v943 = vsel %vm933, %v932, 0.0
      %944 = vadd.xlane.f32.xlu0 %v943
      %v945 = vpop.xlane.xlu0 %944
      %v946 = vrcp.pop 8.0
      %v947 = vmul.f32 8.0, %v946
      %v948 = vsub.f32 1.0, %v947
      %v949 = vmul.f32 %v946, %v948
      %v950 = vadd.f32 %v946, %v949
      %vm951 = vweird.f32 %v946
      %v952 = vsel %vm951, %v946, %v950
      %v953 = vmul.f32 %v936, %v952
      %v954 = vmul.f32 %v939, %v952
      %v955 = vmul.f32 %v942, %v952
      %v956 = vmul.f32 %v945, %v952
      %v957 = vmul.f32 %v929, %v929
      %v958 = vmul.f32 %v930, %v930
      %v959 = vmul.f32 %v931, %v931
      %v960 = vmul.f32 %v932, %v932
      %v961 = vsel %vm933, %v957, 0.0
      %962 = vadd.xlane.f32.xlu0 %v961
      %v963 = vpop.xlane.xlu0 %962
      %v964 = vsel %vm933, %v958, 0.0
      %965 = vadd.xlane.f32.xlu0 %v964
      %v966 = vpop.xlane.xlu0 %965
      %v967 = vsel %vm933, %v959, 0.0
      %968 = vadd.xlane.f32.xlu0 %v967
      %v969 = vpop.xlane.xlu0 %968
      %v970 = vsel %vm933, %v960, 0.0
      %971 = vadd.xlane.f32.xlu0 %v970
      %v972 = vpop.xlane.xlu0 %971
      %v973 = vmul.f32 %v963, %v952
      %v974 = vmul.f32 %v966, %v952
      %v975 = vmul.f32 %v969, %v952
      %v976 = vmul.f32 %v972, %v952
      %v977 = vsub.f32 %v929, %v953
      %v978 = vsub.f32 %v930, %v954
      %v979 = vsub.f32 %v931, %v955
      %v980 = vsub.f32 %v932, %v956
      %v981 = vmul.f32 %v953, %v953
      %v982 = vmul.f32 %v954, %v954
      %v983 = vmul.f32 %v955, %v955
      %v984 = vmul.f32 %v956, %v956
      %v985 = vsub.f32 %v973, %v981
      %v986 = vsub.f32 %v974, %v982
      %v987 = vsub.f32 %v975, %v983
      %v988 = vsub.f32 %v976, %v984
      %v989 = vadd.f32 %v985, 1e-05
      %v990 = vadd.f32 %v986, 1e-05
      %v991 = vadd.f32 %v987, 1e-05
      %v992 = vadd.f32 %v988, 1e-05
      %v993 = vrsqrt.pop %v989
      %v994 = vmul.f32 %v993, %v989
      %v995 = vmul.f32 %v994, %v993
      %v996 = vmul.f32 0.5, %v995
      %v997 = vsub.f32 1.5, %v996
      %v998 = vmul.f32 %v993, %v997
      %vm999 = vweird.f32 %v989
      %vm1000 = vweird.f32 %v993
      %vm1001 = vmor %vm999, %vm1000
      %v1002 = vsel %vm1001, %v993, %v998
      %v1003 = vrsqrt.pop %v990
      %v1004 = vmul.f32 %v1003, %v990
      %v1005 = vmul.f32 %v1004, %v1003
      %v1006 = vmul.f32 0.5, %v1005
      %v1007 = vsub.f32 1.5, %v1006
      %v1008 = vmul.f32 %v1003, %v1007
      %vm1009 = vweird.f32 %v990
      %vm1010 = vweird.f32 %v1003
      %vm1011 = vmor %vm1009, %vm1010
      %v1012 = vsel %vm1011, %v1003, %v1008
      %v1013 = vrsqrt.pop %v991
      %v1014 = vmul.f32 %v1013, %v991
      %v1015 = vmul.f32 %v1014, %v1013
      %v1016 = vmul.f32 0.5, %v1015
      %v1017 = vsub.f32 1.5, %v1016
      %v1018 = vmul.f32 %v1013, %v1017
      %vm1019 = vweird.f32 %v991
      %vm1020 = vweird.f32 %v1013
      %vm1021 = vmor %vm1019, %vm1020
      %v1022 = vsel %vm1021, %v1013, %v1018
      %v1023 = vrsqrt.pop %v992
      %v1024 = vmul.f32 %v1023, %v992
      %v1025 = vmul.f32 %v1024, %v1023
      %v1026 = vmul.f32 0.5, %v1025
      %v1027 = vsub.f32 1.5, %v1026
      %v1028 = vmul.f32 %v1023, %v1027
      %vm1029 = vweird.f32 %v992
      %vm1030 = vweird.f32 %v1023
      %vm1031 = vmor %vm1029, %vm1030
      %v1032 = vsel %vm1031, %v1023, %v1028
      %v1033 = vmul.f32 %v977, %v1002
      %v1034 = vmul.f32 %v978, %v1012
      %v1035 = vmul.f32 %v979, %v1022
      %v1036 = vmul.f32 %v980, %v1032
      %v1037 = vperm.slane %v408, 0
      %v1038 = vmul.f32 %v1033, %v1037
      %v1039 = vmul.f32 %v1034, %v1037
      %v1040 = vmul.f32 %v1035, %v1037
      %v1041 = vmul.f32 %v1036, %v1037
      %v1042 = vperm.slane %v409, 0
      %v1043 = vadd.f32 %v1038, %v1042
      %v1044 = vadd.f32 %v1039, %v1042
      %v1045 = vadd.f32 %v1040, %v1042
      %v1046 = vadd.f32 %v1041, %v1042
      %v1047 = vmax.f32 %v1043, 0.0
      %v1048 = vmax.f32 %v1044, 0.0
      %v1049 = vmax.f32 %v1045, 0.0
      %v1050 = vmax.f32 %v1046, 0.0
      %v1052 = vsel %vm933, %v412, 0
      %vm1054 = vcmask 1043456
      %v1056 = vsel %vm1054, %v443, 0
      %1058 = vmatpush.bf16.msra.mxu0 0
      %1059 = vmatpush.bf16.msra.mxu0 0
      %1060 = vmatpush.bf16.msra.mxu0 0
      %1061 = vmatpush.bf16.msra.mxu0 0
      %1062 = vmatpush.bf16.msra.mxu0 0
      %1063 = vmatpush.bf16.msra.mxu0 0
      %1064 = vmatpush.bf16.msra.mxu0 0
      %1065 = vmatpush.bf16.msra.mxu0 %v1056
      %1066 = vmatmul.bf16.gmra.mxu0 %v1052
      %v1067 = vpop.f32.mrf.mxu0
      %v1068 = vadd.f32 0.0, %v1067
      %v1069 = vpop.f32.mrf.mxu0
      %v1070 = vadd.f32 0.0, %v1069
      %1071 = vdwg.mxu0
      %1073 = vset.pattern.permute.xlu0 0
      %1074 = vperm.xlu0 %1073, %v413
      %v1075 = vpop.permute.xlu0 %1074
      %v1077 = vadd.f32 %v1068, %v1075
      %v1078 = vmax.f32 %v1077, 0.0
      %1080 = vset.pattern.permute.xlu0 0
      %1081 = vperm.xlu0 %1080, %v414
      %v1082 = vpop.permute.xlu0 %1081
      %v1084 = vadd.f32 %v1070, %v1082
      %1086 = vset.pattern.permute.xlu0 0
      %1087 = vperm.xlu0 %1086, %v415
      %v1088 = vpop.permute.xlu0 %1087
      %1091 = vset.pattern.permute.xlu0 0
      %1092 = vperm.xlu0 %1091, %v416
      %v1093 = vpop.permute.xlu0 %1092
      %1096 = vset.pattern.permute.xlu0 0
      %1097 = vperm.xlu0 %1096, %v417
      %v1098 = vpop.permute.xlu0 %1097
      %1101 = vset.pattern.permute.xlu0 0
      %1102 = vperm.xlu0 %1101, %v418
      %v1103 = vpop.permute.xlu0 %1102
      %v1105 = vmul.f32 %v1047, %v1088
      %v1106 = vmul.f32 %v1048, %v1093
      %v1107 = vmul.f32 %v1049, %v1098
      %v1108 = vmul.f32 %v1050, %v1103
      %1110 = vset.pattern.permute.xlu0 0
      %1111 = vperm.xlu0 %1110, %v419
      %v1112 = vpop.permute.xlu0 %1111
      %1115 = vset.pattern.permute.xlu0 0
      %1116 = vperm.xlu0 %1115, %v420
      %v1117 = vpop.permute.xlu0 %1116
      %1120 = vset.pattern.permute.xlu0 0
      %1121 = vperm.xlu0 %1120, %v421
      %v1122 = vpop.permute.xlu0 %1121
      %1125 = vset.pattern.permute.xlu0 0
      %1126 = vperm.xlu0 %1125, %v422
      %v1127 = vpop.permute.xlu0 %1126
      %v1129 = vadd.f32 %v1105, %v1112
      %v1130 = vadd.f32 %v1106, %v1117
      %v1131 = vadd.f32 %v1107, %v1122
      %v1132 = vadd.f32 %v1108, %v1127
      %v1133 = vmax.f32 %v1129, 0.0
      %v1134 = vmax.f32 %v1130, 0.0
      %v1135 = vmax.f32 %v1131, 0.0
      %v1136 = vmax.f32 %v1132, 0.0
      %v1137 = vpack.c.bf16 %v1134, %v1133
      %v1138 = vpack.c.bf16 %v1136, %v1135
      %v1139 = vpack.c.bf16 %v1078, %v1078
      %v1141 = vsel %vm933, %v1137, 0
      %v1144 = vsel %vm933, %v1138, 0
      %v1147 = vsel %vm1054, %v1139, 0
      %1149 = vmatpush.bf16.msra.mxu0 0
      %1150 = vmatpush.bf16.msra.mxu0 0
      %1151 = vmatpush.bf16.msra.mxu0 0
      %1152 = vmatpush.bf16.msra.mxu0 0
      %1153 = vmatpush.bf16.msra.mxu0 0
      %1154 = vmatpush.bf16.msra.mxu0 0
      %1155 = vmatpush.bf16.msra.mxu0 0
      %1156 = vmatpush.bf16.msra.mxu0 %v1147
      %1157 = vmatmul.bf16.gmra.mxu0 %v1141
      %v1158 = vpop.f32.mrf.mxu0
      %v1159 = vadd.f32 0.0, %v1158
      %v1160 = vpop.f32.mrf.mxu0
      %v1161 = vadd.f32 0.0, %v1160
      %1162 = vmatmul.bf16.gmra.mxu0 %v1144
      %v1163 = vpop.f32.mrf.mxu0
      %v1164 = vadd.f32 0.0, %v1163
      %v1165 = vpop.f32.mrf.mxu0
      %v1166 = vadd.f32 0.0, %v1165
      %1167 = vdwg.mxu0
      %v1168 = vmul.f32 %v1159, 0.35355338
      %v1169 = vmul.f32 %v1161, 0.35355338
      %v1170 = vmul.f32 %v1164, 0.35355338
      %v1171 = vmul.f32 %v1166, 0.35355338
      %vm1172 = vcmask 130048
      %v1173 = vsel %vm1172, %v1168, -inf
      %1174 = vmax.xlane.f32.xlu0 %v1173
      %v1175 = vpop.xlane.xlu0 %1174
      %v1176 = vsel %vm1172, %v1169, -inf
      %1177 = vmax.xlane.f32.xlu0 %v1176
      %v1178 = vpop.xlane.xlu0 %1177
      %v1179 = vsel %vm1172, %v1170, -inf
      %1180 = vmax.xlane.f32.xlu0 %v1179
      %v1181 = vpop.xlane.xlu0 %1180
      %v1182 = vsel %vm1172, %v1171, -inf
      %1183 = vmax.xlane.f32.xlu0 %v1182
      %v1184 = vpop.xlane.xlu0 %1183
      %v1185 = vsub.f32 %v1168, %v1175
      %v1186 = vsub.f32 %v1169, %v1178
      %v1187 = vsub.f32 %v1170, %v1181
      %v1188 = vsub.f32 %v1171, %v1184
      %v1189 = vmul.f32 %v1185, 1.442695
      %v1190 = vpow.pop %v1189
      %v1191 = vmul.f32 %v1186, 1.442695
      %v1192 = vpow.pop %v1191
      %v1193 = vmul.f32 %v1187, 1.442695
      %v1194 = vpow.pop %v1193
      %v1195 = vmul.f32 %v1188, 1.442695
      %v1196 = vpow.pop %v1195
      %v1197 = vsel %vm1172, %v1190, 0.0
      %1198 = vadd.xlane.f32.xlu0 %v1197
      %v1199 = vpop.xlane.xlu0 %1198
      %v1200 = vsel %vm1172, %v1192, 0.0
      %1201 = vadd.xlane.f32.xlu0 %v1200
      %v1202 = vpop.xlane.xlu0 %1201
      %v1203 = vsel %vm1172, %v1194, 0.0
      %1204 = vadd.xlane.f32.xlu0 %v1203
      %v1205 = vpop.xlane.xlu0 %1204
      %v1206 = vsel %vm1172, %v1196, 0.0
      %1207 = vadd.xlane.f32.xlu0 %v1206
      %v1208 = vpop.xlane.xlu0 %1207
      %v1209 = vrcp.pop %v1199
      %v1210 = vrcp.pop %v1202
      %v1211 = vrcp.pop %v1205
      %v1212 = vrcp.pop %v1208
      %v1213 = vmul.f32 %v1190, %v1209
      %v1214 = vmul.f32 %v1192, %v1210
      %v1215 = vmul.f32 %v1194, %v1211
      %v1216 = vmul.f32 %v1196, %v1212
      %v1217 = vpack.c.bf16 %v1214, %v1213
      %v1218 = vpack.c.bf16 %v1216, %v1215
      %v1219 = vpack.c.bf16 %v1084, %v1084
      %v1221 = vsel %vm1172, %v1217, 0
      %v1224 = vsel %vm1172, %v1218, 0
      %v1227 = vsel %vm1172, %v1219, 0
      %1229 = vmatpush.bf16.xpose.msra.mxu0 0
      %1230 = vmatpush.bf16.xpose.msra.mxu0 0
      %1231 = vmatpush.bf16.xpose.msra.mxu0 0
      %1232 = vmatpush.bf16.xpose.msra.mxu0 0
      %1233 = vmatpush.bf16.xpose.msra.mxu0 0
      %1234 = vmatpush.bf16.xpose.msra.mxu0 0
      %1235 = vmatpush.bf16.xpose.msra.mxu0 0
      %1236 = vmatpush.bf16.xpose.msra.mxu0 %v1227
      %1237 = vmatmul.bf16.gmra.mxu0 %v1221
      %v1238 = vpop.f32.mrf.mxu0
      %v1239 = vadd.f32 0.0, %v1238
      %v1240 = vpop.f32.mrf.mxu0
      %v1241 = vadd.f32 0.0, %v1240
      %1242 = vmatmul.bf16.gmra.mxu0 %v1224
      %v1243 = vpop.f32.mrf.mxu0
      %v1244 = vadd.f32 0.0, %v1243
      %v1245 = vpop.f32.mrf.mxu0
      %v1246 = vadd.f32 0.0, %v1245
      %1247 = vdwg.mxu0
      %1249 = vset.pattern.permute.xlu0 0
      %1250 = vperm.xlu0 %1249, %v423
      %v1251 = vpop.permute.xlu0 %1250
      %1254 = vset.pattern.permute.xlu0 0
      %1255 = vperm.xlu0 %1254, %v424
      %v1256 = vpop.permute.xlu0 %1255
      %1259 = vset.pattern.permute.xlu0 0
      %1260 = vperm.xlu0 %1259, %v425
      %v1261 = vpop.permute.xlu0 %1260
      %1264 = vset.pattern.permute.xlu0 0
      %1265 = vperm.xlu0 %1264, %v426
      %v1266 = vpop.permute.xlu0 %1265
      %v1268 = vmul.f32 %v1239, %v1251
      %v1269 = vmul.f32 %v1241, %v1256
      %v1270 = vmul.f32 %v1244, %v1261
      %v1271 = vmul.f32 %v1246, %v1266
      %1273 = vset.pattern.permute.xlu0 0
      %1274 = vperm.xlu0 %1273, %v427
      %v1275 = vpop.permute.xlu0 %1274
      %1278 = vset.pattern.permute.xlu0 0
      %1279 = vperm.xlu0 %1278, %v428
      %v1280 = vpop.permute.xlu0 %1279
      %1283 = vset.pattern.permute.xlu0 0
      %1284 = vperm.xlu0 %1283, %v429
      %v1285 = vpop.permute.xlu0 %1284
      %1288 = vset.pattern.permute.xlu0 0
      %1289 = vperm.xlu0 %1288, %v430
      %v1290 = vpop.permute.xlu0 %1289
      %v1292 = vadd.f32 %v1268, %v1275
      %v1293 = vadd.f32 %v1269, %v1280
      %v1294 = vadd.f32 %v1270, %v1285
      %v1295 = vadd.f32 %v1271, %v1290
      %v1296 = vmax.f32 %v1292, 0.0
      %v1297 = vmax.f32 %v1293, 0.0
      %v1298 = vmax.f32 %v1294, 0.0
      %v1299 = vmax.f32 %v1295, 0.0
      %v1300 = vadd.f32 %v1047, %v1296
      %v1301 = vadd.f32 %v1048, %v1297
      %v1302 = vadd.f32 %v1049, %v1298
      %v1303 = vadd.f32 %v1050, %v1299
      %v1304 = vperm.slane %v432, 0
      %v1306 = vsel %vm933, %v1300, 0
      %v1309 = vsel %vm933, %v1301, 0
      %v1312 = vsel %vm933, %v1302, 0
      %v1315 = vsel %vm933, %v1303, 0
      %1317 = vmatpush.msra.mxu0 0.0
      %1318 = vmatpush.msra.mxu0 0.0
      %1319 = vmatpush.msra.mxu0 0.0
      %1320 = vmatpush.msra.mxu0 0.0
      %1321 = vmatpush.msra.mxu0 0.0
      %1322 = vmatpush.msra.mxu0 0.0
      %1323 = vmatpush.msra.mxu0 0.0
      %1324 = vmatpush.msra.mxu0 0.0
      %1325 = vmatpush.msra.mxu0 0.0
      %1326 = vmatpush.msra.mxu0 0.0
      %1327 = vmatpush.msra.mxu0 0.0
      %1328 = vmatpush.msra.mxu0 0.0
      %1329 = vmatpush.msra.mxu0 0.0
      %1330 = vmatpush.msra.mxu0 0.0
      %1331 = vmatpush.msra.mxu0 0.0
      %1332 = vmatpush.msra.mxu0 %v431
      %1333 = vmatmul.f32.gmra.mxu0 %v1306
      %v1334 = vpop.f32.mrf.mxu0
      %v1335 = vadd.f32 %v1304, %v1334
      %1336 = vmatmul.f32.gmra.mxu0 %v1309
      %v1337 = vpop.f32.mrf.mxu0
      %v1338 = vadd.f32 %v1304, %v1337
      %1339 = vmatmul.f32.gmra.mxu0 %v1312
      %v1340 = vpop.f32.mrf.mxu0
      %v1341 = vadd.f32 %v1304, %v1340
      %1342 = vmatmul.f32.gmra.mxu0 %v1315
      %v1343 = vpop.f32.mrf.mxu0
      %v1344 = vadd.f32 %v1304, %v1343
      %1345 = vdwg.mxu0
      %v1346 = vmax.f32 %v1335, 0.0
      %v1347 = vmax.f32 %v1338, 0.0
      %v1348 = vmax.f32 %v1341, 0.0
      %v1349 = vmax.f32 %v1344, 0.0
      %v1350 = vperm.slane %v435, 0
      %v1352 = vsel %vm1172, %v1346, 0
      %v1355 = vsel %vm1172, %v1347, 0
      %v1358 = vsel %vm1172, %v1348, 0
      %v1361 = vsel %vm1172, %v1349, 0
      %1363 = vmatpush.msra.mxu0 0.0
      %1364 = vmatpush.msra.mxu0 0.0
      %1365 = vmatpush.msra.mxu0 0.0
      %1366 = vmatpush.msra.mxu0 0.0
      %1367 = vmatpush.msra.mxu0 0.0
      %1368 = vmatpush.msra.mxu0 0.0
      %1369 = vmatpush.msra.mxu0 0.0
      %1370 = vmatpush.msra.mxu0 0.0
      %1371 = vmatpush.msra.mxu0 0.0
      %1372 = vmatpush.msra.mxu0 0.0
      %1373 = vmatpush.msra.mxu0 0.0
      %1374 = vmatpush.msra.mxu0 0.0
      %1375 = vmatpush.msra.mxu0 0.0
      %1376 = vmatpush.msra.mxu0 0.0
      %1377 = vmatpush.msra.mxu0 %v434
      %1378 = vmatpush.msra.mxu0 %v433
      %1379 = vmatmul.f32.gmra.mxu0 %v1352
      %v1380 = vpop.f32.mrf.mxu0
      %v1381 = vadd.f32 %v1350, %v1380
      %1382 = vmatmul.f32.gmra.mxu0 %v1355
      %v1383 = vpop.f32.mrf.mxu0
      %v1384 = vadd.f32 %v1350, %v1383
      %1385 = vmatmul.f32.gmra.mxu0 %v1358
      %v1386 = vpop.f32.mrf.mxu0
      %v1387 = vadd.f32 %v1350, %v1386
      %1388 = vmatmul.f32.gmra.mxu0 %v1361
      %v1389 = vpop.f32.mrf.mxu0
      %v1390 = vadd.f32 %v1350, %v1389
      %1391 = vdwg.mxu0
      %v1392 = vmax.f32 %v1381, 0.0
      %v1393 = vmax.f32 %v1384, 0.0
      %v1394 = vmax.f32 %v1387, 0.0
      %v1395 = vmax.f32 %v1390, 0.0
      %v1396 = vperm.slane %v438, 0
      %v1398 = vsel %vm1172, %v1392, 0
      %v1401 = vsel %vm1172, %v1393, 0
      %v1404 = vsel %vm1172, %v1394, 0
      %v1407 = vsel %vm1172, %v1395, 0
      %1409 = vmatpush.msra.mxu0 0.0
      %1410 = vmatpush.msra.mxu0 0.0
      %1411 = vmatpush.msra.mxu0 0.0
      %1412 = vmatpush.msra.mxu0 0.0
      %1413 = vmatpush.msra.mxu0 0.0
      %1414 = vmatpush.msra.mxu0 0.0
      %1415 = vmatpush.msra.mxu0 0.0
      %1416 = vmatpush.msra.mxu0 0.0
      %1417 = vmatpush.msra.mxu0 0.0
      %1418 = vmatpush.msra.mxu0 0.0
      %1419 = vmatpush.msra.mxu0 0.0
      %1420 = vmatpush.msra.mxu0 0.0
      %1421 = vmatpush.msra.mxu0 0.0
      %1422 = vmatpush.msra.mxu0 0.0
      %1423 = vmatpush.msra.mxu0 %v437
      %1424 = vmatpush.msra.mxu0 %v436
      %1425 = vmatmul.f32.gmra.mxu0 %v1398
      %v1426 = vpop.f32.mrf.mxu0
      %v1427 = vadd.f32 %v1396, %v1426
      %1428 = vmatmul.f32.gmra.mxu0 %v1401
      %v1429 = vpop.f32.mrf.mxu0
      %v1430 = vadd.f32 %v1396, %v1429
      %1431 = vmatmul.f32.gmra.mxu0 %v1404
      %v1432 = vpop.f32.mrf.mxu0
      %v1433 = vadd.f32 %v1396, %v1432
      %1434 = vmatmul.f32.gmra.mxu0 %v1407
      %v1435 = vpop.f32.mrf.mxu0
      %v1436 = vadd.f32 %v1396, %v1435
      %1437 = vdwg.mxu0
      %v1438 = vadd.f32 %v401, %v1427
      %v1439 = vadd.f32 %v402, %v1430
      %v1440 = vadd.f32 %v403, %v1433
      %v1441 = vadd.f32 %v404, %v1436
      %v1442 = vmul.f32 %v1438, 3.1415927
      %v1443 = vmul.f32 %v1439, 3.1415927
      %v1444 = vmul.f32 %v1440, 3.1415927
      %v1445 = vmul.f32 %v1441, 3.1415927
      %v1446 = vadd.f32 %v1442, 1e-05
      %v1447 = vadd.f32 %v1443, 1e-05
      %v1448 = vadd.f32 %v1444, 1e-05
      %v1449 = vadd.f32 %v1445, 1e-05
      %v1450 = vand.u32 2147483647, %v1446
      %vm1451 = vcmp.le.f32.partialorder %v1450, 0.7853982
      %vm1452 = vcmp.lt.s32.totalorder %v1446, 0
      %v1453 = vand.u32 %v1446, 2139095040
      %v1454 = vshrl.u32 %v1453, 23
      %v1455 = vsub.s32 %v1454, 127
      %v1456 = vand.u32 2147483647, %v1446
      %v1457 = vand.u32 %v1456, 8388607
      %v1458 = vor.u32 %v1457, 8388608
      %v1459 = vsub.s32 0, %v1458
      %v1460 = vadd.s32 %v1455, 1
      %vm1461 = vcmp.gt.s32.totalorder %v1460, 0
      %v1462 = vsel %vm1461, %v1460, 0
      %v1463 = vshrl.u32 %v1462, 5
      %v1464 = vand.u32 %v1462, 31
      %v1465 = vsub.s32 32, %v1464
      %v1466 = vshrl.u32 683565275, %v1465
      %v1467 = vshll.u32 683565275, %v1464
      %v1468 = vshrl.u32 2475754826, %v1465
      %v1469 = vor.u32 %v1467, %v1468
      %v1470 = vshll.u32 2475754826, %v1464
      %v1471 = vshrl.u32 2131351028, %v1465
      %v1472 = vor.u32 %v1470, %v1471
      %v1473 = vshll.u32 2131351028, %v1464
      %v1474 = vshrl.u32 2102212464, %v1465
      %v1475 = vor.u32 %v1473, %v1474
      %v1476 = vshll.u32 2102212464, %v1464
      %v1477 = vshrl.u32 920167782, %v1465
      %v1478 = vor.u32 %v1476, %v1477
      %v1479 = vshll.u32 920167782, %v1464
      %v1480 = vshrl.u32 1326507024, %v1465
      %v1481 = vor.u32 %v1479, %v1480
      %vm1482 = vcmp.lt.s32.totalorder %v1463, 1
      %vm1483 = vcmp.lt.s32.totalorder %v1463, 2
      %vm1484 = vcmp.lt.s32.totalorder %v1463, 3
      %vm1485 = vcmp.lt.s32.totalorder %v1463, 4
      %v1486 = vsel %vm1482, %v1466, %v1469
      %v1487 = vsel %vm1485, %v1475, 2102212464
      %v1488 = vsel %vm1484, %v1472, %v1487
      %v1489 = vsel %vm1483, %v1486, %v1488
      %v1490 = vsel %vm1482, %v1469, %v1472
      %v1491 = vsel %vm1485, %v1478, 920167782
      %v1492 = vsel %vm1484, %v1475, %v1491
      %v1493 = vsel %vm1483, %v1490, %v1492
      %v1494 = vsel %vm1482, %v1472, %v1475
      %v1495 = vsel %vm1485, %v1481, 1326507024
      %v1496 = vsel %vm1484, %v1478, %v1495
      %v1497 = vsel %vm1483, %v1494, %v1496
      %v1498 = vshll.u32 %v1458, 8
      %v1499 = vand.u32 %v1498, 65535
      %v1500 = vshrl.u32 %v1498, 16
      %v1501 = vand.u32 %v1497, 65535
      %v1502 = vshrl.u32 %v1497, 16
      %v1503 = vmul.u32 %v1499, %v1501
      %v1504 = vmul.u32 %v1499, %v1502
      %v1505 = vmul.u32 %v1500, %v1501
      %v1506 = vmul.u32 %v1500, %v1502
      %v1507 = vshll.u32 %v1504, 16
      %v1508 = vshrl.u32 %v1504, 16
      %v1509 = vshll.u32 %v1505, 16
      %v1510 = vshrl.u32 %v1505, 16
      %vm1511 = vc.u32 %v1503, %v1507
      %v1512 = vsel %vm1511, 1, 0
      %v1513 = vadd.s32 %v1503, %v1507
      %v1514 = vadd.s32 %v1506, %v1512
      %vm1515 = vc.u32 %v1513, %v1509
      %v1516 = vsel %vm1515, 1, 0
      %v1517 = vadd.s32 %v1513, %v1509
      %v1518 = vadd.s32 %v1514, %v1516
      %v1519 = vadd.s32 %v1518, %v1508
      %v1520 = vadd.s32 %v1519, %v1510
      %v1521 = vand.u32 %v1498, 65535
      %v1522 = vshrl.u32 %v1498, 16
      %v1523 = vand.u32 %v1493, 65535
      %v1524 = vshrl.u32 %v1493, 16
      %v1525 = vmul.u32 %v1521, %v1523
      %v1526 = vmul.u32 %v1521, %v1524
      %v1527 = vmul.u32 %v1522, %v1523
      %v1528 = vmul.u32 %v1522, %v1524
      %v1529 = vshll.u32 %v1526, 16
      %v1530 = vshrl.u32 %v1526, 16
      %v1531 = vshll.u32 %v1527, 16
      %v1532 = vshrl.u32 %v1527, 16
      %vm1533 = vc.u32 %v1525, %v1529
      %v1534 = vsel %vm1533, 1, 0
      %v1535 = vadd.s32 %v1525, %v1529
      %v1536 = vadd.s32 %v1528, %v1534
      %vm1537 = vc.u32 %v1535, %v1531
      %v1538 = vsel %vm1537, 1, 0
      %v1539 = vadd.s32 %v1535, %v1531
      %v1540 = vadd.s32 %v1536, %v1538
      %v1541 = vadd.s32 %v1540, %v1530
      %v1542 = vadd.s32 %v1541, %v1532
      %v1543 = vmul.u32 %v1498, %v1489
      %v1544 = vadd.s32 %v1520, %v1539
      %vm1545 = vc.u32 %v1520, %v1539
      %v1546 = vadd.s32 %v1542, 1
      %v1547 = vsel %vm1545, %v1546, %v1542
      %v1548 = vadd.s32 %v1543, %v1547
      %v1549 = vadd.s32 %v1548, 536870912
      %v1550 = vshrl.u32 %v1549, 30
      %v1551 = vshll.u32 %v1550, 30
      %v1552 = vsub.s32 %v1548, %v1551
      %vm1553 = vcmp.lt.s32.totalorder %v1552, 0
      %v1554 = vsub.s32 0, %v1552
      %v1555 = vsel %vm1553, %v1554, %v1552
      %v1556 = vclz %v1555
      %v1557 = vsub.s32 %v1556, 2
      %vm1558 = vcmp.gt.s32.totalorder 0, %v1557
      %v1559 = vsel %vm1558, 0, %v1557
      %v1560 = vsub.s32 32, %v1559
      %v1561 = vshll.u32 %v1552, %v1559
      %v1562 = vshrl.u32 %v1544, %v1560
      %v1563 = vor.u32 %v1561, %v1562
      %v1564 = vsub.s32 4294967266, %v1559
      %v1565 = vadd.s32 %v1564, 127
      %v1566 = vshll.u32 %v1565, 23
      %v1567 = vor.u32 4788187, %v1566
      %v1568 = vand.u32 2147483647, %v1567
      %v1570 = vcvt.s32.f32 %v1563
      %v1571 = vmul.f32 %v1570, %v1568
      %v1572 = vxor.u32 %v1571, 2147483648
      %v1573 = vsel %vm1452, %v1572, %v1571
      %v1574 = vsub.s32 4, %v1550
      %v1575 = vsel %vm1452, %v1574, %v1550
      %v1576 = vsel %vm1451, %v1446, %v1573
      %v1577 = vsel %vm1451, 0, %v1575
      %v1578 = vmul.f32 %v1576, %v1576
      %v1579 = vmul.f32 %v1578, -0.001358992
      %v1580 = vadd.f32 %v1579, 0.041655596
      %v1581 = vmul.f32 %v1578, %v1580
      %v1582 = vadd.f32 %v1581, -0.4999988
      %v1583 = vmul.f32 %v1578, %v1582
      %v1584 = vadd.f32 1.0, %v1583
      %v1585 = vmul.f32 %v1576, %v1576
      %v1586 = vmul.f32 %v1585, -0.00019511016
      %v1587 = vadd.f32 %v1586, 0.008332121
      %v1588 = vmul.f32 %v1585, %v1587
      %v1589 = vadd.f32 %v1588, -0.16666654
      %v1590 = vmul.f32 %v1585, %v1589
      %v1591 = vadd.f32 %v1590, 1.0
      %v1592 = vmul.f32 %v1591, %v1576
      %vm1593 = vweird.f32 %v1446
      %v1594 = vand.u32 %v1577, 3
      %vm1595 = vcmp.lt.s32.totalorder %v1594, 2
      %vm1596 = vcmp.eq.s32.totalorder %v1594, 0
      %v1597 = vxor.u32 %v1592, 2147483648
      %v1598 = vsel %vm1596, %v1584, %v1597
      %vm1599 = vcmp.eq.s32.totalorder %v1594, 2
      %v1600 = vxor.u32 %v1584, 2147483648
      %v1601 = vsel %vm1599, %v1600, %v1592
      %v1602 = vsel %vm1595, %v1598, %v1601
      %v1603 = vsel %vm1593, nan, %v1602
      %v1604 = vand.u32 2147483647, %v1447
      %vm1605 = vcmp.le.f32.partialorder %v1604, 0.7853982
      %vm1606 = vcmp.lt.s32.totalorder %v1447, 0
      %v1607 = vand.u32 %v1447, 2139095040
      %v1608 = vshrl.u32 %v1607, 23
      %v1609 = vsub.s32 %v1608, 127
      %v1610 = vand.u32 2147483647, %v1447
      %v1611 = vand.u32 %v1610, 8388607
      %v1612 = vor.u32 %v1611, 8388608
      %v1613 = vsub.s32 0, %v1612
      %v1614 = vadd.s32 %v1609, 1
      %vm1615 = vcmp.gt.s32.totalorder %v1614, 0
      %v1616 = vsel %vm1615, %v1614, 0
      %v1617 = vshrl.u32 %v1616, 5
      %v1618 = vand.u32 %v1616, 31
      %v1619 = vsub.s32 32, %v1618
      %v1620 = vshrl.u32 683565275, %v1619
      %v1621 = vshll.u32 683565275, %v1618
      %v1622 = vshrl.u32 2475754826, %v1619
      %v1623 = vor.u32 %v1621, %v1622
      %v1624 = vshll.u32 2475754826, %v1618
      %v1625 = vshrl.u32 2131351028, %v1619
      %v1626 = vor.u32 %v1624, %v1625
      %v1627 = vshll.u32 2131351028, %v1618
      %v1628 = vshrl.u32 2102212464, %v1619
      %v1629 = vor.u32 %v1627, %v1628
      %v1630 = vshll.u32 2102212464, %v1618
      %v1631 = vshrl.u32 920167782, %v1619
      %v1632 = vor.u32 %v1630, %v1631
      %v1633 = vshll.u32 920167782, %v1618
      %v1634 = vshrl.u32 1326507024, %v1619
      %v1635 = vor.u32 %v1633, %v1634
      %vm1636 = vcmp.lt.s32.totalorder %v1617, 1
      %vm1637 = vcmp.lt.s32.totalorder %v1617, 2
      %vm1638 = vcmp.lt.s32.totalorder %v1617, 3
      %vm1639 = vcmp.lt.s32.totalorder %v1617, 4
      %v1640 = vsel %vm1636, %v1620, %v1623
      %v1641 = vsel %vm1639, %v1629, 2102212464
      %v1642 = vsel %vm1638, %v1626, %v1641
      %v1643 = vsel %vm1637, %v1640, %v1642
      %v1644 = vsel %vm1636, %v1623, %v1626
      %v1645 = vsel %vm1639, %v1632, 920167782
      %v1646 = vsel %vm1638, %v1629, %v1645
      %v1647 = vsel %vm1637, %v1644, %v1646
      %v1648 = vsel %vm1636, %v1626, %v1629
      %v1649 = vsel %vm1639, %v1635, 1326507024
      %v1650 = vsel %vm1638, %v1632, %v1649
      %v1651 = vsel %vm1637, %v1648, %v1650
      %v1652 = vshll.u32 %v1612, 8
      %v1653 = vand.u32 %v1652, 65535
      %v1654 = vshrl.u32 %v1652, 16
      %v1655 = vand.u32 %v1651, 65535
      %v1656 = vshrl.u32 %v1651, 16
      %v1657 = vmul.u32 %v1653, %v1655
      %v1658 = vmul.u32 %v1653, %v1656
      %v1659 = vmul.u32 %v1654, %v1655
      %v1660 = vmul.u32 %v1654, %v1656
      %v1661 = vshll.u32 %v1658, 16
      %v1662 = vshrl.u32 %v1658, 16
      %v1663 = vshll.u32 %v1659, 16
      %v1664 = vshrl.u32 %v1659, 16
      %vm1665 = vc.u32 %v1657, %v1661
      %v1666 = vsel %vm1665, 1, 0
      %v1667 = vadd.s32 %v1657, %v1661
      %v1668 = vadd.s32 %v1660, %v1666
      %vm1669 = vc.u32 %v1667, %v1663
      %v1670 = vsel %vm1669, 1, 0
      %v1671 = vadd.s32 %v1667, %v1663
      %v1672 = vadd.s32 %v1668, %v1670
      %v1673 = vadd.s32 %v1672, %v1662
      %v1674 = vadd.s32 %v1673, %v1664
      %v1675 = vand.u32 %v1652, 65535
      %v1676 = vshrl.u32 %v1652, 16
      %v1677 = vand.u32 %v1647, 65535
      %v1678 = vshrl.u32 %v1647, 16
      %v1679 = vmul.u32 %v1675, %v1677
      %v1680 = vmul.u32 %v1675, %v1678
      %v1681 = vmul.u32 %v1676, %v1677
      %v1682 = vmul.u32 %v1676, %v1678
      %v1683 = vshll.u32 %v1680, 16
      %v1684 = vshrl.u32 %v1680, 16
      %v1685 = vshll.u32 %v1681, 16
      %v1686 = vshrl.u32 %v1681, 16
      %vm1687 = vc.u32 %v1679, %v1683
      %v1688 = vsel %vm1687, 1, 0
      %v1689 = vadd.s32 %v1679, %v1683
      %v1690 = vadd.s32 %v1682, %v1688
      %vm1691 = vc.u32 %v1689, %v1685
      %v1692 = vsel %vm1691, 1, 0
      %v1693 = vadd.s32 %v1689, %v1685
      %v1694 = vadd.s32 %v1690, %v1692
      %v1695 = vadd.s32 %v1694, %v1684
      %v1696 = vadd.s32 %v1695, %v1686
      %v1697 = vmul.u32 %v1652, %v1643
      %v1698 = vadd.s32 %v1674, %v1693
      %vm1699 = vc.u32 %v1674, %v1693
      %v1700 = vadd.s32 %v1696, 1
      %v1701 = vsel %vm1699, %v1700, %v1696
      %v1702 = vadd.s32 %v1697, %v1701
      %v1703 = vadd.s32 %v1702, 536870912
      %v1704 = vshrl.u32 %v1703, 30
      %v1705 = vshll.u32 %v1704, 30
      %v1706 = vsub.s32 %v1702, %v1705
      %vm1707 = vcmp.lt.s32.totalorder %v1706, 0
      %v1708 = vsub.s32 0, %v1706
      %v1709 = vsel %vm1707, %v1708, %v1706
      %v1710 = vclz %v1709
      %v1711 = vsub.s32 %v1710, 2
      %vm1712 = vcmp.gt.s32.totalorder 0, %v1711
      %v1713 = vsel %vm1712, 0, %v1711
      %v1714 = vsub.s32 32, %v1713
      %v1715 = vshll.u32 %v1706, %v1713
      %v1716 = vshrl.u32 %v1698, %v1714
      %v1717 = vor.u32 %v1715, %v1716
      %v1718 = vsub.s32 4294967266, %v1713
      %v1719 = vadd.s32 %v1718, 127
      %v1720 = vshll.u32 %v1719, 23
      %v1721 = vor.u32 4788187, %v1720
      %v1722 = vand.u32 2147483647, %v1721
      %v1724 = vcvt.s32.f32 %v1717
      %v1725 = vmul.f32 %v1724, %v1722
      %v1726 = vxor.u32 %v1725, 2147483648
      %v1727 = vsel %vm1606, %v1726, %v1725
      %v1728 = vsub.s32 4, %v1704
      %v1729 = vsel %vm1606, %v1728, %v1704
      %v1730 = vsel %vm1605, %v1447, %v1727
      %v1731 = vsel %vm1605, 0, %v1729
      %v1732 = vmul.f32 %v1730, %v1730
      %v1733 = vmul.f32 %v1732, -0.001358992
      %v1734 = vadd.f32 %v1733, 0.041655596
      %v1735 = vmul.f32 %v1732, %v1734
      %v1736 = vadd.f32 %v1735, -0.4999988
      %v1737 = vmul.f32 %v1732, %v1736
      %v1738 = vadd.f32 1.0, %v1737
      %v1739 = vmul.f32 %v1730, %v1730
      %v1740 = vmul.f32 %v1739, -0.00019511016
      %v1741 = vadd.f32 %v1740, 0.008332121
      %v1742 = vmul.f32 %v1739, %v1741
      %v1743 = vadd.f32 %v1742, -0.16666654
      %v1744 = vmul.f32 %v1739, %v1743
      %v1745 = vadd.f32 %v1744, 1.0
      %v1746 = vmul.f32 %v1745, %v1730
      %vm1747 = vweird.f32 %v1447
      %v1748 = vand.u32 %v1731, 3
      %vm1749 = vcmp.lt.s32.totalorder %v1748, 2
      %vm1750 = vcmp.eq.s32.totalorder %v1748, 0
      %v1751 = vxor.u32 %v1746, 2147483648
      %v1752 = vsel %vm1750, %v1738, %v1751
      %vm1753 = vcmp.eq.s32.totalorder %v1748, 2
      %v1754 = vxor.u32 %v1738, 2147483648
      %v1755 = vsel %vm1753, %v1754, %v1746
      %v1756 = vsel %vm1749, %v1752, %v1755
      %v1757 = vsel %vm1747, nan, %v1756
      %v1758 = vand.u32 2147483647, %v1448
      %vm1759 = vcmp.le.f32.partialorder %v1758, 0.7853982
      %vm1760 = vcmp.lt.s32.totalorder %v1448, 0
      %v1761 = vand.u32 %v1448, 2139095040
      %v1762 = vshrl.u32 %v1761, 23
      %v1763 = vsub.s32 %v1762, 127
      %v1764 = vand.u32 2147483647, %v1448
      %v1765 = vand.u32 %v1764, 8388607
      %v1766 = vor.u32 %v1765, 8388608
      %v1767 = vsub.s32 0, %v1766
      %v1768 = vadd.s32 %v1763, 1
      %vm1769 = vcmp.gt.s32.totalorder %v1768, 0
      %v1770 = vsel %vm1769, %v1768, 0
      %v1771 = vshrl.u32 %v1770, 5
      %v1772 = vand.u32 %v1770, 31
      %v1773 = vsub.s32 32, %v1772
      %v1774 = vshrl.u32 683565275, %v1773
      %v1775 = vshll.u32 683565275, %v1772
      %v1776 = vshrl.u32 2475754826, %v1773
      %v1777 = vor.u32 %v1775, %v1776
      %v1778 = vshll.u32 2475754826, %v1772
      %v1779 = vshrl.u32 2131351028, %v1773
      %v1780 = vor.u32 %v1778, %v1779
      %v1781 = vshll.u32 2131351028, %v1772
      %v1782 = vshrl.u32 2102212464, %v1773
      %v1783 = vor.u32 %v1781, %v1782
      %v1784 = vshll.u32 2102212464, %v1772
      %v1785 = vshrl.u32 920167782, %v1773
      %v1786 = vor.u32 %v1784, %v1785
      %v1787 = vshll.u32 920167782, %v1772
      %v1788 = vshrl.u32 1326507024, %v1773
      %v1789 = vor.u32 %v1787, %v1788
      %vm1790 = vcmp.lt.s32.totalorder %v1771, 1
      %vm1791 = vcmp.lt.s32.totalorder %v1771, 2
      %vm1792 = vcmp.lt.s32.totalorder %v1771, 3
      %vm1793 = vcmp.lt.s32.totalorder %v1771, 4
      %v1794 = vsel %vm1790, %v1774, %v1777
      %v1795 = vsel %vm1793, %v1783, 2102212464
      %v1796 = vsel %vm1792, %v1780, %v1795
      %v1797 = vsel %vm1791, %v1794, %v1796
      %v1798 = vsel %vm1790, %v1777, %v1780
      %v1799 = vsel %vm1793, %v1786, 920167782
      %v1800 = vsel %vm1792, %v1783, %v1799
      %v1801 = vsel %vm1791, %v1798, %v1800
      %v1802 = vsel %vm1790, %v1780, %v1783
      %v1803 = vsel %vm1793, %v1789, 1326507024
      %v1804 = vsel %vm1792, %v1786, %v1803
      %v1805 = vsel %vm1791, %v1802, %v1804
      %v1806 = vshll.u32 %v1766, 8
      %v1807 = vand.u32 %v1806, 65535
      %v1808 = vshrl.u32 %v1806, 16
      %v1809 = vand.u32 %v1805, 65535
      %v1810 = vshrl.u32 %v1805, 16
      %v1811 = vmul.u32 %v1807, %v1809
      %v1812 = vmul.u32 %v1807, %v1810
      %v1813 = vmul.u32 %v1808, %v1809
      %v1814 = vmul.u32 %v1808, %v1810
      %v1815 = vshll.u32 %v1812, 16
      %v1816 = vshrl.u32 %v1812, 16
      %v1817 = vshll.u32 %v1813, 16
      %v1818 = vshrl.u32 %v1813, 16
      %vm1819 = vc.u32 %v1811, %v1815
      %v1820 = vsel %vm1819, 1, 0
      %v1821 = vadd.s32 %v1811, %v1815
      %v1822 = vadd.s32 %v1814, %v1820
      %vm1823 = vc.u32 %v1821, %v1817
      %v1824 = vsel %vm1823, 1, 0
      %v1825 = vadd.s32 %v1821, %v1817
      %v1826 = vadd.s32 %v1822, %v1824
      %v1827 = vadd.s32 %v1826, %v1816
      %v1828 = vadd.s32 %v1827, %v1818
      %v1829 = vand.u32 %v1806, 65535
      %v1830 = vshrl.u32 %v1806, 16
      %v1831 = vand.u32 %v1801, 65535
      %v1832 = vshrl.u32 %v1801, 16
      %v1833 = vmul.u32 %v1829, %v1831
      %v1834 = vmul.u32 %v1829, %v1832
      %v1835 = vmul.u32 %v1830, %v1831
      %v1836 = vmul.u32 %v1830, %v1832
      %v1837 = vshll.u32 %v1834, 16
      %v1838 = vshrl.u32 %v1834, 16
      %v1839 = vshll.u32 %v1835, 16
      %v1840 = vshrl.u32 %v1835, 16
      %vm1841 = vc.u32 %v1833, %v1837
      %v1842 = vsel %vm1841, 1, 0
      %v1843 = vadd.s32 %v1833, %v1837
      %v1844 = vadd.s32 %v1836, %v1842
      %vm1845 = vc.u32 %v1843, %v1839
      %v1846 = vsel %vm1845, 1, 0
      %v1847 = vadd.s32 %v1843, %v1839
      %v1848 = vadd.s32 %v1844, %v1846
      %v1849 = vadd.s32 %v1848, %v1838
      %v1850 = vadd.s32 %v1849, %v1840
      %v1851 = vmul.u32 %v1806, %v1797
      %v1852 = vadd.s32 %v1828, %v1847
      %vm1853 = vc.u32 %v1828, %v1847
      %v1854 = vadd.s32 %v1850, 1
      %v1855 = vsel %vm1853, %v1854, %v1850
      %v1856 = vadd.s32 %v1851, %v1855
      %v1857 = vadd.s32 %v1856, 536870912
      %v1858 = vshrl.u32 %v1857, 30
      %v1859 = vshll.u32 %v1858, 30
      %v1860 = vsub.s32 %v1856, %v1859
      %vm1861 = vcmp.lt.s32.totalorder %v1860, 0
      %v1862 = vsub.s32 0, %v1860
      %v1863 = vsel %vm1861, %v1862, %v1860
      %v1864 = vclz %v1863
      %v1865 = vsub.s32 %v1864, 2
      %vm1866 = vcmp.gt.s32.totalorder 0, %v1865
      %v1867 = vsel %vm1866, 0, %v1865
      %v1868 = vsub.s32 32, %v1867
      %v1869 = vshll.u32 %v1860, %v1867
      %v1870 = vshrl.u32 %v1852, %v1868
      %v1871 = vor.u32 %v1869, %v1870
      %v1872 = vsub.s32 4294967266, %v1867
      %v1873 = vadd.s32 %v1872, 127
      %v1874 = vshll.u32 %v1873, 23
      %v1875 = vor.u32 4788187, %v1874
      %v1876 = vand.u32 2147483647, %v1875
      %v1878 = vcvt.s32.f32 %v1871
      %v1879 = vmul.f32 %v1878, %v1876
      %v1880 = vxor.u32 %v1879, 2147483648
      %v1881 = vsel %vm1760, %v1880, %v1879
      %v1882 = vsub.s32 4, %v1858
      %v1883 = vsel %vm1760, %v1882, %v1858
      %v1884 = vsel %vm1759, %v1448, %v1881
      %v1885 = vsel %vm1759, 0, %v1883
      %v1886 = vmul.f32 %v1884, %v1884
      %v1887 = vmul.f32 %v1886, -0.001358992
      %v1888 = vadd.f32 %v1887, 0.041655596
      %v1889 = vmul.f32 %v1886, %v1888
      %v1890 = vadd.f32 %v1889, -0.4999988
      %v1891 = vmul.f32 %v1886, %v1890
      %v1892 = vadd.f32 1.0, %v1891
      %v1893 = vmul.f32 %v1884, %v1884
      %v1894 = vmul.f32 %v1893, -0.00019511016
      %v1895 = vadd.f32 %v1894, 0.008332121
      %v1896 = vmul.f32 %v1893, %v1895
      %v1897 = vadd.f32 %v1896, -0.16666654
      %v1898 = vmul.f32 %v1893, %v1897
      %v1899 = vadd.f32 %v1898, 1.0
      %v1900 = vmul.f32 %v1899, %v1884
      %vm1901 = vweird.f32 %v1448
      %v1902 = vand.u32 %v1885, 3
      %vm1903 = vcmp.lt.s32.totalorder %v1902, 2
      %vm1904 = vcmp.eq.s32.totalorder %v1902, 0
      %v1905 = vxor.u32 %v1900, 2147483648
      %v1906 = vsel %vm1904, %v1892, %v1905
      %vm1907 = vcmp.eq.s32.totalorder %v1902, 2
      %v1908 = vxor.u32 %v1892, 2147483648
      %v1909 = vsel %vm1907, %v1908, %v1900
      %v1910 = vsel %vm1903, %v1906, %v1909
      %v1911 = vsel %vm1901, nan, %v1910
      %v1912 = vand.u32 2147483647, %v1449
      %vm1913 = vcmp.le.f32.partialorder %v1912, 0.7853982
      %vm1914 = vcmp.lt.s32.totalorder %v1449, 0
      %v1915 = vand.u32 %v1449, 2139095040
      %v1916 = vshrl.u32 %v1915, 23
      %v1917 = vsub.s32 %v1916, 127
      %v1918 = vand.u32 2147483647, %v1449
      %v1919 = vand.u32 %v1918, 8388607
      %v1920 = vor.u32 %v1919, 8388608
      %v1921 = vsub.s32 0, %v1920
      %v1922 = vadd.s32 %v1917, 1
      %vm1923 = vcmp.gt.s32.totalorder %v1922, 0
      %v1924 = vsel %vm1923, %v1922, 0
      %v1925 = vshrl.u32 %v1924, 5
      %v1926 = vand.u32 %v1924, 31
      %v1927 = vsub.s32 32, %v1926
      %v1928 = vshrl.u32 683565275, %v1927
      %v1929 = vshll.u32 683565275, %v1926
      %v1930 = vshrl.u32 2475754826, %v1927
      %v1931 = vor.u32 %v1929, %v1930
      %v1932 = vshll.u32 2475754826, %v1926
      %v1933 = vshrl.u32 2131351028, %v1927
      %v1934 = vor.u32 %v1932, %v1933
      %v1935 = vshll.u32 2131351028, %v1926
      %v1936 = vshrl.u32 2102212464, %v1927
      %v1937 = vor.u32 %v1935, %v1936
      %v1938 = vshll.u32 2102212464, %v1926
      %v1939 = vshrl.u32 920167782, %v1927
      %v1940 = vor.u32 %v1938, %v1939
      %v1941 = vshll.u32 920167782, %v1926
      %v1942 = vshrl.u32 1326507024, %v1927
      %v1943 = vor.u32 %v1941, %v1942
      %vm1944 = vcmp.lt.s32.totalorder %v1925, 1
      %vm1945 = vcmp.lt.s32.totalorder %v1925, 2
      %vm1946 = vcmp.lt.s32.totalorder %v1925, 3
      %vm1947 = vcmp.lt.s32.totalorder %v1925, 4
      %v1948 = vsel %vm1944, %v1928, %v1931
      %v1949 = vsel %vm1947, %v1937, 2102212464
      %v1950 = vsel %vm1946, %v1934, %v1949
      %v1951 = vsel %vm1945, %v1948, %v1950
      %v1952 = vsel %vm1944, %v1931, %v1934
      %v1953 = vsel %vm1947, %v1940, 920167782
      %v1954 = vsel %vm1946, %v1937, %v1953
      %v1955 = vsel %vm1945, %v1952, %v1954
      %v1956 = vsel %vm1944, %v1934, %v1937
      %v1957 = vsel %vm1947, %v1943, 1326507024
      %v1958 = vsel %vm1946, %v1940, %v1957
      %v1959 = vsel %vm1945, %v1956, %v1958
      %v1960 = vshll.u32 %v1920, 8
      %v1961 = vand.u32 %v1960, 65535
      %v1962 = vshrl.u32 %v1960, 16
      %v1963 = vand.u32 %v1959, 65535
      %v1964 = vshrl.u32 %v1959, 16
      %v1965 = vmul.u32 %v1961, %v1963
      %v1966 = vmul.u32 %v1961, %v1964
      %v1967 = vmul.u32 %v1962, %v1963
      %v1968 = vmul.u32 %v1962, %v1964
      %v1969 = vshll.u32 %v1966, 16
      %v1970 = vshrl.u32 %v1966, 16
      %v1971 = vshll.u32 %v1967, 16
      %v1972 = vshrl.u32 %v1967, 16
      %vm1973 = vc.u32 %v1965, %v1969
      %v1974 = vsel %vm1973, 1, 0
      %v1975 = vadd.s32 %v1965, %v1969
      %v1976 = vadd.s32 %v1968, %v1974
      %vm1977 = vc.u32 %v1975, %v1971
      %v1978 = vsel %vm1977, 1, 0
      %v1979 = vadd.s32 %v1975, %v1971
      %v1980 = vadd.s32 %v1976, %v1978
      %v1981 = vadd.s32 %v1980, %v1970
      %v1982 = vadd.s32 %v1981, %v1972
      %v1983 = vand.u32 %v1960, 65535
      %v1984 = vshrl.u32 %v1960, 16
      %v1985 = vand.u32 %v1955, 65535
      %v1986 = vshrl.u32 %v1955, 16
      %v1987 = vmul.u32 %v1983, %v1985
      %v1988 = vmul.u32 %v1983, %v1986
      %v1989 = vmul.u32 %v1984, %v1985
      %v1990 = vmul.u32 %v1984, %v1986
      %v1991 = vshll.u32 %v1988, 16
      %v1992 = vshrl.u32 %v1988, 16
      %v1993 = vshll.u32 %v1989, 16
      %v1994 = vshrl.u32 %v1989, 16
      %vm1995 = vc.u32 %v1987, %v1991
      %v1996 = vsel %vm1995, 1, 0
      %v1997 = vadd.s32 %v1987, %v1991
      %v1998 = vadd.s32 %v1990, %v1996
      %vm1999 = vc.u32 %v1997, %v1993
      %v2000 = vsel %vm1999, 1, 0
      %v2001 = vadd.s32 %v1997, %v1993
      %v2002 = vadd.s32 %v1998, %v2000
      %v2003 = vadd.s32 %v2002, %v1992
      %v2004 = vadd.s32 %v2003, %v1994
      %v2005 = vmul.u32 %v1960, %v1951
      %v2006 = vadd.s32 %v1982, %v2001
      %vm2007 = vc.u32 %v1982, %v2001
      %v2008 = vadd.s32 %v2004, 1
      %v2009 = vsel %vm2007, %v2008, %v2004
      %v2010 = vadd.s32 %v2005, %v2009
      %v2011 = vadd.s32 %v2010, 536870912
      %v2012 = vshrl.u32 %v2011, 30
      %v2013 = vshll.u32 %v2012, 30
      %v2014 = vsub.s32 %v2010, %v2013
      %vm2015 = vcmp.lt.s32.totalorder %v2014, 0
      %v2016 = vsub.s32 0, %v2014
      %v2017 = vsel %vm2015, %v2016, %v2014
      %v2018 = vclz %v2017
      %v2019 = vsub.s32 %v2018, 2
      %vm2020 = vcmp.gt.s32.totalorder 0, %v2019
      %v2021 = vsel %vm2020, 0, %v2019
      %v2022 = vsub.s32 32, %v2021
      %v2023 = vshll.u32 %v2014, %v2021
      %v2024 = vshrl.u32 %v2006, %v2022
      %v2025 = vor.u32 %v2023, %v2024
      %v2026 = vsub.s32 4294967266, %v2021
      %v2027 = vadd.s32 %v2026, 127
      %v2028 = vshll.u32 %v2027, 23
      %v2029 = vor.u32 4788187, %v2028
      %v2030 = vand.u32 2147483647, %v2029
      %v2032 = vcvt.s32.f32 %v2025
      %v2033 = vmul.f32 %v2032, %v2030
      %v2034 = vxor.u32 %v2033, 2147483648
      %v2035 = vsel %vm1914, %v2034, %v2033
      %v2036 = vsub.s32 4, %v2012
      %v2037 = vsel %vm1914, %v2036, %v2012
      %v2038 = vsel %vm1913, %v1449, %v2035
      %v2039 = vsel %vm1913, 0, %v2037
      %v2040 = vmul.f32 %v2038, %v2038
      %v2041 = vmul.f32 %v2040, -0.001358992
      %v2042 = vadd.f32 %v2041, 0.041655596
      %v2043 = vmul.f32 %v2040, %v2042
      %v2044 = vadd.f32 %v2043, -0.4999988
      %v2045 = vmul.f32 %v2040, %v2044
      %v2046 = vadd.f32 1.0, %v2045
      %v2047 = vmul.f32 %v2038, %v2038
      %v2048 = vmul.f32 %v2047, -0.00019511016
      %v2049 = vadd.f32 %v2048, 0.008332121
      %v2050 = vmul.f32 %v2047, %v2049
      %v2051 = vadd.f32 %v2050, -0.16666654
      %v2052 = vmul.f32 %v2047, %v2051
      %v2053 = vadd.f32 %v2052, 1.0
      %v2054 = vmul.f32 %v2053, %v2038
      %vm2055 = vweird.f32 %v1449
      %v2056 = vand.u32 %v2039, 3
      %vm2057 = vcmp.lt.s32.totalorder %v2056, 2
      %vm2058 = vcmp.eq.s32.totalorder %v2056, 0
      %v2059 = vxor.u32 %v2054, 2147483648
      %v2060 = vsel %vm2058, %v2046, %v2059
      %vm2061 = vcmp.eq.s32.totalorder %v2056, 2
      %v2062 = vxor.u32 %v2046, 2147483648
      %v2063 = vsel %vm2061, %v2062, %v2054
      %v2064 = vsel %vm2057, %v2060, %v2063
      %v2065 = vsel %vm2055, nan, %v2064
      %v2066 = vand.u32 2147483647, %v1446
      %vm2067 = vcmp.le.f32.partialorder %v2066, 0.7853982
      %vm2068 = vcmp.lt.s32.totalorder %v1446, 0
      %v2069 = vand.u32 %v1446, 2139095040
      %v2070 = vshrl.u32 %v2069, 23
      %v2071 = vsub.s32 %v2070, 127
      %v2072 = vand.u32 2147483647, %v1446
      %v2073 = vand.u32 %v2072, 8388607
      %v2074 = vor.u32 %v2073, 8388608
      %v2075 = vsub.s32 0, %v2074
      %v2076 = vadd.s32 %v2071, 1
      %vm2077 = vcmp.gt.s32.totalorder %v2076, 0
      %v2078 = vsel %vm2077, %v2076, 0
      %v2079 = vshrl.u32 %v2078, 5
      %v2080 = vand.u32 %v2078, 31
      %v2081 = vsub.s32 32, %v2080
      %v2082 = vshrl.u32 683565275, %v2081
      %v2083 = vshll.u32 683565275, %v2080
      %v2084 = vshrl.u32 2475754826, %v2081
      %v2085 = vor.u32 %v2083, %v2084
      %v2086 = vshll.u32 2475754826, %v2080
      %v2087 = vshrl.u32 2131351028, %v2081
      %v2088 = vor.u32 %v2086, %v2087
      %v2089 = vshll.u32 2131351028, %v2080
      %v2090 = vshrl.u32 2102212464, %v2081
      %v2091 = vor.u32 %v2089, %v2090
      %v2092 = vshll.u32 2102212464, %v2080
      %v2093 = vshrl.u32 920167782, %v2081
      %v2094 = vor.u32 %v2092, %v2093
      %v2095 = vshll.u32 920167782, %v2080
      %v2096 = vshrl.u32 1326507024, %v2081
      %v2097 = vor.u32 %v2095, %v2096
      %vm2098 = vcmp.lt.s32.totalorder %v2079, 1
      %vm2099 = vcmp.lt.s32.totalorder %v2079, 2
      %vm2100 = vcmp.lt.s32.totalorder %v2079, 3
      %vm2101 = vcmp.lt.s32.totalorder %v2079, 4
      %v2102 = vsel %vm2098, %v2082, %v2085
      %v2103 = vsel %vm2101, %v2091, 2102212464
      %v2104 = vsel %vm2100, %v2088, %v2103
      %v2105 = vsel %vm2099, %v2102, %v2104
      %v2106 = vsel %vm2098, %v2085, %v2088
      %v2107 = vsel %vm2101, %v2094, 920167782
      %v2108 = vsel %vm2100, %v2091, %v2107
      %v2109 = vsel %vm2099, %v2106, %v2108
      %v2110 = vsel %vm2098, %v2088, %v2091
      %v2111 = vsel %vm2101, %v2097, 1326507024
      %v2112 = vsel %vm2100, %v2094, %v2111
      %v2113 = vsel %vm2099, %v2110, %v2112
      %v2114 = vshll.u32 %v2074, 8
      %v2115 = vand.u32 %v2114, 65535
      %v2116 = vshrl.u32 %v2114, 16
      %v2117 = vand.u32 %v2113, 65535
      %v2118 = vshrl.u32 %v2113, 16
      %v2119 = vmul.u32 %v2115, %v2117
      %v2120 = vmul.u32 %v2115, %v2118
      %v2121 = vmul.u32 %v2116, %v2117
      %v2122 = vmul.u32 %v2116, %v2118
      %v2123 = vshll.u32 %v2120, 16
      %v2124 = vshrl.u32 %v2120, 16
      %v2125 = vshll.u32 %v2121, 16
      %v2126 = vshrl.u32 %v2121, 16
      %vm2127 = vc.u32 %v2119, %v2123
      %v2128 = vsel %vm2127, 1, 0
      %v2129 = vadd.s32 %v2119, %v2123
      %v2130 = vadd.s32 %v2122, %v2128
      %vm2131 = vc.u32 %v2129, %v2125
      %v2132 = vsel %vm2131, 1, 0
      %v2133 = vadd.s32 %v2129, %v2125
      %v2134 = vadd.s32 %v2130, %v2132
      %v2135 = vadd.s32 %v2134, %v2124
      %v2136 = vadd.s32 %v2135, %v2126
      %v2137 = vand.u32 %v2114, 65535
      %v2138 = vshrl.u32 %v2114, 16
      %v2139 = vand.u32 %v2109, 65535
      %v2140 = vshrl.u32 %v2109, 16
      %v2141 = vmul.u32 %v2137, %v2139
      %v2142 = vmul.u32 %v2137, %v2140
      %v2143 = vmul.u32 %v2138, %v2139
      %v2144 = vmul.u32 %v2138, %v2140
      %v2145 = vshll.u32 %v2142, 16
      %v2146 = vshrl.u32 %v2142, 16
      %v2147 = vshll.u32 %v2143, 16
      %v2148 = vshrl.u32 %v2143, 16
      %vm2149 = vc.u32 %v2141, %v2145
      %v2150 = vsel %vm2149, 1, 0
      %v2151 = vadd.s32 %v2141, %v2145
      %v2152 = vadd.s32 %v2144, %v2150
      %vm2153 = vc.u32 %v2151, %v2147
      %v2154 = vsel %vm2153, 1, 0
      %v2155 = vadd.s32 %v2151, %v2147
      %v2156 = vadd.s32 %v2152, %v2154
      %v2157 = vadd.s32 %v2156, %v2146
      %v2158 = vadd.s32 %v2157, %v2148
      %v2159 = vmul.u32 %v2114, %v2105
      %v2160 = vadd.s32 %v2136, %v2155
      %vm2161 = vc.u32 %v2136, %v2155
      %v2162 = vadd.s32 %v2158, 1
      %v2163 = vsel %vm2161, %v2162, %v2158
      %v2164 = vadd.s32 %v2159, %v2163
      %v2165 = vadd.s32 %v2164, 536870912
      %v2166 = vshrl.u32 %v2165, 30
      %v2167 = vshll.u32 %v2166, 30
      %v2168 = vsub.s32 %v2164, %v2167
      %vm2169 = vcmp.lt.s32.totalorder %v2168, 0
      %v2170 = vsub.s32 0, %v2168
      %v2171 = vsel %vm2169, %v2170, %v2168
      %v2172 = vclz %v2171
      %v2173 = vsub.s32 %v2172, 2
      %vm2174 = vcmp.gt.s32.totalorder 0, %v2173
      %v2175 = vsel %vm2174, 0, %v2173
      %v2176 = vsub.s32 32, %v2175
      %v2177 = vshll.u32 %v2168, %v2175
      %v2178 = vshrl.u32 %v2160, %v2176
      %v2179 = vor.u32 %v2177, %v2178
      %v2180 = vsub.s32 4294967266, %v2175
      %v2181 = vadd.s32 %v2180, 127
      %v2182 = vshll.u32 %v2181, 23
      %v2183 = vor.u32 4788187, %v2182
      %v2184 = vand.u32 2147483647, %v2183
      %v2186 = vcvt.s32.f32 %v2179
      %v2187 = vmul.f32 %v2186, %v2184
      %v2188 = vxor.u32 %v2187, 2147483648
      %v2189 = vsel %vm2068, %v2188, %v2187
      %v2190 = vsub.s32 4, %v2166
      %v2191 = vsel %vm2068, %v2190, %v2166
      %v2192 = vsel %vm2067, %v1446, %v2189
      %v2193 = vsel %vm2067, 0, %v2191
      %v2194 = vmul.f32 %v2192, %v2192
      %v2195 = vmul.f32 %v2194, -0.001358992
      %v2196 = vadd.f32 %v2195, 0.041655596
      %v2197 = vmul.f32 %v2194, %v2196
      %v2198 = vadd.f32 %v2197, -0.4999988
      %v2199 = vmul.f32 %v2194, %v2198
      %v2200 = vadd.f32 1.0, %v2199
      %v2201 = vmul.f32 %v2192, %v2192
      %v2202 = vmul.f32 %v2201, -0.00019511016
      %v2203 = vadd.f32 %v2202, 0.008332121
      %v2204 = vmul.f32 %v2201, %v2203
      %v2205 = vadd.f32 %v2204, -0.16666654
      %v2206 = vmul.f32 %v2201, %v2205
      %v2207 = vadd.f32 %v2206, 1.0
      %v2208 = vmul.f32 %v2207, %v2192
      %vm2209 = vweird.f32 %v1446
      %v2210 = vadd.s32 %v2193, 3
      %v2211 = vand.u32 %v2210, 3
      %vm2212 = vcmp.lt.s32.totalorder %v2211, 2
      %vm2213 = vcmp.eq.s32.totalorder %v2211, 0
      %v2214 = vxor.u32 %v2208, 2147483648
      %v2215 = vsel %vm2213, %v2200, %v2214
      %vm2216 = vcmp.eq.s32.totalorder %v2211, 2
      %v2217 = vxor.u32 %v2200, 2147483648
      %v2218 = vsel %vm2216, %v2217, %v2208
      %v2219 = vsel %vm2212, %v2215, %v2218
      %v2220 = vsel %vm2209, nan, %v2219
      %v2221 = vand.u32 2147483647, %v1447
      %vm2222 = vcmp.le.f32.partialorder %v2221, 0.7853982
      %vm2223 = vcmp.lt.s32.totalorder %v1447, 0
      %v2224 = vand.u32 %v1447, 2139095040
      %v2225 = vshrl.u32 %v2224, 23
      %v2226 = vsub.s32 %v2225, 127
      %v2227 = vand.u32 2147483647, %v1447
      %v2228 = vand.u32 %v2227, 8388607
      %v2229 = vor.u32 %v2228, 8388608
      %v2230 = vsub.s32 0, %v2229
      %v2231 = vadd.s32 %v2226, 1
      %vm2232 = vcmp.gt.s32.totalorder %v2231, 0
      %v2233 = vsel %vm2232, %v2231, 0
      %v2234 = vshrl.u32 %v2233, 5
      %v2235 = vand.u32 %v2233, 31
      %v2236 = vsub.s32 32, %v2235
      %v2237 = vshrl.u32 683565275, %v2236
      %v2238 = vshll.u32 683565275, %v2235
      %v2239 = vshrl.u32 2475754826, %v2236
      %v2240 = vor.u32 %v2238, %v2239
      %v2241 = vshll.u32 2475754826, %v2235
      %v2242 = vshrl.u32 2131351028, %v2236
      %v2243 = vor.u32 %v2241, %v2242
      %v2244 = vshll.u32 2131351028, %v2235
      %v2245 = vshrl.u32 2102212464, %v2236
      %v2246 = vor.u32 %v2244, %v2245
      %v2247 = vshll.u32 2102212464, %v2235
      %v2248 = vshrl.u32 920167782, %v2236
      %v2249 = vor.u32 %v2247, %v2248
      %v2250 = vshll.u32 920167782, %v2235
      %v2251 = vshrl.u32 1326507024, %v2236
      %v2252 = vor.u32 %v2250, %v2251
      %vm2253 = vcmp.lt.s32.totalorder %v2234, 1
      %vm2254 = vcmp.lt.s32.totalorder %v2234, 2
      %vm2255 = vcmp.lt.s32.totalorder %v2234, 3
      %vm2256 = vcmp.lt.s32.totalorder %v2234, 4
      %v2257 = vsel %vm2253, %v2237, %v2240
      %v2258 = vsel %vm2256, %v2246, 2102212464
      %v2259 = vsel %vm2255, %v2243, %v2258
      %v2260 = vsel %vm2254, %v2257, %v2259
      %v2261 = vsel %vm2253, %v2240, %v2243
      %v2262 = vsel %vm2256, %v2249, 920167782
      %v2263 = vsel %vm2255, %v2246, %v2262
      %v2264 = vsel %vm2254, %v2261, %v2263
      %v2265 = vsel %vm2253, %v2243, %v2246
      %v2266 = vsel %vm2256, %v2252, 1326507024
      %v2267 = vsel %vm2255, %v2249, %v2266
      %v2268 = vsel %vm2254, %v2265, %v2267
      %v2269 = vshll.u32 %v2229, 8
      %v2270 = vand.u32 %v2269, 65535
      %v2271 = vshrl.u32 %v2269, 16
      %v2272 = vand.u32 %v2268, 65535
      %v2273 = vshrl.u32 %v2268, 16
      %v2274 = vmul.u32 %v2270, %v2272
      %v2275 = vmul.u32 %v2270, %v2273
      %v2276 = vmul.u32 %v2271, %v2272
      %v2277 = vmul.u32 %v2271, %v2273
      %v2278 = vshll.u32 %v2275, 16
      %v2279 = vshrl.u32 %v2275, 16
      %v2280 = vshll.u32 %v2276, 16
      %v2281 = vshrl.u32 %v2276, 16
      %vm2282 = vc.u32 %v2274, %v2278
      %v2283 = vsel %vm2282, 1, 0
      %v2284 = vadd.s32 %v2274, %v2278
      %v2285 = vadd.s32 %v2277, %v2283
      %vm2286 = vc.u32 %v2284, %v2280
      %v2287 = vsel %vm2286, 1, 0
      %v2288 = vadd.s32 %v2284, %v2280
      %v2289 = vadd.s32 %v2285, %v2287
      %v2290 = vadd.s32 %v2289, %v2279
      %v2291 = vadd.s32 %v2290, %v2281
      %v2292 = vand.u32 %v2269, 65535
      %v2293 = vshrl.u32 %v2269, 16
      %v2294 = vand.u32 %v2264, 65535
      %v2295 = vshrl.u32 %v2264, 16
      %v2296 = vmul.u32 %v2292, %v2294
      %v2297 = vmul.u32 %v2292, %v2295
      %v2298 = vmul.u32 %v2293, %v2294
      %v2299 = vmul.u32 %v2293, %v2295
      %v2300 = vshll.u32 %v2297, 16
      %v2301 = vshrl.u32 %v2297, 16
      %v2302 = vshll.u32 %v2298, 16
      %v2303 = vshrl.u32 %v2298, 16
      %vm2304 = vc.u32 %v2296, %v2300
      %v2305 = vsel %vm2304, 1, 0
      %v2306 = vadd.s32 %v2296, %v2300
      %v2307 = vadd.s32 %v2299, %v2305
      %vm2308 = vc.u32 %v2306, %v2302
      %v2309 = vsel %vm2308, 1, 0
      %v2310 = vadd.s32 %v2306, %v2302
      %v2311 = vadd.s32 %v2307, %v2309
      %v2312 = vadd.s32 %v2311, %v2301
      %v2313 = vadd.s32 %v2312, %v2303
      %v2314 = vmul.u32 %v2269, %v2260
      %v2315 = vadd.s32 %v2291, %v2310
      %vm2316 = vc.u32 %v2291, %v2310
      %v2317 = vadd.s32 %v2313, 1
      %v2318 = vsel %vm2316, %v2317, %v2313
      %v2319 = vadd.s32 %v2314, %v2318
      %v2320 = vadd.s32 %v2319, 536870912
      %v2321 = vshrl.u32 %v2320, 30
      %v2322 = vshll.u32 %v2321, 30
      %v2323 = vsub.s32 %v2319, %v2322
      %vm2324 = vcmp.lt.s32.totalorder %v2323, 0
      %v2325 = vsub.s32 0, %v2323
      %v2326 = vsel %vm2324, %v2325, %v2323
      %v2327 = vclz %v2326
      %v2328 = vsub.s32 %v2327, 2
      %vm2329 = vcmp.gt.s32.totalorder 0, %v2328
      %v2330 = vsel %vm2329, 0, %v2328
      %v2331 = vsub.s32 32, %v2330
      %v2332 = vshll.u32 %v2323, %v2330
      %v2333 = vshrl.u32 %v2315, %v2331
      %v2334 = vor.u32 %v2332, %v2333
      %v2335 = vsub.s32 4294967266, %v2330
      %v2336 = vadd.s32 %v2335, 127
      %v2337 = vshll.u32 %v2336, 23
      %v2338 = vor.u32 4788187, %v2337
      %v2339 = vand.u32 2147483647, %v2338
      %v2341 = vcvt.s32.f32 %v2334
      %v2342 = vmul.f32 %v2341, %v2339
      %v2343 = vxor.u32 %v2342, 2147483648
      %v2344 = vsel %vm2223, %v2343, %v2342
      %v2345 = vsub.s32 4, %v2321
      %v2346 = vsel %vm2223, %v2345, %v2321
      %v2347 = vsel %vm2222, %v1447, %v2344
      %v2348 = vsel %vm2222, 0, %v2346
      %v2349 = vmul.f32 %v2347, %v2347
      %v2350 = vmul.f32 %v2349, -0.001358992
      %v2351 = vadd.f32 %v2350, 0.041655596
      %v2352 = vmul.f32 %v2349, %v2351
      %v2353 = vadd.f32 %v2352, -0.4999988
      %v2354 = vmul.f32 %v2349, %v2353
      %v2355 = vadd.f32 1.0, %v2354
      %v2356 = vmul.f32 %v2347, %v2347
      %v2357 = vmul.f32 %v2356, -0.00019511016
      %v2358 = vadd.f32 %v2357, 0.008332121
      %v2359 = vmul.f32 %v2356, %v2358
      %v2360 = vadd.f32 %v2359, -0.16666654
      %v2361 = vmul.f32 %v2356, %v2360
      %v2362 = vadd.f32 %v2361, 1.0
      %v2363 = vmul.f32 %v2362, %v2347
      %vm2364 = vweird.f32 %v1447
      %v2365 = vadd.s32 %v2348, 3
      %v2366 = vand.u32 %v2365, 3
      %vm2367 = vcmp.lt.s32.totalorder %v2366, 2
      %vm2368 = vcmp.eq.s32.totalorder %v2366, 0
      %v2369 = vxor.u32 %v2363, 2147483648
      %v2370 = vsel %vm2368, %v2355, %v2369
      %vm2371 = vcmp.eq.s32.totalorder %v2366, 2
      %v2372 = vxor.u32 %v2355, 2147483648
      %v2373 = vsel %vm2371, %v2372, %v2363
      %v2374 = vsel %vm2367, %v2370, %v2373
      %v2375 = vsel %vm2364, nan, %v2374
      %v2376 = vand.u32 2147483647, %v1448
      %vm2377 = vcmp.le.f32.partialorder %v2376, 0.7853982
      %vm2378 = vcmp.lt.s32.totalorder %v1448, 0
      %v2379 = vand.u32 %v1448, 2139095040
      %v2380 = vshrl.u32 %v2379, 23
      %v2381 = vsub.s32 %v2380, 127
      %v2382 = vand.u32 2147483647, %v1448
      %v2383 = vand.u32 %v2382, 8388607
      %v2384 = vor.u32 %v2383, 8388608
      %v2385 = vsub.s32 0, %v2384
      %v2386 = vadd.s32 %v2381, 1
      %vm2387 = vcmp.gt.s32.totalorder %v2386, 0
      %v2388 = vsel %vm2387, %v2386, 0
      %v2389 = vshrl.u32 %v2388, 5
      %v2390 = vand.u32 %v2388, 31
      %v2391 = vsub.s32 32, %v2390
      %v2392 = vshrl.u32 683565275, %v2391
      %v2393 = vshll.u32 683565275, %v2390
      %v2394 = vshrl.u32 2475754826, %v2391
      %v2395 = vor.u32 %v2393, %v2394
      %v2396 = vshll.u32 2475754826, %v2390
      %v2397 = vshrl.u32 2131351028, %v2391
      %v2398 = vor.u32 %v2396, %v2397
      %v2399 = vshll.u32 2131351028, %v2390
      %v2400 = vshrl.u32 2102212464, %v2391
      %v2401 = vor.u32 %v2399, %v2400
      %v2402 = vshll.u32 2102212464, %v2390
      %v2403 = vshrl.u32 920167782, %v2391
      %v2404 = vor.u32 %v2402, %v2403
      %v2405 = vshll.u32 920167782, %v2390
      %v2406 = vshrl.u32 1326507024, %v2391
      %v2407 = vor.u32 %v2405, %v2406
      %vm2408 = vcmp.lt.s32.totalorder %v2389, 1
      %vm2409 = vcmp.lt.s32.totalorder %v2389, 2
      %vm2410 = vcmp.lt.s32.totalorder %v2389, 3
      %vm2411 = vcmp.lt.s32.totalorder %v2389, 4
      %v2412 = vsel %vm2408, %v2392, %v2395
      %v2413 = vsel %vm2411, %v2401, 2102212464
      %v2414 = vsel %vm2410, %v2398, %v2413
      %v2415 = vsel %vm2409, %v2412, %v2414
      %v2416 = vsel %vm2408, %v2395, %v2398
      %v2417 = vsel %vm2411, %v2404, 920167782
      %v2418 = vsel %vm2410, %v2401, %v2417
      %v2419 = vsel %vm2409, %v2416, %v2418
      %v2420 = vsel %vm2408, %v2398, %v2401
      %v2421 = vsel %vm2411, %v2407, 1326507024
      %v2422 = vsel %vm2410, %v2404, %v2421
      %v2423 = vsel %vm2409, %v2420, %v2422
      %v2424 = vshll.u32 %v2384, 8
      %v2425 = vand.u32 %v2424, 65535
      %v2426 = vshrl.u32 %v2424, 16
      %v2427 = vand.u32 %v2423, 65535
      %v2428 = vshrl.u32 %v2423, 16
      %v2429 = vmul.u32 %v2425, %v2427
      %v2430 = vmul.u32 %v2425, %v2428
      %v2431 = vmul.u32 %v2426, %v2427
      %v2432 = vmul.u32 %v2426, %v2428
      %v2433 = vshll.u32 %v2430, 16
      %v2434 = vshrl.u32 %v2430, 16
      %v2435 = vshll.u32 %v2431, 16
      %v2436 = vshrl.u32 %v2431, 16
      %vm2437 = vc.u32 %v2429, %v2433
      %v2438 = vsel %vm2437, 1, 0
      %v2439 = vadd.s32 %v2429, %v2433
      %v2440 = vadd.s32 %v2432, %v2438
      %vm2441 = vc.u32 %v2439, %v2435
      %v2442 = vsel %vm2441, 1, 0
      %v2443 = vadd.s32 %v2439, %v2435
      %v2444 = vadd.s32 %v2440, %v2442
      %v2445 = vadd.s32 %v2444, %v2434
      %v2446 = vadd.s32 %v2445, %v2436
      %v2447 = vand.u32 %v2424, 65535
      %v2448 = vshrl.u32 %v2424, 16
      %v2449 = vand.u32 %v2419, 65535
      %v2450 = vshrl.u32 %v2419, 16
      %v2451 = vmul.u32 %v2447, %v2449
      %v2452 = vmul.u32 %v2447, %v2450
      %v2453 = vmul.u32 %v2448, %v2449
      %v2454 = vmul.u32 %v2448, %v2450
      %v2455 = vshll.u32 %v2452, 16
      %v2456 = vshrl.u32 %v2452, 16
      %v2457 = vshll.u32 %v2453, 16
      %v2458 = vshrl.u32 %v2453, 16
      %vm2459 = vc.u32 %v2451, %v2455
      %v2460 = vsel %vm2459, 1, 0
      %v2461 = vadd.s32 %v2451, %v2455
      %v2462 = vadd.s32 %v2454, %v2460
      %vm2463 = vc.u32 %v2461, %v2457
      %v2464 = vsel %vm2463, 1, 0
      %v2465 = vadd.s32 %v2461, %v2457
      %v2466 = vadd.s32 %v2462, %v2464
      %v2467 = vadd.s32 %v2466, %v2456
      %v2468 = vadd.s32 %v2467, %v2458
      %v2469 = vmul.u32 %v2424, %v2415
      %v2470 = vadd.s32 %v2446, %v2465
      %vm2471 = vc.u32 %v2446, %v2465
      %v2472 = vadd.s32 %v2468, 1
      %v2473 = vsel %vm2471, %v2472, %v2468
      %v2474 = vadd.s32 %v2469, %v2473
      %v2475 = vadd.s32 %v2474, 536870912
      %v2476 = vshrl.u32 %v2475, 30
      %v2477 = vshll.u32 %v2476, 30
      %v2478 = vsub.s32 %v2474, %v2477
      %vm2479 = vcmp.lt.s32.totalorder %v2478, 0
      %v2480 = vsub.s32 0, %v2478
      %v2481 = vsel %vm2479, %v2480, %v2478
      %v2482 = vclz %v2481
      %v2483 = vsub.s32 %v2482, 2
      %vm2484 = vcmp.gt.s32.totalorder 0, %v2483
      %v2485 = vsel %vm2484, 0, %v2483
      %v2486 = vsub.s32 32, %v2485
      %v2487 = vshll.u32 %v2478, %v2485
      %v2488 = vshrl.u32 %v2470, %v2486
      %v2489 = vor.u32 %v2487, %v2488
      %v2490 = vsub.s32 4294967266, %v2485
      %v2491 = vadd.s32 %v2490, 127
      %v2492 = vshll.u32 %v2491, 23
      %v2493 = vor.u32 4788187, %v2492
      %v2494 = vand.u32 2147483647, %v2493
      %v2496 = vcvt.s32.f32 %v2489
      %v2497 = vmul.f32 %v2496, %v2494
      %v2498 = vxor.u32 %v2497, 2147483648
      %v2499 = vsel %vm2378, %v2498, %v2497
      %v2500 = vsub.s32 4, %v2476
      %v2501 = vsel %vm2378, %v2500, %v2476
      %v2502 = vsel %vm2377, %v1448, %v2499
      %v2503 = vsel %vm2377, 0, %v2501
      %v2504 = vmul.f32 %v2502, %v2502
      %v2505 = vmul.f32 %v2504, -0.001358992
      %v2506 = vadd.f32 %v2505, 0.041655596
      %v2507 = vmul.f32 %v2504, %v2506
      %v2508 = vadd.f32 %v2507, -0.4999988
      %v2509 = vmul.f32 %v2504, %v2508
      %v2510 = vadd.f32 1.0, %v2509
      %v2511 = vmul.f32 %v2502, %v2502
      %v2512 = vmul.f32 %v2511, -0.00019511016
      %v2513 = vadd.f32 %v2512, 0.008332121
      %v2514 = vmul.f32 %v2511, %v2513
      %v2515 = vadd.f32 %v2514, -0.16666654
      %v2516 = vmul.f32 %v2511, %v2515
      %v2517 = vadd.f32 %v2516, 1.0
      %v2518 = vmul.f32 %v2517, %v2502
      %vm2519 = vweird.f32 %v1448
      %v2520 = vadd.s32 %v2503, 3
      %v2521 = vand.u32 %v2520, 3
      %vm2522 = vcmp.lt.s32.totalorder %v2521, 2
      %vm2523 = vcmp.eq.s32.totalorder %v2521, 0
      %v2524 = vxor.u32 %v2518, 2147483648
      %v2525 = vsel %vm2523, %v2510, %v2524
      %vm2526 = vcmp.eq.s32.totalorder %v2521, 2
      %v2527 = vxor.u32 %v2510, 2147483648
      %v2528 = vsel %vm2526, %v2527, %v2518
      %v2529 = vsel %vm2522, %v2525, %v2528
      %v2530 = vsel %vm2519, nan, %v2529
      %v2531 = vand.u32 2147483647, %v1449
      %vm2532 = vcmp.le.f32.partialorder %v2531, 0.7853982
      %vm2533 = vcmp.lt.s32.totalorder %v1449, 0
      %v2534 = vand.u32 %v1449, 2139095040
      %v2535 = vshrl.u32 %v2534, 23
      %v2536 = vsub.s32 %v2535, 127
      %v2537 = vand.u32 2147483647, %v1449
      %v2538 = vand.u32 %v2537, 8388607
      %v2539 = vor.u32 %v2538, 8388608
      %v2540 = vsub.s32 0, %v2539
      %v2541 = vadd.s32 %v2536, 1
      %vm2542 = vcmp.gt.s32.totalorder %v2541, 0
      %v2543 = vsel %vm2542, %v2541, 0
      %v2544 = vshrl.u32 %v2543, 5
      %v2545 = vand.u32 %v2543, 31
      %v2546 = vsub.s32 32, %v2545
      %v2547 = vshrl.u32 683565275, %v2546
      %v2548 = vshll.u32 683565275, %v2545
      %v2549 = vshrl.u32 2475754826, %v2546
      %v2550 = vor.u32 %v2548, %v2549
      %v2551 = vshll.u32 2475754826, %v2545
      %v2552 = vshrl.u32 2131351028, %v2546
      %v2553 = vor.u32 %v2551, %v2552
      %v2554 = vshll.u32 2131351028, %v2545
      %v2555 = vshrl.u32 2102212464, %v2546
      %v2556 = vor.u32 %v2554, %v2555
      %v2557 = vshll.u32 2102212464, %v2545
      %v2558 = vshrl.u32 920167782, %v2546
      %v2559 = vor.u32 %v2557, %v2558
      %v2560 = vshll.u32 920167782, %v2545
      %v2561 = vshrl.u32 1326507024, %v2546
      %v2562 = vor.u32 %v2560, %v2561
      %vm2563 = vcmp.lt.s32.totalorder %v2544, 1
      %vm2564 = vcmp.lt.s32.totalorder %v2544, 2
      %vm2565 = vcmp.lt.s32.totalorder %v2544, 3
      %vm2566 = vcmp.lt.s32.totalorder %v2544, 4
      %v2567 = vsel %vm2563, %v2547, %v2550
      %v2568 = vsel %vm2566, %v2556, 2102212464
      %v2569 = vsel %vm2565, %v2553, %v2568
      %v2570 = vsel %vm2564, %v2567, %v2569
      %v2571 = vsel %vm2563, %v2550, %v2553
      %v2572 = vsel %vm2566, %v2559, 920167782
      %v2573 = vsel %vm2565, %v2556, %v2572
      %v2574 = vsel %vm2564, %v2571, %v2573
      %v2575 = vsel %vm2563, %v2553, %v2556
      %v2576 = vsel %vm2566, %v2562, 1326507024
      %v2577 = vsel %vm2565, %v2559, %v2576
      %v2578 = vsel %vm2564, %v2575, %v2577
      %v2579 = vshll.u32 %v2539, 8
      %v2580 = vand.u32 %v2579, 65535
      %v2581 = vshrl.u32 %v2579, 16
      %v2582 = vand.u32 %v2578, 65535
      %v2583 = vshrl.u32 %v2578, 16
      %v2584 = vmul.u32 %v2580, %v2582
      %v2585 = vmul.u32 %v2580, %v2583
      %v2586 = vmul.u32 %v2581, %v2582
      %v2587 = vmul.u32 %v2581, %v2583
      %v2588 = vshll.u32 %v2585, 16
      %v2589 = vshrl.u32 %v2585, 16
      %v2590 = vshll.u32 %v2586, 16
      %v2591 = vshrl.u32 %v2586, 16
      %vm2592 = vc.u32 %v2584, %v2588
      %v2593 = vsel %vm2592, 1, 0
      %v2594 = vadd.s32 %v2584, %v2588
      %v2595 = vadd.s32 %v2587, %v2593
      %vm2596 = vc.u32 %v2594, %v2590
      %v2597 = vsel %vm2596, 1, 0
      %v2598 = vadd.s32 %v2594, %v2590
      %v2599 = vadd.s32 %v2595, %v2597
      %v2600 = vadd.s32 %v2599, %v2589
      %v2601 = vadd.s32 %v2600, %v2591
      %v2602 = vand.u32 %v2579, 65535
      %v2603 = vshrl.u32 %v2579, 16
      %v2604 = vand.u32 %v2574, 65535
      %v2605 = vshrl.u32 %v2574, 16
      %v2606 = vmul.u32 %v2602, %v2604
      %v2607 = vmul.u32 %v2602, %v2605
      %v2608 = vmul.u32 %v2603, %v2604
      %v2609 = vmul.u32 %v2603, %v2605
      %v2610 = vshll.u32 %v2607, 16
      %v2611 = vshrl.u32 %v2607, 16
      %v2612 = vshll.u32 %v2608, 16
      %v2613 = vshrl.u32 %v2608, 16
      %vm2614 = vc.u32 %v2606, %v2610
      %v2615 = vsel %vm2614, 1, 0
      %v2616 = vadd.s32 %v2606, %v2610
      %v2617 = vadd.s32 %v2609, %v2615
      %vm2618 = vc.u32 %v2616, %v2612
      %v2619 = vsel %vm2618, 1, 0
      %v2620 = vadd.s32 %v2616, %v2612
      %v2621 = vadd.s32 %v2617, %v2619
      %v2622 = vadd.s32 %v2621, %v2611
      %v2623 = vadd.s32 %v2622, %v2613
      %v2624 = vmul.u32 %v2579, %v2570
      %v2625 = vadd.s32 %v2601, %v2620
      %vm2626 = vc.u32 %v2601, %v2620
      %v2627 = vadd.s32 %v2623, 1
      %v2628 = vsel %vm2626, %v2627, %v2623
      %v2629 = vadd.s32 %v2624, %v2628
      %v2630 = vadd.s32 %v2629, 536870912
      %v2631 = vshrl.u32 %v2630, 30
      %v2632 = vshll.u32 %v2631, 30
      %v2633 = vsub.s32 %v2629, %v2632
      %vm2634 = vcmp.lt.s32.totalorder %v2633, 0
      %v2635 = vsub.s32 0, %v2633
      %v2636 = vsel %vm2634, %v2635, %v2633
      %v2637 = vclz %v2636
      %v2638 = vsub.s32 %v2637, 2
      %vm2639 = vcmp.gt.s32.totalorder 0, %v2638
      %v2640 = vsel %vm2639, 0, %v2638
      %v2641 = vsub.s32 32, %v2640
      %v2642 = vshll.u32 %v2633, %v2640
      %v2643 = vshrl.u32 %v2625, %v2641
      %v2644 = vor.u32 %v2642, %v2643
      %v2645 = vsub.s32 4294967266, %v2640
      %v2646 = vadd.s32 %v2645, 127
      %v2647 = vshll.u32 %v2646, 23
      %v2648 = vor.u32 4788187, %v2647
      %v2649 = vand.u32 2147483647, %v2648
      %v2651 = vcvt.s32.f32 %v2644
      %v2652 = vmul.f32 %v2651, %v2649
      %v2653 = vxor.u32 %v2652, 2147483648
      %v2654 = vsel %vm2533, %v2653, %v2652
      %v2655 = vsub.s32 4, %v2631
      %v2656 = vsel %vm2533, %v2655, %v2631
      %v2657 = vsel %vm2532, %v1449, %v2654
      %v2658 = vsel %vm2532, 0, %v2656
      %v2659 = vmul.f32 %v2657, %v2657
      %v2660 = vmul.f32 %v2659, -0.001358992
      %v2661 = vadd.f32 %v2660, 0.041655596
      %v2662 = vmul.f32 %v2659, %v2661
      %v2663 = vadd.f32 %v2662, -0.4999988
      %v2664 = vmul.f32 %v2659, %v2663
      %v2665 = vadd.f32 1.0, %v2664
      %v2666 = vmul.f32 %v2657, %v2657
      %v2667 = vmul.f32 %v2666, -0.00019511016
      %v2668 = vadd.f32 %v2667, 0.008332121
      %v2669 = vmul.f32 %v2666, %v2668
      %v2670 = vadd.f32 %v2669, -0.16666654
      %v2671 = vmul.f32 %v2666, %v2670
      %v2672 = vadd.f32 %v2671, 1.0
      %v2673 = vmul.f32 %v2672, %v2657
      %vm2674 = vweird.f32 %v1449
      %v2675 = vadd.s32 %v2658, 3
      %v2676 = vand.u32 %v2675, 3
      %vm2677 = vcmp.lt.s32.totalorder %v2676, 2
      %vm2678 = vcmp.eq.s32.totalorder %v2676, 0
      %v2679 = vxor.u32 %v2673, 2147483648
      %v2680 = vsel %vm2678, %v2665, %v2679
      %vm2681 = vcmp.eq.s32.totalorder %v2676, 2
      %v2682 = vxor.u32 %v2665, 2147483648
      %v2683 = vsel %vm2681, %v2682, %v2673
      %v2684 = vsel %vm2677, %v2680, %v2683
      %v2685 = vsel %vm2674, nan, %v2684
      %v2686 = vrcp.pop %v2220
      %v2687 = vmul.f32 %v2220, %v2686
      %v2688 = vsub.f32 1.0, %v2687
      %v2689 = vmul.f32 %v2686, %v2688
      %v2690 = vadd.f32 %v2686, %v2689
      %vm2691 = vweird.f32 %v2220
      %vm2692 = vweird.f32 %v2686
      %vm2693 = vmor %vm2691, %vm2692
      %v2694 = vsel %vm2693, %v2686, %v2690
      %v2695 = vand.u32 2147483647, %v2220
      %vm2696 = vcmp.eq.f32.partialorder %v2695, 8.507059e+37
      %v2697 = vand.u32 %v2220, 2147483648
      %v2698 = vor.u32 1.1754944e-38, %v2697
      %v2699 = vsel %vm2696, %v2698, %v2694
      %v2700 = vmul.f32 %v1603, %v2699
      %v2701 = vrcp.pop %v2375
      %v2702 = vmul.f32 %v2375, %v2701
      %v2703 = vsub.f32 1.0, %v2702
      %v2704 = vmul.f32 %v2701, %v2703
      %v2705 = vadd.f32 %v2701, %v2704
      %vm2706 = vweird.f32 %v2375
      %vm2707 = vweird.f32 %v2701
      %vm2708 = vmor %vm2706, %vm2707
      %v2709 = vsel %vm2708, %v2701, %v2705
      %v2710 = vand.u32 2147483647, %v2375
      %vm2711 = vcmp.eq.f32.partialorder %v2710, 8.507059e+37
      %v2712 = vand.u32 %v2375, 2147483648
      %v2713 = vor.u32 1.1754944e-38, %v2712
      %v2714 = vsel %vm2711, %v2713, %v2709
      %v2715 = vmul.f32 %v1757, %v2714
      %v2716 = vrcp.pop %v2530
      %v2717 = vmul.f32 %v2530, %v2716
      %v2718 = vsub.f32 1.0, %v2717
      %v2719 = vmul.f32 %v2716, %v2718
      %v2720 = vadd.f32 %v2716, %v2719
      %vm2721 = vweird.f32 %v2530
      %vm2722 = vweird.f32 %v2716
      %vm2723 = vmor %vm2721, %vm2722
      %v2724 = vsel %vm2723, %v2716, %v2720
      %v2725 = vand.u32 2147483647, %v2530
      %vm2726 = vcmp.eq.f32.partialorder %v2725, 8.507059e+37
      %v2727 = vand.u32 %v2530, 2147483648
      %v2728 = vor.u32 1.1754944e-38, %v2727
      %v2729 = vsel %vm2726, %v2728, %v2724
      %v2730 = vmul.f32 %v1911, %v2729
      %v2731 = vrcp.pop %v2685
      %v2732 = vmul.f32 %v2685, %v2731
      %v2733 = vsub.f32 1.0, %v2732
      %v2734 = vmul.f32 %v2731, %v2733
      %v2735 = vadd.f32 %v2731, %v2734
      %vm2736 = vweird.f32 %v2685
      %vm2737 = vweird.f32 %v2731
      %vm2738 = vmor %vm2736, %vm2737
      %v2739 = vsel %vm2738, %v2731, %v2735
      %v2740 = vand.u32 2147483647, %v2685
      %vm2741 = vcmp.eq.f32.partialorder %v2740, 8.507059e+37
      %v2742 = vand.u32 %v2685, 2147483648
      %v2743 = vor.u32 1.1754944e-38, %v2742
      %v2744 = vsel %vm2741, %v2743, %v2739
      %v2745 = vmul.f32 %v2065, %v2744
      %v2746 = vmul.f32 %v1438, 63.0
      %v2747 = vmul.f32 %v1439, 63.0
      %v2748 = vmul.f32 %v1440, 63.0
      %v2749 = vmul.f32 %v1441, 63.0
      %v2750 = vsub.f32 1.0, %v405
      %v2751 = vperm.slane %v2750, 0
      %2753 = vset.pattern.permute.xlu0 2
      %2754 = vperm.xlu0 %2753, %v1438
      %v2755 = vpop.permute.xlu0 %2754
      %2758 = vset.pattern.permute.xlu0 2
      %2759 = vperm.xlu0 %2758, %v1439
      %v2760 = vpop.permute.xlu0 %2759
      %2763 = vset.pattern.permute.xlu0 2
      %2764 = vperm.xlu0 %2763, %v1440
      %v2765 = vpop.permute.xlu0 %2764
      %2768 = vset.pattern.permute.xlu0 2
      %2769 = vperm.xlu0 %2768, %v1441
      %v2770 = vpop.permute.xlu0 %2769
      %v2772 = vsub.f32 %v2751, %v2755
      %v2773 = vsub.f32 %v2751, %v2760
      %v2774 = vsub.f32 %v2751, %v2765
      %v2775 = vsub.f32 %v2751, %v2770
      %v2776 = vmul.f32 %v2772, 32.0
      %v2777 = vmul.f32 %v2773, 32.0
      %v2778 = vmul.f32 %v2774, 32.0
      %v2779 = vmul.f32 %v2775, 32.0
      %2781 = vset.pattern.permute.xlu0 4
      %2782 = vperm.xlu0 %2781, %v2700
      %v2783 = vpop.permute.xlu0 %2782
      %2786 = vset.pattern.permute.xlu0 4
      %2787 = vperm.xlu0 %2786, %v2715
      %v2788 = vpop.permute.xlu0 %2787
      %2791 = vset.pattern.permute.xlu0 4
      %2792 = vperm.xlu0 %2791, %v2730
      %v2793 = vpop.permute.xlu0 %2792
      %2796 = vset.pattern.permute.xlu0 4
      %2797 = vperm.xlu0 %2796, %v2745
      %v2798 = vpop.permute.xlu0 %2797
      %v2800 = vmul.f32 %v2776, %v2783
      %v2801 = vmul.f32 %v2777, %v2788
      %v2802 = vmul.f32 %v2778, %v2793
      %v2803 = vmul.f32 %v2779, %v2798
      %2805 = vset.pattern.permute.xlu0 3
      %2806 = vperm.xlu0 %2805, %v2746
      %v2807 = vpop.permute.xlu0 %2806
      %2810 = vset.pattern.permute.xlu0 3
      %2811 = vperm.xlu0 %2810, %v2747
      %v2812 = vpop.permute.xlu0 %2811
      %2815 = vset.pattern.permute.xlu0 3
      %2816 = vperm.xlu0 %2815, %v2748
      %v2817 = vpop.permute.xlu0 %2816
      %2820 = vset.pattern.permute.xlu0 3
      %2821 = vperm.xlu0 %2820, %v2749
      %v2822 = vpop.permute.xlu0 %2821
      %v2824 = vadd.f32 %v2807, %v2800
      %v2825 = vadd.f32 %v2812, %v2801
      %v2826 = vadd.f32 %v2817, %v2802
      %v2827 = vadd.f32 %v2822, %v2803
      %v2828 = vmul.f32 %v2824, 0.015873017
      %v2829 = vmul.f32 %v2825, 0.015873017
      %v2830 = vmul.f32 %v2826, 0.015873017
      %v2831 = vmul.f32 %v2827, 0.015873017
      %v2832 = vld [vmem:[%s389] sm:$0xf]
      %v2833 = vld [vmem:[%s389 + $0x4] sm:$0xf]
      %v2834 = vld [vmem:[%s389 + $0x8] sm:$0xf]
      %v2835 = vld [vmem:[%s389 + $0xc] sm:$0xf]
      %v2836 = vld [vmem:[%s389 + $0x10] sm:$0xf]
      %v2837 = vld [vmem:[%s389 + $0x14] sm:$0xf]
      %v2838 = vld [vmem:[%s389 + $0x18] sm:$0xf]
      %v2839 = vld [vmem:[%s389 + $0x1c] sm:$0xf]
      %v2840 = vld [vmem:[%s374] sm:$0xf]
      %2845 = vrot.lane.b32.xlu0 %v2828, 3
      %v2846 = vpop.permute.xlu0 %2845
      %2847 = vrot.lane.b32.xlu0 %v2829, 3
      %v2848 = vpop.permute.xlu0 %2847
      %2849 = vrot.lane.b32.xlu0 %v2830, 3
      %v2850 = vpop.permute.xlu0 %2849
      %2851 = vrot.lane.b32.xlu0 %v2831, 3
      %v2852 = vpop.permute.xlu0 %2851
      %2857 = vrot.lane.b32.xlu0 %v2828, 5
      %v2858 = vpop.permute.xlu0 %2857
      %2859 = vrot.lane.b32.xlu0 %v2829, 5
      %v2860 = vpop.permute.xlu0 %2859
      %2861 = vrot.lane.b32.xlu0 %v2830, 5
      %v2862 = vpop.permute.xlu0 %2861
      %2863 = vrot.lane.b32.xlu0 %v2831, 5
      %v2864 = vpop.permute.xlu0 %2863
      %2869 = vrot.lane.b32.xlu0 %v2828, 7
      %v2870 = vpop.permute.xlu0 %2869
      %2871 = vrot.lane.b32.xlu0 %v2829, 7
      %v2872 = vpop.permute.xlu0 %2871
      %2873 = vrot.lane.b32.xlu0 %v2830, 7
      %v2874 = vpop.permute.xlu0 %2873
      %2875 = vrot.lane.b32.xlu0 %v2831, 7
      %v2876 = vpop.permute.xlu0 %2875
      %v2881 = vmul.f32 %v2828, 7.0
      %v2882 = vmul.f32 %v2829, 7.0
      %v2883 = vmul.f32 %v2830, 7.0
      %v2884 = vmul.f32 %v2831, 7.0
      %v2885 = vmul.f32 %v2846, 7.0
      %v2886 = vmul.f32 %v2848, 7.0
      %v2887 = vmul.f32 %v2850, 7.0
      %v2888 = vmul.f32 %v2852, 7.0
      %v2889 = vmul.f32 %v2858, 7.0
      %v2890 = vmul.f32 %v2860, 7.0
      %v2891 = vmul.f32 %v2862, 7.0
      %v2892 = vmul.f32 %v2864, 7.0
      %v2893 = vmul.f32 %v2870, 7.0
      %v2894 = vmul.f32 %v2872, 7.0
      %v2895 = vmul.f32 %v2874, 7.0
      %v2896 = vmul.f32 %v2876, 7.0
      %2898 = vset.pattern.permute.xlu0 7
      %2899 = vperm.xlu0 %2898, %v2881
      %v2900 = vpop.permute.xlu0 %2899
      %2903 = vset.pattern.permute.xlu0 7
      %2904 = vperm.xlu0 %2903, %v2882
      %v2905 = vpop.permute.xlu0 %2904
      %2908 = vset.pattern.permute.xlu0 7
      %2909 = vperm.xlu0 %2908, %v2883
      %v2910 = vpop.permute.xlu0 %2909
      %2913 = vset.pattern.permute.xlu0 7
      %2914 = vperm.xlu0 %2913, %v2884
      %v2915 = vpop.permute.xlu0 %2914
      %2918 = vset.pattern.permute.xlu0 7
      %2919 = vperm.xlu0 %2918, %v2885
      %v2920 = vpop.permute.xlu0 %2919
      %2923 = vset.pattern.permute.xlu0 7
      %2924 = vperm.xlu0 %2923, %v2886
      %v2925 = vpop.permute.xlu0 %2924
      %2928 = vset.pattern.permute.xlu0 7
      %2929 = vperm.xlu0 %2928, %v2887
      %v2930 = vpop.permute.xlu0 %2929
      %2933 = vset.pattern.permute.xlu0 7
      %2934 = vperm.xlu0 %2933, %v2888
      %v2935 = vpop.permute.xlu0 %2934
      %2938 = vset.pattern.permute.xlu0 7
      %2939 = vperm.xlu0 %2938, %v2889
      %v2940 = vpop.permute.xlu0 %2939
      %2943 = vset.pattern.permute.xlu0 7
      %2944 = vperm.xlu0 %2943, %v2890
      %v2945 = vpop.permute.xlu0 %2944
      %2948 = vset.pattern.permute.xlu0 7
      %2949 = vperm.xlu0 %2948, %v2891
      %v2950 = vpop.permute.xlu0 %2949
      %2953 = vset.pattern.permute.xlu0 7
      %2954 = vperm.xlu0 %2953, %v2892
      %v2955 = vpop.permute.xlu0 %2954
      %2958 = vset.pattern.permute.xlu0 7
      %2959 = vperm.xlu0 %2958, %v2893
      %v2960 = vpop.permute.xlu0 %2959
      %2963 = vset.pattern.permute.xlu0 7
      %2964 = vperm.xlu0 %2963, %v2894
      %v2965 = vpop.permute.xlu0 %2964
      %2968 = vset.pattern.permute.xlu0 7
      %2969 = vperm.xlu0 %2968, %v2895
      %v2970 = vpop.permute.xlu0 %2969
      %2973 = vset.pattern.permute.xlu0 7
      %2974 = vperm.xlu0 %2973, %v2896
      %v2975 = vpop.permute.xlu0 %2974
      %v2977 = vsub.f32 %v2900, %v580
      %v2978 = vsub.f32 %v2905, %v580
      %v2979 = vsub.f32 %v2910, %v580
      %v2980 = vsub.f32 %v2915, %v580
      %v2981 = vsub.f32 %v2920, %v580
      %v2982 = vsub.f32 %v2925, %v580
      %v2983 = vsub.f32 %v2930, %v580
      %v2984 = vsub.f32 %v2935, %v580
      %v2985 = vsub.f32 %v2940, %v580
      %v2986 = vsub.f32 %v2945, %v580
      %v2987 = vsub.f32 %v2950, %v580
      %v2988 = vsub.f32 %v2955, %v580
      %v2989 = vsub.f32 %v2960, %v580
      %v2990 = vsub.f32 %v2965, %v580
      %v2991 = vsub.f32 %v2970, %v580
      %v2992 = vsub.f32 %v2975, %v580
      %v2993 = vand.u32 2147483647, %v2977
      %v2994 = vand.u32 2147483647, %v2978
      %v2995 = vand.u32 2147483647, %v2979
      %v2996 = vand.u32 2147483647, %v2980
      %v2997 = vand.u32 2147483647, %v2981
      %v2998 = vand.u32 2147483647, %v2982
      %v2999 = vand.u32 2147483647, %v2983
      %v3000 = vand.u32 2147483647, %v2984
      %v3001 = vand.u32 2147483647, %v2985
      %v3002 = vand.u32 2147483647, %v2986
      %v3003 = vand.u32 2147483647, %v2987
      %v3004 = vand.u32 2147483647, %v2988
      %v3005 = vand.u32 2147483647, %v2989
      %v3006 = vand.u32 2147483647, %v2990
      %v3007 = vand.u32 2147483647, %v2991
      %v3008 = vand.u32 2147483647, %v2992
      %v3009 = vsub.f32 1.0, %v2993
      %v3010 = vsub.f32 1.0, %v2994
      %v3011 = vsub.f32 1.0, %v2995
      %v3012 = vsub.f32 1.0, %v2996
      %v3013 = vsub.f32 1.0, %v2997
      %v3014 = vsub.f32 1.0, %v2998
      %v3015 = vsub.f32 1.0, %v2999
      %v3016 = vsub.f32 1.0, %v3000
      %v3017 = vsub.f32 1.0, %v3001
      %v3018 = vsub.f32 1.0, %v3002
      %v3019 = vsub.f32 1.0, %v3003
      %v3020 = vsub.f32 1.0, %v3004
      %v3021 = vsub.f32 1.0, %v3005
      %v3022 = vsub.f32 1.0, %v3006
      %v3023 = vsub.f32 1.0, %v3007
      %v3024 = vsub.f32 1.0, %v3008
      %v3025 = vmax.f32 %v3009, 0.0
      %v3026 = vmax.f32 %v3010, 0.0
      %v3027 = vmax.f32 %v3011, 0.0
      %v3028 = vmax.f32 %v3012, 0.0
      %v3029 = vmax.f32 %v3013, 0.0
      %v3030 = vmax.f32 %v3014, 0.0
      %v3031 = vmax.f32 %v3015, 0.0
      %v3032 = vmax.f32 %v3016, 0.0
      %v3033 = vmax.f32 %v3017, 0.0
      %v3034 = vmax.f32 %v3018, 0.0
      %v3035 = vmax.f32 %v3019, 0.0
      %v3036 = vmax.f32 %v3020, 0.0
      %v3037 = vmax.f32 %v3021, 0.0
      %v3038 = vmax.f32 %v3022, 0.0
      %v3039 = vmax.f32 %v3023, 0.0
      %v3040 = vmax.f32 %v3024, 0.0
      %v3041 = vpack.c.bf16 %v3026, %v3025
      %v3042 = vpack.c.bf16 %v3028, %v3027
      %v3043 = vpack.c.bf16 %v3030, %v3029
      %v3044 = vpack.c.bf16 %v3032, %v3031
      %v3045 = vpack.c.bf16 %v3034, %v3033
      %v3046 = vpack.c.bf16 %v3036, %v3035
      %v3047 = vpack.c.bf16 %v3038, %v3037
      %v3048 = vpack.c.bf16 %v3040, %v3039
      %v3057 = vunpack.c.l.b16 %v2832
      %v3058 = vunpack.c.l.b16 %v2833
      %v3059 = vunpack.c.l.b16 %v2834
      %v3060 = vunpack.c.l.b16 %v2835
      %v3061 = vunpack.c.l.b16 %v2836
      %v3062 = vunpack.c.l.b16 %v2837
      %v3063 = vunpack.c.l.b16 %v2838
      %v3064 = vunpack.c.l.b16 %v2839
      %v3065 = vpack.c.b16 %v3058, %v3057
      %v3066 = vpack.c.b16 %v3060, %v3059
      %v3067 = vpack.c.b16 %v3062, %v3061
      %v3068 = vpack.c.b16 %v3064, %v3063
      %v3070 = vsel %vm933, %v3041, 0
      %v3073 = vsel %vm933, %v3042, 0
      %v3076 = vsel %vm933, %v3043, 0
      %v3079 = vsel %vm933, %v3044, 0
      %v3082 = vsel %vm933, %v3045, 0
      %v3085 = vsel %vm933, %v3046, 0
      %v3088 = vsel %vm933, %v3047, 0
      %v3091 = vsel %vm933, %v3048, 0
      %v3094 = vsel %vm933, %v3065, 0
      %v3097 = vsel %vm933, %v3066, 0
      %v3100 = vsel %vm933, %v3067, 0
      %v3103 = vsel %vm933, %v3068, 0
      %3105 = vmatpush.bf16.xpose.msra.mxu0 0
      %3106 = vmatpush.bf16.xpose.msra.mxu0 0
      %3107 = vmatpush.bf16.xpose.msra.mxu0 0
      %3108 = vmatpush.bf16.xpose.msra.mxu0 0
      %3109 = vmatpush.bf16.xpose.msra.mxu0 %v3103
      %3110 = vmatpush.bf16.xpose.msra.mxu0 %v3100
      %3111 = vmatpush.bf16.xpose.msra.mxu0 %v3097
      %3112 = vmatpush.bf16.xpose.msra.mxu0 %v3094
      %3113 = vmatmul.bf16.gmra.mxu0 %v3070
      %v3114 = vpop.f32.mrf.mxu0
      %v3115 = vadd.f32 0.0, %v3114
      %v3116 = vpop.f32.mrf.mxu0
      %v3117 = vadd.f32 0.0, %v3116
      %3118 = vmatmul.bf16.gmra.mxu0 %v3073
      %v3119 = vpop.f32.mrf.mxu0
      %v3120 = vadd.f32 0.0, %v3119
      %v3121 = vpop.f32.mrf.mxu0
      %v3122 = vadd.f32 0.0, %v3121
      %3123 = vmatmul.bf16.gmra.mxu0 %v3076
      %v3124 = vpop.f32.mrf.mxu0
      %v3125 = vadd.f32 0.0, %v3124
      %v3126 = vpop.f32.mrf.mxu0
      %v3127 = vadd.f32 0.0, %v3126
      %3128 = vmatmul.bf16.gmra.mxu0 %v3079
      %v3129 = vpop.f32.mrf.mxu0
      %v3130 = vadd.f32 0.0, %v3129
      %v3131 = vpop.f32.mrf.mxu0
      %v3132 = vadd.f32 0.0, %v3131
      %3133 = vmatmul.bf16.gmra.mxu0 %v3082
      %v3134 = vpop.f32.mrf.mxu0
      %v3135 = vadd.f32 0.0, %v3134
      %v3136 = vpop.f32.mrf.mxu0
      %v3137 = vadd.f32 0.0, %v3136
      %3138 = vmatmul.bf16.gmra.mxu0 %v3085
      %v3139 = vpop.f32.mrf.mxu0
      %v3140 = vadd.f32 0.0, %v3139
      %v3141 = vpop.f32.mrf.mxu0
      %v3142 = vadd.f32 0.0, %v3141
      %3143 = vmatmul.bf16.gmra.mxu0 %v3088
      %v3144 = vpop.f32.mrf.mxu0
      %v3145 = vadd.f32 0.0, %v3144
      %v3146 = vpop.f32.mrf.mxu0
      %v3147 = vadd.f32 0.0, %v3146
      %3148 = vmatmul.bf16.gmra.mxu0 %v3091
      %v3149 = vpop.f32.mrf.mxu0
      %v3150 = vadd.f32 0.0, %v3149
      %v3151 = vpop.f32.mrf.mxu0
      %v3152 = vadd.f32 0.0, %v3151
      %3153 = vdwg.mxu0
      %v3154 = vld [vmem:[%s7 + $0x40] sm:$0xf]
      %v3155 = vld [vmem:[%s7 + $0x44] sm:$0xf]
      %v3156 = vld [vmem:[%s7 + $0x48] sm:$0xf]
      %v3157 = vld [vmem:[%s7 + $0x4c] sm:$0xf]
      %v3158 = vld [vmem:[%s7 + $0x50] sm:$0xf]
      %v3159 = vld [vmem:[%s7 + $0x54] sm:$0xf]
      %v3160 = vld [vmem:[%s7 + $0x58] sm:$0xf]
      %v3161 = vld [vmem:[%s7 + $0x5c] sm:$0xf]
      %v3162 = vpack.c.bf16 %v3117, %v3115
      %v3163 = vpack.c.bf16 %v3122, %v3120
      %v3172 = vunpack.c.l.b16 %v3154
      %v3173 = vunpack.c.l.b16 %v3155
      %v3174 = vunpack.c.l.b16 %v3156
      %v3175 = vunpack.c.l.b16 %v3157
      %v3176 = vunpack.c.l.b16 %v3158
      %v3177 = vunpack.c.l.b16 %v3159
      %v3178 = vunpack.c.l.b16 %v3160
      %v3179 = vunpack.c.l.b16 %v3161
      %v3180 = vpack.c.b16 %v3173, %v3172
      %v3181 = vpack.c.b16 %v3175, %v3174
      %v3182 = vpack.c.b16 %v3177, %v3176
      %v3183 = vpack.c.b16 %v3179, %v3178
      %vm3188 = vcmask 523264
      %v3190 = vsel %vm3188, %v3162, 0
      %v3193 = vsel %vm3188, %v3163, 0
      %3195 = vmatpush.bf16.msra.mxu0 0
      %3196 = vmatpush.bf16.msra.mxu0 0
      %3197 = vmatpush.bf16.msra.mxu0 0
      %3198 = vmatpush.bf16.msra.mxu0 0
      %3199 = vmatpush.bf16.msra.mxu0 %v3183
      %3200 = vmatpush.bf16.msra.mxu0 %v3182
      %3201 = vmatpush.bf16.msra.mxu0 %v3181
      %3202 = vmatpush.bf16.msra.mxu0 %v3180
      %3203 = vmatmul.bf16.gmra.mxu0 %v3190
      %v3204 = vpop.f32.mrf.mxu0
      %v3205 = vadd.f32 0.0, %v3204
      %v3206 = vpop.f32.mrf.mxu0
      %v3207 = vadd.f32 0.0, %v3206
      %3208 = vmatmul.bf16.gmra.mxu0 %v3193
      %v3209 = vpop.f32.mrf.mxu0
      %v3210 = vadd.f32 0.0, %v3209
      %v3211 = vpop.f32.mrf.mxu0
      %v3212 = vadd.f32 0.0, %v3211
      %3213 = vdwg.mxu0
      %v3214 = vadd.f32 %v787, %v3205
      %v3215 = vadd.f32 %v787, %v3207
      %v3216 = vadd.f32 %v787, %v3210
      %v3217 = vadd.f32 %v787, %v3212
      %v3218 = vld [vmem:[%s7 + $0x60] sm:$0xf]
      %v3219 = vld [vmem:[%s7 + $0x64] sm:$0xf]
      %v3220 = vld [vmem:[%s7 + $0x68] sm:$0xf]
      %v3221 = vld [vmem:[%s7 + $0x6c] sm:$0xf]
      %v3222 = vld [vmem:[%s7 + $0x70] sm:$0xf]
      %v3223 = vld [vmem:[%s7 + $0x74] sm:$0xf]
      %v3224 = vld [vmem:[%s7 + $0x78] sm:$0xf]
      %v3225 = vld [vmem:[%s7 + $0x7c] sm:$0xf]
      %v3226 = vpack.c.bf16 %v3127, %v3125
      %v3227 = vpack.c.bf16 %v3132, %v3130
      %v3236 = vunpack.c.l.b16 %v3218
      %v3237 = vunpack.c.l.b16 %v3219
      %v3238 = vunpack.c.l.b16 %v3220
      %v3239 = vunpack.c.l.b16 %v3221
      %v3240 = vunpack.c.l.b16 %v3222
      %v3241 = vunpack.c.l.b16 %v3223
      %v3242 = vunpack.c.l.b16 %v3224
      %v3243 = vunpack.c.l.b16 %v3225
      %v3244 = vpack.c.b16 %v3237, %v3236
      %v3245 = vpack.c.b16 %v3239, %v3238
      %v3246 = vpack.c.b16 %v3241, %v3240
      %v3247 = vpack.c.b16 %v3243, %v3242
      %v3253 = vsel %vm3188, %v3226, 0
      %v3256 = vsel %vm3188, %v3227, 0
      %3258 = vmatpush.bf16.msra.mxu0 0
      %3259 = vmatpush.bf16.msra.mxu0 0
      %3260 = vmatpush.bf16.msra.mxu0 0
      %3261 = vmatpush.bf16.msra.mxu0 0
      %3262 = vmatpush.bf16.msra.mxu0 %v3247
      %3263 = vmatpush.bf16.msra.mxu0 %v3246
      %3264 = vmatpush.bf16.msra.mxu0 %v3245
      %3265 = vmatpush.bf16.msra.mxu0 %v3244
      %3266 = vmatmul.bf16.gmra.mxu0 %v3253
      %v3267 = vpop.f32.mrf.mxu0
      %v3268 = vadd.f32 0.0, %v3267
      %v3269 = vpop.f32.mrf.mxu0
      %v3270 = vadd.f32 0.0, %v3269
      %3271 = vmatmul.bf16.gmra.mxu0 %v3256
      %v3272 = vpop.f32.mrf.mxu0
      %v3273 = vadd.f32 0.0, %v3272
      %v3274 = vpop.f32.mrf.mxu0
      %v3275 = vadd.f32 0.0, %v3274
      %3276 = vdwg.mxu0
      %v3277 = vadd.f32 %v3214, %v3268
      %v3278 = vadd.f32 %v3215, %v3270
      %v3279 = vadd.f32 %v3216, %v3273
      %v3280 = vadd.f32 %v3217, %v3275
      %v3281 = vld [vmem:[%s7 + $0x80] sm:$0xf]
      %v3282 = vld [vmem:[%s7 + $0x84] sm:$0xf]
      %v3283 = vld [vmem:[%s7 + $0x88] sm:$0xf]
      %v3284 = vld [vmem:[%s7 + $0x8c] sm:$0xf]
      %v3285 = vld [vmem:[%s7 + $0x90] sm:$0xf]
      %v3286 = vld [vmem:[%s7 + $0x94] sm:$0xf]
      %v3287 = vld [vmem:[%s7 + $0x98] sm:$0xf]
      %v3288 = vld [vmem:[%s7 + $0x9c] sm:$0xf]
      %v3289 = vpack.c.bf16 %v3137, %v3135
      %v3290 = vpack.c.bf16 %v3142, %v3140
      %v3299 = vunpack.c.l.b16 %v3281
      %v3300 = vunpack.c.l.b16 %v3282
      %v3301 = vunpack.c.l.b16 %v3283
      %v3302 = vunpack.c.l.b16 %v3284
      %v3303 = vunpack.c.l.b16 %v3285
      %v3304 = vunpack.c.l.b16 %v3286
      %v3305 = vunpack.c.l.b16 %v3287
      %v3306 = vunpack.c.l.b16 %v3288
      %v3307 = vpack.c.b16 %v3300, %v3299
      %v3308 = vpack.c.b16 %v3302, %v3301
      %v3309 = vpack.c.b16 %v3304, %v3303
      %v3310 = vpack.c.b16 %v3306, %v3305
      %v3316 = vsel %vm3188, %v3289, 0
      %v3319 = vsel %vm3188, %v3290, 0
      %3321 = vmatpush.bf16.msra.mxu0 0
      %3322 = vmatpush.bf16.msra.mxu0 0
      %3323 = vmatpush.bf16.msra.mxu0 0
      %3324 = vmatpush.bf16.msra.mxu0 0
      %3325 = vmatpush.bf16.msra.mxu0 %v3310
      %3326 = vmatpush.bf16.msra.mxu0 %v3309
      %3327 = vmatpush.bf16.msra.mxu0 %v3308
      %3328 = vmatpush.bf16.msra.mxu0 %v3307
      %3329 = vmatmul.bf16.gmra.mxu0 %v3316
      %v3330 = vpop.f32.mrf.mxu0
      %v3331 = vadd.f32 0.0, %v3330
      %v3332 = vpop.f32.mrf.mxu0
      %v3333 = vadd.f32 0.0, %v3332
      %3334 = vmatmul.bf16.gmra.mxu0 %v3319
      %v3335 = vpop.f32.mrf.mxu0
      %v3336 = vadd.f32 0.0, %v3335
      %v3337 = vpop.f32.mrf.mxu0
      %v3338 = vadd.f32 0.0, %v3337
      %3339 = vdwg.mxu0
      %v3340 = vadd.f32 %v3277, %v3331
      %v3341 = vadd.f32 %v3278, %v3333
      %v3342 = vadd.f32 %v3279, %v3336
      %v3343 = vadd.f32 %v3280, %v3338
      %v3344 = vld [vmem:[%s7 + $0xa0] sm:$0xf]
      %v3345 = vld [vmem:[%s7 + $0xa4] sm:$0xf]
      %v3346 = vld [vmem:[%s7 + $0xa8] sm:$0xf]
      %v3347 = vld [vmem:[%s7 + $0xac] sm:$0xf]
      %v3348 = vld [vmem:[%s7 + $0xb0] sm:$0xf]
      %v3349 = vld [vmem:[%s7 + $0xb4] sm:$0xf]
      %v3350 = vld [vmem:[%s7 + $0xb8] sm:$0xf]
      %v3351 = vld [vmem:[%s7 + $0xbc] sm:$0xf]
      %v3352 = vpack.c.bf16 %v3147, %v3145
      %v3353 = vpack.c.bf16 %v3152, %v3150
      %v3362 = vunpack.c.l.b16 %v3344
      %v3363 = vunpack.c.l.b16 %v3345
      %v3364 = vunpack.c.l.b16 %v3346
      %v3365 = vunpack.c.l.b16 %v3347
      %v3366 = vunpack.c.l.b16 %v3348
      %v3367 = vunpack.c.l.b16 %v3349
      %v3368 = vunpack.c.l.b16 %v3350
      %v3369 = vunpack.c.l.b16 %v3351
      %v3370 = vpack.c.b16 %v3363, %v3362
      %v3371 = vpack.c.b16 %v3365, %v3364
      %v3372 = vpack.c.b16 %v3367, %v3366
      %v3373 = vpack.c.b16 %v3369, %v3368
      %v3379 = vsel %vm3188, %v3352, 0
      %v3382 = vsel %vm3188, %v3353, 0
      %3384 = vmatpush.bf16.msra.mxu0 0
      %3385 = vmatpush.bf16.msra.mxu0 0
      %3386 = vmatpush.bf16.msra.mxu0 0
      %3387 = vmatpush.bf16.msra.mxu0 0
      %3388 = vmatpush.bf16.msra.mxu0 %v3373
      %3389 = vmatpush.bf16.msra.mxu0 %v3372
      %3390 = vmatpush.bf16.msra.mxu0 %v3371
      %3391 = vmatpush.bf16.msra.mxu0 %v3370
      %3392 = vmatmul.bf16.gmra.mxu0 %v3379
      %v3393 = vpop.f32.mrf.mxu0
      %v3394 = vadd.f32 0.0, %v3393
      %v3395 = vpop.f32.mrf.mxu0
      %v3396 = vadd.f32 0.0, %v3395
      %3397 = vmatmul.bf16.gmra.mxu0 %v3382
      %v3398 = vpop.f32.mrf.mxu0
      %v3399 = vadd.f32 0.0, %v3398
      %v3400 = vpop.f32.mrf.mxu0
      %v3401 = vadd.f32 0.0, %v3400
      %3402 = vdwg.mxu0
      %v3403 = vadd.f32 %v3340, %v3394
      %v3404 = vadd.f32 %v3341, %v3396
      %v3405 = vadd.f32 %v3342, %v3399
      %v3406 = vadd.f32 %v3343, %v3401
      %v3407 = vsel %vm933, %v3403, 0.0
      %3408 = vadd.xlane.f32.xlu0 %v3407
      %v3409 = vpop.xlane.xlu0 %3408
      %v3410 = vsel %vm933, %v3404, 0.0
      %3411 = vadd.xlane.f32.xlu0 %v3410
      %v3412 = vpop.xlane.xlu0 %3411
      %v3413 = vsel %vm933, %v3405, 0.0
      %3414 = vadd.xlane.f32.xlu0 %v3413
      %v3415 = vpop.xlane.xlu0 %3414
      %v3416 = vsel %vm933, %v3406, 0.0
      %3417 = vadd.xlane.f32.xlu0 %v3416
      %v3418 = vpop.xlane.xlu0 %3417
      %v3419 = vmul.f32 %v3409, %v952
      %v3420 = vmul.f32 %v3412, %v952
      %v3421 = vmul.f32 %v3415, %v952
      %v3422 = vmul.f32 %v3418, %v952
      %v3423 = vmul.f32 %v3403, %v3403
      %v3424 = vmul.f32 %v3404, %v3404
      %v3425 = vmul.f32 %v3405, %v3405
      %v3426 = vmul.f32 %v3406, %v3406
      %v3427 = vsel %vm933, %v3423, 0.0
      %3428 = vadd.xlane.f32.xlu0 %v3427
      %v3429 = vpop.xlane.xlu0 %3428
      %v3430 = vsel %vm933, %v3424, 0.0
      %3431 = vadd.xlane.f32.xlu0 %v3430
      %v3432 = vpop.xlane.xlu0 %3431
      %v3433 = vsel %vm933, %v3425, 0.0
      %3434 = vadd.xlane.f32.xlu0 %v3433
      %v3435 = vpop.xlane.xlu0 %3434
      %v3436 = vsel %vm933, %v3426, 0.0
      %3437 = vadd.xlane.f32.xlu0 %v3436
      %v3438 = vpop.xlane.xlu0 %3437
      %v3439 = vmul.f32 %v3429, %v952
      %v3440 = vmul.f32 %v3432, %v952
      %v3441 = vmul.f32 %v3435, %v952
      %v3442 = vmul.f32 %v3438, %v952
      %v3443 = vsub.f32 %v3403, %v3419
      %v3444 = vsub.f32 %v3404, %v3420
      %v3445 = vsub.f32 %v3405, %v3421
      %v3446 = vsub.f32 %v3406, %v3422
      %v3447 = vmul.f32 %v3419, %v3419
      %v3448 = vmul.f32 %v3420, %v3420
      %v3449 = vmul.f32 %v3421, %v3421
      %v3450 = vmul.f32 %v3422, %v3422
      %v3451 = vsub.f32 %v3439, %v3447
      %v3452 = vsub.f32 %v3440, %v3448
      %v3453 = vsub.f32 %v3441, %v3449
      %v3454 = vsub.f32 %v3442, %v3450
      %v3455 = vadd.f32 %v3451, 1e-05
      %v3456 = vadd.f32 %v3452, 1e-05
      %v3457 = vadd.f32 %v3453, 1e-05
      %v3458 = vadd.f32 %v3454, 1e-05
      %v3459 = vrsqrt.pop %v3455
      %v3460 = vmul.f32 %v3459, %v3455
      %v3461 = vmul.f32 %v3460, %v3459
      %v3462 = vmul.f32 0.5, %v3461
      %v3463 = vsub.f32 1.5, %v3462
      %v3464 = vmul.f32 %v3459, %v3463
      %vm3465 = vweird.f32 %v3455
      %vm3466 = vweird.f32 %v3459
      %vm3467 = vmor %vm3465, %vm3466
      %v3468 = vsel %vm3467, %v3459, %v3464
      %v3469 = vrsqrt.pop %v3456
      %v3470 = vmul.f32 %v3469, %v3456
      %v3471 = vmul.f32 %v3470, %v3469
      %v3472 = vmul.f32 0.5, %v3471
      %v3473 = vsub.f32 1.5, %v3472
      %v3474 = vmul.f32 %v3469, %v3473
      %vm3475 = vweird.f32 %v3456
      %vm3476 = vweird.f32 %v3469
      %vm3477 = vmor %vm3475, %vm3476
      %v3478 = vsel %vm3477, %v3469, %v3474
      %v3479 = vrsqrt.pop %v3457
      %v3480 = vmul.f32 %v3479, %v3457
      %v3481 = vmul.f32 %v3480, %v3479
      %v3482 = vmul.f32 0.5, %v3481
      %v3483 = vsub.f32 1.5, %v3482
      %v3484 = vmul.f32 %v3479, %v3483
      %vm3485 = vweird.f32 %v3457
      %vm3486 = vweird.f32 %v3479
      %vm3487 = vmor %vm3485, %vm3486
      %v3488 = vsel %vm3487, %v3479, %v3484
      %v3489 = vrsqrt.pop %v3458
      %v3490 = vmul.f32 %v3489, %v3458
      %v3491 = vmul.f32 %v3490, %v3489
      %v3492 = vmul.f32 0.5, %v3491
      %v3493 = vsub.f32 1.5, %v3492
      %v3494 = vmul.f32 %v3489, %v3493
      %vm3495 = vweird.f32 %v3458
      %vm3496 = vweird.f32 %v3489
      %vm3497 = vmor %vm3495, %vm3496
      %v3498 = vsel %vm3497, %v3489, %v3494
      %v3499 = vmul.f32 %v3443, %v3468
      %v3500 = vmul.f32 %v3444, %v3478
      %v3501 = vmul.f32 %v3445, %v3488
      %v3502 = vmul.f32 %v3446, %v3498
      %v3503 = vmul.f32 %v3499, %v1037
      %v3504 = vmul.f32 %v3500, %v1037
      %v3505 = vmul.f32 %v3501, %v1037
      %v3506 = vmul.f32 %v3502, %v1037
      %v3507 = vadd.f32 %v3503, %v1042
      %v3508 = vadd.f32 %v3504, %v1042
      %v3509 = vadd.f32 %v3505, %v1042
      %v3510 = vadd.f32 %v3506, %v1042
      %v3511 = vmax.f32 %v3507, 0.0
      %v3512 = vmax.f32 %v3508, 0.0
      %v3513 = vmax.f32 %v3509, 0.0
      %v3514 = vmax.f32 %v3510, 0.0
      %v3516 = vsel %vm1054, %v2840, 0
      %3518 = vmatpush.bf16.msra.mxu0 0
      %3519 = vmatpush.bf16.msra.mxu0 0
      %3520 = vmatpush.bf16.msra.mxu0 0
      %3521 = vmatpush.bf16.msra.mxu0 0
      %3522 = vmatpush.bf16.msra.mxu0 0
      %3523 = vmatpush.bf16.msra.mxu0 0
      %3524 = vmatpush.bf16.msra.mxu0 0
      %3525 = vmatpush.bf16.msra.mxu0 %v3516
      %3526 = vmatmul.bf16.gmra.mxu0 %v1052
      %v3527 = vpop.f32.mrf.mxu0
      %v3528 = vadd.f32 0.0, %v3527
      %v3529 = vpop.f32.mrf.mxu0
      %v3530 = vadd.f32 0.0, %v3529
      %3531 = vdwg.mxu0
      %v3532 = vadd.f32 %v3528, %v1075
      %v3533 = vmax.f32 %v3532, 0.0
      %v3534 = vadd.f32 %v3530, %v1082
      %v3535 = vmul.f32 %v3511, %v1088
      %v3536 = vmul.f32 %v3512, %v1093
      %v3537 = vmul.f32 %v3513, %v1098
      %v3538 = vmul.f32 %v3514, %v1103
      %v3539 = vadd.f32 %v3535, %v1112
      %v3540 = vadd.f32 %v3536, %v1117
      %v3541 = vadd.f32 %v3537, %v1122
      %v3542 = vadd.f32 %v3538, %v1127
      %v3543 = vmax.f32 %v3539, 0.0
      %v3544 = vmax.f32 %v3540, 0.0
      %v3545 = vmax.f32 %v3541, 0.0
      %v3546 = vmax.f32 %v3542, 0.0
      %v3547 = vpack.c.bf16 %v3544, %v3543
      %v3548 = vpack.c.bf16 %v3546, %v3545
      %v3549 = vpack.c.bf16 %v3533, %v3533
      %v3551 = vsel %vm933, %v3547, 0
      %v3554 = vsel %vm933, %v3548, 0
      %v3557 = vsel %vm1054, %v3549, 0
      %3559 = vmatpush.bf16.msra.mxu0 0
      %3560 = vmatpush.bf16.msra.mxu0 0
      %3561 = vmatpush.bf16.msra.mxu0 0
      %3562 = vmatpush.bf16.msra.mxu0 0
      %3563 = vmatpush.bf16.msra.mxu0 0
      %3564 = vmatpush.bf16.msra.mxu0 0
      %3565 = vmatpush.bf16.msra.mxu0 0
      %3566 = vmatpush.bf16.msra.mxu0 %v3557
      %3567 = vmatmul.bf16.gmra.mxu0 %v3551
      %v3568 = vpop.f32.mrf.mxu0
      %v3569 = vadd.f32 0.0, %v3568
      %v3570 = vpop.f32.mrf.mxu0
      %v3571 = vadd.f32 0.0, %v3570
      %3572 = vmatmul.bf16.gmra.mxu0 %v3554
      %v3573 = vpop.f32.mrf.mxu0
      %v3574 = vadd.f32 0.0, %v3573
      %v3575 = vpop.f32.mrf.mxu0
      %v3576 = vadd.f32 0.0, %v3575
      %3577 = vdwg.mxu0
      %v3578 = vmul.f32 %v3569, 0.35355338
      %v3579 = vmul.f32 %v3571, 0.35355338
      %v3580 = vmul.f32 %v3574, 0.35355338
      %v3581 = vmul.f32 %v3576, 0.35355338
      %v3582 = vsel %vm3188, %v3578, -inf
      %3583 = vmax.xlane.f32.xlu0 %v3582
      %v3584 = vpop.xlane.xlu0 %3583
      %v3585 = vsel %vm3188, %v3579, -inf
      %3586 = vmax.xlane.f32.xlu0 %v3585
      %v3587 = vpop.xlane.xlu0 %3586
      %v3588 = vsel %vm3188, %v3580, -inf
      %3589 = vmax.xlane.f32.xlu0 %v3588
      %v3590 = vpop.xlane.xlu0 %3589
      %v3591 = vsel %vm3188, %v3581, -inf
      %3592 = vmax.xlane.f32.xlu0 %v3591
      %v3593 = vpop.xlane.xlu0 %3592
      %v3594 = vsub.f32 %v3578, %v3584
      %v3595 = vsub.f32 %v3579, %v3587
      %v3596 = vsub.f32 %v3580, %v3590
      %v3597 = vsub.f32 %v3581, %v3593
      %v3598 = vmul.f32 %v3594, 1.442695
      %v3599 = vpow.pop %v3598
      %v3600 = vmul.f32 %v3595, 1.442695
      %v3601 = vpow.pop %v3600
      %v3602 = vmul.f32 %v3596, 1.442695
      %v3603 = vpow.pop %v3602
      %v3604 = vmul.f32 %v3597, 1.442695
      %v3605 = vpow.pop %v3604
      %v3606 = vsel %vm3188, %v3599, 0.0
      %3607 = vadd.xlane.f32.xlu0 %v3606
      %v3608 = vpop.xlane.xlu0 %3607
      %v3609 = vsel %vm3188, %v3601, 0.0
      %3610 = vadd.xlane.f32.xlu0 %v3609
      %v3611 = vpop.xlane.xlu0 %3610
      %v3612 = vsel %vm3188, %v3603, 0.0
      %3613 = vadd.xlane.f32.xlu0 %v3612
      %v3614 = vpop.xlane.xlu0 %3613
      %v3615 = vsel %vm3188, %v3605, 0.0
      %3616 = vadd.xlane.f32.xlu0 %v3615
      %v3617 = vpop.xlane.xlu0 %3616
      %v3618 = vrcp.pop %v3608
      %v3619 = vrcp.pop %v3611
      %v3620 = vrcp.pop %v3614
      %v3621 = vrcp.pop %v3617
      %v3622 = vmul.f32 %v3599, %v3618
      %v3623 = vmul.f32 %v3601, %v3619
      %v3624 = vmul.f32 %v3603, %v3620
      %v3625 = vmul.f32 %v3605, %v3621
      %v3626 = vpack.c.bf16 %v3623, %v3622
      %v3627 = vpack.c.bf16 %v3625, %v3624
      %v3628 = vpack.c.bf16 %v3534, %v3534
      %v3630 = vsel %vm3188, %v3626, 0
      %v3633 = vsel %vm3188, %v3627, 0
      %v3636 = vsel %vm3188, %v3628, 0
      %3638 = vmatpush.bf16.xpose.msra.mxu0 0
      %3639 = vmatpush.bf16.xpose.msra.mxu0 0
      %3640 = vmatpush.bf16.xpose.msra.mxu0 0
      %3641 = vmatpush.bf16.xpose.msra.mxu0 0
      %3642 = vmatpush.bf16.xpose.msra.mxu0 0
      %3643 = vmatpush.bf16.xpose.msra.mxu0 0
      %3644 = vmatpush.bf16.xpose.msra.mxu0 0
      %3645 = vmatpush.bf16.xpose.msra.mxu0 %v3636
      %3646 = vmatmul.bf16.gmra.mxu0 %v3630
      %v3647 = vpop.f32.mrf.mxu0
      %v3648 = vadd.f32 0.0, %v3647
      %v3649 = vpop.f32.mrf.mxu0
      %v3650 = vadd.f32 0.0, %v3649
      %3651 = vmatmul.bf16.gmra.mxu0 %v3633
      %v3652 = vpop.f32.mrf.mxu0
      %v3653 = vadd.f32 0.0, %v3652
      %v3654 = vpop.f32.mrf.mxu0
      %v3655 = vadd.f32 0.0, %v3654
      %3656 = vdwg.mxu0
      %v3657 = vmul.f32 %v3648, %v1251
      %v3658 = vmul.f32 %v3650, %v1256
      %v3659 = vmul.f32 %v3653, %v1261
      %v3660 = vmul.f32 %v3655, %v1266
      %v3661 = vadd.f32 %v3657, %v1275
      %v3662 = vadd.f32 %v3658, %v1280
      %v3663 = vadd.f32 %v3659, %v1285
      %v3664 = vadd.f32 %v3660, %v1290
      %v3665 = vmax.f32 %v3661, 0.0
      %v3666 = vmax.f32 %v3662, 0.0
      %v3667 = vmax.f32 %v3663, 0.0
      %v3668 = vmax.f32 %v3664, 0.0
      %v3669 = vadd.f32 %v3511, %v3665
      %v3670 = vadd.f32 %v3512, %v3666
      %v3671 = vadd.f32 %v3513, %v3667
      %v3672 = vadd.f32 %v3514, %v3668
      %v3674 = vsel %vm933, %v3669, 0
      %v3677 = vsel %vm933, %v3670, 0
      %v3680 = vsel %vm933, %v3671, 0
      %v3683 = vsel %vm933, %v3672, 0
      %3685 = vmatpush.msra.mxu0 0.0
      %3686 = vmatpush.msra.mxu0 0.0
      %3687 = vmatpush.msra.mxu0 0.0
      %3688 = vmatpush.msra.mxu0 0.0
      %3689 = vmatpush.msra.mxu0 0.0
      %3690 = vmatpush.msra.mxu0 0.0
      %3691 = vmatpush.msra.mxu0 0.0
      %3692 = vmatpush.msra.mxu0 0.0
      %3693 = vmatpush.msra.mxu0 0.0
      %3694 = vmatpush.msra.mxu0 0.0
      %3695 = vmatpush.msra.mxu0 0.0
      %3696 = vmatpush.msra.mxu0 0.0
      %3697 = vmatpush.msra.mxu0 0.0
      %3698 = vmatpush.msra.mxu0 0.0
      %3699 = vmatpush.msra.mxu0 0.0
      %3700 = vmatpush.msra.mxu0 %v431
      %3701 = vmatmul.f32.gmra.mxu0 %v3674
      %v3702 = vpop.f32.mrf.mxu0
      %v3703 = vadd.f32 %v1304, %v3702
      %3704 = vmatmul.f32.gmra.mxu0 %v3677
      %v3705 = vpop.f32.mrf.mxu0
      %v3706 = vadd.f32 %v1304, %v3705
      %3707 = vmatmul.f32.gmra.mxu0 %v3680
      %v3708 = vpop.f32.mrf.mxu0
      %v3709 = vadd.f32 %v1304, %v3708
      %3710 = vmatmul.f32.gmra.mxu0 %v3683
      %v3711 = vpop.f32.mrf.mxu0
      %v3712 = vadd.f32 %v1304, %v3711
      %3713 = vdwg.mxu0
      %v3714 = vmax.f32 %v3703, 0.0
      %v3715 = vmax.f32 %v3706, 0.0
      %v3716 = vmax.f32 %v3709, 0.0
      %v3717 = vmax.f32 %v3712, 0.0
      %v3719 = vsel %vm1172, %v3714, 0
      %v3722 = vsel %vm1172, %v3715, 0
      %v3725 = vsel %vm1172, %v3716, 0
      %v3728 = vsel %vm1172, %v3717, 0
      %3730 = vmatpush.msra.mxu0 0.0
      %3731 = vmatpush.msra.mxu0 0.0
      %3732 = vmatpush.msra.mxu0 0.0
      %3733 = vmatpush.msra.mxu0 0.0
      %3734 = vmatpush.msra.mxu0 0.0
      %3735 = vmatpush.msra.mxu0 0.0
      %3736 = vmatpush.msra.mxu0 0.0
      %3737 = vmatpush.msra.mxu0 0.0
      %3738 = vmatpush.msra.mxu0 0.0
      %3739 = vmatpush.msra.mxu0 0.0
      %3740 = vmatpush.msra.mxu0 0.0
      %3741 = vmatpush.msra.mxu0 0.0
      %3742 = vmatpush.msra.mxu0 0.0
      %3743 = vmatpush.msra.mxu0 0.0
      %3744 = vmatpush.msra.mxu0 %v434
      %3745 = vmatpush.msra.mxu0 %v433
      %3746 = vmatmul.f32.gmra.mxu0 %v3719
      %v3747 = vpop.f32.mrf.mxu0
      %v3748 = vadd.f32 %v1350, %v3747
      %3749 = vmatmul.f32.gmra.mxu0 %v3722
      %v3750 = vpop.f32.mrf.mxu0
      %v3751 = vadd.f32 %v1350, %v3750
      %3752 = vmatmul.f32.gmra.mxu0 %v3725
      %v3753 = vpop.f32.mrf.mxu0
      %v3754 = vadd.f32 %v1350, %v3753
      %3755 = vmatmul.f32.gmra.mxu0 %v3728
      %v3756 = vpop.f32.mrf.mxu0
      %v3757 = vadd.f32 %v1350, %v3756
      %3758 = vdwg.mxu0
      %v3759 = vmax.f32 %v3748, 0.0
      %v3760 = vmax.f32 %v3751, 0.0
      %v3761 = vmax.f32 %v3754, 0.0
      %v3762 = vmax.f32 %v3757, 0.0
      %v3764 = vsel %vm1172, %v3759, 0
      %v3767 = vsel %vm1172, %v3760, 0
      %v3770 = vsel %vm1172, %v3761, 0
      %v3773 = vsel %vm1172, %v3762, 0
      %3775 = vmatpush.msra.mxu0 0.0
      %3776 = vmatpush.msra.mxu0 0.0
      %3777 = vmatpush.msra.mxu0 0.0
      %3778 = vmatpush.msra.mxu0 0.0
      %3779 = vmatpush.msra.mxu0 0.0
      %3780 = vmatpush.msra.mxu0 0.0
      %3781 = vmatpush.msra.mxu0 0.0
      %3782 = vmatpush.msra.mxu0 0.0
      %3783 = vmatpush.msra.mxu0 0.0
      %3784 = vmatpush.msra.mxu0 0.0
      %3785 = vmatpush.msra.mxu0 0.0
      %3786 = vmatpush.msra.mxu0 0.0
      %3787 = vmatpush.msra.mxu0 0.0
      %3788 = vmatpush.msra.mxu0 0.0
      %3789 = vmatpush.msra.mxu0 %v437
      %3790 = vmatpush.msra.mxu0 %v436
      %3791 = vmatmul.f32.gmra.mxu0 %v3764
      %v3792 = vpop.f32.mrf.mxu0
      %v3793 = vadd.f32 %v1396, %v3792
      %3794 = vmatmul.f32.gmra.mxu0 %v3767
      %v3795 = vpop.f32.mrf.mxu0
      %v3796 = vadd.f32 %v1396, %v3795
      %3797 = vmatmul.f32.gmra.mxu0 %v3770
      %v3798 = vpop.f32.mrf.mxu0
      %v3799 = vadd.f32 %v1396, %v3798
      %3800 = vmatmul.f32.gmra.mxu0 %v3773
      %v3801 = vpop.f32.mrf.mxu0
      %v3802 = vadd.f32 %v1396, %v3801
      %3803 = vdwg.mxu0
      %v3804 = vadd.f32 %v1438, %v3793
      %v3805 = vadd.f32 %v1439, %v3796
      %v3806 = vadd.f32 %v1440, %v3799
      %v3807 = vadd.f32 %v1441, %v3802
      %v3808 = vmul.f32 %v3804, 3.1415927
      %v3809 = vmul.f32 %v3805, 3.1415927
      %v3810 = vmul.f32 %v3806, 3.1415927
      %v3811 = vmul.f32 %v3807, 3.1415927
      %v3812 = vadd.f32 %v3808, 1e-05
      %v3813 = vadd.f32 %v3809, 1e-05
      %v3814 = vadd.f32 %v3810, 1e-05
      %v3815 = vadd.f32 %v3811, 1e-05
      %v3816 = vand.u32 2147483647, %v3812
      %vm3817 = vcmp.le.f32.partialorder %v3816, 0.7853982
      %vm3818 = vcmp.lt.s32.totalorder %v3812, 0
      %v3819 = vand.u32 %v3812, 2139095040
      %v3820 = vshrl.u32 %v3819, 23
      %v3821 = vsub.s32 %v3820, 127
      %v3822 = vand.u32 2147483647, %v3812
      %v3823 = vand.u32 %v3822, 8388607
      %v3824 = vor.u32 %v3823, 8388608
      %v3825 = vsub.s32 0, %v3824
      %v3826 = vadd.s32 %v3821, 1
      %vm3827 = vcmp.gt.s32.totalorder %v3826, 0
      %v3828 = vsel %vm3827, %v3826, 0
      %v3829 = vshrl.u32 %v3828, 5
      %v3830 = vand.u32 %v3828, 31
      %v3831 = vsub.s32 32, %v3830
      %v3832 = vshrl.u32 683565275, %v3831
      %v3833 = vshll.u32 683565275, %v3830
      %v3834 = vshrl.u32 2475754826, %v3831
      %v3835 = vor.u32 %v3833, %v3834
      %v3836 = vshll.u32 2475754826, %v3830
      %v3837 = vshrl.u32 2131351028, %v3831
      %v3838 = vor.u32 %v3836, %v3837
      %v3839 = vshll.u32 2131351028, %v3830
      %v3840 = vshrl.u32 2102212464, %v3831
      %v3841 = vor.u32 %v3839, %v3840
      %v3842 = vshll.u32 2102212464, %v3830
      %v3843 = vshrl.u32 920167782, %v3831
      %v3844 = vor.u32 %v3842, %v3843
      %v3845 = vshll.u32 920167782, %v3830
      %v3846 = vshrl.u32 1326507024, %v3831
      %v3847 = vor.u32 %v3845, %v3846
      %vm3848 = vcmp.lt.s32.totalorder %v3829, 1
      %vm3849 = vcmp.lt.s32.totalorder %v3829, 2
      %vm3850 = vcmp.lt.s32.totalorder %v3829, 3
      %vm3851 = vcmp.lt.s32.totalorder %v3829, 4
      %v3852 = vsel %vm3848, %v3832, %v3835
      %v3853 = vsel %vm3851, %v3841, 2102212464
      %v3854 = vsel %vm3850, %v3838, %v3853
      %v3855 = vsel %vm3849, %v3852, %v3854
      %v3856 = vsel %vm3848, %v3835, %v3838
      %v3857 = vsel %vm3851, %v3844, 920167782
      %v3858 = vsel %vm3850, %v3841, %v3857
      %v3859 = vsel %vm3849, %v3856, %v3858
      %v3860 = vsel %vm3848, %v3838, %v3841
      %v3861 = vsel %vm3851, %v3847, 1326507024
      %v3862 = vsel %vm3850, %v3844, %v3861
      %v3863 = vsel %vm3849, %v3860, %v3862
      %v3864 = vshll.u32 %v3824, 8
      %v3865 = vand.u32 %v3864, 65535
      %v3866 = vshrl.u32 %v3864, 16
      %v3867 = vand.u32 %v3863, 65535
      %v3868 = vshrl.u32 %v3863, 16
      %v3869 = vmul.u32 %v3865, %v3867
      %v3870 = vmul.u32 %v3865, %v3868
      %v3871 = vmul.u32 %v3866, %v3867
      %v3872 = vmul.u32 %v3866, %v3868
      %v3873 = vshll.u32 %v3870, 16
      %v3874 = vshrl.u32 %v3870, 16
      %v3875 = vshll.u32 %v3871, 16
      %v3876 = vshrl.u32 %v3871, 16
      %vm3877 = vc.u32 %v3869, %v3873
      %v3878 = vsel %vm3877, 1, 0
      %v3879 = vadd.s32 %v3869, %v3873
      %v3880 = vadd.s32 %v3872, %v3878
      %vm3881 = vc.u32 %v3879, %v3875
      %v3882 = vsel %vm3881, 1, 0
      %v3883 = vadd.s32 %v3879, %v3875
      %v3884 = vadd.s32 %v3880, %v3882
      %v3885 = vadd.s32 %v3884, %v3874
      %v3886 = vadd.s32 %v3885, %v3876
      %v3887 = vand.u32 %v3864, 65535
      %v3888 = vshrl.u32 %v3864, 16
      %v3889 = vand.u32 %v3859, 65535
      %v3890 = vshrl.u32 %v3859, 16
      %v3891 = vmul.u32 %v3887, %v3889
      %v3892 = vmul.u32 %v3887, %v3890
      %v3893 = vmul.u32 %v3888, %v3889
      %v3894 = vmul.u32 %v3888, %v3890
      %v3895 = vshll.u32 %v3892, 16
      %v3896 = vshrl.u32 %v3892, 16
      %v3897 = vshll.u32 %v3893, 16
      %v3898 = vshrl.u32 %v3893, 16
      %vm3899 = vc.u32 %v3891, %v3895
      %v3900 = vsel %vm3899, 1, 0
      %v3901 = vadd.s32 %v3891, %v3895
      %v3902 = vadd.s32 %v3894, %v3900
      %vm3903 = vc.u32 %v3901, %v3897
      %v3904 = vsel %vm3903, 1, 0
      %v3905 = vadd.s32 %v3901, %v3897
      %v3906 = vadd.s32 %v3902, %v3904
      %v3907 = vadd.s32 %v3906, %v3896
      %v3908 = vadd.s32 %v3907, %v3898
      %v3909 = vmul.u32 %v3864, %v3855
      %v3910 = vadd.s32 %v3886, %v3905
      %vm3911 = vc.u32 %v3886, %v3905
      %v3912 = vadd.s32 %v3908, 1
      %v3913 = vsel %vm3911, %v3912, %v3908
      %v3914 = vadd.s32 %v3909, %v3913
      %v3915 = vadd.s32 %v3914, 536870912
      %v3916 = vshrl.u32 %v3915, 30
      %v3917 = vshll.u32 %v3916, 30
      %v3918 = vsub.s32 %v3914, %v3917
      %vm3919 = vcmp.lt.s32.totalorder %v3918, 0
      %v3920 = vsub.s32 0, %v3918
      %v3921 = vsel %vm3919, %v3920, %v3918
      %v3922 = vclz %v3921
      %v3923 = vsub.s32 %v3922, 2
      %vm3924 = vcmp.gt.s32.totalorder 0, %v3923
      %v3925 = vsel %vm3924, 0, %v3923
      %v3926 = vsub.s32 32, %v3925
      %v3927 = vshll.u32 %v3918, %v3925
      %v3928 = vshrl.u32 %v3910, %v3926
      %v3929 = vor.u32 %v3927, %v3928
      %v3930 = vsub.s32 4294967266, %v3925
      %v3931 = vadd.s32 %v3930, 127
      %v3932 = vshll.u32 %v3931, 23
      %v3933 = vor.u32 4788187, %v3932
      %v3934 = vand.u32 2147483647, %v3933
      %v3936 = vcvt.s32.f32 %v3929
      %v3937 = vmul.f32 %v3936, %v3934
      %v3938 = vxor.u32 %v3937, 2147483648
      %v3939 = vsel %vm3818, %v3938, %v3937
      %v3940 = vsub.s32 4, %v3916
      %v3941 = vsel %vm3818, %v3940, %v3916
      %v3942 = vsel %vm3817, %v3812, %v3939
      %v3943 = vsel %vm3817, 0, %v3941
      %v3944 = vmul.f32 %v3942, %v3942
      %v3945 = vmul.f32 %v3944, -0.001358992
      %v3946 = vadd.f32 %v3945, 0.041655596
      %v3947 = vmul.f32 %v3944, %v3946
      %v3948 = vadd.f32 %v3947, -0.4999988
      %v3949 = vmul.f32 %v3944, %v3948
      %v3950 = vadd.f32 1.0, %v3949
      %v3951 = vmul.f32 %v3942, %v3942
      %v3952 = vmul.f32 %v3951, -0.00019511016
      %v3953 = vadd.f32 %v3952, 0.008332121
      %v3954 = vmul.f32 %v3951, %v3953
      %v3955 = vadd.f32 %v3954, -0.16666654
      %v3956 = vmul.f32 %v3951, %v3955
      %v3957 = vadd.f32 %v3956, 1.0
      %v3958 = vmul.f32 %v3957, %v3942
      %vm3959 = vweird.f32 %v3812
      %v3960 = vand.u32 %v3943, 3
      %vm3961 = vcmp.lt.s32.totalorder %v3960, 2
      %vm3962 = vcmp.eq.s32.totalorder %v3960, 0
      %v3963 = vxor.u32 %v3958, 2147483648
      %v3964 = vsel %vm3962, %v3950, %v3963
      %vm3965 = vcmp.eq.s32.totalorder %v3960, 2
      %v3966 = vxor.u32 %v3950, 2147483648
      %v3967 = vsel %vm3965, %v3966, %v3958
      %v3968 = vsel %vm3961, %v3964, %v3967
      %v3969 = vsel %vm3959, nan, %v3968
      %v3970 = vand.u32 2147483647, %v3813
      %vm3971 = vcmp.le.f32.partialorder %v3970, 0.7853982
      %vm3972 = vcmp.lt.s32.totalorder %v3813, 0
      %v3973 = vand.u32 %v3813, 2139095040
      %v3974 = vshrl.u32 %v3973, 23
      %v3975 = vsub.s32 %v3974, 127
      %v3976 = vand.u32 2147483647, %v3813
      %v3977 = vand.u32 %v3976, 8388607
      %v3978 = vor.u32 %v3977, 8388608
      %v3979 = vsub.s32 0, %v3978
      %v3980 = vadd.s32 %v3975, 1
      %vm3981 = vcmp.gt.s32.totalorder %v3980, 0
      %v3982 = vsel %vm3981, %v3980, 0
      %v3983 = vshrl.u32 %v3982, 5
      %v3984 = vand.u32 %v3982, 31
      %v3985 = vsub.s32 32, %v3984
      %v3986 = vshrl.u32 683565275, %v3985
      %v3987 = vshll.u32 683565275, %v3984
      %v3988 = vshrl.u32 2475754826, %v3985
      %v3989 = vor.u32 %v3987, %v3988
      %v3990 = vshll.u32 2475754826, %v3984
      %v3991 = vshrl.u32 2131351028, %v3985
      %v3992 = vor.u32 %v3990, %v3991
      %v3993 = vshll.u32 2131351028, %v3984
      %v3994 = vshrl.u32 2102212464, %v3985
      %v3995 = vor.u32 %v3993, %v3994
      %v3996 = vshll.u32 2102212464, %v3984
      %v3997 = vshrl.u32 920167782, %v3985
      %v3998 = vor.u32 %v3996, %v3997
      %v3999 = vshll.u32 920167782, %v3984
      %v4000 = vshrl.u32 1326507024, %v3985
      %v4001 = vor.u32 %v3999, %v4000
      %vm4002 = vcmp.lt.s32.totalorder %v3983, 1
      %vm4003 = vcmp.lt.s32.totalorder %v3983, 2
      %vm4004 = vcmp.lt.s32.totalorder %v3983, 3
      %vm4005 = vcmp.lt.s32.totalorder %v3983, 4
      %v4006 = vsel %vm4002, %v3986, %v3989
      %v4007 = vsel %vm4005, %v3995, 2102212464
      %v4008 = vsel %vm4004, %v3992, %v4007
      %v4009 = vsel %vm4003, %v4006, %v4008
      %v4010 = vsel %vm4002, %v3989, %v3992
      %v4011 = vsel %vm4005, %v3998, 920167782
      %v4012 = vsel %vm4004, %v3995, %v4011
      %v4013 = vsel %vm4003, %v4010, %v4012
      %v4014 = vsel %vm4002, %v3992, %v3995
      %v4015 = vsel %vm4005, %v4001, 1326507024
      %v4016 = vsel %vm4004, %v3998, %v4015
      %v4017 = vsel %vm4003, %v4014, %v4016
      %v4018 = vshll.u32 %v3978, 8
      %v4019 = vand.u32 %v4018, 65535
      %v4020 = vshrl.u32 %v4018, 16
      %v4021 = vand.u32 %v4017, 65535
      %v4022 = vshrl.u32 %v4017, 16
      %v4023 = vmul.u32 %v4019, %v4021
      %v4024 = vmul.u32 %v4019, %v4022
      %v4025 = vmul.u32 %v4020, %v4021
      %v4026 = vmul.u32 %v4020, %v4022
      %v4027 = vshll.u32 %v4024, 16
      %v4028 = vshrl.u32 %v4024, 16
      %v4029 = vshll.u32 %v4025, 16
      %v4030 = vshrl.u32 %v4025, 16
      %vm4031 = vc.u32 %v4023, %v4027
      %v4032 = vsel %vm4031, 1, 0
      %v4033 = vadd.s32 %v4023, %v4027
      %v4034 = vadd.s32 %v4026, %v4032
      %vm4035 = vc.u32 %v4033, %v4029
      %v4036 = vsel %vm4035, 1, 0
      %v4037 = vadd.s32 %v4033, %v4029
      %v4038 = vadd.s32 %v4034, %v4036
      %v4039 = vadd.s32 %v4038, %v4028
      %v4040 = vadd.s32 %v4039, %v4030
      %v4041 = vand.u32 %v4018, 65535
      %v4042 = vshrl.u32 %v4018, 16
      %v4043 = vand.u32 %v4013, 65535
      %v4044 = vshrl.u32 %v4013, 16
      %v4045 = vmul.u32 %v4041, %v4043
      %v4046 = vmul.u32 %v4041, %v4044
      %v4047 = vmul.u32 %v4042, %v4043
      %v4048 = vmul.u32 %v4042, %v4044
      %v4049 = vshll.u32 %v4046, 16
      %v4050 = vshrl.u32 %v4046, 16
      %v4051 = vshll.u32 %v4047, 16
      %v4052 = vshrl.u32 %v4047, 16
      %vm4053 = vc.u32 %v4045, %v4049
      %v4054 = vsel %vm4053, 1, 0
      %v4055 = vadd.s32 %v4045, %v4049
      %v4056 = vadd.s32 %v4048, %v4054
      %vm4057 = vc.u32 %v4055, %v4051
      %v4058 = vsel %vm4057, 1, 0
      %v4059 = vadd.s32 %v4055, %v4051
      %v4060 = vadd.s32 %v4056, %v4058
      %v4061 = vadd.s32 %v4060, %v4050
      %v4062 = vadd.s32 %v4061, %v4052
      %v4063 = vmul.u32 %v4018, %v4009
      %v4064 = vadd.s32 %v4040, %v4059
      %vm4065 = vc.u32 %v4040, %v4059
      %v4066 = vadd.s32 %v4062, 1
      %v4067 = vsel %vm4065, %v4066, %v4062
      %v4068 = vadd.s32 %v4063, %v4067
      %v4069 = vadd.s32 %v4068, 536870912
      %v4070 = vshrl.u32 %v4069, 30
      %v4071 = vshll.u32 %v4070, 30
      %v4072 = vsub.s32 %v4068, %v4071
      %vm4073 = vcmp.lt.s32.totalorder %v4072, 0
      %v4074 = vsub.s32 0, %v4072
      %v4075 = vsel %vm4073, %v4074, %v4072
      %v4076 = vclz %v4075
      %v4077 = vsub.s32 %v4076, 2
      %vm4078 = vcmp.gt.s32.totalorder 0, %v4077
      %v4079 = vsel %vm4078, 0, %v4077
      %v4080 = vsub.s32 32, %v4079
      %v4081 = vshll.u32 %v4072, %v4079
      %v4082 = vshrl.u32 %v4064, %v4080
      %v4083 = vor.u32 %v4081, %v4082
      %v4084 = vsub.s32 4294967266, %v4079
      %v4085 = vadd.s32 %v4084, 127
      %v4086 = vshll.u32 %v4085, 23
      %v4087 = vor.u32 4788187, %v4086
      %v4088 = vand.u32 2147483647, %v4087
      %v4090 = vcvt.s32.f32 %v4083
      %v4091 = vmul.f32 %v4090, %v4088
      %v4092 = vxor.u32 %v4091, 2147483648
      %v4093 = vsel %vm3972, %v4092, %v4091
      %v4094 = vsub.s32 4, %v4070
      %v4095 = vsel %vm3972, %v4094, %v4070
      %v4096 = vsel %vm3971, %v3813, %v4093
      %v4097 = vsel %vm3971, 0, %v4095
      %v4098 = vmul.f32 %v4096, %v4096
      %v4099 = vmul.f32 %v4098, -0.001358992
      %v4100 = vadd.f32 %v4099, 0.041655596
      %v4101 = vmul.f32 %v4098, %v4100
      %v4102 = vadd.f32 %v4101, -0.4999988
      %v4103 = vmul.f32 %v4098, %v4102
      %v4104 = vadd.f32 1.0, %v4103
      %v4105 = vmul.f32 %v4096, %v4096
      %v4106 = vmul.f32 %v4105, -0.00019511016
      %v4107 = vadd.f32 %v4106, 0.008332121
      %v4108 = vmul.f32 %v4105, %v4107
      %v4109 = vadd.f32 %v4108, -0.16666654
      %v4110 = vmul.f32 %v4105, %v4109
      %v4111 = vadd.f32 %v4110, 1.0
      %v4112 = vmul.f32 %v4111, %v4096
      %vm4113 = vweird.f32 %v3813
      %v4114 = vand.u32 %v4097, 3
      %vm4115 = vcmp.lt.s32.totalorder %v4114, 2
      %vm4116 = vcmp.eq.s32.totalorder %v4114, 0
      %v4117 = vxor.u32 %v4112, 2147483648
      %v4118 = vsel %vm4116, %v4104, %v4117
      %vm4119 = vcmp.eq.s32.totalorder %v4114, 2
      %v4120 = vxor.u32 %v4104, 2147483648
      %v4121 = vsel %vm4119, %v4120, %v4112
      %v4122 = vsel %vm4115, %v4118, %v4121
      %v4123 = vsel %vm4113, nan, %v4122
      %v4124 = vand.u32 2147483647, %v3814
      %vm4125 = vcmp.le.f32.partialorder %v4124, 0.7853982
      %vm4126 = vcmp.lt.s32.totalorder %v3814, 0
      %v4127 = vand.u32 %v3814, 2139095040
      %v4128 = vshrl.u32 %v4127, 23
      %v4129 = vsub.s32 %v4128, 127
      %v4130 = vand.u32 2147483647, %v3814
      %v4131 = vand.u32 %v4130, 8388607
      %v4132 = vor.u32 %v4131, 8388608
      %v4133 = vsub.s32 0, %v4132
      %v4134 = vadd.s32 %v4129, 1
      %vm4135 = vcmp.gt.s32.totalorder %v4134, 0
      %v4136 = vsel %vm4135, %v4134, 0
      %v4137 = vshrl.u32 %v4136, 5
      %v4138 = vand.u32 %v4136, 31
      %v4139 = vsub.s32 32, %v4138
      %v4140 = vshrl.u32 683565275, %v4139
      %v4141 = vshll.u32 683565275, %v4138
      %v4142 = vshrl.u32 2475754826, %v4139
      %v4143 = vor.u32 %v4141, %v4142
      %v4144 = vshll.u32 2475754826, %v4138
      %v4145 = vshrl.u32 2131351028, %v4139
      %v4146 = vor.u32 %v4144, %v4145
      %v4147 = vshll.u32 2131351028, %v4138
      %v4148 = vshrl.u32 2102212464, %v4139
      %v4149 = vor.u32 %v4147, %v4148
      %v4150 = vshll.u32 2102212464, %v4138
      %v4151 = vshrl.u32 920167782, %v4139
      %v4152 = vor.u32 %v4150, %v4151
      %v4153 = vshll.u32 920167782, %v4138
      %v4154 = vshrl.u32 1326507024, %v4139
      %v4155 = vor.u32 %v4153, %v4154
      %vm4156 = vcmp.lt.s32.totalorder %v4137, 1
      %vm4157 = vcmp.lt.s32.totalorder %v4137, 2
      %vm4158 = vcmp.lt.s32.totalorder %v4137, 3
      %vm4159 = vcmp.lt.s32.totalorder %v4137, 4
      %v4160 = vsel %vm4156, %v4140, %v4143
      %v4161 = vsel %vm4159, %v4149, 2102212464
      %v4162 = vsel %vm4158, %v4146, %v4161
      %v4163 = vsel %vm4157, %v4160, %v4162
      %v4164 = vsel %vm4156, %v4143, %v4146
      %v4165 = vsel %vm4159, %v4152, 920167782
      %v4166 = vsel %vm4158, %v4149, %v4165
      %v4167 = vsel %vm4157, %v4164, %v4166
      %v4168 = vsel %vm4156, %v4146, %v4149
      %v4169 = vsel %vm4159, %v4155, 1326507024
      %v4170 = vsel %vm4158, %v4152, %v4169
      %v4171 = vsel %vm4157, %v4168, %v4170
      %v4172 = vshll.u32 %v4132, 8
      %v4173 = vand.u32 %v4172, 65535
      %v4174 = vshrl.u32 %v4172, 16
      %v4175 = vand.u32 %v4171, 65535
      %v4176 = vshrl.u32 %v4171, 16
      %v4177 = vmul.u32 %v4173, %v4175
      %v4178 = vmul.u32 %v4173, %v4176
      %v4179 = vmul.u32 %v4174, %v4175
      %v4180 = vmul.u32 %v4174, %v4176
      %v4181 = vshll.u32 %v4178, 16
      %v4182 = vshrl.u32 %v4178, 16
      %v4183 = vshll.u32 %v4179, 16
      %v4184 = vshrl.u32 %v4179, 16
      %vm4185 = vc.u32 %v4177, %v4181
      %v4186 = vsel %vm4185, 1, 0
      %v4187 = vadd.s32 %v4177, %v4181
      %v4188 = vadd.s32 %v4180, %v4186
      %vm4189 = vc.u32 %v4187, %v4183
      %v4190 = vsel %vm4189, 1, 0
      %v4191 = vadd.s32 %v4187, %v4183
      %v4192 = vadd.s32 %v4188, %v4190
      %v4193 = vadd.s32 %v4192, %v4182
      %v4194 = vadd.s32 %v4193, %v4184
      %v4195 = vand.u32 %v4172, 65535
      %v4196 = vshrl.u32 %v4172, 16
      %v4197 = vand.u32 %v4167, 65535
      %v4198 = vshrl.u32 %v4167, 16
      %v4199 = vmul.u32 %v4195, %v4197
      %v4200 = vmul.u32 %v4195, %v4198
      %v4201 = vmul.u32 %v4196, %v4197
      %v4202 = vmul.u32 %v4196, %v4198
      %v4203 = vshll.u32 %v4200, 16
      %v4204 = vshrl.u32 %v4200, 16
      %v4205 = vshll.u32 %v4201, 16
      %v4206 = vshrl.u32 %v4201, 16
      %vm4207 = vc.u32 %v4199, %v4203
      %v4208 = vsel %vm4207, 1, 0
      %v4209 = vadd.s32 %v4199, %v4203
      %v4210 = vadd.s32 %v4202, %v4208
      %vm4211 = vc.u32 %v4209, %v4205
      %v4212 = vsel %vm4211, 1, 0
      %v4213 = vadd.s32 %v4209, %v4205
      %v4214 = vadd.s32 %v4210, %v4212
      %v4215 = vadd.s32 %v4214, %v4204
      %v4216 = vadd.s32 %v4215, %v4206
      %v4217 = vmul.u32 %v4172, %v4163
      %v4218 = vadd.s32 %v4194, %v4213
      %vm4219 = vc.u32 %v4194, %v4213
      %v4220 = vadd.s32 %v4216, 1
      %v4221 = vsel %vm4219, %v4220, %v4216
      %v4222 = vadd.s32 %v4217, %v4221
      %v4223 = vadd.s32 %v4222, 536870912
      %v4224 = vshrl.u32 %v4223, 30
      %v4225 = vshll.u32 %v4224, 30
      %v4226 = vsub.s32 %v4222, %v4225
      %vm4227 = vcmp.lt.s32.totalorder %v4226, 0
      %v4228 = vsub.s32 0, %v4226
      %v4229 = vsel %vm4227, %v4228, %v4226
      %v4230 = vclz %v4229
      %v4231 = vsub.s32 %v4230, 2
      %vm4232 = vcmp.gt.s32.totalorder 0, %v4231
      %v4233 = vsel %vm4232, 0, %v4231
      %v4234 = vsub.s32 32, %v4233
      %v4235 = vshll.u32 %v4226, %v4233
      %v4236 = vshrl.u32 %v4218, %v4234
      %v4237 = vor.u32 %v4235, %v4236
      %v4238 = vsub.s32 4294967266, %v4233
      %v4239 = vadd.s32 %v4238, 127
      %v4240 = vshll.u32 %v4239, 23
      %v4241 = vor.u32 4788187, %v4240
      %v4242 = vand.u32 2147483647, %v4241
      %v4244 = vcvt.s32.f32 %v4237
      %v4245 = vmul.f32 %v4244, %v4242
      %v4246 = vxor.u32 %v4245, 2147483648
      %v4247 = vsel %vm4126, %v4246, %v4245
      %v4248 = vsub.s32 4, %v4224
      %v4249 = vsel %vm4126, %v4248, %v4224
      %v4250 = vsel %vm4125, %v3814, %v4247
      %v4251 = vsel %vm4125, 0, %v4249
      %v4252 = vmul.f32 %v4250, %v4250
      %v4253 = vmul.f32 %v4252, -0.001358992
      %v4254 = vadd.f32 %v4253, 0.041655596
      %v4255 = vmul.f32 %v4252, %v4254
      %v4256 = vadd.f32 %v4255, -0.4999988
      %v4257 = vmul.f32 %v4252, %v4256
      %v4258 = vadd.f32 1.0, %v4257
      %v4259 = vmul.f32 %v4250, %v4250
      %v4260 = vmul.f32 %v4259, -0.00019511016
      %v4261 = vadd.f32 %v4260, 0.008332121
      %v4262 = vmul.f32 %v4259, %v4261
      %v4263 = vadd.f32 %v4262, -0.16666654
      %v4264 = vmul.f32 %v4259, %v4263
      %v4265 = vadd.f32 %v4264, 1.0
      %v4266 = vmul.f32 %v4265, %v4250
      %vm4267 = vweird.f32 %v3814
      %v4268 = vand.u32 %v4251, 3
      %vm4269 = vcmp.lt.s32.totalorder %v4268, 2
      %vm4270 = vcmp.eq.s32.totalorder %v4268, 0
      %v4271 = vxor.u32 %v4266, 2147483648
      %v4272 = vsel %vm4270, %v4258, %v4271
      %vm4273 = vcmp.eq.s32.totalorder %v4268, 2
      %v4274 = vxor.u32 %v4258, 2147483648
      %v4275 = vsel %vm4273, %v4274, %v4266
      %v4276 = vsel %vm4269, %v4272, %v4275
      %v4277 = vsel %vm4267, nan, %v4276
      %v4278 = vand.u32 2147483647, %v3815
      %vm4279 = vcmp.le.f32.partialorder %v4278, 0.7853982
      %vm4280 = vcmp.lt.s32.totalorder %v3815, 0
      %v4281 = vand.u32 %v3815, 2139095040
      %v4282 = vshrl.u32 %v4281, 23
      %v4283 = vsub.s32 %v4282, 127
      %v4284 = vand.u32 2147483647, %v3815
      %v4285 = vand.u32 %v4284, 8388607
      %v4286 = vor.u32 %v4285, 8388608
      %v4287 = vsub.s32 0, %v4286
      %v4288 = vadd.s32 %v4283, 1
      %vm4289 = vcmp.gt.s32.totalorder %v4288, 0
      %v4290 = vsel %vm4289, %v4288, 0
      %v4291 = vshrl.u32 %v4290, 5
      %v4292 = vand.u32 %v4290, 31
      %v4293 = vsub.s32 32, %v4292
      %v4294 = vshrl.u32 683565275, %v4293
      %v4295 = vshll.u32 683565275, %v4292
      %v4296 = vshrl.u32 2475754826, %v4293
      %v4297 = vor.u32 %v4295, %v4296
      %v4298 = vshll.u32 2475754826, %v4292
      %v4299 = vshrl.u32 2131351028, %v4293
      %v4300 = vor.u32 %v4298, %v4299
      %v4301 = vshll.u32 2131351028, %v4292
      %v4302 = vshrl.u32 2102212464, %v4293
      %v4303 = vor.u32 %v4301, %v4302
      %v4304 = vshll.u32 2102212464, %v4292
      %v4305 = vshrl.u32 920167782, %v4293
      %v4306 = vor.u32 %v4304, %v4305
      %v4307 = vshll.u32 920167782, %v4292
      %v4308 = vshrl.u32 1326507024, %v4293
      %v4309 = vor.u32 %v4307, %v4308
      %vm4310 = vcmp.lt.s32.totalorder %v4291, 1
      %vm4311 = vcmp.lt.s32.totalorder %v4291, 2
      %vm4312 = vcmp.lt.s32.totalorder %v4291, 3
      %vm4313 = vcmp.lt.s32.totalorder %v4291, 4
      %v4314 = vsel %vm4310, %v4294, %v4297
      %v4315 = vsel %vm4313, %v4303, 2102212464
      %v4316 = vsel %vm4312, %v4300, %v4315
      %v4317 = vsel %vm4311, %v4314, %v4316
      %v4318 = vsel %vm4310, %v4297, %v4300
      %v4319 = vsel %vm4313, %v4306, 920167782
      %v4320 = vsel %vm4312, %v4303, %v4319
      %v4321 = vsel %vm4311, %v4318, %v4320
      %v4322 = vsel %vm4310, %v4300, %v4303
      %v4323 = vsel %vm4313, %v4309, 1326507024
      %v4324 = vsel %vm4312, %v4306, %v4323
      %v4325 = vsel %vm4311, %v4322, %v4324
      %v4326 = vshll.u32 %v4286, 8
      %v4327 = vand.u32 %v4326, 65535
      %v4328 = vshrl.u32 %v4326, 16
      %v4329 = vand.u32 %v4325, 65535
      %v4330 = vshrl.u32 %v4325, 16
      %v4331 = vmul.u32 %v4327, %v4329
      %v4332 = vmul.u32 %v4327, %v4330
      %v4333 = vmul.u32 %v4328, %v4329
      %v4334 = vmul.u32 %v4328, %v4330
      %v4335 = vshll.u32 %v4332, 16
      %v4336 = vshrl.u32 %v4332, 16
      %v4337 = vshll.u32 %v4333, 16
      %v4338 = vshrl.u32 %v4333, 16
      %vm4339 = vc.u32 %v4331, %v4335
      %v4340 = vsel %vm4339, 1, 0
      %v4341 = vadd.s32 %v4331, %v4335
      %v4342 = vadd.s32 %v4334, %v4340
      %vm4343 = vc.u32 %v4341, %v4337
      %v4344 = vsel %vm4343, 1, 0
      %v4345 = vadd.s32 %v4341, %v4337
      %v4346 = vadd.s32 %v4342, %v4344
      %v4347 = vadd.s32 %v4346, %v4336
      %v4348 = vadd.s32 %v4347, %v4338
      %v4349 = vand.u32 %v4326, 65535
      %v4350 = vshrl.u32 %v4326, 16
      %v4351 = vand.u32 %v4321, 65535
      %v4352 = vshrl.u32 %v4321, 16
      %v4353 = vmul.u32 %v4349, %v4351
      %v4354 = vmul.u32 %v4349, %v4352
      %v4355 = vmul.u32 %v4350, %v4351
      %v4356 = vmul.u32 %v4350, %v4352
      %v4357 = vshll.u32 %v4354, 16
      %v4358 = vshrl.u32 %v4354, 16
      %v4359 = vshll.u32 %v4355, 16
      %v4360 = vshrl.u32 %v4355, 16
      %vm4361 = vc.u32 %v4353, %v4357
      %v4362 = vsel %vm4361, 1, 0
      %v4363 = vadd.s32 %v4353, %v4357
      %v4364 = vadd.s32 %v4356, %v4362
      %vm4365 = vc.u32 %v4363, %v4359
      %v4366 = vsel %vm4365, 1, 0
      %v4367 = vadd.s32 %v4363, %v4359
      %v4368 = vadd.s32 %v4364, %v4366
      %v4369 = vadd.s32 %v4368, %v4358
      %v4370 = vadd.s32 %v4369, %v4360
      %v4371 = vmul.u32 %v4326, %v4317
      %v4372 = vadd.s32 %v4348, %v4367
      %vm4373 = vc.u32 %v4348, %v4367
      %v4374 = vadd.s32 %v4370, 1
      %v4375 = vsel %vm4373, %v4374, %v4370
      %v4376 = vadd.s32 %v4371, %v4375
      %v4377 = vadd.s32 %v4376, 536870912
      %v4378 = vshrl.u32 %v4377, 30
      %v4379 = vshll.u32 %v4378, 30
      %v4380 = vsub.s32 %v4376, %v4379
      %vm4381 = vcmp.lt.s32.totalorder %v4380, 0
      %v4382 = vsub.s32 0, %v4380
      %v4383 = vsel %vm4381, %v4382, %v4380
      %v4384 = vclz %v4383
      %v4385 = vsub.s32 %v4384, 2
      %vm4386 = vcmp.gt.s32.totalorder 0, %v4385
      %v4387 = vsel %vm4386, 0, %v4385
      %v4388 = vsub.s32 32, %v4387
      %v4389 = vshll.u32 %v4380, %v4387
      %v4390 = vshrl.u32 %v4372, %v4388
      %v4391 = vor.u32 %v4389, %v4390
      %v4392 = vsub.s32 4294967266, %v4387
      %v4393 = vadd.s32 %v4392, 127
      %v4394 = vshll.u32 %v4393, 23
      %v4395 = vor.u32 4788187, %v4394
      %v4396 = vand.u32 2147483647, %v4395
      %v4398 = vcvt.s32.f32 %v4391
      %v4399 = vmul.f32 %v4398, %v4396
      %v4400 = vxor.u32 %v4399, 2147483648
      %v4401 = vsel %vm4280, %v4400, %v4399
      %v4402 = vsub.s32 4, %v4378
      %v4403 = vsel %vm4280, %v4402, %v4378
      %v4404 = vsel %vm4279, %v3815, %v4401
      %v4405 = vsel %vm4279, 0, %v4403
      %v4406 = vmul.f32 %v4404, %v4404
      %v4407 = vmul.f32 %v4406, -0.001358992
      %v4408 = vadd.f32 %v4407, 0.041655596
      %v4409 = vmul.f32 %v4406, %v4408
      %v4410 = vadd.f32 %v4409, -0.4999988
      %v4411 = vmul.f32 %v4406, %v4410
      %v4412 = vadd.f32 1.0, %v4411
      %v4413 = vmul.f32 %v4404, %v4404
      %v4414 = vmul.f32 %v4413, -0.00019511016
      %v4415 = vadd.f32 %v4414, 0.008332121
      %v4416 = vmul.f32 %v4413, %v4415
      %v4417 = vadd.f32 %v4416, -0.16666654
      %v4418 = vmul.f32 %v4413, %v4417
      %v4419 = vadd.f32 %v4418, 1.0
      %v4420 = vmul.f32 %v4419, %v4404
      %vm4421 = vweird.f32 %v3815
      %v4422 = vand.u32 %v4405, 3
      %vm4423 = vcmp.lt.s32.totalorder %v4422, 2
      %vm4424 = vcmp.eq.s32.totalorder %v4422, 0
      %v4425 = vxor.u32 %v4420, 2147483648
      %v4426 = vsel %vm4424, %v4412, %v4425
      %vm4427 = vcmp.eq.s32.totalorder %v4422, 2
      %v4428 = vxor.u32 %v4412, 2147483648
      %v4429 = vsel %vm4427, %v4428, %v4420
      %v4430 = vsel %vm4423, %v4426, %v4429
      %v4431 = vsel %vm4421, nan, %v4430
      %v4432 = vand.u32 2147483647, %v3812
      %vm4433 = vcmp.le.f32.partialorder %v4432, 0.7853982
      %vm4434 = vcmp.lt.s32.totalorder %v3812, 0
      %v4435 = vand.u32 %v3812, 2139095040
      %v4436 = vshrl.u32 %v4435, 23
      %v4437 = vsub.s32 %v4436, 127
      %v4438 = vand.u32 2147483647, %v3812
      %v4439 = vand.u32 %v4438, 8388607
      %v4440 = vor.u32 %v4439, 8388608
      %v4441 = vsub.s32 0, %v4440
      %v4442 = vadd.s32 %v4437, 1
      %vm4443 = vcmp.gt.s32.totalorder %v4442, 0
      %v4444 = vsel %vm4443, %v4442, 0
      %v4445 = vshrl.u32 %v4444, 5
      %v4446 = vand.u32 %v4444, 31
      %v4447 = vsub.s32 32, %v4446
      %v4448 = vshrl.u32 683565275, %v4447
      %v4449 = vshll.u32 683565275, %v4446
      %v4450 = vshrl.u32 2475754826, %v4447
      %v4451 = vor.u32 %v4449, %v4450
      %v4452 = vshll.u32 2475754826, %v4446
      %v4453 = vshrl.u32 2131351028, %v4447
      %v4454 = vor.u32 %v4452, %v4453
      %v4455 = vshll.u32 2131351028, %v4446
      %v4456 = vshrl.u32 2102212464, %v4447
      %v4457 = vor.u32 %v4455, %v4456
      %v4458 = vshll.u32 2102212464, %v4446
      %v4459 = vshrl.u32 920167782, %v4447
      %v4460 = vor.u32 %v4458, %v4459
      %v4461 = vshll.u32 920167782, %v4446
      %v4462 = vshrl.u32 1326507024, %v4447
      %v4463 = vor.u32 %v4461, %v4462
      %vm4464 = vcmp.lt.s32.totalorder %v4445, 1
      %vm4465 = vcmp.lt.s32.totalorder %v4445, 2
      %vm4466 = vcmp.lt.s32.totalorder %v4445, 3
      %vm4467 = vcmp.lt.s32.totalorder %v4445, 4
      %v4468 = vsel %vm4464, %v4448, %v4451
      %v4469 = vsel %vm4467, %v4457, 2102212464
      %v4470 = vsel %vm4466, %v4454, %v4469
      %v4471 = vsel %vm4465, %v4468, %v4470
      %v4472 = vsel %vm4464, %v4451, %v4454
      %v4473 = vsel %vm4467, %v4460, 920167782
      %v4474 = vsel %vm4466, %v4457, %v4473
      %v4475 = vsel %vm4465, %v4472, %v4474
      %v4476 = vsel %vm4464, %v4454, %v4457
      %v4477 = vsel %vm4467, %v4463, 1326507024
      %v4478 = vsel %vm4466, %v4460, %v4477
      %v4479 = vsel %vm4465, %v4476, %v4478
      %v4480 = vshll.u32 %v4440, 8
      %v4481 = vand.u32 %v4480, 65535
      %v4482 = vshrl.u32 %v4480, 16
      %v4483 = vand.u32 %v4479, 65535
      %v4484 = vshrl.u32 %v4479, 16
      %v4485 = vmul.u32 %v4481, %v4483
      %v4486 = vmul.u32 %v4481, %v4484
      %v4487 = vmul.u32 %v4482, %v4483
      %v4488 = vmul.u32 %v4482, %v4484
      %v4489 = vshll.u32 %v4486, 16
      %v4490 = vshrl.u32 %v4486, 16
      %v4491 = vshll.u32 %v4487, 16
      %v4492 = vshrl.u32 %v4487, 16
      %vm4493 = vc.u32 %v4485, %v4489
      %v4494 = vsel %vm4493, 1, 0
      %v4495 = vadd.s32 %v4485, %v4489
      %v4496 = vadd.s32 %v4488, %v4494
      %vm4497 = vc.u32 %v4495, %v4491
      %v4498 = vsel %vm4497, 1, 0
      %v4499 = vadd.s32 %v4495, %v4491
      %v4500 = vadd.s32 %v4496, %v4498
      %v4501 = vadd.s32 %v4500, %v4490
      %v4502 = vadd.s32 %v4501, %v4492
      %v4503 = vand.u32 %v4480, 65535
      %v4504 = vshrl.u32 %v4480, 16
      %v4505 = vand.u32 %v4475, 65535
      %v4506 = vshrl.u32 %v4475, 16
      %v4507 = vmul.u32 %v4503, %v4505
      %v4508 = vmul.u32 %v4503, %v4506
      %v4509 = vmul.u32 %v4504, %v4505
      %v4510 = vmul.u32 %v4504, %v4506
      %v4511 = vshll.u32 %v4508, 16
      %v4512 = vshrl.u32 %v4508, 16
      %v4513 = vshll.u32 %v4509, 16
      %v4514 = vshrl.u32 %v4509, 16
      %vm4515 = vc.u32 %v4507, %v4511
      %v4516 = vsel %vm4515, 1, 0
      %v4517 = vadd.s32 %v4507, %v4511
      %v4518 = vadd.s32 %v4510, %v4516
      %vm4519 = vc.u32 %v4517, %v4513
      %v4520 = vsel %vm4519, 1, 0
      %v4521 = vadd.s32 %v4517, %v4513
      %v4522 = vadd.s32 %v4518, %v4520
      %v4523 = vadd.s32 %v4522, %v4512
      %v4524 = vadd.s32 %v4523, %v4514
      %v4525 = vmul.u32 %v4480, %v4471
      %v4526 = vadd.s32 %v4502, %v4521
      %vm4527 = vc.u32 %v4502, %v4521
      %v4528 = vadd.s32 %v4524, 1
      %v4529 = vsel %vm4527, %v4528, %v4524
      %v4530 = vadd.s32 %v4525, %v4529
      %v4531 = vadd.s32 %v4530, 536870912
      %v4532 = vshrl.u32 %v4531, 30
      %v4533 = vshll.u32 %v4532, 30
      %v4534 = vsub.s32 %v4530, %v4533
      %vm4535 = vcmp.lt.s32.totalorder %v4534, 0
      %v4536 = vsub.s32 0, %v4534
      %v4537 = vsel %vm4535, %v4536, %v4534
      %v4538 = vclz %v4537
      %v4539 = vsub.s32 %v4538, 2
      %vm4540 = vcmp.gt.s32.totalorder 0, %v4539
      %v4541 = vsel %vm4540, 0, %v4539
      %v4542 = vsub.s32 32, %v4541
      %v4543 = vshll.u32 %v4534, %v4541
      %v4544 = vshrl.u32 %v4526, %v4542
      %v4545 = vor.u32 %v4543, %v4544
      %v4546 = vsub.s32 4294967266, %v4541
      %v4547 = vadd.s32 %v4546, 127
      %v4548 = vshll.u32 %v4547, 23
      %v4549 = vor.u32 4788187, %v4548
      %v4550 = vand.u32 2147483647, %v4549
      %v4552 = vcvt.s32.f32 %v4545
      %v4553 = vmul.f32 %v4552, %v4550
      %v4554 = vxor.u32 %v4553, 2147483648
      %v4555 = vsel %vm4434, %v4554, %v4553
      %v4556 = vsub.s32 4, %v4532
      %v4557 = vsel %vm4434, %v4556, %v4532
      %v4558 = vsel %vm4433, %v3812, %v4555
      %v4559 = vsel %vm4433, 0, %v4557
      %v4560 = vmul.f32 %v4558, %v4558
      %v4561 = vmul.f32 %v4560, -0.001358992
      %v4562 = vadd.f32 %v4561, 0.041655596
      %v4563 = vmul.f32 %v4560, %v4562
      %v4564 = vadd.f32 %v4563, -0.4999988
      %v4565 = vmul.f32 %v4560, %v4564
      %v4566 = vadd.f32 1.0, %v4565
      %v4567 = vmul.f32 %v4558, %v4558
      %v4568 = vmul.f32 %v4567, -0.00019511016
      %v4569 = vadd.f32 %v4568, 0.008332121
      %v4570 = vmul.f32 %v4567, %v4569
      %v4571 = vadd.f32 %v4570, -0.16666654
      %v4572 = vmul.f32 %v4567, %v4571
      %v4573 = vadd.f32 %v4572, 1.0
      %v4574 = vmul.f32 %v4573, %v4558
      %vm4575 = vweird.f32 %v3812
      %v4576 = vadd.s32 %v4559, 3
      %v4577 = vand.u32 %v4576, 3
      %vm4578 = vcmp.lt.s32.totalorder %v4577, 2
      %vm4579 = vcmp.eq.s32.totalorder %v4577, 0
      %v4580 = vxor.u32 %v4574, 2147483648
      %v4581 = vsel %vm4579, %v4566, %v4580
      %vm4582 = vcmp.eq.s32.totalorder %v4577, 2
      %v4583 = vxor.u32 %v4566, 2147483648
      %v4584 = vsel %vm4582, %v4583, %v4574
      %v4585 = vsel %vm4578, %v4581, %v4584
      %v4586 = vsel %vm4575, nan, %v4585
      %v4587 = vand.u32 2147483647, %v3813
      %vm4588 = vcmp.le.f32.partialorder %v4587, 0.7853982
      %vm4589 = vcmp.lt.s32.totalorder %v3813, 0
      %v4590 = vand.u32 %v3813, 2139095040
      %v4591 = vshrl.u32 %v4590, 23
      %v4592 = vsub.s32 %v4591, 127
      %v4593 = vand.u32 2147483647, %v3813
      %v4594 = vand.u32 %v4593, 8388607
      %v4595 = vor.u32 %v4594, 8388608
      %v4596 = vsub.s32 0, %v4595
      %v4597 = vadd.s32 %v4592, 1
      %vm4598 = vcmp.gt.s32.totalorder %v4597, 0
      %v4599 = vsel %vm4598, %v4597, 0
      %v4600 = vshrl.u32 %v4599, 5
      %v4601 = vand.u32 %v4599, 31
      %v4602 = vsub.s32 32, %v4601
      %v4603 = vshrl.u32 683565275, %v4602
      %v4604 = vshll.u32 683565275, %v4601
      %v4605 = vshrl.u32 2475754826, %v4602
      %v4606 = vor.u32 %v4604, %v4605
      %v4607 = vshll.u32 2475754826, %v4601
      %v4608 = vshrl.u32 2131351028, %v4602
      %v4609 = vor.u32 %v4607, %v4608
      %v4610 = vshll.u32 2131351028, %v4601
      %v4611 = vshrl.u32 2102212464, %v4602
      %v4612 = vor.u32 %v4610, %v4611
      %v4613 = vshll.u32 2102212464, %v4601
      %v4614 = vshrl.u32 920167782, %v4602
      %v4615 = vor.u32 %v4613, %v4614
      %v4616 = vshll.u32 920167782, %v4601
      %v4617 = vshrl.u32 1326507024, %v4602
      %v4618 = vor.u32 %v4616, %v4617
      %vm4619 = vcmp.lt.s32.totalorder %v4600, 1
      %vm4620 = vcmp.lt.s32.totalorder %v4600, 2
      %vm4621 = vcmp.lt.s32.totalorder %v4600, 3
      %vm4622 = vcmp.lt.s32.totalorder %v4600, 4
      %v4623 = vsel %vm4619, %v4603, %v4606
      %v4624 = vsel %vm4622, %v4612, 2102212464
      %v4625 = vsel %vm4621, %v4609, %v4624
      %v4626 = vsel %vm4620, %v4623, %v4625
      %v4627 = vsel %vm4619, %v4606, %v4609
      %v4628 = vsel %vm4622, %v4615, 920167782
      %v4629 = vsel %vm4621, %v4612, %v4628
      %v4630 = vsel %vm4620, %v4627, %v4629
      %v4631 = vsel %vm4619, %v4609, %v4612
      %v4632 = vsel %vm4622, %v4618, 1326507024
      %v4633 = vsel %vm4621, %v4615, %v4632
      %v4634 = vsel %vm4620, %v4631, %v4633
      %v4635 = vshll.u32 %v4595, 8
      %v4636 = vand.u32 %v4635, 65535
      %v4637 = vshrl.u32 %v4635, 16
      %v4638 = vand.u32 %v4634, 65535
      %v4639 = vshrl.u32 %v4634, 16
      %v4640 = vmul.u32 %v4636, %v4638
      %v4641 = vmul.u32 %v4636, %v4639
      %v4642 = vmul.u32 %v4637, %v4638
      %v4643 = vmul.u32 %v4637, %v4639
      %v4644 = vshll.u32 %v4641, 16
      %v4645 = vshrl.u32 %v4641, 16
      %v4646 = vshll.u32 %v4642, 16
      %v4647 = vshrl.u32 %v4642, 16
      %vm4648 = vc.u32 %v4640, %v4644
      %v4649 = vsel %vm4648, 1, 0
      %v4650 = vadd.s32 %v4640, %v4644
      %v4651 = vadd.s32 %v4643, %v4649
      %vm4652 = vc.u32 %v4650, %v4646
      %v4653 = vsel %vm4652, 1, 0
      %v4654 = vadd.s32 %v4650, %v4646
      %v4655 = vadd.s32 %v4651, %v4653
      %v4656 = vadd.s32 %v4655, %v4645
      %v4657 = vadd.s32 %v4656, %v4647
      %v4658 = vand.u32 %v4635, 65535
      %v4659 = vshrl.u32 %v4635, 16
      %v4660 = vand.u32 %v4630, 65535
      %v4661 = vshrl.u32 %v4630, 16
      %v4662 = vmul.u32 %v4658, %v4660
      %v4663 = vmul.u32 %v4658, %v4661
      %v4664 = vmul.u32 %v4659, %v4660
      %v4665 = vmul.u32 %v4659, %v4661
      %v4666 = vshll.u32 %v4663, 16
      %v4667 = vshrl.u32 %v4663, 16
      %v4668 = vshll.u32 %v4664, 16
      %v4669 = vshrl.u32 %v4664, 16
      %vm4670 = vc.u32 %v4662, %v4666
      %v4671 = vsel %vm4670, 1, 0
      %v4672 = vadd.s32 %v4662, %v4666
      %v4673 = vadd.s32 %v4665, %v4671
      %vm4674 = vc.u32 %v4672, %v4668
      %v4675 = vsel %vm4674, 1, 0
      %v4676 = vadd.s32 %v4672, %v4668
      %v4677 = vadd.s32 %v4673, %v4675
      %v4678 = vadd.s32 %v4677, %v4667
      %v4679 = vadd.s32 %v4678, %v4669
      %v4680 = vmul.u32 %v4635, %v4626
      %v4681 = vadd.s32 %v4657, %v4676
      %vm4682 = vc.u32 %v4657, %v4676
      %v4683 = vadd.s32 %v4679, 1
      %v4684 = vsel %vm4682, %v4683, %v4679
      %v4685 = vadd.s32 %v4680, %v4684
      %v4686 = vadd.s32 %v4685, 536870912
      %v4687 = vshrl.u32 %v4686, 30
      %v4688 = vshll.u32 %v4687, 30
      %v4689 = vsub.s32 %v4685, %v4688
      %vm4690 = vcmp.lt.s32.totalorder %v4689, 0
      %v4691 = vsub.s32 0, %v4689
      %v4692 = vsel %vm4690, %v4691, %v4689
      %v4693 = vclz %v4692
      %v4694 = vsub.s32 %v4693, 2
      %vm4695 = vcmp.gt.s32.totalorder 0, %v4694
      %v4696 = vsel %vm4695, 0, %v4694
      %v4697 = vsub.s32 32, %v4696
      %v4698 = vshll.u32 %v4689, %v4696
      %v4699 = vshrl.u32 %v4681, %v4697
      %v4700 = vor.u32 %v4698, %v4699
      %v4701 = vsub.s32 4294967266, %v4696
      %v4702 = vadd.s32 %v4701, 127
      %v4703 = vshll.u32 %v4702, 23
      %v4704 = vor.u32 4788187, %v4703
      %v4705 = vand.u32 2147483647, %v4704
      %v4707 = vcvt.s32.f32 %v4700
      %v4708 = vmul.f32 %v4707, %v4705
      %v4709 = vxor.u32 %v4708, 2147483648
      %v4710 = vsel %vm4589, %v4709, %v4708
      %v4711 = vsub.s32 4, %v4687
      %v4712 = vsel %vm4589, %v4711, %v4687
      %v4713 = vsel %vm4588, %v3813, %v4710
      %v4714 = vsel %vm4588, 0, %v4712
      %v4715 = vmul.f32 %v4713, %v4713
      %v4716 = vmul.f32 %v4715, -0.001358992
      %v4717 = vadd.f32 %v4716, 0.041655596
      %v4718 = vmul.f32 %v4715, %v4717
      %v4719 = vadd.f32 %v4718, -0.4999988
      %v4720 = vmul.f32 %v4715, %v4719
      %v4721 = vadd.f32 1.0, %v4720
      %v4722 = vmul.f32 %v4713, %v4713
      %v4723 = vmul.f32 %v4722, -0.00019511016
      %v4724 = vadd.f32 %v4723, 0.008332121
      %v4725 = vmul.f32 %v4722, %v4724
      %v4726 = vadd.f32 %v4725, -0.16666654
      %v4727 = vmul.f32 %v4722, %v4726
      %v4728 = vadd.f32 %v4727, 1.0
      %v4729 = vmul.f32 %v4728, %v4713
      %vm4730 = vweird.f32 %v3813
      %v4731 = vadd.s32 %v4714, 3
      %v4732 = vand.u32 %v4731, 3
      %vm4733 = vcmp.lt.s32.totalorder %v4732, 2
      %vm4734 = vcmp.eq.s32.totalorder %v4732, 0
      %v4735 = vxor.u32 %v4729, 2147483648
      %v4736 = vsel %vm4734, %v4721, %v4735
      %vm4737 = vcmp.eq.s32.totalorder %v4732, 2
      %v4738 = vxor.u32 %v4721, 2147483648
      %v4739 = vsel %vm4737, %v4738, %v4729
      %v4740 = vsel %vm4733, %v4736, %v4739
      %v4741 = vsel %vm4730, nan, %v4740
      %v4742 = vand.u32 2147483647, %v3814
      %vm4743 = vcmp.le.f32.partialorder %v4742, 0.7853982
      %vm4744 = vcmp.lt.s32.totalorder %v3814, 0
      %v4745 = vand.u32 %v3814, 2139095040
      %v4746 = vshrl.u32 %v4745, 23
      %v4747 = vsub.s32 %v4746, 127
      %v4748 = vand.u32 2147483647, %v3814
      %v4749 = vand.u32 %v4748, 8388607
      %v4750 = vor.u32 %v4749, 8388608
      %v4751 = vsub.s32 0, %v4750
      %v4752 = vadd.s32 %v4747, 1
      %vm4753 = vcmp.gt.s32.totalorder %v4752, 0
      %v4754 = vsel %vm4753, %v4752, 0
      %v4755 = vshrl.u32 %v4754, 5
      %v4756 = vand.u32 %v4754, 31
      %v4757 = vsub.s32 32, %v4756
      %v4758 = vshrl.u32 683565275, %v4757
      %v4759 = vshll.u32 683565275, %v4756
      %v4760 = vshrl.u32 2475754826, %v4757
      %v4761 = vor.u32 %v4759, %v4760
      %v4762 = vshll.u32 2475754826, %v4756
      %v4763 = vshrl.u32 2131351028, %v4757
      %v4764 = vor.u32 %v4762, %v4763
      %v4765 = vshll.u32 2131351028, %v4756
      %v4766 = vshrl.u32 2102212464, %v4757
      %v4767 = vor.u32 %v4765, %v4766
      %v4768 = vshll.u32 2102212464, %v4756
      %v4769 = vshrl.u32 920167782, %v4757
      %v4770 = vor.u32 %v4768, %v4769
      %v4771 = vshll.u32 920167782, %v4756
      %v4772 = vshrl.u32 1326507024, %v4757
      %v4773 = vor.u32 %v4771, %v4772
      %vm4774 = vcmp.lt.s32.totalorder %v4755, 1
      %vm4775 = vcmp.lt.s32.totalorder %v4755, 2
      %vm4776 = vcmp.lt.s32.totalorder %v4755, 3
      %vm4777 = vcmp.lt.s32.totalorder %v4755, 4
      %v4778 = vsel %vm4774, %v4758, %v4761
      %v4779 = vsel %vm4777, %v4767, 2102212464
      %v4780 = vsel %vm4776, %v4764, %v4779
      %v4781 = vsel %vm4775, %v4778, %v4780
      %v4782 = vsel %vm4774, %v4761, %v4764
      %v4783 = vsel %vm4777, %v4770, 920167782
      %v4784 = vsel %vm4776, %v4767, %v4783
      %v4785 = vsel %vm4775, %v4782, %v4784
      %v4786 = vsel %vm4774, %v4764, %v4767
      %v4787 = vsel %vm4777, %v4773, 1326507024
      %v4788 = vsel %vm4776, %v4770, %v4787
      %v4789 = vsel %vm4775, %v4786, %v4788
      %v4790 = vshll.u32 %v4750, 8
      %v4791 = vand.u32 %v4790, 65535
      %v4792 = vshrl.u32 %v4790, 16
      %v4793 = vand.u32 %v4789, 65535
      %v4794 = vshrl.u32 %v4789, 16
      %v4795 = vmul.u32 %v4791, %v4793
      %v4796 = vmul.u32 %v4791, %v4794
      %v4797 = vmul.u32 %v4792, %v4793
      %v4798 = vmul.u32 %v4792, %v4794
      %v4799 = vshll.u32 %v4796, 16
      %v4800 = vshrl.u32 %v4796, 16
      %v4801 = vshll.u32 %v4797, 16
      %v4802 = vshrl.u32 %v4797, 16
      %vm4803 = vc.u32 %v4795, %v4799
      %v4804 = vsel %vm4803, 1, 0
      %v4805 = vadd.s32 %v4795, %v4799
      %v4806 = vadd.s32 %v4798, %v4804
      %vm4807 = vc.u32 %v4805, %v4801
      %v4808 = vsel %vm4807, 1, 0
      %v4809 = vadd.s32 %v4805, %v4801
      %v4810 = vadd.s32 %v4806, %v4808
      %v4811 = vadd.s32 %v4810, %v4800
      %v4812 = vadd.s32 %v4811, %v4802
      %v4813 = vand.u32 %v4790, 65535
      %v4814 = vshrl.u32 %v4790, 16
      %v4815 = vand.u32 %v4785, 65535
      %v4816 = vshrl.u32 %v4785, 16
      %v4817 = vmul.u32 %v4813, %v4815
      %v4818 = vmul.u32 %v4813, %v4816
      %v4819 = vmul.u32 %v4814, %v4815
      %v4820 = vmul.u32 %v4814, %v4816
      %v4821 = vshll.u32 %v4818, 16
      %v4822 = vshrl.u32 %v4818, 16
      %v4823 = vshll.u32 %v4819, 16
      %v4824 = vshrl.u32 %v4819, 16
      %vm4825 = vc.u32 %v4817, %v4821
      %v4826 = vsel %vm4825, 1, 0
      %v4827 = vadd.s32 %v4817, %v4821
      %v4828 = vadd.s32 %v4820, %v4826
      %vm4829 = vc.u32 %v4827, %v4823
      %v4830 = vsel %vm4829, 1, 0
      %v4831 = vadd.s32 %v4827, %v4823
      %v4832 = vadd.s32 %v4828, %v4830
      %v4833 = vadd.s32 %v4832, %v4822
      %v4834 = vadd.s32 %v4833, %v4824
      %v4835 = vmul.u32 %v4790, %v4781
      %v4836 = vadd.s32 %v4812, %v4831
      %vm4837 = vc.u32 %v4812, %v4831
      %v4838 = vadd.s32 %v4834, 1
      %v4839 = vsel %vm4837, %v4838, %v4834
      %v4840 = vadd.s32 %v4835, %v4839
      %v4841 = vadd.s32 %v4840, 536870912
      %v4842 = vshrl.u32 %v4841, 30
      %v4843 = vshll.u32 %v4842, 30
      %v4844 = vsub.s32 %v4840, %v4843
      %vm4845 = vcmp.lt.s32.totalorder %v4844, 0
      %v4846 = vsub.s32 0, %v4844
      %v4847 = vsel %vm4845, %v4846, %v4844
      %v4848 = vclz %v4847
      %v4849 = vsub.s32 %v4848, 2
      %vm4850 = vcmp.gt.s32.totalorder 0, %v4849
      %v4851 = vsel %vm4850, 0, %v4849
      %v4852 = vsub.s32 32, %v4851
      %v4853 = vshll.u32 %v4844, %v4851
      %v4854 = vshrl.u32 %v4836, %v4852
      %v4855 = vor.u32 %v4853, %v4854
      %v4856 = vsub.s32 4294967266, %v4851
      %v4857 = vadd.s32 %v4856, 127
      %v4858 = vshll.u32 %v4857, 23
      %v4859 = vor.u32 4788187, %v4858
      %v4860 = vand.u32 2147483647, %v4859
      %v4862 = vcvt.s32.f32 %v4855
      %v4863 = vmul.f32 %v4862, %v4860
      %v4864 = vxor.u32 %v4863, 2147483648
      %v4865 = vsel %vm4744, %v4864, %v4863
      %v4866 = vsub.s32 4, %v4842
      %v4867 = vsel %vm4744, %v4866, %v4842
      %v4868 = vsel %vm4743, %v3814, %v4865
      %v4869 = vsel %vm4743, 0, %v4867
      %v4870 = vmul.f32 %v4868, %v4868
      %v4871 = vmul.f32 %v4870, -0.001358992
      %v4872 = vadd.f32 %v4871, 0.041655596
      %v4873 = vmul.f32 %v4870, %v4872
      %v4874 = vadd.f32 %v4873, -0.4999988
      %v4875 = vmul.f32 %v4870, %v4874
      %v4876 = vadd.f32 1.0, %v4875
      %v4877 = vmul.f32 %v4868, %v4868
      %v4878 = vmul.f32 %v4877, -0.00019511016
      %v4879 = vadd.f32 %v4878, 0.008332121
      %v4880 = vmul.f32 %v4877, %v4879
      %v4881 = vadd.f32 %v4880, -0.16666654
      %v4882 = vmul.f32 %v4877, %v4881
      %v4883 = vadd.f32 %v4882, 1.0
      %v4884 = vmul.f32 %v4883, %v4868
      %vm4885 = vweird.f32 %v3814
      %v4886 = vadd.s32 %v4869, 3
      %v4887 = vand.u32 %v4886, 3
      %vm4888 = vcmp.lt.s32.totalorder %v4887, 2
      %vm4889 = vcmp.eq.s32.totalorder %v4887, 0
      %v4890 = vxor.u32 %v4884, 2147483648
      %v4891 = vsel %vm4889, %v4876, %v4890
      %vm4892 = vcmp.eq.s32.totalorder %v4887, 2
      %v4893 = vxor.u32 %v4876, 2147483648
      %v4894 = vsel %vm4892, %v4893, %v4884
      %v4895 = vsel %vm4888, %v4891, %v4894
      %v4896 = vsel %vm4885, nan, %v4895
      %v4897 = vand.u32 2147483647, %v3815
      %vm4898 = vcmp.le.f32.partialorder %v4897, 0.7853982
      %vm4899 = vcmp.lt.s32.totalorder %v3815, 0
      %v4900 = vand.u32 %v3815, 2139095040
      %v4901 = vshrl.u32 %v4900, 23
      %v4902 = vsub.s32 %v4901, 127
      %v4903 = vand.u32 2147483647, %v3815
      %v4904 = vand.u32 %v4903, 8388607
      %v4905 = vor.u32 %v4904, 8388608
      %v4906 = vsub.s32 0, %v4905
      %v4907 = vadd.s32 %v4902, 1
      %vm4908 = vcmp.gt.s32.totalorder %v4907, 0
      %v4909 = vsel %vm4908, %v4907, 0
      %v4910 = vshrl.u32 %v4909, 5
      %v4911 = vand.u32 %v4909, 31
      %v4912 = vsub.s32 32, %v4911
      %v4913 = vshrl.u32 683565275, %v4912
      %v4914 = vshll.u32 683565275, %v4911
      %v4915 = vshrl.u32 2475754826, %v4912
      %v4916 = vor.u32 %v4914, %v4915
      %v4917 = vshll.u32 2475754826, %v4911
      %v4918 = vshrl.u32 2131351028, %v4912
      %v4919 = vor.u32 %v4917, %v4918
      %v4920 = vshll.u32 2131351028, %v4911
      %v4921 = vshrl.u32 2102212464, %v4912
      %v4922 = vor.u32 %v4920, %v4921
      %v4923 = vshll.u32 2102212464, %v4911
      %v4924 = vshrl.u32 920167782, %v4912
      %v4925 = vor.u32 %v4923, %v4924
      %v4926 = vshll.u32 920167782, %v4911
      %v4927 = vshrl.u32 1326507024, %v4912
      %v4928 = vor.u32 %v4926, %v4927
      %vm4929 = vcmp.lt.s32.totalorder %v4910, 1
      %vm4930 = vcmp.lt.s32.totalorder %v4910, 2
      %vm4931 = vcmp.lt.s32.totalorder %v4910, 3
      %vm4932 = vcmp.lt.s32.totalorder %v4910, 4
      %v4933 = vsel %vm4929, %v4913, %v4916
      %v4934 = vsel %vm4932, %v4922, 2102212464
      %v4935 = vsel %vm4931, %v4919, %v4934
      %v4936 = vsel %vm4930, %v4933, %v4935
      %v4937 = vsel %vm4929, %v4916, %v4919
      %v4938 = vsel %vm4932, %v4925, 920167782
      %v4939 = vsel %vm4931, %v4922, %v4938
      %v4940 = vsel %vm4930, %v4937, %v4939
      %v4941 = vsel %vm4929, %v4919, %v4922
      %v4942 = vsel %vm4932, %v4928, 1326507024
      %v4943 = vsel %vm4931, %v4925, %v4942
      %v4944 = vsel %vm4930, %v4941, %v4943
      %v4945 = vshll.u32 %v4905, 8
      %v4946 = vand.u32 %v4945, 65535
      %v4947 = vshrl.u32 %v4945, 16
      %v4948 = vand.u32 %v4944, 65535
      %v4949 = vshrl.u32 %v4944, 16
      %v4950 = vmul.u32 %v4946, %v4948
      %v4951 = vmul.u32 %v4946, %v4949
      %v4952 = vmul.u32 %v4947, %v4948
      %v4953 = vmul.u32 %v4947, %v4949
      %v4954 = vshll.u32 %v4951, 16
      %v4955 = vshrl.u32 %v4951, 16
      %v4956 = vshll.u32 %v4952, 16
      %v4957 = vshrl.u32 %v4952, 16
      %vm4958 = vc.u32 %v4950, %v4954
      %v4959 = vsel %vm4958, 1, 0
      %v4960 = vadd.s32 %v4950, %v4954
      %v4961 = vadd.s32 %v4953, %v4959
      %vm4962 = vc.u32 %v4960, %v4956
      %v4963 = vsel %vm4962, 1, 0
      %v4964 = vadd.s32 %v4960, %v4956
      %v4965 = vadd.s32 %v4961, %v4963
      %v4966 = vadd.s32 %v4965, %v4955
      %v4967 = vadd.s32 %v4966, %v4957
      %v4968 = vand.u32 %v4945, 65535
      %v4969 = vshrl.u32 %v4945, 16
      %v4970 = vand.u32 %v4940, 65535
      %v4971 = vshrl.u32 %v4940, 16
      %v4972 = vmul.u32 %v4968, %v4970
      %v4973 = vmul.u32 %v4968, %v4971
      %v4974 = vmul.u32 %v4969, %v4970
      %v4975 = vmul.u32 %v4969, %v4971
      %v4976 = vshll.u32 %v4973, 16
      %v4977 = vshrl.u32 %v4973, 16
      %v4978 = vshll.u32 %v4974, 16
      %v4979 = vshrl.u32 %v4974, 16
      %vm4980 = vc.u32 %v4972, %v4976
      %v4981 = vsel %vm4980, 1, 0
      %v4982 = vadd.s32 %v4972, %v4976
      %v4983 = vadd.s32 %v4975, %v4981
      %vm4984 = vc.u32 %v4982, %v4978
      %v4985 = vsel %vm4984, 1, 0
      %v4986 = vadd.s32 %v4982, %v4978
      %v4987 = vadd.s32 %v4983, %v4985
      %v4988 = vadd.s32 %v4987, %v4977
      %v4989 = vadd.s32 %v4988, %v4979
      %v4990 = vmul.u32 %v4945, %v4936
      %v4991 = vadd.s32 %v4967, %v4986
      %vm4992 = vc.u32 %v4967, %v4986
      %v4993 = vadd.s32 %v4989, 1
      %v4994 = vsel %vm4992, %v4993, %v4989
      %v4995 = vadd.s32 %v4990, %v4994
      %v4996 = vadd.s32 %v4995, 536870912
      %v4997 = vshrl.u32 %v4996, 30
      %v4998 = vshll.u32 %v4997, 30
      %v4999 = vsub.s32 %v4995, %v4998
      %vm5000 = vcmp.lt.s32.totalorder %v4999, 0
      %v5001 = vsub.s32 0, %v4999
      %v5002 = vsel %vm5000, %v5001, %v4999
      %v5003 = vclz %v5002
      %v5004 = vsub.s32 %v5003, 2
      %vm5005 = vcmp.gt.s32.totalorder 0, %v5004
      %v5006 = vsel %vm5005, 0, %v5004
      %v5007 = vsub.s32 32, %v5006
      %v5008 = vshll.u32 %v4999, %v5006
      %v5009 = vshrl.u32 %v4991, %v5007
      %v5010 = vor.u32 %v5008, %v5009
      %v5011 = vsub.s32 4294967266, %v5006
      %v5012 = vadd.s32 %v5011, 127
      %v5013 = vshll.u32 %v5012, 23
      %v5014 = vor.u32 4788187, %v5013
      %v5015 = vand.u32 2147483647, %v5014
      %v5017 = vcvt.s32.f32 %v5010
      %v5018 = vmul.f32 %v5017, %v5015
      %v5019 = vxor.u32 %v5018, 2147483648
      %v5020 = vsel %vm4899, %v5019, %v5018
      %v5021 = vsub.s32 4, %v4997
      %v5022 = vsel %vm4899, %v5021, %v4997
      %v5023 = vsel %vm4898, %v3815, %v5020
      %v5024 = vsel %vm4898, 0, %v5022
      %v5025 = vmul.f32 %v5023, %v5023
      %v5026 = vmul.f32 %v5025, -0.001358992
      %v5027 = vadd.f32 %v5026, 0.041655596
      %v5028 = vmul.f32 %v5025, %v5027
      %v5029 = vadd.f32 %v5028, -0.4999988
      %v5030 = vmul.f32 %v5025, %v5029
      %v5031 = vadd.f32 1.0, %v5030
      %v5032 = vmul.f32 %v5023, %v5023
      %v5033 = vmul.f32 %v5032, -0.00019511016
      %v5034 = vadd.f32 %v5033, 0.008332121
      %v5035 = vmul.f32 %v5032, %v5034
      %v5036 = vadd.f32 %v5035, -0.16666654
      %v5037 = vmul.f32 %v5032, %v5036
      %v5038 = vadd.f32 %v5037, 1.0
      %v5039 = vmul.f32 %v5038, %v5023
      %vm5040 = vweird.f32 %v3815
      %v5041 = vadd.s32 %v5024, 3
      %v5042 = vand.u32 %v5041, 3
      %vm5043 = vcmp.lt.s32.totalorder %v5042, 2
      %vm5044 = vcmp.eq.s32.totalorder %v5042, 0
      %v5045 = vxor.u32 %v5039, 2147483648
      %v5046 = vsel %vm5044, %v5031, %v5045
      %vm5047 = vcmp.eq.s32.totalorder %v5042, 2
      %v5048 = vxor.u32 %v5031, 2147483648
      %v5049 = vsel %vm5047, %v5048, %v5039
      %v5050 = vsel %vm5043, %v5046, %v5049
      %v5051 = vsel %vm5040, nan, %v5050
      %v5052 = vrcp.pop %v4586
      %v5053 = vmul.f32 %v4586, %v5052
      %v5054 = vsub.f32 1.0, %v5053
      %v5055 = vmul.f32 %v5052, %v5054
      %v5056 = vadd.f32 %v5052, %v5055
      %vm5057 = vweird.f32 %v4586
      %vm5058 = vweird.f32 %v5052
      %vm5059 = vmor %vm5057, %vm5058
      %v5060 = vsel %vm5059, %v5052, %v5056
      %v5061 = vand.u32 2147483647, %v4586
      %vm5062 = vcmp.eq.f32.partialorder %v5061, 8.507059e+37
      %v5063 = vand.u32 %v4586, 2147483648
      %v5064 = vor.u32 1.1754944e-38, %v5063
      %v5065 = vsel %vm5062, %v5064, %v5060
      %v5066 = vmul.f32 %v3969, %v5065
      %v5067 = vrcp.pop %v4741
      %v5068 = vmul.f32 %v4741, %v5067
      %v5069 = vsub.f32 1.0, %v5068
      %v5070 = vmul.f32 %v5067, %v5069
      %v5071 = vadd.f32 %v5067, %v5070
      %vm5072 = vweird.f32 %v4741
      %vm5073 = vweird.f32 %v5067
      %vm5074 = vmor %vm5072, %vm5073
      %v5075 = vsel %vm5074, %v5067, %v5071
      %v5076 = vand.u32 2147483647, %v4741
      %vm5077 = vcmp.eq.f32.partialorder %v5076, 8.507059e+37
      %v5078 = vand.u32 %v4741, 2147483648
      %v5079 = vor.u32 1.1754944e-38, %v5078
      %v5080 = vsel %vm5077, %v5079, %v5075
      %v5081 = vmul.f32 %v4123, %v5080
      %v5082 = vrcp.pop %v4896
      %v5083 = vmul.f32 %v4896, %v5082
      %v5084 = vsub.f32 1.0, %v5083
      %v5085 = vmul.f32 %v5082, %v5084
      %v5086 = vadd.f32 %v5082, %v5085
      %vm5087 = vweird.f32 %v4896
      %vm5088 = vweird.f32 %v5082
      %vm5089 = vmor %vm5087, %vm5088
      %v5090 = vsel %vm5089, %v5082, %v5086
      %v5091 = vand.u32 2147483647, %v4896
      %vm5092 = vcmp.eq.f32.partialorder %v5091, 8.507059e+37
      %v5093 = vand.u32 %v4896, 2147483648
      %v5094 = vor.u32 1.1754944e-38, %v5093
      %v5095 = vsel %vm5092, %v5094, %v5090
      %v5096 = vmul.f32 %v4277, %v5095
      %v5097 = vrcp.pop %v5051
      %v5098 = vmul.f32 %v5051, %v5097
      %v5099 = vsub.f32 1.0, %v5098
      %v5100 = vmul.f32 %v5097, %v5099
      %v5101 = vadd.f32 %v5097, %v5100
      %vm5102 = vweird.f32 %v5051
      %vm5103 = vweird.f32 %v5097
      %vm5104 = vmor %vm5102, %vm5103
      %v5105 = vsel %vm5104, %v5097, %v5101
      %v5106 = vand.u32 2147483647, %v5051
      %vm5107 = vcmp.eq.f32.partialorder %v5106, 8.507059e+37
      %v5108 = vand.u32 %v5051, 2147483648
      %v5109 = vor.u32 1.1754944e-38, %v5108
      %v5110 = vsel %vm5107, %v5109, %v5105
      %v5111 = vmul.f32 %v4431, %v5110
      %v5112 = vmul.f32 %v3804, 63.0
      %v5113 = vmul.f32 %v3805, 63.0
      %v5114 = vmul.f32 %v3806, 63.0
      %v5115 = vmul.f32 %v3807, 63.0
      %5117 = vset.pattern.permute.xlu0 2
      %5118 = vperm.xlu0 %5117, %v3804
      %v5119 = vpop.permute.xlu0 %5118
      %5122 = vset.pattern.permute.xlu0 2
      %5123 = vperm.xlu0 %5122, %v3805
      %v5124 = vpop.permute.xlu0 %5123
      %5127 = vset.pattern.permute.xlu0 2
      %5128 = vperm.xlu0 %5127, %v3806
      %v5129 = vpop.permute.xlu0 %5128
      %5132 = vset.pattern.permute.xlu0 2
      %5133 = vperm.xlu0 %5132, %v3807
      %v5134 = vpop.permute.xlu0 %5133
      %v5136 = vsub.f32 %v2751, %v5119
      %v5137 = vsub.f32 %v2751, %v5124
      %v5138 = vsub.f32 %v2751, %v5129
      %v5139 = vsub.f32 %v2751, %v5134
      %v5140 = vmul.f32 %v5136, 32.0
      %v5141 = vmul.f32 %v5137, 32.0
      %v5142 = vmul.f32 %v5138, 32.0
      %v5143 = vmul.f32 %v5139, 32.0
      %5145 = vset.pattern.permute.xlu0 4
      %5146 = vperm.xlu0 %5145, %v5066
      %v5147 = vpop.permute.xlu0 %5146
      %5150 = vset.pattern.permute.xlu0 4
      %5151 = vperm.xlu0 %5150, %v5081
      %v5152 = vpop.permute.xlu0 %5151
      %5155 = vset.pattern.permute.xlu0 4
      %5156 = vperm.xlu0 %5155, %v5096
      %v5157 = vpop.permute.xlu0 %5156
      %5160 = vset.pattern.permute.xlu0 4
      %5161 = vperm.xlu0 %5160, %v5111
      %v5162 = vpop.permute.xlu0 %5161
      %v5164 = vmul.f32 %v5140, %v5147
      %v5165 = vmul.f32 %v5141, %v5152
      %v5166 = vmul.f32 %v5142, %v5157
      %v5167 = vmul.f32 %v5143, %v5162
      %5169 = vset.pattern.permute.xlu0 3
      %5170 = vperm.xlu0 %5169, %v5112
      %v5171 = vpop.permute.xlu0 %5170
      %5174 = vset.pattern.permute.xlu0 3
      %5175 = vperm.xlu0 %5174, %v5113
      %v5176 = vpop.permute.xlu0 %5175
      %5179 = vset.pattern.permute.xlu0 3
      %5180 = vperm.xlu0 %5179, %v5114
      %v5181 = vpop.permute.xlu0 %5180
      %5184 = vset.pattern.permute.xlu0 3
      %5185 = vperm.xlu0 %5184, %v5115
      %v5186 = vpop.permute.xlu0 %5185
      %v5188 = vadd.f32 %v5171, %v5164
      %v5189 = vadd.f32 %v5176, %v5165
      %v5190 = vadd.f32 %v5181, %v5166
      %v5191 = vadd.f32 %v5186, %v5167
      %v5192 = vmul.f32 %v5188, 0.015873017
      %v5193 = vmul.f32 %v5189, 0.015873017
      %v5194 = vmul.f32 %v5190, 0.015873017
      %v5195 = vmul.f32 %v5191, 0.015873017
      %v5196 = vld [vmem:[%s394] sm:$0xf]
      %v5197 = vld [vmem:[%s394 + $0x4] sm:$0xf]
      %v5198 = vld [vmem:[%s394 + $0x8] sm:$0xf]
      %v5199 = vld [vmem:[%s394 + $0xc] sm:$0xf]
      %v5200 = vld [vmem:[%s394 + $0x10] sm:$0xf]
      %v5201 = vld [vmem:[%s394 + $0x14] sm:$0xf]
      %v5202 = vld [vmem:[%s394 + $0x18] sm:$0xf]
      %v5203 = vld [vmem:[%s394 + $0x1c] sm:$0xf]
      %v5204 = vld [vmem:[%s394 + $0x20] sm:$0xf]
      %v5205 = vld [vmem:[%s394 + $0x24] sm:$0xf]
      %v5206 = vld [vmem:[%s394 + $0x28] sm:$0xf]
      %v5207 = vld [vmem:[%s394 + $0x2c] sm:$0xf]
      %v5208 = vld [vmem:[%s394 + $0x30] sm:$0xf]
      %v5209 = vld [vmem:[%s394 + $0x34] sm:$0xf]
      %v5210 = vld [vmem:[%s394 + $0x38] sm:$0xf]
      %v5211 = vld [vmem:[%s394 + $0x3c] sm:$0xf]
      %v5212 = vld [vmem:[%s379] sm:$0xff]
      %5217 = vrot.lane.b32.xlu0 %v5192, 3
      %v5218 = vpop.permute.xlu0 %5217
      %5219 = vrot.lane.b32.xlu0 %v5193, 3
      %v5220 = vpop.permute.xlu0 %5219
      %5221 = vrot.lane.b32.xlu0 %v5194, 3
      %v5222 = vpop.permute.xlu0 %5221
      %5223 = vrot.lane.b32.xlu0 %v5195, 3
      %v5224 = vpop.permute.xlu0 %5223
      %5229 = vrot.lane.b32.xlu0 %v5192, 5
      %v5230 = vpop.permute.xlu0 %5229
      %5231 = vrot.lane.b32.xlu0 %v5193, 5
      %v5232 = vpop.permute.xlu0 %5231
      %5233 = vrot.lane.b32.xlu0 %v5194, 5
      %v5234 = vpop.permute.xlu0 %5233
      %5235 = vrot.lane.b32.xlu0 %v5195, 5
      %v5236 = vpop.permute.xlu0 %5235
      %5241 = vrot.lane.b32.xlu0 %v5192, 7
      %v5242 = vpop.permute.xlu0 %5241
      %5243 = vrot.lane.b32.xlu0 %v5193, 7
      %v5244 = vpop.permute.xlu0 %5243
      %5245 = vrot.lane.b32.xlu0 %v5194, 7
      %v5246 = vpop.permute.xlu0 %5245
      %5247 = vrot.lane.b32.xlu0 %v5195, 7
      %v5248 = vpop.permute.xlu0 %5247
      %v5253 = vmul.f32 %v5192, 15.0
      %v5254 = vmul.f32 %v5193, 15.0
      %v5255 = vmul.f32 %v5194, 15.0
      %v5256 = vmul.f32 %v5195, 15.0
      %v5257 = vmul.f32 %v5218, 15.0
      %v5258 = vmul.f32 %v5220, 15.0
      %v5259 = vmul.f32 %v5222, 15.0
      %v5260 = vmul.f32 %v5224, 15.0
      %v5261 = vmul.f32 %v5230, 15.0
      %v5262 = vmul.f32 %v5232, 15.0
      %v5263 = vmul.f32 %v5234, 15.0
      %v5264 = vmul.f32 %v5236, 15.0
      %v5265 = vmul.f32 %v5242, 15.0
      %v5266 = vmul.f32 %v5244, 15.0
      %v5267 = vmul.f32 %v5246, 15.0
      %v5268 = vmul.f32 %v5248, 15.0
      %5270 = vset.pattern.permute.xlu0 7
      %5271 = vperm.xlu0 %5270, %v5253
      %v5272 = vpop.permute.xlu0 %5271
      %5275 = vset.pattern.permute.xlu0 7
      %5276 = vperm.xlu0 %5275, %v5254
      %v5277 = vpop.permute.xlu0 %5276
      %5280 = vset.pattern.permute.xlu0 7
      %5281 = vperm.xlu0 %5280, %v5255
      %v5282 = vpop.permute.xlu0 %5281
      %5285 = vset.pattern.permute.xlu0 7
      %5286 = vperm.xlu0 %5285, %v5256
      %v5287 = vpop.permute.xlu0 %5286
      %5290 = vset.pattern.permute.xlu0 7
      %5291 = vperm.xlu0 %5290, %v5257
      %v5292 = vpop.permute.xlu0 %5291
      %5295 = vset.pattern.permute.xlu0 7
      %5296 = vperm.xlu0 %5295, %v5258
      %v5297 = vpop.permute.xlu0 %5296
      %5300 = vset.pattern.permute.xlu0 7
      %5301 = vperm.xlu0 %5300, %v5259
      %v5302 = vpop.permute.xlu0 %5301
      %5305 = vset.pattern.permute.xlu0 7
      %5306 = vperm.xlu0 %5305, %v5260
      %v5307 = vpop.permute.xlu0 %5306
      %5310 = vset.pattern.permute.xlu0 7
      %5311 = vperm.xlu0 %5310, %v5261
      %v5312 = vpop.permute.xlu0 %5311
      %5315 = vset.pattern.permute.xlu0 7
      %5316 = vperm.xlu0 %5315, %v5262
      %v5317 = vpop.permute.xlu0 %5316
      %5320 = vset.pattern.permute.xlu0 7
      %5321 = vperm.xlu0 %5320, %v5263
      %v5322 = vpop.permute.xlu0 %5321
      %5325 = vset.pattern.permute.xlu0 7
      %5326 = vperm.xlu0 %5325, %v5264
      %v5327 = vpop.permute.xlu0 %5326
      %5330 = vset.pattern.permute.xlu0 7
      %5331 = vperm.xlu0 %5330, %v5265
      %v5332 = vpop.permute.xlu0 %5331
      %5335 = vset.pattern.permute.xlu0 7
      %5336 = vperm.xlu0 %5335, %v5266
      %v5337 = vpop.permute.xlu0 %5336
      %5340 = vset.pattern.permute.xlu0 7
      %5341 = vperm.xlu0 %5340, %v5267
      %v5342 = vpop.permute.xlu0 %5341
      %5345 = vset.pattern.permute.xlu0 7
      %5346 = vperm.xlu0 %5345, %v5268
      %v5347 = vpop.permute.xlu0 %5346
      %v5349 = vsub.f32 %v5272, %v580
      %v5350 = vsub.f32 %v5277, %v580
      %v5351 = vsub.f32 %v5282, %v580
      %v5352 = vsub.f32 %v5287, %v580
      %v5353 = vsub.f32 %v5292, %v580
      %v5354 = vsub.f32 %v5297, %v580
      %v5355 = vsub.f32 %v5302, %v580
      %v5356 = vsub.f32 %v5307, %v580
      %v5357 = vsub.f32 %v5312, %v580
      %v5358 = vsub.f32 %v5317, %v580
      %v5359 = vsub.f32 %v5322, %v580
      %v5360 = vsub.f32 %v5327, %v580
      %v5361 = vsub.f32 %v5332, %v580
      %v5362 = vsub.f32 %v5337, %v580
      %v5363 = vsub.f32 %v5342, %v580
      %v5364 = vsub.f32 %v5347, %v580
      %v5365 = vand.u32 2147483647, %v5349
      %v5366 = vand.u32 2147483647, %v5350
      %v5367 = vand.u32 2147483647, %v5351
      %v5368 = vand.u32 2147483647, %v5352
      %v5369 = vand.u32 2147483647, %v5353
      %v5370 = vand.u32 2147483647, %v5354
      %v5371 = vand.u32 2147483647, %v5355
      %v5372 = vand.u32 2147483647, %v5356
      %v5373 = vand.u32 2147483647, %v5357
      %v5374 = vand.u32 2147483647, %v5358
      %v5375 = vand.u32 2147483647, %v5359
      %v5376 = vand.u32 2147483647, %v5360
      %v5377 = vand.u32 2147483647, %v5361
      %v5378 = vand.u32 2147483647, %v5362
      %v5379 = vand.u32 2147483647, %v5363
      %v5380 = vand.u32 2147483647, %v5364
      %v5381 = vsub.f32 1.0, %v5365
      %v5382 = vsub.f32 1.0, %v5366
      %v5383 = vsub.f32 1.0, %v5367
      %v5384 = vsub.f32 1.0, %v5368
      %v5385 = vsub.f32 1.0, %v5369
      %v5386 = vsub.f32 1.0, %v5370
      %v5387 = vsub.f32 1.0, %v5371
      %v5388 = vsub.f32 1.0, %v5372
      %v5389 = vsub.f32 1.0, %v5373
      %v5390 = vsub.f32 1.0, %v5374
      %v5391 = vsub.f32 1.0, %v5375
      %v5392 = vsub.f32 1.0, %v5376
      %v5393 = vsub.f32 1.0, %v5377
      %v5394 = vsub.f32 1.0, %v5378
      %v5395 = vsub.f32 1.0, %v5379
      %v5396 = vsub.f32 1.0, %v5380
      %v5397 = vmax.f32 %v5381, 0.0
      %v5398 = vmax.f32 %v5382, 0.0
      %v5399 = vmax.f32 %v5383, 0.0
      %v5400 = vmax.f32 %v5384, 0.0
      %v5401 = vmax.f32 %v5385, 0.0
      %v5402 = vmax.f32 %v5386, 0.0
      %v5403 = vmax.f32 %v5387, 0.0
      %v5404 = vmax.f32 %v5388, 0.0
      %v5405 = vmax.f32 %v5389, 0.0
      %v5406 = vmax.f32 %v5390, 0.0
      %v5407 = vmax.f32 %v5391, 0.0
      %v5408 = vmax.f32 %v5392, 0.0
      %v5409 = vmax.f32 %v5393, 0.0
      %v5410 = vmax.f32 %v5394, 0.0
      %v5411 = vmax.f32 %v5395, 0.0
      %v5412 = vmax.f32 %v5396, 0.0
      %v5413 = vpack.c.bf16 %v5398, %v5397
      %v5414 = vpack.c.bf16 %v5400, %v5399
      %v5415 = vpack.c.bf16 %v5402, %v5401
      %v5416 = vpack.c.bf16 %v5404, %v5403
      %v5417 = vpack.c.bf16 %v5406, %v5405
      %v5418 = vpack.c.bf16 %v5408, %v5407
      %v5419 = vpack.c.bf16 %v5410, %v5409
      %v5420 = vpack.c.bf16 %v5412, %v5411
      %v5437 = vunpack.c.l.b16 %v5196
      %v5438 = vunpack.c.l.b16 %v5197
      %v5439 = vunpack.c.l.b16 %v5198
      %v5440 = vunpack.c.l.b16 %v5199
      %v5441 = vunpack.c.l.b16 %v5200
      %v5442 = vunpack.c.l.b16 %v5201
      %v5443 = vunpack.c.l.b16 %v5202
      %v5444 = vunpack.c.l.b16 %v5203
      %v5445 = vunpack.c.l.b16 %v5204
      %v5446 = vunpack.c.l.b16 %v5205
      %v5447 = vunpack.c.l.b16 %v5206
      %v5448 = vunpack.c.l.b16 %v5207
      %v5449 = vunpack.c.l.b16 %v5208
      %v5450 = vunpack.c.l.b16 %v5209
      %v5451 = vunpack.c.l.b16 %v5210
      %v5452 = vunpack.c.l.b16 %v5211
      %v5453 = vpack.c.b16 %v5438, %v5437
      %v5454 = vpack.c.b16 %v5440, %v5439
      %v5455 = vpack.c.b16 %v5442, %v5441
      %v5456 = vpack.c.b16 %v5444, %v5443
      %v5457 = vpack.c.b16 %v5446, %v5445
      %v5458 = vpack.c.b16 %v5448, %v5447
      %v5459 = vpack.c.b16 %v5450, %v5449
      %v5460 = vpack.c.b16 %v5452, %v5451
      %v5462 = vsel %vm1172, %v5413, 0
      %v5465 = vsel %vm1172, %v5414, 0
      %v5468 = vsel %vm1172, %v5415, 0
      %v5471 = vsel %vm1172, %v5416, 0
      %v5474 = vsel %vm1172, %v5417, 0
      %v5477 = vsel %vm1172, %v5418, 0
      %v5480 = vsel %vm1172, %v5419, 0
      %v5483 = vsel %vm1172, %v5420, 0
      %v5486 = vsel %vm1172, %v5453, 0
      %v5489 = vsel %vm1172, %v5454, 0
      %v5492 = vsel %vm1172, %v5455, 0
      %v5495 = vsel %vm1172, %v5456, 0
      %v5498 = vsel %vm1172, %v5457, 0
      %v5501 = vsel %vm1172, %v5458, 0
      %v5504 = vsel %vm1172, %v5459, 0
      %v5507 = vsel %vm1172, %v5460, 0
      %5509 = vmatpush.bf16.xpose.msra.mxu0 %v5507
      %5510 = vmatpush.bf16.xpose.msra.mxu0 %v5504
      %5511 = vmatpush.bf16.xpose.msra.mxu0 %v5501
      %5512 = vmatpush.bf16.xpose.msra.mxu0 %v5498
      %5513 = vmatpush.bf16.xpose.msra.mxu0 %v5495
      %5514 = vmatpush.bf16.xpose.msra.mxu0 %v5492
      %5515 = vmatpush.bf16.xpose.msra.mxu0 %v5489
      %5516 = vmatpush.bf16.xpose.msra.mxu0 %v5486
      %5517 = vmatmul.bf16.gmra.mxu0 %v5462
      %v5518 = vpop.f32.mrf.mxu0
      %v5519 = vadd.f32 0.0, %v5518
      %v5520 = vpop.f32.mrf.mxu0
      %v5521 = vadd.f32 0.0, %v5520
      %5522 = vmatmul.bf16.gmra.mxu0 %v5465
      %v5523 = vpop.f32.mrf.mxu0
      %v5524 = vadd.f32 0.0, %v5523
      %v5525 = vpop.f32.mrf.mxu0
      %v5526 = vadd.f32 0.0, %v5525
      %5527 = vmatmul.bf16.gmra.mxu0 %v5468
      %v5528 = vpop.f32.mrf.mxu0
      %v5529 = vadd.f32 0.0, %v5528
      %v5530 = vpop.f32.mrf.mxu0
      %v5531 = vadd.f32 0.0, %v5530
      %5532 = vmatmul.bf16.gmra.mxu0 %v5471
      %v5533 = vpop.f32.mrf.mxu0
      %v5534 = vadd.f32 0.0, %v5533
      %v5535 = vpop.f32.mrf.mxu0
      %v5536 = vadd.f32 0.0, %v5535
      %5537 = vmatmul.bf16.gmra.mxu0 %v5474
      %v5538 = vpop.f32.mrf.mxu0
      %v5539 = vadd.f32 0.0, %v5538
      %v5540 = vpop.f32.mrf.mxu0
      %v5541 = vadd.f32 0.0, %v5540
      %5542 = vmatmul.bf16.gmra.mxu0 %v5477
      %v5543 = vpop.f32.mrf.mxu0
      %v5544 = vadd.f32 0.0, %v5543
      %v5545 = vpop.f32.mrf.mxu0
      %v5546 = vadd.f32 0.0, %v5545
      %5547 = vmatmul.bf16.gmra.mxu0 %v5480
      %v5548 = vpop.f32.mrf.mxu0
      %v5549 = vadd.f32 0.0, %v5548
      %v5550 = vpop.f32.mrf.mxu0
      %v5551 = vadd.f32 0.0, %v5550
      %5552 = vmatmul.bf16.gmra.mxu0 %v5483
      %v5553 = vpop.f32.mrf.mxu0
      %v5554 = vadd.f32 0.0, %v5553
      %v5555 = vpop.f32.mrf.mxu0
      %v5556 = vadd.f32 0.0, %v5555
      %5557 = vdwg.mxu0
      %v5558 = vld [vmem:[%s7 + $0xc0] sm:$0xf]
      %v5559 = vld [vmem:[%s7 + $0xc4] sm:$0xf]
      %v5560 = vld [vmem:[%s7 + $0xc8] sm:$0xf]
      %v5561 = vld [vmem:[%s7 + $0xcc] sm:$0xf]
      %v5562 = vld [vmem:[%s7 + $0xd0] sm:$0xf]
      %v5563 = vld [vmem:[%s7 + $0xd4] sm:$0xf]
      %v5564 = vld [vmem:[%s7 + $0xd8] sm:$0xf]
      %v5565 = vld [vmem:[%s7 + $0xdc] sm:$0xf]
      %v5566 = vld [vmem:[%s7 + $0xe0] sm:$0xf]
      %v5567 = vld [vmem:[%s7 + $0xe4] sm:$0xf]
      %v5568 = vld [vmem:[%s7 + $0xe8] sm:$0xf]
      %v5569 = vld [vmem:[%s7 + $0xec] sm:$0xf]
      %v5570 = vld [vmem:[%s7 + $0xf0] sm:$0xf]
      %v5571 = vld [vmem:[%s7 + $0xf4] sm:$0xf]
      %v5572 = vld [vmem:[%s7 + $0xf8] sm:$0xf]
      %v5573 = vld [vmem:[%s7 + $0xfc] sm:$0xf]
      %v5574 = vpack.c.bf16 %v5521, %v5519
      %v5575 = vpack.c.bf16 %v5526, %v5524
      %v5592 = vunpack.c.l.b16 %v5558
      %v5593 = vunpack.c.l.b16 %v5559
      %v5594 = vunpack.c.l.b16 %v5560
      %v5595 = vunpack.c.l.b16 %v5561
      %v5596 = vunpack.c.l.b16 %v5562
      %v5597 = vunpack.c.l.b16 %v5563
      %v5598 = vunpack.c.l.b16 %v5564
      %v5599 = vunpack.c.l.b16 %v5565
      %v5600 = vunpack.c.l.b16 %v5566
      %v5601 = vunpack.c.l.b16 %v5567
      %v5602 = vunpack.c.l.b16 %v5568
      %v5603 = vunpack.c.l.b16 %v5569
      %v5604 = vunpack.c.l.b16 %v5570
      %v5605 = vunpack.c.l.b16 %v5571
      %v5606 = vunpack.c.l.b16 %v5572
      %v5607 = vunpack.c.l.b16 %v5573
      %v5608 = vpack.c.b16 %v5593, %v5592
      %v5609 = vpack.c.b16 %v5595, %v5594
      %v5610 = vpack.c.b16 %v5597, %v5596
      %v5611 = vpack.c.b16 %v5599, %v5598
      %v5612 = vpack.c.b16 %v5601, %v5600
      %v5613 = vpack.c.b16 %v5603, %v5602
      %v5614 = vpack.c.b16 %v5605, %v5604
      %v5615 = vpack.c.b16 %v5607, %v5606
      %5624 = vmatpush.bf16.msra.mxu0 %v5615
      %5625 = vmatpush.bf16.msra.mxu0 %v5614
      %5626 = vmatpush.bf16.msra.mxu0 %v5613
      %5627 = vmatpush.bf16.msra.mxu0 %v5612
      %5628 = vmatpush.bf16.msra.mxu0 %v5611
      %5629 = vmatpush.bf16.msra.mxu0 %v5610
      %5630 = vmatpush.bf16.msra.mxu0 %v5609
      %5631 = vmatpush.bf16.msra.mxu0 %v5608
      %5632 = vmatmul.bf16.gmra.mxu0 %v5574
      %v5633 = vpop.f32.mrf.mxu0
      %v5634 = vadd.f32 0.0, %v5633
      %v5635 = vpop.f32.mrf.mxu0
      %v5636 = vadd.f32 0.0, %v5635
      %5637 = vmatmul.bf16.gmra.mxu0 %v5575
      %v5638 = vpop.f32.mrf.mxu0
      %v5639 = vadd.f32 0.0, %v5638
      %v5640 = vpop.f32.mrf.mxu0
      %v5641 = vadd.f32 0.0, %v5640
      %5642 = vdwg.mxu0
      %v5643 = vadd.f32 %v787, %v5634
      %v5644 = vadd.f32 %v787, %v5636
      %v5645 = vadd.f32 %v787, %v5639
      %v5646 = vadd.f32 %v787, %v5641
      %v5647 = vld [vmem:[%s7 + $0x100] sm:$0xf]
      %v5648 = vld [vmem:[%s7 + $0x104] sm:$0xf]
      %v5649 = vld [vmem:[%s7 + $0x108] sm:$0xf]
      %v5650 = vld [vmem:[%s7 + $0x10c] sm:$0xf]
      %v5651 = vld [vmem:[%s7 + $0x110] sm:$0xf]
      %v5652 = vld [vmem:[%s7 + $0x114] sm:$0xf]
      %v5653 = vld [vmem:[%s7 + $0x118] sm:$0xf]
      %v5654 = vld [vmem:[%s7 + $0x11c] sm:$0xf]
      %v5655 = vld [vmem:[%s7 + $0x120] sm:$0xf]
      %v5656 = vld [vmem:[%s7 + $0x124] sm:$0xf]
      %v5657 = vld [vmem:[%s7 + $0x128] sm:$0xf]
      %v5658 = vld [vmem:[%s7 + $0x12c] sm:$0xf]
      %v5659 = vld [vmem:[%s7 + $0x130] sm:$0xf]
      %v5660 = vld [vmem:[%s7 + $0x134] sm:$0xf]
      %v5661 = vld [vmem:[%s7 + $0x138] sm:$0xf]
      %v5662 = vld [vmem:[%s7 + $0x13c] sm:$0xf]
      %v5663 = vpack.c.bf16 %v5531, %v5529
      %v5664 = vpack.c.bf16 %v5536, %v5534
      %v5681 = vunpack.c.l.b16 %v5647
      %v5682 = vunpack.c.l.b16 %v5648
      %v5683 = vunpack.c.l.b16 %v5649
      %v5684 = vunpack.c.l.b16 %v5650
      %v5685 = vunpack.c.l.b16 %v5651
      %v5686 = vunpack.c.l.b16 %v5652
      %v5687 = vunpack.c.l.b16 %v5653
      %v5688 = vunpack.c.l.b16 %v5654
      %v5689 = vunpack.c.l.b16 %v5655
      %v5690 = vunpack.c.l.b16 %v5656
      %v5691 = vunpack.c.l.b16 %v5657
      %v5692 = vunpack.c.l.b16 %v5658
      %v5693 = vunpack.c.l.b16 %v5659
      %v5694 = vunpack.c.l.b16 %v5660
      %v5695 = vunpack.c.l.b16 %v5661
      %v5696 = vunpack.c.l.b16 %v5662
      %v5697 = vpack.c.b16 %v5682, %v5681
      %v5698 = vpack.c.b16 %v5684, %v5683
      %v5699 = vpack.c.b16 %v5686, %v5685
      %v5700 = vpack.c.b16 %v5688, %v5687
      %v5701 = vpack.c.b16 %v5690, %v5689
      %v5702 = vpack.c.b16 %v5692, %v5691
      %v5703 = vpack.c.b16 %v5694, %v5693
      %v5704 = vpack.c.b16 %v5696, %v5695
      %5713 = vmatpush.bf16.msra.mxu0 %v5704
      %5714 = vmatpush.bf16.msra.mxu0 %v5703
      %5715 = vmatpush.bf16.msra.mxu0 %v5702
      %5716 = vmatpush.bf16.msra.mxu0 %v5701
      %5717 = vmatpush.bf16.msra.mxu0 %v5700
      %5718 = vmatpush.bf16.msra.mxu0 %v5699
      %5719 = vmatpush.bf16.msra.mxu0 %v5698
      %5720 = vmatpush.bf16.msra.mxu0 %v5697
      %5721 = vmatmul.bf16.gmra.mxu0 %v5663
      %v5722 = vpop.f32.mrf.mxu0
      %v5723 = vadd.f32 0.0, %v5722
      %v5724 = vpop.f32.mrf.mxu0
      %v5725 = vadd.f32 0.0, %v5724
      %5726 = vmatmul.bf16.gmra.mxu0 %v5664
      %v5727 = vpop.f32.mrf.mxu0
      %v5728 = vadd.f32 0.0, %v5727
      %v5729 = vpop.f32.mrf.mxu0
      %v5730 = vadd.f32 0.0, %v5729
      %5731 = vdwg.mxu0
      %v5732 = vadd.f32 %v5643, %v5723
      %v5733 = vadd.f32 %v5644, %v5725
      %v5734 = vadd.f32 %v5645, %v5728
      %v5735 = vadd.f32 %v5646, %v5730
      %v5736 = vld [vmem:[%s7 + $0x140] sm:$0xf]
      %v5737 = vld [vmem:[%s7 + $0x144] sm:$0xf]
      %v5738 = vld [vmem:[%s7 + $0x148] sm:$0xf]
      %v5739 = vld [vmem:[%s7 + $0x14c] sm:$0xf]
      %v5740 = vld [vmem:[%s7 + $0x150] sm:$0xf]
      %v5741 = vld [vmem:[%s7 + $0x154] sm:$0xf]
      %v5742 = vld [vmem:[%s7 + $0x158] sm:$0xf]
      %v5743 = vld [vmem:[%s7 + $0x15c] sm:$0xf]
      %v5744 = vld [vmem:[%s7 + $0x160] sm:$0xf]
      %v5745 = vld [vmem:[%s7 + $0x164] sm:$0xf]
      %v5746 = vld [vmem:[%s7 + $0x168] sm:$0xf]
      %v5747 = vld [vmem:[%s7 + $0x16c] sm:$0xf]
      %v5748 = vld [vmem:[%s7 + $0x170] sm:$0xf]
      %v5749 = vld [vmem:[%s7 + $0x174] sm:$0xf]
      %v5750 = vld [vmem:[%s7 + $0x178] sm:$0xf]
      %v5751 = vld [vmem:[%s7 + $0x17c] sm:$0xf]
      %v5752 = vpack.c.bf16 %v5541, %v5539
      %v5753 = vpack.c.bf16 %v5546, %v5544
      %v5770 = vunpack.c.l.b16 %v5736
      %v5771 = vunpack.c.l.b16 %v5737
      %v5772 = vunpack.c.l.b16 %v5738
      %v5773 = vunpack.c.l.b16 %v5739
      %v5774 = vunpack.c.l.b16 %v5740
      %v5775 = vunpack.c.l.b16 %v5741
      %v5776 = vunpack.c.l.b16 %v5742
      %v5777 = vunpack.c.l.b16 %v5743
      %v5778 = vunpack.c.l.b16 %v5744
      %v5779 = vunpack.c.l.b16 %v5745
      %v5780 = vunpack.c.l.b16 %v5746
      %v5781 = vunpack.c.l.b16 %v5747
      %v5782 = vunpack.c.l.b16 %v5748
      %v5783 = vunpack.c.l.b16 %v5749
      %v5784 = vunpack.c.l.b16 %v5750
      %v5785 = vunpack.c.l.b16 %v5751
      %v5786 = vpack.c.b16 %v5771, %v5770
      %v5787 = vpack.c.b16 %v5773, %v5772
      %v5788 = vpack.c.b16 %v5775, %v5774
      %v5789 = vpack.c.b16 %v5777, %v5776
      %v5790 = vpack.c.b16 %v5779, %v5778
      %v5791 = vpack.c.b16 %v5781, %v5780
      %v5792 = vpack.c.b16 %v5783, %v5782
      %v5793 = vpack.c.b16 %v5785, %v5784
      %5802 = vmatpush.bf16.msra.mxu0 %v5793
      %5803 = vmatpush.bf16.msra.mxu0 %v5792
      %5804 = vmatpush.bf16.msra.mxu0 %v5791
      %5805 = vmatpush.bf16.msra.mxu0 %v5790
      %5806 = vmatpush.bf16.msra.mxu0 %v5789
      %5807 = vmatpush.bf16.msra.mxu0 %v5788
      %5808 = vmatpush.bf16.msra.mxu0 %v5787
      %5809 = vmatpush.bf16.msra.mxu0 %v5786
      %5810 = vmatmul.bf16.gmra.mxu0 %v5752
      %v5811 = vpop.f32.mrf.mxu0
      %v5812 = vadd.f32 0.0, %v5811
      %v5813 = vpop.f32.mrf.mxu0
      %v5814 = vadd.f32 0.0, %v5813
      %5815 = vmatmul.bf16.gmra.mxu0 %v5753
      %v5816 = vpop.f32.mrf.mxu0
      %v5817 = vadd.f32 0.0, %v5816
      %v5818 = vpop.f32.mrf.mxu0
      %v5819 = vadd.f32 0.0, %v5818
      %5820 = vdwg.mxu0
      %v5821 = vadd.f32 %v5732, %v5812
      %v5822 = vadd.f32 %v5733, %v5814
      %v5823 = vadd.f32 %v5734, %v5817
      %v5824 = vadd.f32 %v5735, %v5819
      %v5825 = vld [vmem:[%s7 + $0x180] sm:$0xf]
      %v5826 = vld [vmem:[%s7 + $0x184] sm:$0xf]
      %v5827 = vld [vmem:[%s7 + $0x188] sm:$0xf]
      %v5828 = vld [vmem:[%s7 + $0x18c] sm:$0xf]
      %v5829 = vld [vmem:[%s7 + $0x190] sm:$0xf]
      %v5830 = vld [vmem:[%s7 + $0x194] sm:$0xf]
      %v5831 = vld [vmem:[%s7 + $0x198] sm:$0xf]
      %v5832 = vld [vmem:[%s7 + $0x19c] sm:$0xf]
      %v5833 = vld [vmem:[%s7 + $0x1a0] sm:$0xf]
      %v5834 = vld [vmem:[%s7 + $0x1a4] sm:$0xf]
      %v5835 = vld [vmem:[%s7 + $0x1a8] sm:$0xf]
      %v5836 = vld [vmem:[%s7 + $0x1ac] sm:$0xf]
      %v5837 = vld [vmem:[%s7 + $0x1b0] sm:$0xf]
      %v5838 = vld [vmem:[%s7 + $0x1b4] sm:$0xf]
      %v5839 = vld [vmem:[%s7 + $0x1b8] sm:$0xf]
      %v5840 = vld [vmem:[%s7 + $0x1bc] sm:$0xf]
      %v5841 = vpack.c.bf16 %v5551, %v5549
      %v5842 = vpack.c.bf16 %v5556, %v5554
      %v5859 = vunpack.c.l.b16 %v5825
      %v5860 = vunpack.c.l.b16 %v5826
      %v5861 = vunpack.c.l.b16 %v5827
      %v5862 = vunpack.c.l.b16 %v5828
      %v5863 = vunpack.c.l.b16 %v5829
      %v5864 = vunpack.c.l.b16 %v5830
      %v5865 = vunpack.c.l.b16 %v5831
      %v5866 = vunpack.c.l.b16 %v5832
      %v5867 = vunpack.c.l.b16 %v5833
      %v5868 = vunpack.c.l.b16 %v5834
      %v5869 = vunpack.c.l.b16 %v5835
      %v5870 = vunpack.c.l.b16 %v5836
      %v5871 = vunpack.c.l.b16 %v5837
      %v5872 = vunpack.c.l.b16 %v5838
      %v5873 = vunpack.c.l.b16 %v5839
      %v5874 = vunpack.c.l.b16 %v5840
      %v5875 = vpack.c.b16 %v5860, %v5859
      %v5876 = vpack.c.b16 %v5862, %v5861
      %v5877 = vpack.c.b16 %v5864, %v5863
      %v5878 = vpack.c.b16 %v5866, %v5865
      %v5879 = vpack.c.b16 %v5868, %v5867
      %v5880 = vpack.c.b16 %v5870, %v5869
      %v5881 = vpack.c.b16 %v5872, %v5871
      %v5882 = vpack.c.b16 %v5874, %v5873
      %5891 = vmatpush.bf16.msra.mxu0 %v5882
      %5892 = vmatpush.bf16.msra.mxu0 %v5881
      %5893 = vmatpush.bf16.msra.mxu0 %v5880
      %5894 = vmatpush.bf16.msra.mxu0 %v5879
      %5895 = vmatpush.bf16.msra.mxu0 %v5878
      %5896 = vmatpush.bf16.msra.mxu0 %v5877
      %5897 = vmatpush.bf16.msra.mxu0 %v5876
      %5898 = vmatpush.bf16.msra.mxu0 %v5875
      %5899 = vmatmul.bf16.gmra.mxu0 %v5841
      %v5900 = vpop.f32.mrf.mxu0
      %v5901 = vadd.f32 0.0, %v5900
      %v5902 = vpop.f32.mrf.mxu0
      %v5903 = vadd.f32 0.0, %v5902
      %5904 = vmatmul.bf16.gmra.mxu0 %v5842
      %v5905 = vpop.f32.mrf.mxu0
      %v5906 = vadd.f32 0.0, %v5905
      %v5907 = vpop.f32.mrf.mxu0
      %v5908 = vadd.f32 0.0, %v5907
      %5909 = vdwg.mxu0
      %v5910 = vadd.f32 %v5821, %v5901
      %v5911 = vadd.f32 %v5822, %v5903
      %v5912 = vadd.f32 %v5823, %v5906
      %v5913 = vadd.f32 %v5824, %v5908
      %v5914 = vsel %vm933, %v5910, 0.0
      %5915 = vadd.xlane.f32.xlu0 %v5914
      %v5916 = vpop.xlane.xlu0 %5915
      %v5917 = vsel %vm933, %v5911, 0.0
      %5918 = vadd.xlane.f32.xlu0 %v5917
      %v5919 = vpop.xlane.xlu0 %5918
      %v5920 = vsel %vm933, %v5912, 0.0
      %5921 = vadd.xlane.f32.xlu0 %v5920
      %v5922 = vpop.xlane.xlu0 %5921
      %v5923 = vsel %vm933, %v5913, 0.0
      %5924 = vadd.xlane.f32.xlu0 %v5923
      %v5925 = vpop.xlane.xlu0 %5924
      %v5926 = vmul.f32 %v5916, %v952
      %v5927 = vmul.f32 %v5919, %v952
      %v5928 = vmul.f32 %v5922, %v952
      %v5929 = vmul.f32 %v5925, %v952
      %v5930 = vmul.f32 %v5910, %v5910
      %v5931 = vmul.f32 %v5911, %v5911
      %v5932 = vmul.f32 %v5912, %v5912
      %v5933 = vmul.f32 %v5913, %v5913
      %v5934 = vsel %vm933, %v5930, 0.0
      %5935 = vadd.xlane.f32.xlu0 %v5934
      %v5936 = vpop.xlane.xlu0 %5935
      %v5937 = vsel %vm933, %v5931, 0.0
      %5938 = vadd.xlane.f32.xlu0 %v5937
      %v5939 = vpop.xlane.xlu0 %5938
      %v5940 = vsel %vm933, %v5932, 0.0
      %5941 = vadd.xlane.f32.xlu0 %v5940
      %v5942 = vpop.xlane.xlu0 %5941
      %v5943 = vsel %vm933, %v5933, 0.0
      %5944 = vadd.xlane.f32.xlu0 %v5943
      %v5945 = vpop.xlane.xlu0 %5944
      %v5946 = vmul.f32 %v5936, %v952
      %v5947 = vmul.f32 %v5939, %v952
      %v5948 = vmul.f32 %v5942, %v952
      %v5949 = vmul.f32 %v5945, %v952
      %v5950 = vsub.f32 %v5910, %v5926
      %v5951 = vsub.f32 %v5911, %v5927
      %v5952 = vsub.f32 %v5912, %v5928
      %v5953 = vsub.f32 %v5913, %v5929
      %v5954 = vmul.f32 %v5926, %v5926
      %v5955 = vmul.f32 %v5927, %v5927
      %v5956 = vmul.f32 %v5928, %v5928
      %v5957 = vmul.f32 %v5929, %v5929
      %v5958 = vsub.f32 %v5946, %v5954
      %v5959 = vsub.f32 %v5947, %v5955
      %v5960 = vsub.f32 %v5948, %v5956
      %v5961 = vsub.f32 %v5949, %v5957
      %v5962 = vadd.f32 %v5958, 1e-05
      %v5963 = vadd.f32 %v5959, 1e-05
      %v5964 = vadd.f32 %v5960, 1e-05
      %v5965 = vadd.f32 %v5961, 1e-05
      %v5966 = vrsqrt.pop %v5962
      %v5967 = vmul.f32 %v5966, %v5962
      %v5968 = vmul.f32 %v5967, %v5966
      %v5969 = vmul.f32 0.5, %v5968
      %v5970 = vsub.f32 1.5, %v5969
      %v5971 = vmul.f32 %v5966, %v5970
      %vm5972 = vweird.f32 %v5962
      %vm5973 = vweird.f32 %v5966
      %vm5974 = vmor %vm5972, %vm5973
      %v5975 = vsel %vm5974, %v5966, %v5971
      %v5976 = vrsqrt.pop %v5963
      %v5977 = vmul.f32 %v5976, %v5963
      %v5978 = vmul.f32 %v5977, %v5976
      %v5979 = vmul.f32 0.5, %v5978
      %v5980 = vsub.f32 1.5, %v5979
      %v5981 = vmul.f32 %v5976, %v5980
      %vm5982 = vweird.f32 %v5963
      %vm5983 = vweird.f32 %v5976
      %vm5984 = vmor %vm5982, %vm5983
      %v5985 = vsel %vm5984, %v5976, %v5981
      %v5986 = vrsqrt.pop %v5964
      %v5987 = vmul.f32 %v5986, %v5964
      %v5988 = vmul.f32 %v5987, %v5986
      %v5989 = vmul.f32 0.5, %v5988
      %v5990 = vsub.f32 1.5, %v5989
      %v5991 = vmul.f32 %v5986, %v5990
      %vm5992 = vweird.f32 %v5964
      %vm5993 = vweird.f32 %v5986
      %vm5994 = vmor %vm5992, %vm5993
      %v5995 = vsel %vm5994, %v5986, %v5991
      %v5996 = vrsqrt.pop %v5965
      %v5997 = vmul.f32 %v5996, %v5965
      %v5998 = vmul.f32 %v5997, %v5996
      %v5999 = vmul.f32 0.5, %v5998
      %v6000 = vsub.f32 1.5, %v5999
      %v6001 = vmul.f32 %v5996, %v6000
      %vm6002 = vweird.f32 %v5965
      %vm6003 = vweird.f32 %v5996
      %vm6004 = vmor %vm6002, %vm6003
      %v6005 = vsel %vm6004, %v5996, %v6001
      %v6006 = vmul.f32 %v5950, %v5975
      %v6007 = vmul.f32 %v5951, %v5985
      %v6008 = vmul.f32 %v5952, %v5995
      %v6009 = vmul.f32 %v5953, %v6005
      %v6010 = vmul.f32 %v6006, %v1037
      %v6011 = vmul.f32 %v6007, %v1037
      %v6012 = vmul.f32 %v6008, %v1037
      %v6013 = vmul.f32 %v6009, %v1037
      %v6014 = vadd.f32 %v6010, %v1042
      %v6015 = vadd.f32 %v6011, %v1042
      %v6016 = vadd.f32 %v6012, %v1042
      %v6017 = vadd.f32 %v6013, %v1042
      %v6018 = vmax.f32 %v6014, 0.0
      %v6019 = vmax.f32 %v6015, 0.0
      %v6020 = vmax.f32 %v6016, 0.0
      %v6021 = vmax.f32 %v6017, 0.0
      %v6023 = vunpack.c.l.b16 %v5212
      %v6024 = vunpack.c.h.b16 %v5212
      %v6025 = vpack.c.b16 %v6023, %v6023
      %v6026 = vpack.c.b16 %v6024, %v6024
      %v6028 = vsel %vm1054, %v6025, 0
      %v6031 = vsel %vm1054, %v6026, 0
      %6033 = vmatpush.bf16.msra.mxu0 0
      %6034 = vmatpush.bf16.msra.mxu0 0
      %6035 = vmatpush.bf16.msra.mxu0 0
      %6036 = vmatpush.bf16.msra.mxu0 0
      %6037 = vmatpush.bf16.msra.mxu0 0
      %6038 = vmatpush.bf16.msra.mxu0 0
      %6039 = vmatpush.bf16.msra.mxu0 0
      %6040 = vmatpush.bf16.msra.mxu0 %v6028
      %6041 = vmatmul.bf16.gmra.mxu0 %v1052
      %v6042 = vpop.f32.mrf.mxu0
      %v6043 = vadd.f32 0.0, %v6042
      %v6044 = vpop.f32.mrf.mxu0
      %v6045 = vadd.f32 0.0, %v6044
      %6046 = vdwg.mxu0
      %6047 = vmatpush.bf16.msra.mxu0 0
      %6048 = vmatpush.bf16.msra.mxu0 0
      %6049 = vmatpush.bf16.msra.mxu0 0
      %6050 = vmatpush.bf16.msra.mxu0 0
      %6051 = vmatpush.bf16.msra.mxu0 0
      %6052 = vmatpush.bf16.msra.mxu0 0
      %6053 = vmatpush.bf16.msra.mxu0 0
      %6054 = vmatpush.bf16.msra.mxu0 %v6031
      %6055 = vmatmul.bf16.gmra.mxu0 %v1052
      %v6056 = vpop.f32.mrf.mxu0
      %v6057 = vadd.f32 0.0, %v6056
      %v6058 = vpop.f32.mrf.mxu0
      %v6059 = vadd.f32 0.0, %v6058
      %6060 = vdwg.mxu0
      %v6061 = vadd.f32 %v6043, %v1075
      %v6062 = vadd.f32 %v6057, %v1075
      %v6063 = vmax.f32 %v6061, 0.0
      %v6064 = vmax.f32 %v6062, 0.0
      %v6065 = vadd.f32 %v6045, %v1082
      %v6066 = vadd.f32 %v6059, %v1082
      %v6067 = vmul.f32 %v6018, %v1088
      %v6068 = vmul.f32 %v6019, %v1093
      %v6069 = vmul.f32 %v6020, %v1098
      %v6070 = vmul.f32 %v6021, %v1103
      %v6071 = vadd.f32 %v6067, %v1112
      %v6072 = vadd.f32 %v6068, %v1117
      %v6073 = vadd.f32 %v6069, %v1122
      %v6074 = vadd.f32 %v6070, %v1127
      %v6075 = vmax.f32 %v6071, 0.0
      %v6076 = vmax.f32 %v6072, 0.0
      %v6077 = vmax.f32 %v6073, 0.0
      %v6078 = vmax.f32 %v6074, 0.0
      %v6079 = vpack.c.bf16 %v6076, %v6075
      %v6080 = vpack.c.bf16 %v6078, %v6077
      %v6081 = vpack.c.bf16 %v6063, %v6063
      %v6082 = vpack.c.bf16 %v6064, %v6064
      %v6084 = vsel %vm933, %v6079, 0
      %v6087 = vsel %vm933, %v6080, 0
      %v6090 = vsel %vm1054, %v6081, 0
      %v6093 = vsel %vm1054, %v6082, 0
      %6095 = vmatpush.bf16.msra.mxu0 0
      %6096 = vmatpush.bf16.msra.mxu0 0
      %6097 = vmatpush.bf16.msra.mxu0 0
      %6098 = vmatpush.bf16.msra.mxu0 0
      %6099 = vmatpush.bf16.msra.mxu0 0
      %6100 = vmatpush.bf16.msra.mxu0 0
      %6101 = vmatpush.bf16.msra.mxu0 0
      %6102 = vmatpush.bf16.msra.mxu0 %v6090
      %6103 = vmatmul.bf16.gmra.mxu0 %v6084
      %v6104 = vpop.f32.mrf.mxu0
      %v6105 = vadd.f32 0.0, %v6104
      %v6106 = vpop.f32.mrf.mxu0
      %v6107 = vadd.f32 0.0, %v6106
      %6108 = vmatmul.bf16.gmra.mxu0 %v6087
      %v6109 = vpop.f32.mrf.mxu0
      %v6110 = vadd.f32 0.0, %v6109
      %v6111 = vpop.f32.mrf.mxu0
      %v6112 = vadd.f32 0.0, %v6111
      %6113 = vdwg.mxu0
      %6114 = vmatpush.bf16.msra.mxu0 0
      %6115 = vmatpush.bf16.msra.mxu0 0
      %6116 = vmatpush.bf16.msra.mxu0 0
      %6117 = vmatpush.bf16.msra.mxu0 0
      %6118 = vmatpush.bf16.msra.mxu0 0
      %6119 = vmatpush.bf16.msra.mxu0 0
      %6120 = vmatpush.bf16.msra.mxu0 0
      %6121 = vmatpush.bf16.msra.mxu0 %v6093
      %6122 = vmatmul.bf16.gmra.mxu0 %v6084
      %v6123 = vpop.f32.mrf.mxu0
      %v6124 = vadd.f32 0.0, %v6123
      %v6125 = vpop.f32.mrf.mxu0
      %v6126 = vadd.f32 0.0, %v6125
      %6127 = vmatmul.bf16.gmra.mxu0 %v6087
      %v6128 = vpop.f32.mrf.mxu0
      %v6129 = vadd.f32 0.0, %v6128
      %v6130 = vpop.f32.mrf.mxu0
      %v6131 = vadd.f32 0.0, %v6130
      %6132 = vdwg.mxu0
      %v6133 = vmul.f32 %v6105, 0.35355338
      %v6134 = vmul.f32 %v6124, 0.35355338
      %v6135 = vmul.f32 %v6107, 0.35355338
      %v6136 = vmul.f32 %v6126, 0.35355338
      %v6137 = vmul.f32 %v6110, 0.35355338
      %v6138 = vmul.f32 %v6129, 0.35355338
      %v6139 = vmul.f32 %v6112, 0.35355338
      %v6140 = vmul.f32 %v6131, 0.35355338
      %v6141 = vmax.f32 %v6133, %v6134
      %6142 = vmax.xlane.f32.xlu0 %v6141
      %v6143 = vpop.xlane.xlu0 %6142
      %v6144 = vmax.f32 %v6135, %v6136
      %6145 = vmax.xlane.f32.xlu0 %v6144
      %v6146 = vpop.xlane.xlu0 %6145
      %v6147 = vmax.f32 %v6137, %v6138
      %6148 = vmax.xlane.f32.xlu0 %v6147
      %v6149 = vpop.xlane.xlu0 %6148
      %v6150 = vmax.f32 %v6139, %v6140
      %6151 = vmax.xlane.f32.xlu0 %v6150
      %v6152 = vpop.xlane.xlu0 %6151
      %v6153 = vsub.f32 %v6133, %v6143
      %v6154 = vsub.f32 %v6134, %v6143
      %v6155 = vsub.f32 %v6135, %v6146
      %v6156 = vsub.f32 %v6136, %v6146
      %v6157 = vsub.f32 %v6137, %v6149
      %v6158 = vsub.f32 %v6138, %v6149
      %v6159 = vsub.f32 %v6139, %v6152
      %v6160 = vsub.f32 %v6140, %v6152
      %v6161 = vmul.f32 %v6153, 1.442695
      %v6162 = vpow.pop %v6161
      %v6163 = vmul.f32 %v6154, 1.442695
      %v6164 = vpow.pop %v6163
      %v6165 = vmul.f32 %v6155, 1.442695
      %v6166 = vpow.pop %v6165
      %v6167 = vmul.f32 %v6156, 1.442695
      %v6168 = vpow.pop %v6167
      %v6169 = vmul.f32 %v6157, 1.442695
      %v6170 = vpow.pop %v6169
      %v6171 = vmul.f32 %v6158, 1.442695
      %v6172 = vpow.pop %v6171
      %v6173 = vmul.f32 %v6159, 1.442695
      %v6174 = vpow.pop %v6173
      %v6175 = vmul.f32 %v6160, 1.442695
      %v6176 = vpow.pop %v6175
      %v6177 = vadd.f32 %v6162, %v6164
      %6178 = vadd.xlane.f32.xlu0 %v6177
      %v6179 = vpop.xlane.xlu0 %6178
      %v6180 = vadd.f32 %v6166, %v6168
      %6181 = vadd.xlane.f32.xlu0 %v6180
      %v6182 = vpop.xlane.xlu0 %6181
      %v6183 = vadd.f32 %v6170, %v6172
      %6184 = vadd.xlane.f32.xlu0 %v6183
      %v6185 = vpop.xlane.xlu0 %6184
      %v6186 = vadd.f32 %v6174, %v6176
      %6187 = vadd.xlane.f32.xlu0 %v6186
      %v6188 = vpop.xlane.xlu0 %6187
      %v6189 = vrcp.pop %v6179
      %v6190 = vrcp.pop %v6182
      %v6191 = vrcp.pop %v6185
      %v6192 = vrcp.pop %v6188
      %v6193 = vmul.f32 %v6162, %v6189
      %v6194 = vmul.f32 %v6164, %v6189
      %v6195 = vmul.f32 %v6166, %v6190
      %v6196 = vmul.f32 %v6168, %v6190
      %v6197 = vmul.f32 %v6170, %v6191
      %v6198 = vmul.f32 %v6172, %v6191
      %v6199 = vmul.f32 %v6174, %v6192
      %v6200 = vmul.f32 %v6176, %v6192
      %v6201 = vpack.c.bf16 %v6195, %v6193
      %v6202 = vpack.c.bf16 %v6196, %v6194
      %v6203 = vpack.c.bf16 %v6199, %v6197
      %v6204 = vpack.c.bf16 %v6200, %v6198
      %v6205 = vpack.c.bf16 %v6065, %v6065
      %v6206 = vpack.c.bf16 %v6066, %v6066
      %6207 = vmatpush.bf16.xpose.msra.mxu0 0
      %6208 = vmatpush.bf16.xpose.msra.mxu0 0
      %6209 = vmatpush.bf16.xpose.msra.mxu0 0
      %6210 = vmatpush.bf16.xpose.msra.mxu0 0
      %6211 = vmatpush.bf16.xpose.msra.mxu0 0
      %6212 = vmatpush.bf16.xpose.msra.mxu0 0
      %6213 = vmatpush.bf16.xpose.msra.mxu0 0
      %6214 = vmatpush.bf16.xpose.msra.mxu0 %v6205
      %6215 = vmatmul.bf16.gmra.mxu0 %v6201
      %v6216 = vpop.f32.mrf.mxu0
      %v6217 = vadd.f32 0.0, %v6216
      %v6218 = vpop.f32.mrf.mxu0
      %v6219 = vadd.f32 0.0, %v6218
      %6220 = vmatmul.bf16.gmra.mxu0 %v6203
      %v6221 = vpop.f32.mrf.mxu0
      %v6222 = vadd.f32 0.0, %v6221
      %v6223 = vpop.f32.mrf.mxu0
      %v6224 = vadd.f32 0.0, %v6223
      %6225 = vdwg.mxu0
      %6226 = vmatpush.bf16.xpose.msra.mxu0 0
      %6227 = vmatpush.bf16.xpose.msra.mxu0 0
      %6228 = vmatpush.bf16.xpose.msra.mxu0 0
      %6229 = vmatpush.bf16.xpose.msra.mxu0 0
      %6230 = vmatpush.bf16.xpose.msra.mxu0 0
      %6231 = vmatpush.bf16.xpose.msra.mxu0 0
      %6232 = vmatpush.bf16.xpose.msra.mxu0 0
      %6233 = vmatpush.bf16.xpose.msra.mxu0 %v6206
      %6234 = vmatmul.bf16.gmra.mxu0 %v6202
      %v6235 = vpop.f32.mrf.mxu0
      %v6236 = vadd.f32 %v6217, %v6235
      %v6237 = vpop.f32.mrf.mxu0
      %v6238 = vadd.f32 %v6219, %v6237
      %6239 = vmatmul.bf16.gmra.mxu0 %v6204
      %v6240 = vpop.f32.mrf.mxu0
      %v6241 = vadd.f32 %v6222, %v6240
      %v6242 = vpop.f32.mrf.mxu0
      %v6243 = vadd.f32 %v6224, %v6242
      %6244 = vdwg.mxu0
      %v6245 = vmul.f32 %v6236, %v1251
      %v6246 = vmul.f32 %v6238, %v1256
      %v6247 = vmul.f32 %v6241, %v1261
      %v6248 = vmul.f32 %v6243, %v1266
      %v6249 = vadd.f32 %v6245, %v1275
      %v6250 = vadd.f32 %v6246, %v1280
      %v6251 = vadd.f32 %v6247, %v1285
      %v6252 = vadd.f32 %v6248, %v1290
      %v6253 = vmax.f32 %v6249, 0.0
      %v6254 = vmax.f32 %v6250, 0.0
      %v6255 = vmax.f32 %v6251, 0.0
      %v6256 = vmax.f32 %v6252, 0.0
      %v6257 = vadd.f32 %v6018, %v6253
      %v6258 = vadd.f32 %v6019, %v6254
      %v6259 = vadd.f32 %v6020, %v6255
      %v6260 = vadd.f32 %v6021, %v6256
      %v6262 = vsel %vm933, %v6257, 0
      %v6265 = vsel %vm933, %v6258, 0
      %v6268 = vsel %vm933, %v6259, 0
      %v6271 = vsel %vm933, %v6260, 0
      %6273 = vmatpush.msra.mxu0 0.0
      %6274 = vmatpush.msra.mxu0 0.0
      %6275 = vmatpush.msra.mxu0 0.0
      %6276 = vmatpush.msra.mxu0 0.0
      %6277 = vmatpush.msra.mxu0 0.0
      %6278 = vmatpush.msra.mxu0 0.0
      %6279 = vmatpush.msra.mxu0 0.0
      %6280 = vmatpush.msra.mxu0 0.0
      %6281 = vmatpush.msra.mxu0 0.0
      %6282 = vmatpush.msra.mxu0 0.0
      %6283 = vmatpush.msra.mxu0 0.0
      %6284 = vmatpush.msra.mxu0 0.0
      %6285 = vmatpush.msra.mxu0 0.0
      %6286 = vmatpush.msra.mxu0 0.0
      %6287 = vmatpush.msra.mxu0 0.0
      %6288 = vmatpush.msra.mxu0 %v431
      %6289 = vmatmul.f32.gmra.mxu0 %v6262
      %v6290 = vpop.f32.mrf.mxu0
      %v6291 = vadd.f32 %v1304, %v6290
      %6292 = vmatmul.f32.gmra.mxu0 %v6265
      %v6293 = vpop.f32.mrf.mxu0
      %v6294 = vadd.f32 %v1304, %v6293
      %6295 = vmatmul.f32.gmra.mxu0 %v6268
      %v6296 = vpop.f32.mrf.mxu0
      %v6297 = vadd.f32 %v1304, %v6296
      %6298 = vmatmul.f32.gmra.mxu0 %v6271
      %v6299 = vpop.f32.mrf.mxu0
      %v6300 = vadd.f32 %v1304, %v6299
      %6301 = vdwg.mxu0
      %v6302 = vmax.f32 %v6291, 0.0
      %v6303 = vmax.f32 %v6294, 0.0
      %v6304 = vmax.f32 %v6297, 0.0
      %v6305 = vmax.f32 %v6300, 0.0
      %v6307 = vsel %vm1172, %v6302, 0
      %v6310 = vsel %vm1172, %v6303, 0
      %v6313 = vsel %vm1172, %v6304, 0
      %v6316 = vsel %vm1172, %v6305, 0
      %6318 = vmatpush.msra.mxu0 0.0
      %6319 = vmatpush.msra.mxu0 0.0
      %6320 = vmatpush.msra.mxu0 0.0
      %6321 = vmatpush.msra.mxu0 0.0
      %6322 = vmatpush.msra.mxu0 0.0
      %6323 = vmatpush.msra.mxu0 0.0
      %6324 = vmatpush.msra.mxu0 0.0
      %6325 = vmatpush.msra.mxu0 0.0
      %6326 = vmatpush.msra.mxu0 0.0
      %6327 = vmatpush.msra.mxu0 0.0
      %6328 = vmatpush.msra.mxu0 0.0
      %6329 = vmatpush.msra.mxu0 0.0
      %6330 = vmatpush.msra.mxu0 0.0
      %6331 = vmatpush.msra.mxu0 0.0
      %6332 = vmatpush.msra.mxu0 %v434
      %6333 = vmatpush.msra.mxu0 %v433
      %6334 = vmatmul.f32.gmra.mxu0 %v6307
      %v6335 = vpop.f32.mrf.mxu0
      %v6336 = vadd.f32 %v1350, %v6335
      %6337 = vmatmul.f32.gmra.mxu0 %v6310
      %v6338 = vpop.f32.mrf.mxu0
      %v6339 = vadd.f32 %v1350, %v6338
      %6340 = vmatmul.f32.gmra.mxu0 %v6313
      %v6341 = vpop.f32.mrf.mxu0
      %v6342 = vadd.f32 %v1350, %v6341
      %6343 = vmatmul.f32.gmra.mxu0 %v6316
      %v6344 = vpop.f32.mrf.mxu0
      %v6345 = vadd.f32 %v1350, %v6344
      %6346 = vdwg.mxu0
      %v6347 = vmax.f32 %v6336, 0.0
      %v6348 = vmax.f32 %v6339, 0.0
      %v6349 = vmax.f32 %v6342, 0.0
      %v6350 = vmax.f32 %v6345, 0.0
      %v6352 = vsel %vm1172, %v6347, 0
      %v6355 = vsel %vm1172, %v6348, 0
      %v6358 = vsel %vm1172, %v6349, 0
      %v6361 = vsel %vm1172, %v6350, 0
      %6363 = vmatpush.msra.mxu0 0.0
      %6364 = vmatpush.msra.mxu0 0.0
      %6365 = vmatpush.msra.mxu0 0.0
      %6366 = vmatpush.msra.mxu0 0.0
      %6367 = vmatpush.msra.mxu0 0.0
      %6368 = vmatpush.msra.mxu0 0.0
      %6369 = vmatpush.msra.mxu0 0.0
      %6370 = vmatpush.msra.mxu0 0.0
      %6371 = vmatpush.msra.mxu0 0.0
      %6372 = vmatpush.msra.mxu0 0.0
      %6373 = vmatpush.msra.mxu0 0.0
      %6374 = vmatpush.msra.mxu0 0.0
      %6375 = vmatpush.msra.mxu0 0.0
      %6376 = vmatpush.msra.mxu0 0.0
      %6377 = vmatpush.msra.mxu0 %v437
      %6378 = vmatpush.msra.mxu0 %v436
      %6379 = vmatmul.f32.gmra.mxu0 %v6352
      %v6380 = vpop.f32.mrf.mxu0
      %v6381 = vadd.f32 %v1396, %v6380
      %6382 = vmatmul.f32.gmra.mxu0 %v6355
      %v6383 = vpop.f32.mrf.mxu0
      %v6384 = vadd.f32 %v1396, %v6383
      %6385 = vmatmul.f32.gmra.mxu0 %v6358
      %v6386 = vpop.f32.mrf.mxu0
      %v6387 = vadd.f32 %v1396, %v6386
      %6388 = vmatmul.f32.gmra.mxu0 %v6361
      %v6389 = vpop.f32.mrf.mxu0
      %v6390 = vadd.f32 %v1396, %v6389
      %6391 = vdwg.mxu0
      %v6392 = vadd.f32 %v3804, %v6381
      %v6393 = vadd.f32 %v3805, %v6384
      %v6394 = vadd.f32 %v3806, %v6387
      %v6395 = vadd.f32 %v3807, %v6390
      %v6396 = vmul.f32 %v6392, 3.1415927
      %v6397 = vmul.f32 %v6393, 3.1415927
      %v6398 = vmul.f32 %v6394, 3.1415927
      %v6399 = vmul.f32 %v6395, 3.1415927
      %v6400 = vadd.f32 %v6396, 1e-05
      %v6401 = vadd.f32 %v6397, 1e-05
      %v6402 = vadd.f32 %v6398, 1e-05
      %v6403 = vadd.f32 %v6399, 1e-05
      %v6404 = vand.u32 2147483647, %v6400
      %vm6405 = vcmp.le.f32.partialorder %v6404, 0.7853982
      %vm6406 = vcmp.lt.s32.totalorder %v6400, 0
      %v6407 = vand.u32 %v6400, 2139095040
      %v6408 = vshrl.u32 %v6407, 23
      %v6409 = vsub.s32 %v6408, 127
      %v6410 = vand.u32 2147483647, %v6400
      %v6411 = vand.u32 %v6410, 8388607
      %v6412 = vor.u32 %v6411, 8388608
      %v6413 = vsub.s32 0, %v6412
      %v6414 = vadd.s32 %v6409, 1
      %vm6415 = vcmp.gt.s32.totalorder %v6414, 0
      %v6416 = vsel %vm6415, %v6414, 0
      %v6417 = vshrl.u32 %v6416, 5
      %v6418 = vand.u32 %v6416, 31
      %v6419 = vsub.s32 32, %v6418
      %v6420 = vshrl.u32 683565275, %v6419
      %v6421 = vshll.u32 683565275, %v6418
      %v6422 = vshrl.u32 2475754826, %v6419
      %v6423 = vor.u32 %v6421, %v6422
      %v6424 = vshll.u32 2475754826, %v6418
      %v6425 = vshrl.u32 2131351028, %v6419
      %v6426 = vor.u32 %v6424, %v6425
      %v6427 = vshll.u32 2131351028, %v6418
      %v6428 = vshrl.u32 2102212464, %v6419
      %v6429 = vor.u32 %v6427, %v6428
      %v6430 = vshll.u32 2102212464, %v6418
      %v6431 = vshrl.u32 920167782, %v6419
      %v6432 = vor.u32 %v6430, %v6431
      %v6433 = vshll.u32 920167782, %v6418
      %v6434 = vshrl.u32 1326507024, %v6419
      %v6435 = vor.u32 %v6433, %v6434
      %vm6436 = vcmp.lt.s32.totalorder %v6417, 1
      %vm6437 = vcmp.lt.s32.totalorder %v6417, 2
      %vm6438 = vcmp.lt.s32.totalorder %v6417, 3
      %vm6439 = vcmp.lt.s32.totalorder %v6417, 4
      %v6440 = vsel %vm6436, %v6420, %v6423
      %v6441 = vsel %vm6439, %v6429, 2102212464
      %v6442 = vsel %vm6438, %v6426, %v6441
      %v6443 = vsel %vm6437, %v6440, %v6442
      %v6444 = vsel %vm6436, %v6423, %v6426
      %v6445 = vsel %vm6439, %v6432, 920167782
      %v6446 = vsel %vm6438, %v6429, %v6445
      %v6447 = vsel %vm6437, %v6444, %v6446
      %v6448 = vsel %vm6436, %v6426, %v6429
      %v6449 = vsel %vm6439, %v6435, 1326507024
      %v6450 = vsel %vm6438, %v6432, %v6449
      %v6451 = vsel %vm6437, %v6448, %v6450
      %v6452 = vshll.u32 %v6412, 8
      %v6453 = vand.u32 %v6452, 65535
      %v6454 = vshrl.u32 %v6452, 16
      %v6455 = vand.u32 %v6451, 65535
      %v6456 = vshrl.u32 %v6451, 16
      %v6457 = vmul.u32 %v6453, %v6455
      %v6458 = vmul.u32 %v6453, %v6456
      %v6459 = vmul.u32 %v6454, %v6455
      %v6460 = vmul.u32 %v6454, %v6456
      %v6461 = vshll.u32 %v6458, 16
      %v6462 = vshrl.u32 %v6458, 16
      %v6463 = vshll.u32 %v6459, 16
      %v6464 = vshrl.u32 %v6459, 16
      %vm6465 = vc.u32 %v6457, %v6461
      %v6466 = vsel %vm6465, 1, 0
      %v6467 = vadd.s32 %v6457, %v6461
      %v6468 = vadd.s32 %v6460, %v6466
      %vm6469 = vc.u32 %v6467, %v6463
      %v6470 = vsel %vm6469, 1, 0
      %v6471 = vadd.s32 %v6467, %v6463
      %v6472 = vadd.s32 %v6468, %v6470
      %v6473 = vadd.s32 %v6472, %v6462
      %v6474 = vadd.s32 %v6473, %v6464
      %v6475 = vand.u32 %v6452, 65535
      %v6476 = vshrl.u32 %v6452, 16
      %v6477 = vand.u32 %v6447, 65535
      %v6478 = vshrl.u32 %v6447, 16
      %v6479 = vmul.u32 %v6475, %v6477
      %v6480 = vmul.u32 %v6475, %v6478
      %v6481 = vmul.u32 %v6476, %v6477
      %v6482 = vmul.u32 %v6476, %v6478
      %v6483 = vshll.u32 %v6480, 16
      %v6484 = vshrl.u32 %v6480, 16
      %v6485 = vshll.u32 %v6481, 16
      %v6486 = vshrl.u32 %v6481, 16
      %vm6487 = vc.u32 %v6479, %v6483
      %v6488 = vsel %vm6487, 1, 0
      %v6489 = vadd.s32 %v6479, %v6483
      %v6490 = vadd.s32 %v6482, %v6488
      %vm6491 = vc.u32 %v6489, %v6485
      %v6492 = vsel %vm6491, 1, 0
      %v6493 = vadd.s32 %v6489, %v6485
      %v6494 = vadd.s32 %v6490, %v6492
      %v6495 = vadd.s32 %v6494, %v6484
      %v6496 = vadd.s32 %v6495, %v6486
      %v6497 = vmul.u32 %v6452, %v6443
      %v6498 = vadd.s32 %v6474, %v6493
      %vm6499 = vc.u32 %v6474, %v6493
      %v6500 = vadd.s32 %v6496, 1
      %v6501 = vsel %vm6499, %v6500, %v6496
      %v6502 = vadd.s32 %v6497, %v6501
      %v6503 = vadd.s32 %v6502, 536870912
      %v6504 = vshrl.u32 %v6503, 30
      %v6505 = vshll.u32 %v6504, 30
      %v6506 = vsub.s32 %v6502, %v6505
      %vm6507 = vcmp.lt.s32.totalorder %v6506, 0
      %v6508 = vsub.s32 0, %v6506
      %v6509 = vsel %vm6507, %v6508, %v6506
      %v6510 = vclz %v6509
      %v6511 = vsub.s32 %v6510, 2
      %vm6512 = vcmp.gt.s32.totalorder 0, %v6511
      %v6513 = vsel %vm6512, 0, %v6511
      %v6514 = vsub.s32 32, %v6513
      %v6515 = vshll.u32 %v6506, %v6513
      %v6516 = vshrl.u32 %v6498, %v6514
      %v6517 = vor.u32 %v6515, %v6516
      %v6518 = vsub.s32 4294967266, %v6513
      %v6519 = vadd.s32 %v6518, 127
      %v6520 = vshll.u32 %v6519, 23
      %v6521 = vor.u32 4788187, %v6520
      %v6522 = vand.u32 2147483647, %v6521
      %v6524 = vcvt.s32.f32 %v6517
      %v6525 = vmul.f32 %v6524, %v6522
      %v6526 = vxor.u32 %v6525, 2147483648
      %v6527 = vsel %vm6406, %v6526, %v6525
      %v6528 = vsub.s32 4, %v6504
      %v6529 = vsel %vm6406, %v6528, %v6504
      %v6530 = vsel %vm6405, %v6400, %v6527
      %v6531 = vsel %vm6405, 0, %v6529
      %v6532 = vmul.f32 %v6530, %v6530
      %v6533 = vmul.f32 %v6532, -0.001358992
      %v6534 = vadd.f32 %v6533, 0.041655596
      %v6535 = vmul.f32 %v6532, %v6534
      %v6536 = vadd.f32 %v6535, -0.4999988
      %v6537 = vmul.f32 %v6532, %v6536
      %v6538 = vadd.f32 1.0, %v6537
      %v6539 = vmul.f32 %v6530, %v6530
      %v6540 = vmul.f32 %v6539, -0.00019511016
      %v6541 = vadd.f32 %v6540, 0.008332121
      %v6542 = vmul.f32 %v6539, %v6541
      %v6543 = vadd.f32 %v6542, -0.16666654
      %v6544 = vmul.f32 %v6539, %v6543
      %v6545 = vadd.f32 %v6544, 1.0
      %v6546 = vmul.f32 %v6545, %v6530
      %vm6547 = vweird.f32 %v6400
      %v6548 = vand.u32 %v6531, 3
      %vm6549 = vcmp.lt.s32.totalorder %v6548, 2
      %vm6550 = vcmp.eq.s32.totalorder %v6548, 0
      %v6551 = vxor.u32 %v6546, 2147483648
      %v6552 = vsel %vm6550, %v6538, %v6551
      %vm6553 = vcmp.eq.s32.totalorder %v6548, 2
      %v6554 = vxor.u32 %v6538, 2147483648
      %v6555 = vsel %vm6553, %v6554, %v6546
      %v6556 = vsel %vm6549, %v6552, %v6555
      %v6557 = vsel %vm6547, nan, %v6556
      %v6558 = vand.u32 2147483647, %v6401
      %vm6559 = vcmp.le.f32.partialorder %v6558, 0.7853982
      %vm6560 = vcmp.lt.s32.totalorder %v6401, 0
      %v6561 = vand.u32 %v6401, 2139095040
      %v6562 = vshrl.u32 %v6561, 23
      %v6563 = vsub.s32 %v6562, 127
      %v6564 = vand.u32 2147483647, %v6401
      %v6565 = vand.u32 %v6564, 8388607
      %v6566 = vor.u32 %v6565, 8388608
      %v6567 = vsub.s32 0, %v6566
      %v6568 = vadd.s32 %v6563, 1
      %vm6569 = vcmp.gt.s32.totalorder %v6568, 0
      %v6570 = vsel %vm6569, %v6568, 0
      %v6571 = vshrl.u32 %v6570, 5
      %v6572 = vand.u32 %v6570, 31
      %v6573 = vsub.s32 32, %v6572
      %v6574 = vshrl.u32 683565275, %v6573
      %v6575 = vshll.u32 683565275, %v6572
      %v6576 = vshrl.u32 2475754826, %v6573
      %v6577 = vor.u32 %v6575, %v6576
      %v6578 = vshll.u32 2475754826, %v6572
      %v6579 = vshrl.u32 2131351028, %v6573
      %v6580 = vor.u32 %v6578, %v6579
      %v6581 = vshll.u32 2131351028, %v6572
      %v6582 = vshrl.u32 2102212464, %v6573
      %v6583 = vor.u32 %v6581, %v6582
      %v6584 = vshll.u32 2102212464, %v6572
      %v6585 = vshrl.u32 920167782, %v6573
      %v6586 = vor.u32 %v6584, %v6585
      %v6587 = vshll.u32 920167782, %v6572
      %v6588 = vshrl.u32 1326507024, %v6573
      %v6589 = vor.u32 %v6587, %v6588
      %vm6590 = vcmp.lt.s32.totalorder %v6571, 1
      %vm6591 = vcmp.lt.s32.totalorder %v6571, 2
      %vm6592 = vcmp.lt.s32.totalorder %v6571, 3
      %vm6593 = vcmp.lt.s32.totalorder %v6571, 4
      %v6594 = vsel %vm6590, %v6574, %v6577
      %v6595 = vsel %vm6593, %v6583, 2102212464
      %v6596 = vsel %vm6592, %v6580, %v6595
      %v6597 = vsel %vm6591, %v6594, %v6596
      %v6598 = vsel %vm6590, %v6577, %v6580
      %v6599 = vsel %vm6593, %v6586, 920167782
      %v6600 = vsel %vm6592, %v6583, %v6599
      %v6601 = vsel %vm6591, %v6598, %v6600
      %v6602 = vsel %vm6590, %v6580, %v6583
      %v6603 = vsel %vm6593, %v6589, 1326507024
      %v6604 = vsel %vm6592, %v6586, %v6603
      %v6605 = vsel %vm6591, %v6602, %v6604
      %v6606 = vshll.u32 %v6566, 8
      %v6607 = vand.u32 %v6606, 65535
      %v6608 = vshrl.u32 %v6606, 16
      %v6609 = vand.u32 %v6605, 65535
      %v6610 = vshrl.u32 %v6605, 16
      %v6611 = vmul.u32 %v6607, %v6609
      %v6612 = vmul.u32 %v6607, %v6610
      %v6613 = vmul.u32 %v6608, %v6609
      %v6614 = vmul.u32 %v6608, %v6610
      %v6615 = vshll.u32 %v6612, 16
      %v6616 = vshrl.u32 %v6612, 16
      %v6617 = vshll.u32 %v6613, 16
      %v6618 = vshrl.u32 %v6613, 16
      %vm6619 = vc.u32 %v6611, %v6615
      %v6620 = vsel %vm6619, 1, 0
      %v6621 = vadd.s32 %v6611, %v6615
      %v6622 = vadd.s32 %v6614, %v6620
      %vm6623 = vc.u32 %v6621, %v6617
      %v6624 = vsel %vm6623, 1, 0
      %v6625 = vadd.s32 %v6621, %v6617
      %v6626 = vadd.s32 %v6622, %v6624
      %v6627 = vadd.s32 %v6626, %v6616
      %v6628 = vadd.s32 %v6627, %v6618
      %v6629 = vand.u32 %v6606, 65535
      %v6630 = vshrl.u32 %v6606, 16
      %v6631 = vand.u32 %v6601, 65535
      %v6632 = vshrl.u32 %v6601, 16
      %v6633 = vmul.u32 %v6629, %v6631
      %v6634 = vmul.u32 %v6629, %v6632
      %v6635 = vmul.u32 %v6630, %v6631
      %v6636 = vmul.u32 %v6630, %v6632
      %v6637 = vshll.u32 %v6634, 16
      %v6638 = vshrl.u32 %v6634, 16
      %v6639 = vshll.u32 %v6635, 16
      %v6640 = vshrl.u32 %v6635, 16
      %vm6641 = vc.u32 %v6633, %v6637
      %v6642 = vsel %vm6641, 1, 0
      %v6643 = vadd.s32 %v6633, %v6637
      %v6644 = vadd.s32 %v6636, %v6642
      %vm6645 = vc.u32 %v6643, %v6639
      %v6646 = vsel %vm6645, 1, 0
      %v6647 = vadd.s32 %v6643, %v6639
      %v6648 = vadd.s32 %v6644, %v6646
      %v6649 = vadd.s32 %v6648, %v6638
      %v6650 = vadd.s32 %v6649, %v6640
      %v6651 = vmul.u32 %v6606, %v6597
      %v6652 = vadd.s32 %v6628, %v6647
      %vm6653 = vc.u32 %v6628, %v6647
      %v6654 = vadd.s32 %v6650, 1
      %v6655 = vsel %vm6653, %v6654, %v6650
      %v6656 = vadd.s32 %v6651, %v6655
      %v6657 = vadd.s32 %v6656, 536870912
      %v6658 = vshrl.u32 %v6657, 30
      %v6659 = vshll.u32 %v6658, 30
      %v6660 = vsub.s32 %v6656, %v6659
      %vm6661 = vcmp.lt.s32.totalorder %v6660, 0
      %v6662 = vsub.s32 0, %v6660
      %v6663 = vsel %vm6661, %v6662, %v6660
      %v6664 = vclz %v6663
      %v6665 = vsub.s32 %v6664, 2
      %vm6666 = vcmp.gt.s32.totalorder 0, %v6665
      %v6667 = vsel %vm6666, 0, %v6665
      %v6668 = vsub.s32 32, %v6667
      %v6669 = vshll.u32 %v6660, %v6667
      %v6670 = vshrl.u32 %v6652, %v6668
      %v6671 = vor.u32 %v6669, %v6670
      %v6672 = vsub.s32 4294967266, %v6667
      %v6673 = vadd.s32 %v6672, 127
      %v6674 = vshll.u32 %v6673, 23
      %v6675 = vor.u32 4788187, %v6674
      %v6676 = vand.u32 2147483647, %v6675
      %v6678 = vcvt.s32.f32 %v6671
      %v6679 = vmul.f32 %v6678, %v6676
      %v6680 = vxor.u32 %v6679, 2147483648
      %v6681 = vsel %vm6560, %v6680, %v6679
      %v6682 = vsub.s32 4, %v6658
      %v6683 = vsel %vm6560, %v6682, %v6658
      %v6684 = vsel %vm6559, %v6401, %v6681
      %v6685 = vsel %vm6559, 0, %v6683
      %v6686 = vmul.f32 %v6684, %v6684
      %v6687 = vmul.f32 %v6686, -0.001358992
      %v6688 = vadd.f32 %v6687, 0.041655596
      %v6689 = vmul.f32 %v6686, %v6688
      %v6690 = vadd.f32 %v6689, -0.4999988
      %v6691 = vmul.f32 %v6686, %v6690
      %v6692 = vadd.f32 1.0, %v6691
      %v6693 = vmul.f32 %v6684, %v6684
      %v6694 = vmul.f32 %v6693, -0.00019511016
      %v6695 = vadd.f32 %v6694, 0.008332121
      %v6696 = vmul.f32 %v6693, %v6695
      %v6697 = vadd.f32 %v6696, -0.16666654
      %v6698 = vmul.f32 %v6693, %v6697
      %v6699 = vadd.f32 %v6698, 1.0
      %v6700 = vmul.f32 %v6699, %v6684
      %vm6701 = vweird.f32 %v6401
      %v6702 = vand.u32 %v6685, 3
      %vm6703 = vcmp.lt.s32.totalorder %v6702, 2
      %vm6704 = vcmp.eq.s32.totalorder %v6702, 0
      %v6705 = vxor.u32 %v6700, 2147483648
      %v6706 = vsel %vm6704, %v6692, %v6705
      %vm6707 = vcmp.eq.s32.totalorder %v6702, 2
      %v6708 = vxor.u32 %v6692, 2147483648
      %v6709 = vsel %vm6707, %v6708, %v6700
      %v6710 = vsel %vm6703, %v6706, %v6709
      %v6711 = vsel %vm6701, nan, %v6710
      %v6712 = vand.u32 2147483647, %v6402
      %vm6713 = vcmp.le.f32.partialorder %v6712, 0.7853982
      %vm6714 = vcmp.lt.s32.totalorder %v6402, 0
      %v6715 = vand.u32 %v6402, 2139095040
      %v6716 = vshrl.u32 %v6715, 23
      %v6717 = vsub.s32 %v6716, 127
      %v6718 = vand.u32 2147483647, %v6402
      %v6719 = vand.u32 %v6718, 8388607
      %v6720 = vor.u32 %v6719, 8388608
      %v6721 = vsub.s32 0, %v6720
      %v6722 = vadd.s32 %v6717, 1
      %vm6723 = vcmp.gt.s32.totalorder %v6722, 0
      %v6724 = vsel %vm6723, %v6722, 0
      %v6725 = vshrl.u32 %v6724, 5
      %v6726 = vand.u32 %v6724, 31
      %v6727 = vsub.s32 32, %v6726
      %v6728 = vshrl.u32 683565275, %v6727
      %v6729 = vshll.u32 683565275, %v6726
      %v6730 = vshrl.u32 2475754826, %v6727
      %v6731 = vor.u32 %v6729, %v6730
      %v6732 = vshll.u32 2475754826, %v6726
      %v6733 = vshrl.u32 2131351028, %v6727
      %v6734 = vor.u32 %v6732, %v6733
      %v6735 = vshll.u32 2131351028, %v6726
      %v6736 = vshrl.u32 2102212464, %v6727
      %v6737 = vor.u32 %v6735, %v6736
      %v6738 = vshll.u32 2102212464, %v6726
      %v6739 = vshrl.u32 920167782, %v6727
      %v6740 = vor.u32 %v6738, %v6739
      %v6741 = vshll.u32 920167782, %v6726
      %v6742 = vshrl.u32 1326507024, %v6727
      %v6743 = vor.u32 %v6741, %v6742
      %vm6744 = vcmp.lt.s32.totalorder %v6725, 1
      %vm6745 = vcmp.lt.s32.totalorder %v6725, 2
      %vm6746 = vcmp.lt.s32.totalorder %v6725, 3
      %vm6747 = vcmp.lt.s32.totalorder %v6725, 4
      %v6748 = vsel %vm6744, %v6728, %v6731
      %v6749 = vsel %vm6747, %v6737, 2102212464
      %v6750 = vsel %vm6746, %v6734, %v6749
      %v6751 = vsel %vm6745, %v6748, %v6750
      %v6752 = vsel %vm6744, %v6731, %v6734
      %v6753 = vsel %vm6747, %v6740, 920167782
      %v6754 = vsel %vm6746, %v6737, %v6753
      %v6755 = vsel %vm6745, %v6752, %v6754
      %v6756 = vsel %vm6744, %v6734, %v6737
      %v6757 = vsel %vm6747, %v6743, 1326507024
      %v6758 = vsel %vm6746, %v6740, %v6757
      %v6759 = vsel %vm6745, %v6756, %v6758
      %v6760 = vshll.u32 %v6720, 8
      %v6761 = vand.u32 %v6760, 65535
      %v6762 = vshrl.u32 %v6760, 16
      %v6763 = vand.u32 %v6759, 65535
      %v6764 = vshrl.u32 %v6759, 16
      %v6765 = vmul.u32 %v6761, %v6763
      %v6766 = vmul.u32 %v6761, %v6764
      %v6767 = vmul.u32 %v6762, %v6763
      %v6768 = vmul.u32 %v6762, %v6764
      %v6769 = vshll.u32 %v6766, 16
      %v6770 = vshrl.u32 %v6766, 16
      %v6771 = vshll.u32 %v6767, 16
      %v6772 = vshrl.u32 %v6767, 16
      %vm6773 = vc.u32 %v6765, %v6769
      %v6774 = vsel %vm6773, 1, 0
      %v6775 = vadd.s32 %v6765, %v6769
      %v6776 = vadd.s32 %v6768, %v6774
      %vm6777 = vc.u32 %v6775, %v6771
      %v6778 = vsel %vm6777, 1, 0
      %v6779 = vadd.s32 %v6775, %v6771
      %v6780 = vadd.s32 %v6776, %v6778
      %v6781 = vadd.s32 %v6780, %v6770
      %v6782 = vadd.s32 %v6781, %v6772
      %v6783 = vand.u32 %v6760, 65535
      %v6784 = vshrl.u32 %v6760, 16
      %v6785 = vand.u32 %v6755, 65535
      %v6786 = vshrl.u32 %v6755, 16
      %v6787 = vmul.u32 %v6783, %v6785
      %v6788 = vmul.u32 %v6783, %v6786
      %v6789 = vmul.u32 %v6784, %v6785
      %v6790 = vmul.u32 %v6784, %v6786
      %v6791 = vshll.u32 %v6788, 16
      %v6792 = vshrl.u32 %v6788, 16
      %v6793 = vshll.u32 %v6789, 16
      %v6794 = vshrl.u32 %v6789, 16
      %vm6795 = vc.u32 %v6787, %v6791
      %v6796 = vsel %vm6795, 1, 0
      %v6797 = vadd.s32 %v6787, %v6791
      %v6798 = vadd.s32 %v6790, %v6796
      %vm6799 = vc.u32 %v6797, %v6793
      %v6800 = vsel %vm6799, 1, 0
      %v6801 = vadd.s32 %v6797, %v6793
      %v6802 = vadd.s32 %v6798, %v6800
      %v6803 = vadd.s32 %v6802, %v6792
      %v6804 = vadd.s32 %v6803, %v6794
      %v6805 = vmul.u32 %v6760, %v6751
      %v6806 = vadd.s32 %v6782, %v6801
      %vm6807 = vc.u32 %v6782, %v6801
      %v6808 = vadd.s32 %v6804, 1
      %v6809 = vsel %vm6807, %v6808, %v6804
      %v6810 = vadd.s32 %v6805, %v6809
      %v6811 = vadd.s32 %v6810, 536870912
      %v6812 = vshrl.u32 %v6811, 30
      %v6813 = vshll.u32 %v6812, 30
      %v6814 = vsub.s32 %v6810, %v6813
      %vm6815 = vcmp.lt.s32.totalorder %v6814, 0
      %v6816 = vsub.s32 0, %v6814
      %v6817 = vsel %vm6815, %v6816, %v6814
      %v6818 = vclz %v6817
      %v6819 = vsub.s32 %v6818, 2
      %vm6820 = vcmp.gt.s32.totalorder 0, %v6819
      %v6821 = vsel %vm6820, 0, %v6819
      %v6822 = vsub.s32 32, %v6821
      %v6823 = vshll.u32 %v6814, %v6821
      %v6824 = vshrl.u32 %v6806, %v6822
      %v6825 = vor.u32 %v6823, %v6824
      %v6826 = vsub.s32 4294967266, %v6821
      %v6827 = vadd.s32 %v6826, 127
      %v6828 = vshll.u32 %v6827, 23
      %v6829 = vor.u32 4788187, %v6828
      %v6830 = vand.u32 2147483647, %v6829
      %v6832 = vcvt.s32.f32 %v6825
      %v6833 = vmul.f32 %v6832, %v6830
      %v6834 = vxor.u32 %v6833, 2147483648
      %v6835 = vsel %vm6714, %v6834, %v6833
      %v6836 = vsub.s32 4, %v6812
      %v6837 = vsel %vm6714, %v6836, %v6812
      %v6838 = vsel %vm6713, %v6402, %v6835
      %v6839 = vsel %vm6713, 0, %v6837
      %v6840 = vmul.f32 %v6838, %v6838
      %v6841 = vmul.f32 %v6840, -0.001358992
      %v6842 = vadd.f32 %v6841, 0.041655596
      %v6843 = vmul.f32 %v6840, %v6842
      %v6844 = vadd.f32 %v6843, -0.4999988
      %v6845 = vmul.f32 %v6840, %v6844
      %v6846 = vadd.f32 1.0, %v6845
      %v6847 = vmul.f32 %v6838, %v6838
      %v6848 = vmul.f32 %v6847, -0.00019511016
      %v6849 = vadd.f32 %v6848, 0.008332121
      %v6850 = vmul.f32 %v6847, %v6849
      %v6851 = vadd.f32 %v6850, -0.16666654
      %v6852 = vmul.f32 %v6847, %v6851
      %v6853 = vadd.f32 %v6852, 1.0
      %v6854 = vmul.f32 %v6853, %v6838
      %vm6855 = vweird.f32 %v6402
      %v6856 = vand.u32 %v6839, 3
      %vm6857 = vcmp.lt.s32.totalorder %v6856, 2
      %vm6858 = vcmp.eq.s32.totalorder %v6856, 0
      %v6859 = vxor.u32 %v6854, 2147483648
      %v6860 = vsel %vm6858, %v6846, %v6859
      %vm6861 = vcmp.eq.s32.totalorder %v6856, 2
      %v6862 = vxor.u32 %v6846, 2147483648
      %v6863 = vsel %vm6861, %v6862, %v6854
      %v6864 = vsel %vm6857, %v6860, %v6863
      %v6865 = vsel %vm6855, nan, %v6864
      %v6866 = vand.u32 2147483647, %v6403
      %vm6867 = vcmp.le.f32.partialorder %v6866, 0.7853982
      %vm6868 = vcmp.lt.s32.totalorder %v6403, 0
      %v6869 = vand.u32 %v6403, 2139095040
      %v6870 = vshrl.u32 %v6869, 23
      %v6871 = vsub.s32 %v6870, 127
      %v6872 = vand.u32 2147483647, %v6403
      %v6873 = vand.u32 %v6872, 8388607
      %v6874 = vor.u32 %v6873, 8388608
      %v6875 = vsub.s32 0, %v6874
      %v6876 = vadd.s32 %v6871, 1
      %vm6877 = vcmp.gt.s32.totalorder %v6876, 0
      %v6878 = vsel %vm6877, %v6876, 0
      %v6879 = vshrl.u32 %v6878, 5
      %v6880 = vand.u32 %v6878, 31
      %v6881 = vsub.s32 32, %v6880
      %v6882 = vshrl.u32 683565275, %v6881
      %v6883 = vshll.u32 683565275, %v6880
      %v6884 = vshrl.u32 2475754826, %v6881
      %v6885 = vor.u32 %v6883, %v6884
      %v6886 = vshll.u32 2475754826, %v6880
      %v6887 = vshrl.u32 2131351028, %v6881
      %v6888 = vor.u32 %v6886, %v6887
      %v6889 = vshll.u32 2131351028, %v6880
      %v6890 = vshrl.u32 2102212464, %v6881
      %v6891 = vor.u32 %v6889, %v6890
      %v6892 = vshll.u32 2102212464, %v6880
      %v6893 = vshrl.u32 920167782, %v6881
      %v6894 = vor.u32 %v6892, %v6893
      %v6895 = vshll.u32 920167782, %v6880
      %v6896 = vshrl.u32 1326507024, %v6881
      %v6897 = vor.u32 %v6895, %v6896
      %vm6898 = vcmp.lt.s32.totalorder %v6879, 1
      %vm6899 = vcmp.lt.s32.totalorder %v6879, 2
      %vm6900 = vcmp.lt.s32.totalorder %v6879, 3
      %vm6901 = vcmp.lt.s32.totalorder %v6879, 4
      %v6902 = vsel %vm6898, %v6882, %v6885
      %v6903 = vsel %vm6901, %v6891, 2102212464
      %v6904 = vsel %vm6900, %v6888, %v6903
      %v6905 = vsel %vm6899, %v6902, %v6904
      %v6906 = vsel %vm6898, %v6885, %v6888
      %v6907 = vsel %vm6901, %v6894, 920167782
      %v6908 = vsel %vm6900, %v6891, %v6907
      %v6909 = vsel %vm6899, %v6906, %v6908
      %v6910 = vsel %vm6898, %v6888, %v6891
      %v6911 = vsel %vm6901, %v6897, 1326507024
      %v6912 = vsel %vm6900, %v6894, %v6911
      %v6913 = vsel %vm6899, %v6910, %v6912
      %v6914 = vshll.u32 %v6874, 8
      %v6915 = vand.u32 %v6914, 65535
      %v6916 = vshrl.u32 %v6914, 16
      %v6917 = vand.u32 %v6913, 65535
      %v6918 = vshrl.u32 %v6913, 16
      %v6919 = vmul.u32 %v6915, %v6917
      %v6920 = vmul.u32 %v6915, %v6918
      %v6921 = vmul.u32 %v6916, %v6917
      %v6922 = vmul.u32 %v6916, %v6918
      %v6923 = vshll.u32 %v6920, 16
      %v6924 = vshrl.u32 %v6920, 16
      %v6925 = vshll.u32 %v6921, 16
      %v6926 = vshrl.u32 %v6921, 16
      %vm6927 = vc.u32 %v6919, %v6923
      %v6928 = vsel %vm6927, 1, 0
      %v6929 = vadd.s32 %v6919, %v6923
      %v6930 = vadd.s32 %v6922, %v6928
      %vm6931 = vc.u32 %v6929, %v6925
      %v6932 = vsel %vm6931, 1, 0
      %v6933 = vadd.s32 %v6929, %v6925
      %v6934 = vadd.s32 %v6930, %v6932
      %v6935 = vadd.s32 %v6934, %v6924
      %v6936 = vadd.s32 %v6935, %v6926
      %v6937 = vand.u32 %v6914, 65535
      %v6938 = vshrl.u32 %v6914, 16
      %v6939 = vand.u32 %v6909, 65535
      %v6940 = vshrl.u32 %v6909, 16
      %v6941 = vmul.u32 %v6937, %v6939
      %v6942 = vmul.u32 %v6937, %v6940
      %v6943 = vmul.u32 %v6938, %v6939
      %v6944 = vmul.u32 %v6938, %v6940
      %v6945 = vshll.u32 %v6942, 16
      %v6946 = vshrl.u32 %v6942, 16
      %v6947 = vshll.u32 %v6943, 16
      %v6948 = vshrl.u32 %v6943, 16
      %vm6949 = vc.u32 %v6941, %v6945
      %v6950 = vsel %vm6949, 1, 0
      %v6951 = vadd.s32 %v6941, %v6945
      %v6952 = vadd.s32 %v6944, %v6950
      %vm6953 = vc.u32 %v6951, %v6947
      %v6954 = vsel %vm6953, 1, 0
      %v6955 = vadd.s32 %v6951, %v6947
      %v6956 = vadd.s32 %v6952, %v6954
      %v6957 = vadd.s32 %v6956, %v6946
      %v6958 = vadd.s32 %v6957, %v6948
      %v6959 = vmul.u32 %v6914, %v6905
      %v6960 = vadd.s32 %v6936, %v6955
      %vm6961 = vc.u32 %v6936, %v6955
      %v6962 = vadd.s32 %v6958, 1
      %v6963 = vsel %vm6961, %v6962, %v6958
      %v6964 = vadd.s32 %v6959, %v6963
      %v6965 = vadd.s32 %v6964, 536870912
      %v6966 = vshrl.u32 %v6965, 30
      %v6967 = vshll.u32 %v6966, 30
      %v6968 = vsub.s32 %v6964, %v6967
      %vm6969 = vcmp.lt.s32.totalorder %v6968, 0
      %v6970 = vsub.s32 0, %v6968
      %v6971 = vsel %vm6969, %v6970, %v6968
      %v6972 = vclz %v6971
      %v6973 = vsub.s32 %v6972, 2
      %vm6974 = vcmp.gt.s32.totalorder 0, %v6973
      %v6975 = vsel %vm6974, 0, %v6973
      %v6976 = vsub.s32 32, %v6975
      %v6977 = vshll.u32 %v6968, %v6975
      %v6978 = vshrl.u32 %v6960, %v6976
      %v6979 = vor.u32 %v6977, %v6978
      %v6980 = vsub.s32 4294967266, %v6975
      %v6981 = vadd.s32 %v6980, 127
      %v6982 = vshll.u32 %v6981, 23
      %v6983 = vor.u32 4788187, %v6982
      %v6984 = vand.u32 2147483647, %v6983
      %v6986 = vcvt.s32.f32 %v6979
      %v6987 = vmul.f32 %v6986, %v6984
      %v6988 = vxor.u32 %v6987, 2147483648
      %v6989 = vsel %vm6868, %v6988, %v6987
      %v6990 = vsub.s32 4, %v6966
      %v6991 = vsel %vm6868, %v6990, %v6966
      %v6992 = vsel %vm6867, %v6403, %v6989
      %v6993 = vsel %vm6867, 0, %v6991
      %v6994 = vmul.f32 %v6992, %v6992
      %v6995 = vmul.f32 %v6994, -0.001358992
      %v6996 = vadd.f32 %v6995, 0.041655596
      %v6997 = vmul.f32 %v6994, %v6996
      %v6998 = vadd.f32 %v6997, -0.4999988
      %v6999 = vmul.f32 %v6994, %v6998
      %v7000 = vadd.f32 1.0, %v6999
      %v7001 = vmul.f32 %v6992, %v6992
      %v7002 = vmul.f32 %v7001, -0.00019511016
      %v7003 = vadd.f32 %v7002, 0.008332121
      %v7004 = vmul.f32 %v7001, %v7003
      %v7005 = vadd.f32 %v7004, -0.16666654
      %v7006 = vmul.f32 %v7001, %v7005
      %v7007 = vadd.f32 %v7006, 1.0
      %v7008 = vmul.f32 %v7007, %v6992
      %vm7009 = vweird.f32 %v6403
      %v7010 = vand.u32 %v6993, 3
      %vm7011 = vcmp.lt.s32.totalorder %v7010, 2
      %vm7012 = vcmp.eq.s32.totalorder %v7010, 0
      %v7013 = vxor.u32 %v7008, 2147483648
      %v7014 = vsel %vm7012, %v7000, %v7013
      %vm7015 = vcmp.eq.s32.totalorder %v7010, 2
      %v7016 = vxor.u32 %v7000, 2147483648
      %v7017 = vsel %vm7015, %v7016, %v7008
      %v7018 = vsel %vm7011, %v7014, %v7017
      %v7019 = vsel %vm7009, nan, %v7018
      %v7020 = vand.u32 2147483647, %v6400
      %vm7021 = vcmp.le.f32.partialorder %v7020, 0.7853982
      %vm7022 = vcmp.lt.s32.totalorder %v6400, 0
      %v7023 = vand.u32 %v6400, 2139095040
      %v7024 = vshrl.u32 %v7023, 23
      %v7025 = vsub.s32 %v7024, 127
      %v7026 = vand.u32 2147483647, %v6400
      %v7027 = vand.u32 %v7026, 8388607
      %v7028 = vor.u32 %v7027, 8388608
      %v7029 = vsub.s32 0, %v7028
      %v7030 = vadd.s32 %v7025, 1
      %vm7031 = vcmp.gt.s32.totalorder %v7030, 0
      %v7032 = vsel %vm7031, %v7030, 0
      %v7033 = vshrl.u32 %v7032, 5
      %v7034 = vand.u32 %v7032, 31
      %v7035 = vsub.s32 32, %v7034
      %v7036 = vshrl.u32 683565275, %v7035
      %v7037 = vshll.u32 683565275, %v7034
      %v7038 = vshrl.u32 2475754826, %v7035
      %v7039 = vor.u32 %v7037, %v7038
      %v7040 = vshll.u32 2475754826, %v7034
      %v7041 = vshrl.u32 2131351028, %v7035
      %v7042 = vor.u32 %v7040, %v7041
      %v7043 = vshll.u32 2131351028, %v7034
      %v7044 = vshrl.u32 2102212464, %v7035
      %v7045 = vor.u32 %v7043, %v7044
      %v7046 = vshll.u32 2102212464, %v7034
      %v7047 = vshrl.u32 920167782, %v7035
      %v7048 = vor.u32 %v7046, %v7047
      %v7049 = vshll.u32 920167782, %v7034
      %v7050 = vshrl.u32 1326507024, %v7035
      %v7051 = vor.u32 %v7049, %v7050
      %vm7052 = vcmp.lt.s32.totalorder %v7033, 1
      %vm7053 = vcmp.lt.s32.totalorder %v7033, 2
      %vm7054 = vcmp.lt.s32.totalorder %v7033, 3
      %vm7055 = vcmp.lt.s32.totalorder %v7033, 4
      %v7056 = vsel %vm7052, %v7036, %v7039
      %v7057 = vsel %vm7055, %v7045, 2102212464
      %v7058 = vsel %vm7054, %v7042, %v7057
      %v7059 = vsel %vm7053, %v7056, %v7058
      %v7060 = vsel %vm7052, %v7039, %v7042
      %v7061 = vsel %vm7055, %v7048, 920167782
      %v7062 = vsel %vm7054, %v7045, %v7061
      %v7063 = vsel %vm7053, %v7060, %v7062
      %v7064 = vsel %vm7052, %v7042, %v7045
      %v7065 = vsel %vm7055, %v7051, 1326507024
      %v7066 = vsel %vm7054, %v7048, %v7065
      %v7067 = vsel %vm7053, %v7064, %v7066
      %v7068 = vshll.u32 %v7028, 8
      %v7069 = vand.u32 %v7068, 65535
      %v7070 = vshrl.u32 %v7068, 16
      %v7071 = vand.u32 %v7067, 65535
      %v7072 = vshrl.u32 %v7067, 16
      %v7073 = vmul.u32 %v7069, %v7071
      %v7074 = vmul.u32 %v7069, %v7072
      %v7075 = vmul.u32 %v7070, %v7071
      %v7076 = vmul.u32 %v7070, %v7072
      %v7077 = vshll.u32 %v7074, 16
      %v7078 = vshrl.u32 %v7074, 16
      %v7079 = vshll.u32 %v7075, 16
      %v7080 = vshrl.u32 %v7075, 16
      %vm7081 = vc.u32 %v7073, %v7077
      %v7082 = vsel %vm7081, 1, 0
      %v7083 = vadd.s32 %v7073, %v7077
      %v7084 = vadd.s32 %v7076, %v7082
      %vm7085 = vc.u32 %v7083, %v7079
      %v7086 = vsel %vm7085, 1, 0
      %v7087 = vadd.s32 %v7083, %v7079
      %v7088 = vadd.s32 %v7084, %v7086
      %v7089 = vadd.s32 %v7088, %v7078
      %v7090 = vadd.s32 %v7089, %v7080
      %v7091 = vand.u32 %v7068, 65535
      %v7092 = vshrl.u32 %v7068, 16
      %v7093 = vand.u32 %v7063, 65535
      %v7094 = vshrl.u32 %v7063, 16
      %v7095 = vmul.u32 %v7091, %v7093
      %v7096 = vmul.u32 %v7091, %v7094
      %v7097 = vmul.u32 %v7092, %v7093
      %v7098 = vmul.u32 %v7092, %v7094
      %v7099 = vshll.u32 %v7096, 16
      %v7100 = vshrl.u32 %v7096, 16
      %v7101 = vshll.u32 %v7097, 16
      %v7102 = vshrl.u32 %v7097, 16
      %vm7103 = vc.u32 %v7095, %v7099
      %v7104 = vsel %vm7103, 1, 0
      %v7105 = vadd.s32 %v7095, %v7099
      %v7106 = vadd.s32 %v7098, %v7104
      %vm7107 = vc.u32 %v7105, %v7101
      %v7108 = vsel %vm7107, 1, 0
      %v7109 = vadd.s32 %v7105, %v7101
      %v7110 = vadd.s32 %v7106, %v7108
      %v7111 = vadd.s32 %v7110, %v7100
      %v7112 = vadd.s32 %v7111, %v7102
      %v7113 = vmul.u32 %v7068, %v7059
      %v7114 = vadd.s32 %v7090, %v7109
      %vm7115 = vc.u32 %v7090, %v7109
      %v7116 = vadd.s32 %v7112, 1
      %v7117 = vsel %vm7115, %v7116, %v7112
      %v7118 = vadd.s32 %v7113, %v7117
      %v7119 = vadd.s32 %v7118, 536870912
      %v7120 = vshrl.u32 %v7119, 30
      %v7121 = vshll.u32 %v7120, 30
      %v7122 = vsub.s32 %v7118, %v7121
      %vm7123 = vcmp.lt.s32.totalorder %v7122, 0
      %v7124 = vsub.s32 0, %v7122
      %v7125 = vsel %vm7123, %v7124, %v7122
      %v7126 = vclz %v7125
      %v7127 = vsub.s32 %v7126, 2
      %vm7128 = vcmp.gt.s32.totalorder 0, %v7127
      %v7129 = vsel %vm7128, 0, %v7127
      %v7130 = vsub.s32 32, %v7129
      %v7131 = vshll.u32 %v7122, %v7129
      %v7132 = vshrl.u32 %v7114, %v7130
      %v7133 = vor.u32 %v7131, %v7132
      %v7134 = vsub.s32 4294967266, %v7129
      %v7135 = vadd.s32 %v7134, 127
      %v7136 = vshll.u32 %v7135, 23
      %v7137 = vor.u32 4788187, %v7136
      %v7138 = vand.u32 2147483647, %v7137
      %v7140 = vcvt.s32.f32 %v7133
      %v7141 = vmul.f32 %v7140, %v7138
      %v7142 = vxor.u32 %v7141, 2147483648
      %v7143 = vsel %vm7022, %v7142, %v7141
      %v7144 = vsub.s32 4, %v7120
      %v7145 = vsel %vm7022, %v7144, %v7120
      %v7146 = vsel %vm7021, %v6400, %v7143
      %v7147 = vsel %vm7021, 0, %v7145
      %v7148 = vmul.f32 %v7146, %v7146
      %v7149 = vmul.f32 %v7148, -0.001358992
      %v7150 = vadd.f32 %v7149, 0.041655596
      %v7151 = vmul.f32 %v7148, %v7150
      %v7152 = vadd.f32 %v7151, -0.4999988
      %v7153 = vmul.f32 %v7148, %v7152
      %v7154 = vadd.f32 1.0, %v7153
      %v7155 = vmul.f32 %v7146, %v7146
      %v7156 = vmul.f32 %v7155, -0.00019511016
      %v7157 = vadd.f32 %v7156, 0.008332121
      %v7158 = vmul.f32 %v7155, %v7157
      %v7159 = vadd.f32 %v7158, -0.16666654
      %v7160 = vmul.f32 %v7155, %v7159
      %v7161 = vadd.f32 %v7160, 1.0
      %v7162 = vmul.f32 %v7161, %v7146
      %vm7163 = vweird.f32 %v6400
      %v7164 = vadd.s32 %v7147, 3
      %v7165 = vand.u32 %v7164, 3
      %vm7166 = vcmp.lt.s32.totalorder %v7165, 2
      %vm7167 = vcmp.eq.s32.totalorder %v7165, 0
      %v7168 = vxor.u32 %v7162, 2147483648
      %v7169 = vsel %vm7167, %v7154, %v7168
      %vm7170 = vcmp.eq.s32.totalorder %v7165, 2
      %v7171 = vxor.u32 %v7154, 2147483648
      %v7172 = vsel %vm7170, %v7171, %v7162
      %v7173 = vsel %vm7166, %v7169, %v7172
      %v7174 = vsel %vm7163, nan, %v7173
      %v7175 = vand.u32 2147483647, %v6401
      %vm7176 = vcmp.le.f32.partialorder %v7175, 0.7853982
      %vm7177 = vcmp.lt.s32.totalorder %v6401, 0
      %v7178 = vand.u32 %v6401, 2139095040
      %v7179 = vshrl.u32 %v7178, 23
      %v7180 = vsub.s32 %v7179, 127
      %v7181 = vand.u32 2147483647, %v6401
      %v7182 = vand.u32 %v7181, 8388607
      %v7183 = vor.u32 %v7182, 8388608
      %v7184 = vsub.s32 0, %v7183
      %v7185 = vadd.s32 %v7180, 1
      %vm7186 = vcmp.gt.s32.totalorder %v7185, 0
      %v7187 = vsel %vm7186, %v7185, 0
      %v7188 = vshrl.u32 %v7187, 5
      %v7189 = vand.u32 %v7187, 31
      %v7190 = vsub.s32 32, %v7189
      %v7191 = vshrl.u32 683565275, %v7190
      %v7192 = vshll.u32 683565275, %v7189
      %v7193 = vshrl.u32 2475754826, %v7190
      %v7194 = vor.u32 %v7192, %v7193
      %v7195 = vshll.u32 2475754826, %v7189
      %v7196 = vshrl.u32 2131351028, %v7190
      %v7197 = vor.u32 %v7195, %v7196
      %v7198 = vshll.u32 2131351028, %v7189
      %v7199 = vshrl.u32 2102212464, %v7190
      %v7200 = vor.u32 %v7198, %v7199
      %v7201 = vshll.u32 2102212464, %v7189
      %v7202 = vshrl.u32 920167782, %v7190
      %v7203 = vor.u32 %v7201, %v7202
      %v7204 = vshll.u32 920167782, %v7189
      %v7205 = vshrl.u32 1326507024, %v7190
      %v7206 = vor.u32 %v7204, %v7205
      %vm7207 = vcmp.lt.s32.totalorder %v7188, 1
      %vm7208 = vcmp.lt.s32.totalorder %v7188, 2
      %vm7209 = vcmp.lt.s32.totalorder %v7188, 3
      %vm7210 = vcmp.lt.s32.totalorder %v7188, 4
      %v7211 = vsel %vm7207, %v7191, %v7194
      %v7212 = vsel %vm7210, %v7200, 2102212464
      %v7213 = vsel %vm7209, %v7197, %v7212
      %v7214 = vsel %vm7208, %v7211, %v7213
      %v7215 = vsel %vm7207, %v7194, %v7197
      %v7216 = vsel %vm7210, %v7203, 920167782
      %v7217 = vsel %vm7209, %v7200, %v7216
      %v7218 = vsel %vm7208, %v7215, %v7217
      %v7219 = vsel %vm7207, %v7197, %v7200
      %v7220 = vsel %vm7210, %v7206, 1326507024
      %v7221 = vsel %vm7209, %v7203, %v7220
      %v7222 = vsel %vm7208, %v7219, %v7221
      %v7223 = vshll.u32 %v7183, 8
      %v7224 = vand.u32 %v7223, 65535
      %v7225 = vshrl.u32 %v7223, 16
      %v7226 = vand.u32 %v7222, 65535
      %v7227 = vshrl.u32 %v7222, 16
      %v7228 = vmul.u32 %v7224, %v7226
      %v7229 = vmul.u32 %v7224, %v7227
      %v7230 = vmul.u32 %v7225, %v7226
      %v7231 = vmul.u32 %v7225, %v7227
      %v7232 = vshll.u32 %v7229, 16
      %v7233 = vshrl.u32 %v7229, 16
      %v7234 = vshll.u32 %v7230, 16
      %v7235 = vshrl.u32 %v7230, 16
      %vm7236 = vc.u32 %v7228, %v7232
      %v7237 = vsel %vm7236, 1, 0
      %v7238 = vadd.s32 %v7228, %v7232
      %v7239 = vadd.s32 %v7231, %v7237
      %vm7240 = vc.u32 %v7238, %v7234
      %v7241 = vsel %vm7240, 1, 0
      %v7242 = vadd.s32 %v7238, %v7234
      %v7243 = vadd.s32 %v7239, %v7241
      %v7244 = vadd.s32 %v7243, %v7233
      %v7245 = vadd.s32 %v7244, %v7235
      %v7246 = vand.u32 %v7223, 65535
      %v7247 = vshrl.u32 %v7223, 16
      %v7248 = vand.u32 %v7218, 65535
      %v7249 = vshrl.u32 %v7218, 16
      %v7250 = vmul.u32 %v7246, %v7248
      %v7251 = vmul.u32 %v7246, %v7249
      %v7252 = vmul.u32 %v7247, %v7248
      %v7253 = vmul.u32 %v7247, %v7249
      %v7254 = vshll.u32 %v7251, 16
      %v7255 = vshrl.u32 %v7251, 16
      %v7256 = vshll.u32 %v7252, 16
      %v7257 = vshrl.u32 %v7252, 16
      %vm7258 = vc.u32 %v7250, %v7254
      %v7259 = vsel %vm7258, 1, 0
      %v7260 = vadd.s32 %v7250, %v7254
      %v7261 = vadd.s32 %v7253, %v7259
      %vm7262 = vc.u32 %v7260, %v7256
      %v7263 = vsel %vm7262, 1, 0
      %v7264 = vadd.s32 %v7260, %v7256
      %v7265 = vadd.s32 %v7261, %v7263
      %v7266 = vadd.s32 %v7265, %v7255
      %v7267 = vadd.s32 %v7266, %v7257
      %v7268 = vmul.u32 %v7223, %v7214
      %v7269 = vadd.s32 %v7245, %v7264
      %vm7270 = vc.u32 %v7245, %v7264
      %v7271 = vadd.s32 %v7267, 1
      %v7272 = vsel %vm7270, %v7271, %v7267
      %v7273 = vadd.s32 %v7268, %v7272
      %v7274 = vadd.s32 %v7273, 536870912
      %v7275 = vshrl.u32 %v7274, 30
      %v7276 = vshll.u32 %v7275, 30
      %v7277 = vsub.s32 %v7273, %v7276
      %vm7278 = vcmp.lt.s32.totalorder %v7277, 0
      %v7279 = vsub.s32 0, %v7277
      %v7280 = vsel %vm7278, %v7279, %v7277
      %v7281 = vclz %v7280
      %v7282 = vsub.s32 %v7281, 2
      %vm7283 = vcmp.gt.s32.totalorder 0, %v7282
      %v7284 = vsel %vm7283, 0, %v7282
      %v7285 = vsub.s32 32, %v7284
      %v7286 = vshll.u32 %v7277, %v7284
      %v7287 = vshrl.u32 %v7269, %v7285
      %v7288 = vor.u32 %v7286, %v7287
      %v7289 = vsub.s32 4294967266, %v7284
      %v7290 = vadd.s32 %v7289, 127
      %v7291 = vshll.u32 %v7290, 23
      %v7292 = vor.u32 4788187, %v7291
      %v7293 = vand.u32 2147483647, %v7292
      %v7295 = vcvt.s32.f32 %v7288
      %v7296 = vmul.f32 %v7295, %v7293
      %v7297 = vxor.u32 %v7296, 2147483648
      %v7298 = vsel %vm7177, %v7297, %v7296
      %v7299 = vsub.s32 4, %v7275
      %v7300 = vsel %vm7177, %v7299, %v7275
      %v7301 = vsel %vm7176, %v6401, %v7298
      %v7302 = vsel %vm7176, 0, %v7300
      %v7303 = vmul.f32 %v7301, %v7301
      %v7304 = vmul.f32 %v7303, -0.001358992
      %v7305 = vadd.f32 %v7304, 0.041655596
      %v7306 = vmul.f32 %v7303, %v7305
      %v7307 = vadd.f32 %v7306, -0.4999988
      %v7308 = vmul.f32 %v7303, %v7307
      %v7309 = vadd.f32 1.0, %v7308
      %v7310 = vmul.f32 %v7301, %v7301
      %v7311 = vmul.f32 %v7310, -0.00019511016
      %v7312 = vadd.f32 %v7311, 0.008332121
      %v7313 = vmul.f32 %v7310, %v7312
      %v7314 = vadd.f32 %v7313, -0.16666654
      %v7315 = vmul.f32 %v7310, %v7314
      %v7316 = vadd.f32 %v7315, 1.0
      %v7317 = vmul.f32 %v7316, %v7301
      %vm7318 = vweird.f32 %v6401
      %v7319 = vadd.s32 %v7302, 3
      %v7320 = vand.u32 %v7319, 3
      %vm7321 = vcmp.lt.s32.totalorder %v7320, 2
      %vm7322 = vcmp.eq.s32.totalorder %v7320, 0
      %v7323 = vxor.u32 %v7317, 2147483648
      %v7324 = vsel %vm7322, %v7309, %v7323
      %vm7325 = vcmp.eq.s32.totalorder %v7320, 2
      %v7326 = vxor.u32 %v7309, 2147483648
      %v7327 = vsel %vm7325, %v7326, %v7317
      %v7328 = vsel %vm7321, %v7324, %v7327
      %v7329 = vsel %vm7318, nan, %v7328
      %v7330 = vand.u32 2147483647, %v6402
      %vm7331 = vcmp.le.f32.partialorder %v7330, 0.7853982
      %vm7332 = vcmp.lt.s32.totalorder %v6402, 0
      %v7333 = vand.u32 %v6402, 2139095040
      %v7334 = vshrl.u32 %v7333, 23
      %v7335 = vsub.s32 %v7334, 127
      %v7336 = vand.u32 2147483647, %v6402
      %v7337 = vand.u32 %v7336, 8388607
      %v7338 = vor.u32 %v7337, 8388608
      %v7339 = vsub.s32 0, %v7338
      %v7340 = vadd.s32 %v7335, 1
      %vm7341 = vcmp.gt.s32.totalorder %v7340, 0
      %v7342 = vsel %vm7341, %v7340, 0
      %v7343 = vshrl.u32 %v7342, 5
      %v7344 = vand.u32 %v7342, 31
      %v7345 = vsub.s32 32, %v7344
      %v7346 = vshrl.u32 683565275, %v7345
      %v7347 = vshll.u32 683565275, %v7344
      %v7348 = vshrl.u32 2475754826, %v7345
      %v7349 = vor.u32 %v7347, %v7348
      %v7350 = vshll.u32 2475754826, %v7344
      %v7351 = vshrl.u32 2131351028, %v7345
      %v7352 = vor.u32 %v7350, %v7351
      %v7353 = vshll.u32 2131351028, %v7344
      %v7354 = vshrl.u32 2102212464, %v7345
      %v7355 = vor.u32 %v7353, %v7354
      %v7356 = vshll.u32 2102212464, %v7344
      %v7357 = vshrl.u32 920167782, %v7345
      %v7358 = vor.u32 %v7356, %v7357
      %v7359 = vshll.u32 920167782, %v7344
      %v7360 = vshrl.u32 1326507024, %v7345
      %v7361 = vor.u32 %v7359, %v7360
      %vm7362 = vcmp.lt.s32.totalorder %v7343, 1
      %vm7363 = vcmp.lt.s32.totalorder %v7343, 2
      %vm7364 = vcmp.lt.s32.totalorder %v7343, 3
      %vm7365 = vcmp.lt.s32.totalorder %v7343, 4
      %v7366 = vsel %vm7362, %v7346, %v7349
      %v7367 = vsel %vm7365, %v7355, 2102212464
      %v7368 = vsel %vm7364, %v7352, %v7367
      %v7369 = vsel %vm7363, %v7366, %v7368
      %v7370 = vsel %vm7362, %v7349, %v7352
      %v7371 = vsel %vm7365, %v7358, 920167782
      %v7372 = vsel %vm7364, %v7355, %v7371
      %v7373 = vsel %vm7363, %v7370, %v7372
      %v7374 = vsel %vm7362, %v7352, %v7355
      %v7375 = vsel %vm7365, %v7361, 1326507024
      %v7376 = vsel %vm7364, %v7358, %v7375
      %v7377 = vsel %vm7363, %v7374, %v7376
      %v7378 = vshll.u32 %v7338, 8
      %v7379 = vand.u32 %v7378, 65535
      %v7380 = vshrl.u32 %v7378, 16
      %v7381 = vand.u32 %v7377, 65535
      %v7382 = vshrl.u32 %v7377, 16
      %v7383 = vmul.u32 %v7379, %v7381
      %v7384 = vmul.u32 %v7379, %v7382
      %v7385 = vmul.u32 %v7380, %v7381
      %v7386 = vmul.u32 %v7380, %v7382
      %v7387 = vshll.u32 %v7384, 16
      %v7388 = vshrl.u32 %v7384, 16
      %v7389 = vshll.u32 %v7385, 16
      %v7390 = vshrl.u32 %v7385, 16
      %vm7391 = vc.u32 %v7383, %v7387
      %v7392 = vsel %vm7391, 1, 0
      %v7393 = vadd.s32 %v7383, %v7387
      %v7394 = vadd.s32 %v7386, %v7392
      %vm7395 = vc.u32 %v7393, %v7389
      %v7396 = vsel %vm7395, 1, 0
      %v7397 = vadd.s32 %v7393, %v7389
      %v7398 = vadd.s32 %v7394, %v7396
      %v7399 = vadd.s32 %v7398, %v7388
      %v7400 = vadd.s32 %v7399, %v7390
      %v7401 = vand.u32 %v7378, 65535
      %v7402 = vshrl.u32 %v7378, 16
      %v7403 = vand.u32 %v7373, 65535
      %v7404 = vshrl.u32 %v7373, 16
      %v7405 = vmul.u32 %v7401, %v7403
      %v7406 = vmul.u32 %v7401, %v7404
      %v7407 = vmul.u32 %v7402, %v7403
      %v7408 = vmul.u32 %v7402, %v7404
      %v7409 = vshll.u32 %v7406, 16
      %v7410 = vshrl.u32 %v7406, 16
      %v7411 = vshll.u32 %v7407, 16
      %v7412 = vshrl.u32 %v7407, 16
      %vm7413 = vc.u32 %v7405, %v7409
      %v7414 = vsel %vm7413, 1, 0
      %v7415 = vadd.s32 %v7405, %v7409
      %v7416 = vadd.s32 %v7408, %v7414
      %vm7417 = vc.u32 %v7415, %v7411
      %v7418 = vsel %vm7417, 1, 0
      %v7419 = vadd.s32 %v7415, %v7411
      %v7420 = vadd.s32 %v7416, %v7418
      %v7421 = vadd.s32 %v7420, %v7410
      %v7422 = vadd.s32 %v7421, %v7412
      %v7423 = vmul.u32 %v7378, %v7369
      %v7424 = vadd.s32 %v7400, %v7419
      %vm7425 = vc.u32 %v7400, %v7419
      %v7426 = vadd.s32 %v7422, 1
      %v7427 = vsel %vm7425, %v7426, %v7422
      %v7428 = vadd.s32 %v7423, %v7427
      %v7429 = vadd.s32 %v7428, 536870912
      %v7430 = vshrl.u32 %v7429, 30
      %v7431 = vshll.u32 %v7430, 30
      %v7432 = vsub.s32 %v7428, %v7431
      %vm7433 = vcmp.lt.s32.totalorder %v7432, 0
      %v7434 = vsub.s32 0, %v7432
      %v7435 = vsel %vm7433, %v7434, %v7432
      %v7436 = vclz %v7435
      %v7437 = vsub.s32 %v7436, 2
      %vm7438 = vcmp.gt.s32.totalorder 0, %v7437
      %v7439 = vsel %vm7438, 0, %v7437
      %v7440 = vsub.s32 32, %v7439
      %v7441 = vshll.u32 %v7432, %v7439
      %v7442 = vshrl.u32 %v7424, %v7440
      %v7443 = vor.u32 %v7441, %v7442
      %v7444 = vsub.s32 4294967266, %v7439
      %v7445 = vadd.s32 %v7444, 127
      %v7446 = vshll.u32 %v7445, 23
      %v7447 = vor.u32 4788187, %v7446
      %v7448 = vand.u32 2147483647, %v7447
      %v7450 = vcvt.s32.f32 %v7443
      %v7451 = vmul.f32 %v7450, %v7448
      %v7452 = vxor.u32 %v7451, 2147483648
      %v7453 = vsel %vm7332, %v7452, %v7451
      %v7454 = vsub.s32 4, %v7430
      %v7455 = vsel %vm7332, %v7454, %v7430
      %v7456 = vsel %vm7331, %v6402, %v7453
      %v7457 = vsel %vm7331, 0, %v7455
      %v7458 = vmul.f32 %v7456, %v7456
      %v7459 = vmul.f32 %v7458, -0.001358992
      %v7460 = vadd.f32 %v7459, 0.041655596
      %v7461 = vmul.f32 %v7458, %v7460
      %v7462 = vadd.f32 %v7461, -0.4999988
      %v7463 = vmul.f32 %v7458, %v7462
      %v7464 = vadd.f32 1.0, %v7463
      %v7465 = vmul.f32 %v7456, %v7456
      %v7466 = vmul.f32 %v7465, -0.00019511016
      %v7467 = vadd.f32 %v7466, 0.008332121
      %v7468 = vmul.f32 %v7465, %v7467
      %v7469 = vadd.f32 %v7468, -0.16666654
      %v7470 = vmul.f32 %v7465, %v7469
      %v7471 = vadd.f32 %v7470, 1.0
      %v7472 = vmul.f32 %v7471, %v7456
      %vm7473 = vweird.f32 %v6402
      %v7474 = vadd.s32 %v7457, 3
      %v7475 = vand.u32 %v7474, 3
      %vm7476 = vcmp.lt.s32.totalorder %v7475, 2
      %vm7477 = vcmp.eq.s32.totalorder %v7475, 0
      %v7478 = vxor.u32 %v7472, 2147483648
      %v7479 = vsel %vm7477, %v7464, %v7478
      %vm7480 = vcmp.eq.s32.totalorder %v7475, 2
      %v7481 = vxor.u32 %v7464, 2147483648
      %v7482 = vsel %vm7480, %v7481, %v7472
      %v7483 = vsel %vm7476, %v7479, %v7482
      %v7484 = vsel %vm7473, nan, %v7483
      %v7485 = vand.u32 2147483647, %v6403
      %vm7486 = vcmp.le.f32.partialorder %v7485, 0.7853982
      %vm7487 = vcmp.lt.s32.totalorder %v6403, 0
      %v7488 = vand.u32 %v6403, 2139095040
      %v7489 = vshrl.u32 %v7488, 23
      %v7490 = vsub.s32 %v7489, 127
      %v7491 = vand.u32 2147483647, %v6403
      %v7492 = vand.u32 %v7491, 8388607
      %v7493 = vor.u32 %v7492, 8388608
      %v7494 = vsub.s32 0, %v7493
      %v7495 = vadd.s32 %v7490, 1
      %vm7496 = vcmp.gt.s32.totalorder %v7495, 0
      %v7497 = vsel %vm7496, %v7495, 0
      %v7498 = vshrl.u32 %v7497, 5
      %v7499 = vand.u32 %v7497, 31
      %v7500 = vsub.s32 32, %v7499
      %v7501 = vshrl.u32 683565275, %v7500
      %v7502 = vshll.u32 683565275, %v7499
      %v7503 = vshrl.u32 2475754826, %v7500
      %v7504 = vor.u32 %v7502, %v7503
      %v7505 = vshll.u32 2475754826, %v7499
      %v7506 = vshrl.u32 2131351028, %v7500
      %v7507 = vor.u32 %v7505, %v7506
      %v7508 = vshll.u32 2131351028, %v7499
      %v7509 = vshrl.u32 2102212464, %v7500
      %v7510 = vor.u32 %v7508, %v7509
      %v7511 = vshll.u32 2102212464, %v7499
      %v7512 = vshrl.u32 920167782, %v7500
      %v7513 = vor.u32 %v7511, %v7512
      %v7514 = vshll.u32 920167782, %v7499
      %v7515 = vshrl.u32 1326507024, %v7500
      %v7516 = vor.u32 %v7514, %v7515
      %vm7517 = vcmp.lt.s32.totalorder %v7498, 1
      %vm7518 = vcmp.lt.s32.totalorder %v7498, 2
      %vm7519 = vcmp.lt.s32.totalorder %v7498, 3
      %vm7520 = vcmp.lt.s32.totalorder %v7498, 4
      %v7521 = vsel %vm7517, %v7501, %v7504
      %v7522 = vsel %vm7520, %v7510, 2102212464
      %v7523 = vsel %vm7519, %v7507, %v7522
      %v7524 = vsel %vm7518, %v7521, %v7523
      %v7525 = vsel %vm7517, %v7504, %v7507
      %v7526 = vsel %vm7520, %v7513, 920167782
      %v7527 = vsel %vm7519, %v7510, %v7526
      %v7528 = vsel %vm7518, %v7525, %v7527
      %v7529 = vsel %vm7517, %v7507, %v7510
      %v7530 = vsel %vm7520, %v7516, 1326507024
      %v7531 = vsel %vm7519, %v7513, %v7530
      %v7532 = vsel %vm7518, %v7529, %v7531
      %v7533 = vshll.u32 %v7493, 8
      %v7534 = vand.u32 %v7533, 65535
      %v7535 = vshrl.u32 %v7533, 16
      %v7536 = vand.u32 %v7532, 65535
      %v7537 = vshrl.u32 %v7532, 16
      %v7538 = vmul.u32 %v7534, %v7536
      %v7539 = vmul.u32 %v7534, %v7537
      %v7540 = vmul.u32 %v7535, %v7536
      %v7541 = vmul.u32 %v7535, %v7537
      %v7542 = vshll.u32 %v7539, 16
      %v7543 = vshrl.u32 %v7539, 16
      %v7544 = vshll.u32 %v7540, 16
      %v7545 = vshrl.u32 %v7540, 16
      %vm7546 = vc.u32 %v7538, %v7542
      %v7547 = vsel %vm7546, 1, 0
      %v7548 = vadd.s32 %v7538, %v7542
      %v7549 = vadd.s32 %v7541, %v7547
      %vm7550 = vc.u32 %v7548, %v7544
      %v7551 = vsel %vm7550, 1, 0
      %v7552 = vadd.s32 %v7548, %v7544
      %v7553 = vadd.s32 %v7549, %v7551
      %v7554 = vadd.s32 %v7553, %v7543
      %v7555 = vadd.s32 %v7554, %v7545
      %v7556 = vand.u32 %v7533, 65535
      %v7557 = vshrl.u32 %v7533, 16
      %v7558 = vand.u32 %v7528, 65535
      %v7559 = vshrl.u32 %v7528, 16
      %v7560 = vmul.u32 %v7556, %v7558
      %v7561 = vmul.u32 %v7556, %v7559
      %v7562 = vmul.u32 %v7557, %v7558
      %v7563 = vmul.u32 %v7557, %v7559
      %v7564 = vshll.u32 %v7561, 16
      %v7565 = vshrl.u32 %v7561, 16
      %v7566 = vshll.u32 %v7562, 16
      %v7567 = vshrl.u32 %v7562, 16
      %vm7568 = vc.u32 %v7560, %v7564
      %v7569 = vsel %vm7568, 1, 0
      %v7570 = vadd.s32 %v7560, %v7564
      %v7571 = vadd.s32 %v7563, %v7569
      %vm7572 = vc.u32 %v7570, %v7566
      %v7573 = vsel %vm7572, 1, 0
      %v7574 = vadd.s32 %v7570, %v7566
      %v7575 = vadd.s32 %v7571, %v7573
      %v7576 = vadd.s32 %v7575, %v7565
      %v7577 = vadd.s32 %v7576, %v7567
      %v7578 = vmul.u32 %v7533, %v7524
      %v7579 = vadd.s32 %v7555, %v7574
      %vm7580 = vc.u32 %v7555, %v7574
      %v7581 = vadd.s32 %v7577, 1
      %v7582 = vsel %vm7580, %v7581, %v7577
      %v7583 = vadd.s32 %v7578, %v7582
      %v7584 = vadd.s32 %v7583, 536870912
      %v7585 = vshrl.u32 %v7584, 30
      %v7586 = vshll.u32 %v7585, 30
      %v7587 = vsub.s32 %v7583, %v7586
      %vm7588 = vcmp.lt.s32.totalorder %v7587, 0
      %v7589 = vsub.s32 0, %v7587
      %v7590 = vsel %vm7588, %v7589, %v7587
      %v7591 = vclz %v7590
      %v7592 = vsub.s32 %v7591, 2
      %vm7593 = vcmp.gt.s32.totalorder 0, %v7592
      %v7594 = vsel %vm7593, 0, %v7592
      %v7595 = vsub.s32 32, %v7594
      %v7596 = vshll.u32 %v7587, %v7594
      %v7597 = vshrl.u32 %v7579, %v7595
      %v7598 = vor.u32 %v7596, %v7597
      %v7599 = vsub.s32 4294967266, %v7594
      %v7600 = vadd.s32 %v7599, 127
      %v7601 = vshll.u32 %v7600, 23
      %v7602 = vor.u32 4788187, %v7601
      %v7603 = vand.u32 2147483647, %v7602
      %v7605 = vcvt.s32.f32 %v7598
      %v7606 = vmul.f32 %v7605, %v7603
      %v7607 = vxor.u32 %v7606, 2147483648
      %v7608 = vsel %vm7487, %v7607, %v7606
      %v7609 = vsub.s32 4, %v7585
      %v7610 = vsel %vm7487, %v7609, %v7585
      %v7611 = vsel %vm7486, %v6403, %v7608
      %v7612 = vsel %vm7486, 0, %v7610
      %v7613 = vmul.f32 %v7611, %v7611
      %v7614 = vmul.f32 %v7613, -0.001358992
      %v7615 = vadd.f32 %v7614, 0.041655596
      %v7616 = vmul.f32 %v7613, %v7615
      %v7617 = vadd.f32 %v7616, -0.4999988
      %v7618 = vmul.f32 %v7613, %v7617
      %v7619 = vadd.f32 1.0, %v7618
      %v7620 = vmul.f32 %v7611, %v7611
      %v7621 = vmul.f32 %v7620, -0.00019511016
      %v7622 = vadd.f32 %v7621, 0.008332121
      %v7623 = vmul.f32 %v7620, %v7622
      %v7624 = vadd.f32 %v7623, -0.16666654
      %v7625 = vmul.f32 %v7620, %v7624
      %v7626 = vadd.f32 %v7625, 1.0
      %v7627 = vmul.f32 %v7626, %v7611
      %vm7628 = vweird.f32 %v6403
      %v7629 = vadd.s32 %v7612, 3
      %v7630 = vand.u32 %v7629, 3
      %vm7631 = vcmp.lt.s32.totalorder %v7630, 2
      %vm7632 = vcmp.eq.s32.totalorder %v7630, 0
      %v7633 = vxor.u32 %v7627, 2147483648
      %v7634 = vsel %vm7632, %v7619, %v7633
      %vm7635 = vcmp.eq.s32.totalorder %v7630, 2
      %v7636 = vxor.u32 %v7619, 2147483648
      %v7637 = vsel %vm7635, %v7636, %v7627
      %v7638 = vsel %vm7631, %v7634, %v7637
      %v7639 = vsel %vm7628, nan, %v7638
      %v7640 = vrcp.pop %v7174
      %v7641 = vmul.f32 %v7174, %v7640
      %v7642 = vsub.f32 1.0, %v7641
      %v7643 = vmul.f32 %v7640, %v7642
      %v7644 = vadd.f32 %v7640, %v7643
      %vm7645 = vweird.f32 %v7174
      %vm7646 = vweird.f32 %v7640
      %vm7647 = vmor %vm7645, %vm7646
      %v7648 = vsel %vm7647, %v7640, %v7644
      %v7649 = vand.u32 2147483647, %v7174
      %vm7650 = vcmp.eq.f32.partialorder %v7649, 8.507059e+37
      %v7651 = vand.u32 %v7174, 2147483648
      %v7652 = vor.u32 1.1754944e-38, %v7651
      %v7653 = vsel %vm7650, %v7652, %v7648
      %v7654 = vmul.f32 %v6557, %v7653
      %v7655 = vrcp.pop %v7329
      %v7656 = vmul.f32 %v7329, %v7655
      %v7657 = vsub.f32 1.0, %v7656
      %v7658 = vmul.f32 %v7655, %v7657
      %v7659 = vadd.f32 %v7655, %v7658
      %vm7660 = vweird.f32 %v7329
      %vm7661 = vweird.f32 %v7655
      %vm7662 = vmor %vm7660, %vm7661
      %v7663 = vsel %vm7662, %v7655, %v7659
      %v7664 = vand.u32 2147483647, %v7329
      %vm7665 = vcmp.eq.f32.partialorder %v7664, 8.507059e+37
      %v7666 = vand.u32 %v7329, 2147483648
      %v7667 = vor.u32 1.1754944e-38, %v7666
      %v7668 = vsel %vm7665, %v7667, %v7663
      %v7669 = vmul.f32 %v6711, %v7668
      %v7670 = vrcp.pop %v7484
      %v7671 = vmul.f32 %v7484, %v7670
      %v7672 = vsub.f32 1.0, %v7671
      %v7673 = vmul.f32 %v7670, %v7672
      %v7674 = vadd.f32 %v7670, %v7673
      %vm7675 = vweird.f32 %v7484
      %vm7676 = vweird.f32 %v7670
      %vm7677 = vmor %vm7675, %vm7676
      %v7678 = vsel %vm7677, %v7670, %v7674
      %v7679 = vand.u32 2147483647, %v7484
      %vm7680 = vcmp.eq.f32.partialorder %v7679, 8.507059e+37
      %v7681 = vand.u32 %v7484, 2147483648
      %v7682 = vor.u32 1.1754944e-38, %v7681
      %v7683 = vsel %vm7680, %v7682, %v7678
      %v7684 = vmul.f32 %v6865, %v7683
      %v7685 = vrcp.pop %v7639
      %v7686 = vmul.f32 %v7639, %v7685
      %v7687 = vsub.f32 1.0, %v7686
      %v7688 = vmul.f32 %v7685, %v7687
      %v7689 = vadd.f32 %v7685, %v7688
      %vm7690 = vweird.f32 %v7639
      %vm7691 = vweird.f32 %v7685
      %vm7692 = vmor %vm7690, %vm7691
      %v7693 = vsel %vm7692, %v7685, %v7689
      %v7694 = vand.u32 2147483647, %v7639
      %vm7695 = vcmp.eq.f32.partialorder %v7694, 8.507059e+37
      %v7696 = vand.u32 %v7639, 2147483648
      %v7697 = vor.u32 1.1754944e-38, %v7696
      %v7698 = vsel %vm7695, %v7697, %v7693
      %v7699 = vmul.f32 %v7019, %v7698
      %v7700 = vmul.f32 %v6392, 63.0
      %v7701 = vmul.f32 %v6393, 63.0
      %v7702 = vmul.f32 %v6394, 63.0
      %v7703 = vmul.f32 %v6395, 63.0
      %7705 = vset.pattern.permute.xlu0 2
      %7706 = vperm.xlu0 %7705, %v6392
      %v7707 = vpop.permute.xlu0 %7706
      %7710 = vset.pattern.permute.xlu0 2
      %7711 = vperm.xlu0 %7710, %v6393
      %v7712 = vpop.permute.xlu0 %7711
      %7715 = vset.pattern.permute.xlu0 2
      %7716 = vperm.xlu0 %7715, %v6394
      %v7717 = vpop.permute.xlu0 %7716
      %7720 = vset.pattern.permute.xlu0 2
      %7721 = vperm.xlu0 %7720, %v6395
      %v7722 = vpop.permute.xlu0 %7721
      %v7724 = vsub.f32 %v2751, %v7707
      %v7725 = vsub.f32 %v2751, %v7712
      %v7726 = vsub.f32 %v2751, %v7717
      %v7727 = vsub.f32 %v2751, %v7722
      %v7728 = vmul.f32 %v7724, 32.0
      %v7729 = vmul.f32 %v7725, 32.0
      %v7730 = vmul.f32 %v7726, 32.0
      %v7731 = vmul.f32 %v7727, 32.0
      %7733 = vset.pattern.permute.xlu0 4
      %7734 = vperm.xlu0 %7733, %v7654
      %v7735 = vpop.permute.xlu0 %7734
      %7738 = vset.pattern.permute.xlu0 4
      %7739 = vperm.xlu0 %7738, %v7669
      %v7740 = vpop.permute.xlu0 %7739
      %7743 = vset.pattern.permute.xlu0 4
      %7744 = vperm.xlu0 %7743, %v7684
      %v7745 = vpop.permute.xlu0 %7744
      %7748 = vset.pattern.permute.xlu0 4
      %7749 = vperm.xlu0 %7748, %v7699
      %v7750 = vpop.permute.xlu0 %7749
      %v7752 = vmul.f32 %v7728, %v7735
      %v7753 = vmul.f32 %v7729, %v7740
      %v7754 = vmul.f32 %v7730, %v7745
      %v7755 = vmul.f32 %v7731, %v7750
      %7757 = vset.pattern.permute.xlu0 3
      %7758 = vperm.xlu0 %7757, %v7700
      %v7759 = vpop.permute.xlu0 %7758
      %7762 = vset.pattern.permute.xlu0 3
      %7763 = vperm.xlu0 %7762, %v7701
      %v7764 = vpop.permute.xlu0 %7763
      %7767 = vset.pattern.permute.xlu0 3
      %7768 = vperm.xlu0 %7767, %v7702
      %v7769 = vpop.permute.xlu0 %7768
      %7772 = vset.pattern.permute.xlu0 3
      %7773 = vperm.xlu0 %7772, %v7703
      %v7774 = vpop.permute.xlu0 %7773
      %v7776 = vadd.f32 %v7759, %v7752
      %v7777 = vadd.f32 %v7764, %v7753
      %v7778 = vadd.f32 %v7769, %v7754
      %v7779 = vadd.f32 %v7774, %v7755
      %v7780 = vmul.f32 %v7776, 0.015873017
      %v7781 = vmul.f32 %v7777, 0.015873017
      %v7782 = vmul.f32 %v7778, 0.015873017
      %v7783 = vmul.f32 %v7779, 0.015873017
      %7788 = vrot.lane.b32.xlu0 %v6381, 122
      %v7789 = vpop.permute.xlu0 %7788
      %7790 = vrot.lane.b32.xlu0 %v6384, 122
      %v7791 = vpop.permute.xlu0 %7790
      %7792 = vrot.lane.b32.xlu0 %v6387, 122
      %v7793 = vpop.permute.xlu0 %7792
      %7794 = vrot.lane.b32.xlu0 %v6390, 122
      %v7795 = vpop.permute.xlu0 %7794
      %v7800 = vadd.f32 %v7780, %v7789
      %v7801 = vadd.f32 %v7781, %v7791
      %v7802 = vadd.f32 %v7782, %v7793
      %v7803 = vadd.f32 %v7783, %v7795
      %7808 = vrot.lane.b32.xlu0 %v7800, 6
      %v7809 = vpop.permute.xlu0 %7808
      %7810 = vrot.lane.b32.xlu0 %v7801, 6
      %v7811 = vpop.permute.xlu0 %7810
      %7812 = vrot.lane.b32.xlu0 %v7802, 6
      %v7813 = vpop.permute.xlu0 %7812
      %7814 = vrot.lane.b32.xlu0 %v7803, 6
      %v7815 = vpop.permute.xlu0 %7814
      %vm7820 = vcmask 15360
      %v7821 = vsel %vm7820, %v6381, %v6392
      %v7822 = vsel %vm7820, %v6384, %v6393
      %v7823 = vsel %vm7820, %v6387, %v6394
      %v7824 = vsel %vm7820, %v6390, %v6395
      %vm7825 = vcmask 23552
      %v7826 = vsel %vm7825, %v7821, %v6392
      %v7827 = vsel %vm7825, %v7822, %v6393
      %v7828 = vsel %vm7825, %v7823, %v6394
      %v7829 = vsel %vm7825, %v7824, %v6395
      %v7830 = vsel %vm663, %v7826, %v6392
      %v7831 = vsel %vm663, %v7827, %v6393
      %v7832 = vsel %vm663, %v7828, %v6394
      %v7833 = vsel %vm663, %v7829, %v6395
      %vm7834 = vcmask 39936
      %v7835 = vsel %vm7834, %v7830, %v6381
      %v7836 = vsel %vm7834, %v7831, %v6384
      %v7837 = vsel %vm7834, %v7832, %v6387
      %v7838 = vsel %vm7834, %v7833, %v6390
      %vm7839 = vcmask 48128
      %v7840 = vsel %vm7839, %v7835, %v7809
      %v7841 = vsel %vm7839, %v7836, %v7811
      %v7842 = vsel %vm7839, %v7837, %v7813
      %v7843 = vsel %vm7839, %v7838, %v7815
      %vm7844 = vcmask 113664
      %7845 = vst.msk [vmem:[%s399] sm:$0xff] %vm7844, %v7840
      %7846 = vst.msk [vmem:[%s399 + $0x8] sm:$0xff] %vm7844, %v7841
      %7847 = vst.msk [vmem:[%s399 + $0x10] sm:$0xff] %vm7844, %v7842
      %7848 = vst.msk [vmem:[%s399 + $0x18] sm:$0xff] %vm7844, %v7843
      %p7849 = scmp.lt.s32.totalorder %s19, 1
      %s7850 = scalar_select %p7849, %s19, 1
      %s7851 = smul.addr %s7850, 4
      %s7852 = smul.addr %s7851, 8
      %s7853 = scalar_lea.vmem %s8, %s7852
      // Predicated region
      $region53: #{tpu_custom_call.1} parent=51 // pred_check
        %p7854 = pneg %p235
      $region54: #{tpu_custom_call.1} parent=51 // pred_check_branch
        %7856 = sbr.rel (%p7854) target = $region56
      $region55: #{tpu_custom_call.1} parent=51 // pred_region
        _
      $region56: #{tpu_custom_call.1} parent=51 // pred_fallthru
        _
    $region52: #{tpu_custom_call.1} parent=5 // pred_fallthru
      _
    %p7857 = scmp.le.s32.totalorder 2, %s14
    // Predicated region
    $region57: #{tpu_custom_call.1} parent=5 // pred_check
      %p7858 = pneg %p7857
    $region58: #{tpu_custom_call.1} parent=5 // pred_check_branch
      %7860 = sbr.rel (%p7858) target = $region60
    $region59: #{tpu_custom_call.1} parent=5 // pred_region
      %s7861 = ssub.s32 %s14, 2
      // Predicated region
      $region61: #{tpu_custom_call.1} parent=59 // pred_check
        %p7862 = pneg %p241
      $region62: #{tpu_custom_call.1} parent=59 // pred_check_branch
        %7864 = sbr.rel (%p7862) target = $region64
      $region63: #{tpu_custom_call.1} parent=59 // pred_region
        %p7865 = scmp.lt.s32.totalorder %s20, 1
        %s7866 = scalar_select %p7865, %s20, 1
        %s7867 = smul.addr %s7866, 4
        %s7868 = smul.addr %s7867, 8
        %s7869 = scalar_lea.vmem %s8, %s7868
      $region64: #{tpu_custom_call.1} parent=59 // pred_fallthru
        _
    $region60: #{tpu_custom_call.1} parent=5 // pred_fallthru
      _
  $region6: #{tpu_custom_call.1} parent=0 // loop_footer
    %s18 = sadd.s32 1, %s14
  $region7: #{tpu_custom_call.1} parent=0 // loop_footer_branch
    %13 = sbr.rel target = $region3
  $region8: #{tpu_custom_call.1} parent=0 // loop_exit
    _

</llo_original>
